<compile_context>
chip_gen: v7x
topology: tpu7x:2x2x1
jax: 0.10.0
libtpu: 0.0.40
codegen_flags: <defaults>
</compile_context>

<pallas_src>
import jax
import jax.numpy as jnp
import numpy as np
from jax import lax
from jax.experimental import pallas as pl
from jax.experimental.pallas import tpu as pltpu


# ----------------------------------------------------------------------------
# Parameter init (PyTorch Linear convention: weight is (out_features, in_features))
# ----------------------------------------------------------------------------
def init_params(key, input_size, hidden_size, vocab_size):
    I, H, V = input_size, hidden_size, vocab_size
    ks = jax.random.split(key, 16)
    s = 0.1
    p = {
        # LSTMCell
        "w_ih": jax.random.normal(ks[0], (4 * H, I)) * s,
        "w_hh": jax.random.normal(ks[1], (4 * H, H)) * s,
        "b_lstm": jax.random.normal(ks[2], (4 * H,)) * s,   # bias_ih + bias_hh combined
        # Attention
        "w_enc": jax.random.normal(ks[3], (H, 2 * H)) * s,
        "w_dec": jax.random.normal(ks[4], (H, H)) * s,
        "w_cov": jax.random.normal(ks[5], (H, 1)) * s,
        "attn_b": jnp.zeros((1,), jnp.float32),
        "w_attnproj": jax.random.normal(ks[6], (1, H)) * s,
        # p_gen
        "w_pgen": jax.random.normal(ks[7], (1, 3 * H + I)) * s,
        "b_pgen": jax.random.normal(ks[8], (1,)) * s,
        # vocab_fc
        "w_v1": jax.random.normal(ks[9], (2 * H, 3 * H)) * s,
        "b_v1": jax.random.normal(ks[10], (2 * H,)) * s,
        "w_v2": jax.random.normal(ks[11], (V, 2 * H)) * s,
        "b_v2": jax.random.normal(ks[12], (V,)) * s,
    }
    return {k: v.astype(jnp.float32) for k, v in p.items()}


def _round_up(x, m):
    return ((x + m - 1) // m) * m


# ----------------------------------------------------------------------------
# Pallas kernel + wrapper
# ----------------------------------------------------------------------------
def decoder_pallas(params, article_ext, dec_inp, dec_tgt, enc_h, hn0, cn0,
                   p_extend, mask, lambda_, is_coverage=True, t_chunk=4):
    T, B, I = dec_inp.shape
    L = enc_h.shape[1]
    H = hn0.shape[-1]
    V = params["b_v2"].shape[-1]
    NE = p_extend.shape[-1]
    f32 = jnp.float32

    # ---- pad batch to a sublane multiple and time to a chunk multiple ----
    Bp = _round_up(max(B, 8), 8)
    Tc = t_chunk
    Tp = _round_up(T, Tc)

    dec_inp_p = jnp.pad(dec_inp.astype(f32), ((0, Tp - T), (0, Bp - B), (0, 0)))
    dec_tgt_p = jnp.pad(dec_tgt.astype(jnp.int32),
                        ((0, Tp - T), (0, Bp - B)))[:, :, None]     # (Tp, Bp, 1)
    article_p = jnp.pad(article_ext.astype(jnp.int32), ((0, Bp - B), (0, 0)))
    enc_h_p = jnp.pad(enc_h.astype(f32), ((0, Bp - B), (0, 0), (0, 0)))
    p_ext_p = jnp.pad(p_extend.astype(f32), ((0, Bp - B), (0, 0)))
    mask_p = jnp.pad(mask.astype(f32), ((0, Bp - B), (0, 0)))
    hn0_p = jnp.pad(hn0.astype(f32), ((0, Bp - B), (0, 0)))
    cn0_p = jnp.pad(cn0.astype(f32), ((0, Bp - B), (0, 0)))

    # ---- loop-invariant precomputation (hoisted out of the time loop) ----
    enc_proj_p = (jnp.einsum("bld,hd->blh", enc_h_p, params["w_enc"])
                  + params["attn_b"][0]).astype(f32)                 # (Bp, L, H)
    neg_mask_p = jnp.where(mask_p > 0, 0.0, -1e30).astype(f32)       # additive mask

    # ---- weight repacking ----
    # LSTM / attention kept in f32 (state carried over time; v5e elementwise f32)
    w_ih_t = params["w_ih"].T.astype(f32)            # (I, 4H)
    w_hh_t = params["w_hh"].T.astype(f32)            # (H, 4H)
    b_lstm = params["b_lstm"][None, :].astype(f32)   # (1, 4H)
    w_dec_t = params["w_dec"].T.astype(f32)          # (H, H)
    w_cov_r = params["w_cov"].reshape(1, H).astype(f32)
    w_ap_r = params["w_attnproj"].reshape(1, H).astype(f32)
    # fused [vocab_fc layer-1 | p_gen] matmul, bf16 operands, padded to 128 lanes
    NF = 2 * H + 1
    NP = _round_up(NF, 128)
    whf = jnp.concatenate([params["w_v1"][:, :2 * H].T,
                           params["w_pgen"][:, :2 * H].T], axis=1)    # (2H, 2H+1)
    wsf = jnp.concatenate([params["w_v1"][:, 2 * H:].T,
                           params["w_pgen"][:, 2 * H:3 * H].T], axis=1)  # (H, 2H+1)
    bfz = jnp.concatenate([params["b_v1"], params["b_pgen"]])[None, :]   # (1, 2H+1)
    whf = jnp.pad(whf, ((0, 0), (0, NP - NF))).astype(jnp.bfloat16)
    wsf = jnp.pad(wsf, ((0, 0), (0, NP - NF))).astype(jnp.bfloat16)
    bfz = jnp.pad(bfz, ((0, 0), (0, NP - NF))).astype(f32)
    w_pgx = params["w_pgen"][:, 3 * H:].astype(f32)                    # (1, I)
    # largest weight: vocab output matmul, bf16 operands / f32 accumulation
    w_v2_t = params["w_v2"].T.astype(jnp.bfloat16)                     # (2H, V)
    b_v2_r = params["b_v2"][None, :].astype(f32)                       # (1, V)

    def kernel(x_ref, y_ref, xext_ref, ench_ref, encp_ref, pext_ref, nmsk_ref,
               hn0_ref, cn0_ref,
               w_ih_ref, w_hh_ref, b_lstm_ref, w_dec_ref, w_cov_ref, w_ap_ref,
               whf_ref, wsf_ref, bfz_ref, w_pgx_ref, w_v2_ref, b_v2_ref,
               total_ref, loss_ref, covl_ref,
               hn_s, cn_s, cov_s, lacc_s, cacc_s, cnt_s):
        t = pl.program_id(0)

        @pl.when(t == 0)
        def _init():
            hn_s[...] = hn0_ref[...]
            cn_s[...] = cn0_ref[...]
            cov_s[...] = jnp.zeros_like(cov_s)
            lacc_s[...] = jnp.zeros_like(lacc_s)
            cacc_s[...] = jnp.zeros_like(cacc_s)
            cnt_s[...] = jnp.zeros_like(cnt_s)

        # loop-invariant loads (once per chunk of Tc timesteps)
        eh = ench_ref[...]         # (Bp, L, 2H)
        encp = encp_ref[...]       # (Bp, L, H)  (attn bias already folded in)
        nmsk = nmsk_ref[...]       # (Bp, L)     additive 0 / -1e30 mask
        xext = xext_ref[...]       # (Bp, L) int32
        pext = pext_ref[...]       # (Bp, NE)
        w_ih = w_ih_ref[...]
        w_hh = w_hh_ref[...]
        b_l = b_lstm_ref[...]
        w_dec = w_dec_ref[...]
        w_cov = w_cov_ref[...]
        w_ap = w_ap_ref[...]
        w_hf = whf_ref[...]
        w_sf = wsf_ref[...]
        b_f = bfz_ref[...]
        w_px = w_pgx_ref[...]
        w_v2 = w_v2_ref[...]
        b_v2 = b_v2_ref[...]

        vocab_ids = lax.broadcasted_iota(jnp.int32, (Bp, V), 1)
        ext_ids = lax.broadcasted_iota(jnp.int32, (Bp, NE), 1) + V

        def step(tc, carry):
            hn, cn, cov, lacc, cacc, cnt = carry
            x = x_ref[tc]            # (Bp, I)
            y_col = y_ref[tc]        # (Bp, 1) int32

            # ---------------- LSTMCell (f32) ----------------
            gates = (jnp.dot(x, w_ih, preferred_element_type=jnp.float32)
                     + jnp.dot(hn, w_hh, preferred_element_type=jnp.float32)
                     + b_l)
            i_g = jax.nn.sigmoid(gates[:, 0:H])
            f_g = jax.nn.sigmoid(gates[:, H:2 * H])
            g_g = jnp.tanh(gates[:, 2 * H:3 * H])
            o_g = jax.nn.sigmoid(gates[:, 3 * H:4 * H])
            cn = f_g * cn + i_g * g_g
            hn = o_g * jnp.tanh(cn)

            # ---------------- Attention ----------------
            dec_proj = jnp.dot(hn, w_dec, preferred_element_type=jnp.float32)
            proj_sum = encp + dec_proj[:, None, :]
            if is_coverage:
                proj_sum = proj_sum + cov[:, :, None] * w_cov
            tanh_sum = jnp.tanh(proj_sum)
            # attention energies on the VPU (lane reduce) -- no N=1 matmul
            e = jnp.sum(tanh_sum * w_ap, axis=-1) + nmsk          # (Bp, L)
            e_max = jnp.max(e, axis=-1, keepdims=True)
            e_exp = jnp.exp(e - e_max)
            a = e_exp * (1.0 / jnp.sum(e_exp, axis=-1, keepdims=True))
            h_star = jnp.sum(a[:, :, None] * eh, axis=1)          # (Bp, 2H)
            if is_coverage:
                covloss = jnp.sum(jnp.minimum(a, cov), axis=-1, keepdims=True)
                cov = cov + a

            # ---- fused [vocab_fc layer-1 | p_gen] matmul (bf16 MXU, f32 acc) ----
            z = (jnp.dot(h_star.astype(jnp.bfloat16), w_hf,
                         preferred_element_type=jnp.float32)
                 + jnp.dot(hn.astype(jnp.bfloat16), w_sf,
                           preferred_element_type=jnp.float32)
                 + b_f)                                           # (Bp, NP)
            z1 = z[:, :2 * H]
            pg_x = jnp.sum(x * w_px, axis=-1, keepdims=True)      # VPU x-term
            p_gen = jax.nn.sigmoid(z[:, 2 * H:2 * H + 1] + pg_x)  # (Bp, 1)

            # ---- vocab logits: only entry y[b] of the softmax is consumed ----
            logits = jnp.dot(z1.astype(jnp.bfloat16), w_v2,
                             preferred_element_type=jnp.float32) + b_v2
            lmax = jnp.max(logits, axis=-1, keepdims=True)
            lexp = jnp.exp(logits - lmax)
            denom = jnp.sum(lexp, axis=-1, keepdims=True)
            lexp_y = jnp.sum(jnp.where(vocab_ids == y_col, lexp, 0.0),
                             axis=-1, keepdims=True)
            p_from_vocab = p_gen * lexp_y / denom

            # p_star[b] == (cat([p_vocab*p_gen, p_extend])
            #                .scatter_add_(1, x_ext, a*(1-p_gen)))[b, y[b]]
            p_from_ext = jnp.sum(jnp.where(ext_ids == y_col, pext, 0.0),
                                 axis=-1, keepdims=True)
            copy_mass = jnp.sum(jnp.where(xext == y_col, a, 0.0),
                                axis=-1, keepdims=True) * (1.0 - p_gen)
            p_star = p_from_vocab + p_from_ext + copy_mass        # (Bp, 1)

            lbl = (y_col != 0).astype(jnp.float32)
            lacc = lacc + jnp.log(p_star + 1e-30) * lbl
            if is_coverage:
                cacc = cacc + covloss * lbl
            cnt = cnt + lbl
            return (hn, cn, cov, lacc, cacc, cnt)

        carry0 = (hn_s[...], cn_s[...], cov_s[...],
                  lacc_s[...], cacc_s[...], cnt_s[...])
        hn, cn, cov, lacc, cacc, cnt = lax.fori_loop(0, Tc, step, carry0,
                                                     unroll=True)
        hn_s[...] = hn
        cn_s[...] = cn
        cov_s[...] = cov
        lacc_s[...] = lacc
        cacc_s[...] = cacc
        cnt_s[...] = cnt

        @pl.when(t == pl.num_programs(0) - 1)
        def _fin():
            cnt_safe = jnp.maximum(cnt_s[...], 1.0)   # guard 0/0 on padded rows
            nll = -lacc_s[...] / cnt_safe
            loss_ref[...] = nll
            if is_coverage:
                cl = lambda_ * cacc_s[...] / cnt_safe
                covl_ref[...] = cl
                total_ref[...] = nll + cl
            else:
                covl_ref[...] = jnp.zeros_like(covl_ref)
                total_ref[...] = nll

    def full(shape):
        nd = len(shape)
        return pl.BlockSpec(shape, lambda t, nd=nd: (0,) * nd)

    in_specs = [
        pl.BlockSpec((Tc, Bp, I), lambda t: (t, 0, 0)),   # dec_inp chunk
        pl.BlockSpec((Tc, Bp, 1), lambda t: (t, 0, 0)),   # dec_tgt chunk
        full((Bp, L)), full((Bp, L, 2 * H)), full((Bp, L, H)),
        full((Bp, NE)), full((Bp, L)),
        full((Bp, H)), full((Bp, H)),
        full((I, 4 * H)), full((H, 4 * H)), full((1, 4 * H)),
        full((H, H)), full((1, H)), full((1, H)),
        full((2 * H, NP)), full((H, NP)), full((1, NP)), full((1, I)),
        full((2 * H, V)), full((1, V)),
    ]
    out_specs = [full((Bp, 1))] * 3
    out_shape = [jax.ShapeDtypeStruct((Bp, 1), jnp.float32)] * 3
    scratch = [pltpu.VMEM((Bp, H), jnp.float32), pltpu.VMEM((Bp, H), jnp.float32),
               pltpu.VMEM((Bp, L), jnp.float32), pltpu.VMEM((Bp, 1), jnp.float32),
               pltpu.VMEM((Bp, 1), jnp.float32), pltpu.VMEM((Bp, 1), jnp.float32)]

    fn = pl.pallas_call(
        kernel,
        out_shape=out_shape,
        grid_spec=pltpu.PrefetchScalarGridSpec(
            num_scalar_prefetch=0, grid=(Tp // Tc,),
            in_specs=in_specs, out_specs=out_specs, scratch_shapes=scratch),
        compiler_params=pltpu.CompilerParams(
            dimension_semantics=("arbitrary",),
            vmem_limit_bytes=32 * 1024 * 1024),
    )

    inputs = [
        dec_inp_p, dec_tgt_p, article_p, enc_h_p, enc_proj_p, p_ext_p, neg_mask_p,
        hn0_p, cn0_p,
        w_ih_t, w_hh_t, b_lstm,
        w_dec_t, w_cov_r, w_ap_r,
        whf, wsf, bfz, w_pgx,
        w_v2_t, b_v2_r,
    ]
    total, loss, covl = fn(*inputs)
    if is_coverage:
        return total[:B, 0], loss[:B, 0], covl[:B, 0]
    return (loss[:B, 0],)


# ----------------------------------------------------------------------------
# Pure-JAX reference (faithful to the PyTorch forward, incl. scatter_add_)
# ----------------------------------------------------------------------------
def decoder_reference(params, article_ext, dec_inp, dec_tgt, enc_h, hn, cn,
                      p_extend, mask, lambda_, is_coverage=True):
    T, B, _ = dec_inp.shape
    H = hn.shape[-1]
    cov = jnp.zeros_like(mask) if is_coverage else None
    Ps, Cls = [], []
    for t in range(T):
        x, y = dec_inp[t], dec_tgt[t]
        gates = x @ params["w_ih"].T + hn @ params["w_hh"].T + params["b_lstm"]
        i = jax.nn.sigmoid(gates[:, :H]); f = jax.nn.sigmoid(gates[:, H:2 * H])
        g = jnp.tanh(gates[:, 2 * H:3 * H]); o = jax.nn.sigmoid(gates[:, 3 * H:])
        cn = f * cn + i * g
        hn = o * jnp.tanh(cn)
        proj_sum = enc_h @ params["w_enc"].T + (hn @ params["w_dec"].T)[:, None, :]
        if is_coverage:
            proj_sum = proj_sum + cov[:, :, None] * params["w_cov"][:, 0][None, None, :]
        e = (jnp.tanh(proj_sum + params["attn_b"]) @ params["w_attnproj"].T)[:, :, 0]
        e = jnp.where(mask > 0, e, -1e30)
        a = jax.nn.softmax(e, axis=-1)
        if is_coverage:
            Cls.append(jnp.minimum(a, cov).sum(-1))
            h_star = jnp.einsum("bl,bld->bd", a, enc_h)
            cov = cov + a
        else:
            h_star = jnp.einsum("bl,bld->bd", a, enc_h)
        p_gen = jax.nn.sigmoid(jnp.concatenate([h_star, hn, x], -1) @ params["w_pgen"].T
                               + params["b_pgen"])
        z1 = jnp.concatenate([h_star, hn], -1) @ params["w_v1"].T + params["b_v1"]
        logits = z1 @ params["w_v2"].T + params["b_v2"]
        p = jax.nn.softmax(logits, -1) * p_gen
        p = jnp.concatenate([p, p_extend], -1)
        add = a * (1.0 - p_gen)
        p = jax.vmap(lambda pp, idx, vv: pp.at[idx].add(vv))(p, article_ext, add)
        Ps.append(jnp.take_along_axis(p, y[:, None], axis=1)[:, 0])
    Ps = jnp.stack(Ps)
    label_mask = (dec_tgt != 0).astype(jnp.float32)
    loss = -(jnp.log(Ps + 1e-30) * label_mask).sum(0) / label_mask.sum(0)
    if is_coverage:
        Cls = jnp.stack(Cls)
        coverage_loss = (lambda_ * Cls * label_mask).sum(0) / label_mask.sum(0)
        return loss + coverage_loss, loss, coverage_loss
    return (loss,)


# ----------------------------------------------------------------------------
if __name__ == "__main__":
    key = jax.random.PRNGKey(0)
    B, T, I, H, V, L, NE = 2, 8, 8, 16, 32, 10, 6
    lambda_ = 1.0
    is_coverage = True

    kp, k1, k2, k3, k4, k5, k6, k7 = jax.random.split(key, 8)
    params = init_params(kp, I, H, V)

    article_ext = jax.random.randint(k1, (B, L), 0, V + NE, dtype=jnp.int32)
    dec_inp = jax.random.normal(k2, (T, B, I), jnp.float32)
    dec_tgt = jax.random.randint(k3, (T, B), 1, V + NE, dtype=jnp.int32)
    enc_h = jax.random.normal(k4, (B, L, 2 * H), jnp.float32)
    hn0 = 0.1 * jax.random.normal(k5, (B, H), jnp.float32)
    cn0 = 0.1 * jax.random.normal(k6, (B, H), jnp.float32)
    p_extend = 0.01 * jax.random.uniform(k7, (B, NE), jnp.float32)
    lens = jnp.array([L, 7])
    mask = (jnp.arange(L)[None, :] < lens[:, None]).astype(jnp.float32)

    out = decoder_pallas(params, article_ext, dec_inp, dec_tgt, enc_h, hn0, cn0,
                         p_extend, mask, lambda_, is_coverage, t_chunk=4)
    out = jax.block_until_ready(out)

    ref = decoder_reference(params, article_ext, dec_inp, dec_tgt, enc_h, hn0, cn0,
                            p_extend, mask, lambda_, is_coverage)
    # bf16 MXU operands on the vocab/p_gen matmuls -> loosened tolerance
    for o, r in zip(out, ref):
        np.testing.assert_allclose(np.asarray(o), np.asarray(r), rtol=3e-2, atol=3e-3)

    print("KERNEL_OK")
</pallas_src>

<mosaic_0001>
module attributes {stable_mosaic.version = 11 : i64} {
  func.func @kernel(%arg0: i32, %arg1: memref<4x8x8xf32, #tpu.memory_space<vmem>>, %arg2: memref<4x8x1xi32, #tpu.memory_space<vmem>>, %arg3: memref<8x10xi32, #tpu.memory_space<vmem>>, %arg4: memref<8x10x32xf32, #tpu.memory_space<vmem>>, %arg5: memref<8x10x16xf32, #tpu.memory_space<vmem>>, %arg6: memref<8x6xf32, #tpu.memory_space<vmem>>, %arg7: memref<8x10xf32, #tpu.memory_space<vmem>>, %arg8: memref<8x16xf32, #tpu.memory_space<vmem>>, %arg9: memref<8x16xf32, #tpu.memory_space<vmem>>, %arg10: memref<8x64xf32, #tpu.memory_space<vmem>>, %arg11: memref<16x64xf32, #tpu.memory_space<vmem>>, %arg12: memref<1x64xf32, #tpu.memory_space<vmem>>, %arg13: memref<16x16xf32, #tpu.memory_space<vmem>>, %arg14: memref<1x16xf32, #tpu.memory_space<vmem>>, %arg15: memref<1x16xf32, #tpu.memory_space<vmem>>, %arg16: memref<32x128xbf16, #tpu.memory_space<vmem>>, %arg17: memref<16x128xbf16, #tpu.memory_space<vmem>>, %arg18: memref<1x128xf32, #tpu.memory_space<vmem>>, %arg19: memref<1x8xf32, #tpu.memory_space<vmem>>, %arg20: memref<32x32xbf16, #tpu.memory_space<vmem>>, %arg21: memref<1x32xf32, #tpu.memory_space<vmem>>, %arg22: memref<8x1xf32, #tpu.memory_space<vmem>>, %arg23: memref<8x1xf32, #tpu.memory_space<vmem>>, %arg24: memref<8x1xf32, #tpu.memory_space<vmem>>, %arg25: memref<8x16xf32, #tpu.memory_space<vmem>>, %arg26: memref<8x16xf32, #tpu.memory_space<vmem>>, %arg27: memref<8x10xf32, #tpu.memory_space<vmem>>, %arg28: memref<8x1xf32, #tpu.memory_space<vmem>>, %arg29: memref<8x1xf32, #tpu.memory_space<vmem>>, %arg30: memref<8x1xf32, #tpu.memory_space<vmem>>) attributes {dimension_semantics = [#tpu.dimension_semantics<arbitrary>], iteration_bounds = array<i64: 2>, scalar_prefetch = 0 : i64, scratch_operands = 6 : i64, tpu.core_type = #tpu.core_type<tc>, window_params = [{transform_indices = @transform_0, window_bounds = array<i64: 4, 8, 8>}, {transform_indices = @transform_1, window_bounds = array<i64: 4, 8, 1>}, {pipeline_mode = #tpu.pipeline_mode<synchronous>, transform_indices = @transform_2, window_bounds = array<i64: 8, 10>}, {pipeline_mode = #tpu.pipeline_mode<synchronous>, transform_indices = @transform_3, window_bounds = array<i64: 8, 10, 32>}, {pipeline_mode = #tpu.pipeline_mode<synchronous>, transform_indices = @transform_4, window_bounds = array<i64: 8, 10, 16>}, {pipeline_mode = #tpu.pipeline_mode<synchronous>, transform_indices = @transform_5, window_bounds = array<i64: 8, 6>}, {pipeline_mode = #tpu.pipeline_mode<synchronous>, transform_indices = @transform_6, window_bounds = array<i64: 8, 10>}, {pipeline_mode = #tpu.pipeline_mode<synchronous>, transform_indices = @transform_7, window_bounds = array<i64: 8, 16>}, {pipeline_mode = #tpu.pipeline_mode<synchronous>, transform_indices = @transform_8, window_bounds = array<i64: 8, 16>}, {pipeline_mode = #tpu.pipeline_mode<synchronous>, transform_indices = @transform_9, window_bounds = array<i64: 8, 64>}, {pipeline_mode = #tpu.pipeline_mode<synchronous>, transform_indices = @transform_10, window_bounds = array<i64: 16, 64>}, {pipeline_mode = #tpu.pipeline_mode<synchronous>, transform_indices = @transform_11, window_bounds = array<i64: 1, 64>}, {pipeline_mode = #tpu.pipeline_mode<synchronous>, transform_indices = @transform_12, window_bounds = array<i64: 16, 16>}, {pipeline_mode = #tpu.pipeline_mode<synchronous>, transform_indices = @transform_13, window_bounds = array<i64: 1, 16>}, {pipeline_mode = #tpu.pipeline_mode<synchronous>, transform_indices = @transform_14, window_bounds = array<i64: 1, 16>}, {pipeline_mode = #tpu.pipeline_mode<synchronous>, transform_indices = @transform_15, window_bounds = array<i64: 32, 128>}, {pipeline_mode = #tpu.pipeline_mode<synchronous>, transform_indices = @transform_16, window_bounds = array<i64: 16, 128>}, {pipeline_mode = #tpu.pipeline_mode<synchronous>, transform_indices = @transform_17, window_bounds = array<i64: 1, 128>}, {pipeline_mode = #tpu.pipeline_mode<synchronous>, transform_indices = @transform_18, window_bounds = array<i64: 1, 8>}, {pipeline_mode = #tpu.pipeline_mode<synchronous>, transform_indices = @transform_19, window_bounds = array<i64: 32, 32>}, {pipeline_mode = #tpu.pipeline_mode<synchronous>, transform_indices = @transform_20, window_bounds = array<i64: 1, 32>}, {pipeline_mode = #tpu.pipeline_mode<synchronous>, transform_indices = @transform_21, window_bounds = array<i64: 8, 1>}, {pipeline_mode = #tpu.pipeline_mode<synchronous>, transform_indices = @transform_22, window_bounds = array<i64: 8, 1>}, {pipeline_mode = #tpu.pipeline_mode<synchronous>, transform_indices = @transform_23, window_bounds = array<i64: 8, 1>}]} {
    %c0_i32 = arith.constant 0 : i32
    %0 = arith.cmpi eq, %arg0, %c0_i32 : i32
    %1 = arith.extui %0 : i1 to i32
    %c0_i32_0 = arith.constant 0 : i32
    %2 = arith.cmpi ne, %1, %c0_i32_0 : i32
    scf.if %2 {
      %c0_190 = arith.constant 0 : index
      %c0_191 = arith.constant 0 : index
      %591 = vector.load %arg8[%c0_190, %c0_191] : memref<8x16xf32, #tpu.memory_space<vmem>>, vector<8x16xf32>
      %c0_192 = arith.constant 0 : index
      %c0_193 = arith.constant 0 : index
      %592 = vector.load %arg25[%c0_192, %c0_193] : memref<8x16xf32, #tpu.memory_space<vmem>>, vector<8x16xf32>
      tpu.vector_store %arg25[%c0_192, %c0_193], %591 {strides = array<i32>} : memref<8x16xf32, #tpu.memory_space<vmem>>, vector<8x16xf32>,
      %c0_194 = arith.constant 0 : index
      %c0_195 = arith.constant 0 : index
      %593 = vector.load %arg9[%c0_194, %c0_195] : memref<8x16xf32, #tpu.memory_space<vmem>>, vector<8x16xf32>
      %c0_196 = arith.constant 0 : index
      %c0_197 = arith.constant 0 : index
      %594 = vector.load %arg26[%c0_196, %c0_197] : memref<8x16xf32, #tpu.memory_space<vmem>>, vector<8x16xf32>
      tpu.vector_store %arg26[%c0_196, %c0_197], %593 {strides = array<i32>} : memref<8x16xf32, #tpu.memory_space<vmem>>, vector<8x16xf32>,
      %cst_198 = arith.constant 0.000000e+00 : f32
      %595 = vector.broadcast %cst_198 : f32 to vector<8x10xf32>
      %c0_199 = arith.constant 0 : index
      %c0_200 = arith.constant 0 : index
      %596 = vector.load %arg27[%c0_199, %c0_200] : memref<8x10xf32, #tpu.memory_space<vmem>>, vector<8x10xf32>
      tpu.vector_store %arg27[%c0_199, %c0_200], %595 {strides = array<i32>} : memref<8x10xf32, #tpu.memory_space<vmem>>, vector<8x10xf32>,
      %cst_201 = arith.constant 0.000000e+00 : f32
      %597 = vector.broadcast %cst_201 : f32 to vector<8x1xf32>
      %c0_202 = arith.constant 0 : index
      %c0_203 = arith.constant 0 : index
      %598 = vector.load %arg28[%c0_202, %c0_203] : memref<8x1xf32, #tpu.memory_space<vmem>>, vector<8x1xf32>
      tpu.vector_store %arg28[%c0_202, %c0_203], %597 {strides = array<i32>} : memref<8x1xf32, #tpu.memory_space<vmem>>, vector<8x1xf32>,
      %cst_204 = arith.constant 0.000000e+00 : f32
      %599 = vector.broadcast %cst_204 : f32 to vector<8x1xf32>
      %c0_205 = arith.constant 0 : index
      %c0_206 = arith.constant 0 : index
      %600 = vector.load %arg29[%c0_205, %c0_206] : memref<8x1xf32, #tpu.memory_space<vmem>>, vector<8x1xf32>
      tpu.vector_store %arg29[%c0_205, %c0_206], %599 {strides = array<i32>} : memref<8x1xf32, #tpu.memory_space<vmem>>, vector<8x1xf32>,
      %cst_207 = arith.constant 0.000000e+00 : f32
      %601 = vector.broadcast %cst_207 : f32 to vector<8x1xf32>
      %c0_208 = arith.constant 0 : index
      %c0_209 = arith.constant 0 : index
      %602 = vector.load %arg30[%c0_208, %c0_209] : memref<8x1xf32, #tpu.memory_space<vmem>>, vector<8x1xf32>
      tpu.vector_store %arg30[%c0_208, %c0_209], %601 {strides = array<i32>} : memref<8x1xf32, #tpu.memory_space<vmem>>, vector<8x1xf32>,
    } else {
    }
    %c0 = arith.constant 0 : index
    %c0_1 = arith.constant 0 : index
    %c0_2 = arith.constant 0 : index
    %3 = vector.load %arg4[%c0, %c0_1, %c0_2] : memref<8x10x32xf32, #tpu.memory_space<vmem>>, vector<8x10x32xf32>
    %c0_3 = arith.constant 0 : index
    %c0_4 = arith.constant 0 : index
    %c0_5 = arith.constant 0 : index
    %4 = vector.load %arg5[%c0_3, %c0_4, %c0_5] : memref<8x10x16xf32, #tpu.memory_space<vmem>>, vector<8x10x16xf32>
    %c0_6 = arith.constant 0 : index
    %c0_7 = arith.constant 0 : index
    %5 = vector.load %arg7[%c0_6, %c0_7] : memref<8x10xf32, #tpu.memory_space<vmem>>, vector<8x10xf32>
    %c0_8 = arith.constant 0 : index
    %c0_9 = arith.constant 0 : index
    %6 = vector.load %arg3[%c0_8, %c0_9] : memref<8x10xi32, #tpu.memory_space<vmem>>, vector<8x10xi32>
    %c0_10 = arith.constant 0 : index
    %c0_11 = arith.constant 0 : index
    %7 = vector.load %arg6[%c0_10, %c0_11] : memref<8x6xf32, #tpu.memory_space<vmem>>, vector<8x6xf32>
    %c0_12 = arith.constant 0 : index
    %c0_13 = arith.constant 0 : index
    %8 = vector.load %arg10[%c0_12, %c0_13] : memref<8x64xf32, #tpu.memory_space<vmem>>, vector<8x64xf32>
    %c0_14 = arith.constant 0 : index
    %c0_15 = arith.constant 0 : index
    %9 = vector.load %arg11[%c0_14, %c0_15] : memref<16x64xf32, #tpu.memory_space<vmem>>, vector<16x64xf32>
    %c0_16 = arith.constant 0 : index
    %c0_17 = arith.constant 0 : index
    %10 = vector.load %arg12[%c0_16, %c0_17] : memref<1x64xf32, #tpu.memory_space<vmem>>, vector<1x64xf32>
    %c0_18 = arith.constant 0 : index
    %c0_19 = arith.constant 0 : index
    %11 = vector.load %arg13[%c0_18, %c0_19] : memref<16x16xf32, #tpu.memory_space<vmem>>, vector<16x16xf32>
    %c0_20 = arith.constant 0 : index
    %c0_21 = arith.constant 0 : index
    %12 = vector.load %arg14[%c0_20, %c0_21] : memref<1x16xf32, #tpu.memory_space<vmem>>, vector<1x16xf32>
    %c0_22 = arith.constant 0 : index
    %c0_23 = arith.constant 0 : index
    %13 = vector.load %arg15[%c0_22, %c0_23] : memref<1x16xf32, #tpu.memory_space<vmem>>, vector<1x16xf32>
    %c0_24 = arith.constant 0 : index
    %c0_25 = arith.constant 0 : index
    %14 = vector.load %arg16[%c0_24, %c0_25] : memref<32x128xbf16, #tpu.memory_space<vmem>>, vector<32x128xbf16>
    %c0_26 = arith.constant 0 : index
    %c0_27 = arith.constant 0 : index
    %15 = vector.load %arg17[%c0_26, %c0_27] : memref<16x128xbf16, #tpu.memory_space<vmem>>, vector<16x128xbf16>
    %c0_28 = arith.constant 0 : index
    %c0_29 = arith.constant 0 : index
    %16 = vector.load %arg18[%c0_28, %c0_29] : memref<1x128xf32, #tpu.memory_space<vmem>>, vector<1x128xf32>
    %c0_30 = arith.constant 0 : index
    %c0_31 = arith.constant 0 : index
    %17 = vector.load %arg19[%c0_30, %c0_31] : memref<1x8xf32, #tpu.memory_space<vmem>>, vector<1x8xf32>
    %c0_32 = arith.constant 0 : index
    %c0_33 = arith.constant 0 : index
    %18 = vector.load %arg20[%c0_32, %c0_33] : memref<32x32xbf16, #tpu.memory_space<vmem>>, vector<32x32xbf16>
    %c0_34 = arith.constant 0 : index
    %c0_35 = arith.constant 0 : index
    %19 = vector.load %arg21[%c0_34, %c0_35] : memref<1x32xf32, #tpu.memory_space<vmem>>, vector<1x32xf32>
    %20 = tpu.iota {dimensions = array<i32: 1>} : vector<8x32xi32>
    %21 = tpu.iota {dimensions = array<i32: 1>} : vector<8x6xi32>
    %c32_i32 = arith.constant 32 : i32
    %22 = vector.broadcast %c32_i32 : i32 to vector<8x6xi32>
    %23 = arith.addi %21, %22 : vector<8x6xi32>
    %c0_36 = arith.constant 0 : index
    %c0_37 = arith.constant 0 : index
    %24 = vector.load %arg25[%c0_36, %c0_37] : memref<8x16xf32, #tpu.memory_space<vmem>>, vector<8x16xf32>
    %c0_38 = arith.constant 0 : index
    %c0_39 = arith.constant 0 : index
    %25 = vector.load %arg26[%c0_38, %c0_39] : memref<8x16xf32, #tpu.memory_space<vmem>>, vector<8x16xf32>
    %c0_40 = arith.constant 0 : index
    %c0_41 = arith.constant 0 : index
    %26 = vector.load %arg27[%c0_40, %c0_41] : memref<8x10xf32, #tpu.memory_space<vmem>>, vector<8x10xf32>
    %c0_42 = arith.constant 0 : index
    %c0_43 = arith.constant 0 : index
    %27 = vector.load %arg28[%c0_42, %c0_43] : memref<8x1xf32, #tpu.memory_space<vmem>>, vector<8x1xf32>
    %c0_44 = arith.constant 0 : index
    %c0_45 = arith.constant 0 : index
    %28 = vector.load %arg29[%c0_44, %c0_45] : memref<8x1xf32, #tpu.memory_space<vmem>>, vector<8x1xf32>
    %c0_46 = arith.constant 0 : index
    %c0_47 = arith.constant 0 : index
    %29 = vector.load %arg30[%c0_46, %c0_47] : memref<8x1xf32, #tpu.memory_space<vmem>>, vector<8x1xf32>
    %c0_i32_48 = arith.constant 0 : i32
    %30 = arith.index_cast %c0_i32_48 : i32 to index
    %c0_49 = arith.constant 0 : index
    %c0_50 = arith.constant 0 : index
    %31 = vector.load %arg1[%30, %c0_49, %c0_50] : memref<4x8x8xf32, #tpu.memory_space<vmem>>, vector<1x8x8xf32>
    %32 = vector.shape_cast %31 : vector<1x8x8xf32> to vector<8x8xf32>
    %33 = arith.index_cast %c0_i32_48 : i32 to index
    %c0_51 = arith.constant 0 : index
    %c0_52 = arith.constant 0 : index
    %34 = vector.load %arg2[%33, %c0_51, %c0_52] : memref<4x8x1xi32, #tpu.memory_space<vmem>>, vector<1x8x1xi32>
    %35 = vector.shape_cast %34 : vector<1x8x1xi32> to vector<8x1xi32>
    %cst = arith.constant dense<0.000000e+00> : vector<8x64xf32>
    %36 = tpu.matmul %32, %8, %cst {dimension_numbers = #tpu.dot_dimension_numbers<[1], [0], [0], [1], [0, 0, 1, 1], [], []>} : vector<8x8xf32>, vector<8x64xf32>, vector<8x64xf32> -> vector<8x64xf32>
    %cst_53 = arith.constant dense<0.000000e+00> : vector<8x64xf32>
    %37 = tpu.matmul %24, %9, %cst_53 {dimension_numbers = #tpu.dot_dimension_numbers<[1], [0], [0], [1], [0, 0, 1, 1], [], []>} : vector<8x16xf32>, vector<16x64xf32>, vector<8x64xf32> -> vector<8x64xf32>
    %38 = arith.addf %36, %37 : vector<8x64xf32>
    %39 = vector.broadcast %10 : vector<1x64xf32> to vector<8x64xf32>
    %40 = arith.addf %38, %39 : vector<8x64xf32>
    %41 = vector.extract_strided_slice %40 {offsets = [0, 0], sizes = [8, 16], strides = [1, 1]} : vector<8x64xf32> to vector<8x16xf32>
    %42 = arith.negf %41 : vector<8x16xf32>
    %43 = math.exp %42 : vector<8x16xf32>
    %cst_54 = arith.constant 1.000000e+00 : f32
    %44 = vector.broadcast %cst_54 : f32 to vector<8x16xf32>
    %45 = arith.addf %44, %43 : vector<8x16xf32>
    %46 = arith.divf %44, %45 : vector<8x16xf32>
    %47 = vector.extract_strided_slice %40 {offsets = [0, 16], sizes = [8, 16], strides = [1, 1]} : vector<8x64xf32> to vector<8x16xf32>
    %48 = arith.negf %47 : vector<8x16xf32>
    %49 = math.exp %48 : vector<8x16xf32>
    %cst_55 = arith.constant 1.000000e+00 : f32
    %50 = vector.broadcast %cst_55 : f32 to vector<8x16xf32>
    %51 = arith.addf %50, %49 : vector<8x16xf32>
    %52 = arith.divf %50, %51 : vector<8x16xf32>
    %53 = vector.extract_strided_slice %40 {offsets = [0, 32], sizes = [8, 16], strides = [1, 1]} : vector<8x64xf32> to vector<8x16xf32>
    %54 = math.tanh %53 : vector<8x16xf32>
    %55 = vector.extract_strided_slice %40 {offsets = [0, 48], sizes = [8, 16], strides = [1, 1]} : vector<8x64xf32> to vector<8x16xf32>
    %56 = arith.negf %55 : vector<8x16xf32>
    %57 = math.exp %56 : vector<8x16xf32>
    %cst_56 = arith.constant 1.000000e+00 : f32
    %58 = vector.broadcast %cst_56 : f32 to vector<8x16xf32>
    %59 = arith.addf %58, %57 : vector<8x16xf32>
    %60 = arith.divf %58, %59 : vector<8x16xf32>
    %61 = arith.mulf %52, %25 : vector<8x16xf32>
    %62 = arith.mulf %46, %54 : vector<8x16xf32>
    %63 = arith.addf %61, %62 : vector<8x16xf32>
    %64 = math.tanh %63 : vector<8x16xf32>
    %65 = arith.mulf %60, %64 : vector<8x16xf32>
    %cst_57 = arith.constant dense<0.000000e+00> : vector<8x16xf32>
    %66 = tpu.matmul %65, %11, %cst_57 {dimension_numbers = #tpu.dot_dimension_numbers<[1], [0], [0], [1], [0, 0, 1, 1], [], []>} : vector<8x16xf32>, vector<16x16xf32>, vector<8x16xf32> -> vector<8x16xf32>
    %67 = vector.shape_cast %66 : vector<8x16xf32> to vector<8x1x16xf32>
    %68 = vector.broadcast %67 : vector<8x1x16xf32> to vector<8x10x16xf32>
    %69 = arith.addf %4, %68 : vector<8x10x16xf32>
    %70 = vector.shape_cast %26 : vector<8x10xf32> to vector<8x10x1xf32>
    %71 = vector.shape_cast %12 : vector<1x16xf32> to vector<1x1x16xf32>
    %72 = vector.broadcast %70 : vector<8x10x1xf32> to vector<8x10x16xf32>
    %73 = vector.broadcast %71 : vector<1x1x16xf32> to vector<8x10x16xf32>
    %74 = arith.mulf %72, %73 : vector<8x10x16xf32>
    %75 = arith.addf %69, %74 : vector<8x10x16xf32>
    %76 = math.tanh %75 : vector<8x10x16xf32>
    %77 = vector.shape_cast %13 : vector<1x16xf32> to vector<1x1x16xf32>
    %78 = vector.broadcast %77 : vector<1x1x16xf32> to vector<8x10x16xf32>
    %79 = arith.mulf %76, %78 : vector<8x10x16xf32>
    %cst_58 = arith.constant dense<0.000000e+00> : vector<8x10xf32>
    %80 = vector.multi_reduction <add>, %79, %cst_58 [2] : vector<8x10x16xf32> to vector<8x10xf32>
    %81 = arith.addf %80, %5 : vector<8x10xf32>
    %cst_59 = arith.constant dense<0xFF800000> : vector<8xf32>
    %82 = vector.multi_reduction <maximumf>, %81, %cst_59 [1] : vector<8x10xf32> to vector<8xf32>
    %83 = vector.shape_cast %82 : vector<8xf32> to vector<8x1xf32>
    %84 = vector.broadcast %83 : vector<8x1xf32> to vector<8x10xf32>
    %85 = arith.subf %81, %84 : vector<8x10xf32>
    %86 = math.exp %85 : vector<8x10xf32>
    %cst_60 = arith.constant dense<0.000000e+00> : vector<8xf32>
    %87 = vector.multi_reduction <add>, %86, %cst_60 [1] : vector<8x10xf32> to vector<8xf32>
    %88 = vector.shape_cast %87 : vector<8xf32> to vector<8x1xf32>
    %cst_61 = arith.constant 1.000000e+00 : f32
    %89 = vector.broadcast %cst_61 : f32 to vector<8x1xf32>
    %90 = arith.divf %89, %88 : vector<8x1xf32>
    %91 = vector.broadcast %90 : vector<8x1xf32> to vector<8x10xf32>
    %92 = arith.mulf %86, %91 : vector<8x10xf32>
    %93 = vector.shape_cast %92 : vector<8x10xf32> to vector<8x10x1xf32>
    %94 = vector.broadcast %93 : vector<8x10x1xf32> to vector<8x10x32xf32>
    %95 = arith.mulf %94, %3 : vector<8x10x32xf32>
    %cst_62 = arith.constant dense<0.000000e+00> : vector<8x32xf32>
    %96 = vector.multi_reduction <add>, %95, %cst_62 [1] : vector<8x10x32xf32> to vector<8x32xf32>
    %97 = arith.minimumf %92, %26 : vector<8x10xf32>
    %cst_63 = arith.constant dense<0.000000e+00> : vector<8xf32>
    %98 = vector.multi_reduction <add>, %97, %cst_63 [1] : vector<8x10xf32> to vector<8xf32>
    %99 = vector.shape_cast %98 : vector<8xf32> to vector<8x1xf32>
    %100 = arith.addf %26, %92 : vector<8x10xf32>
    %101 = arith.truncf %96 : vector<8x32xf32> to vector<8x32xbf16>
    %cst_64 = arith.constant dense<0.000000e+00> : vector<8x128xf32>
    %102 = tpu.matmul %101, %14, %cst_64 {dimension_numbers = #tpu.dot_dimension_numbers<[1], [0], [0], [1], [0, 0, 1, 1], [], []>} : vector<8x32xbf16>, vector<32x128xbf16>, vector<8x128xf32> -> vector<8x128xf32>
    %103 = arith.truncf %65 : vector<8x16xf32> to vector<8x16xbf16>
    %cst_65 = arith.constant dense<0.000000e+00> : vector<8x128xf32>
    %104 = tpu.matmul %103, %15, %cst_65 {dimension_numbers = #tpu.dot_dimension_numbers<[1], [0], [0], [1], [0, 0, 1, 1], [], []>} : vector<8x16xbf16>, vector<16x128xbf16>, vector<8x128xf32> -> vector<8x128xf32>
    %105 = arith.addf %102, %104 : vector<8x128xf32>
    %106 = vector.broadcast %16 : vector<1x128xf32> to vector<8x128xf32>
    %107 = arith.addf %105, %106 : vector<8x128xf32>
    %108 = vector.extract_strided_slice %107 {offsets = [0, 0], sizes = [8, 32], strides = [1, 1]} : vector<8x128xf32> to vector<8x32xf32>
    %109 = vector.broadcast %17 : vector<1x8xf32> to vector<8x8xf32>
    %110 = arith.mulf %32, %109 : vector<8x8xf32>
    %cst_66 = arith.constant dense<0.000000e+00> : vector<8xf32>
    %111 = vector.multi_reduction <add>, %110, %cst_66 [1] : vector<8x8xf32> to vector<8xf32>
    %112 = vector.shape_cast %111 : vector<8xf32> to vector<8x1xf32>
    %113 = vector.extract_strided_slice %107 {offsets = [0, 32], sizes = [8, 1], strides = [1, 1]} : vector<8x128xf32> to vector<8x1xf32>
    %114 = arith.addf %113, %112 : vector<8x1xf32>
    %115 = arith.negf %114 : vector<8x1xf32>
    %116 = math.exp %115 : vector<8x1xf32>
    %cst_67 = arith.constant 1.000000e+00 : f32
    %117 = vector.broadcast %cst_67 : f32 to vector<8x1xf32>
    %118 = arith.addf %117, %116 : vector<8x1xf32>
    %119 = arith.divf %117, %118 : vector<8x1xf32>
    %120 = arith.truncf %108 : vector<8x32xf32> to vector<8x32xbf16>
    %cst_68 = arith.constant dense<0.000000e+00> : vector<8x32xf32>
    %121 = tpu.matmul %120, %18, %cst_68 {dimension_numbers = #tpu.dot_dimension_numbers<[1], [0], [0], [1], [0, 0, 1, 1], [], []>} : vector<8x32xbf16>, vector<32x32xbf16>, vector<8x32xf32> -> vector<8x32xf32>
    %122 = vector.broadcast %19 : vector<1x32xf32> to vector<8x32xf32>
    %123 = arith.addf %121, %122 : vector<8x32xf32>
    %cst_69 = arith.constant dense<0xFF800000> : vector<8xf32>
    %124 = vector.multi_reduction <maximumf>, %123, %cst_69 [1] : vector<8x32xf32> to vector<8xf32>
    %125 = vector.shape_cast %124 : vector<8xf32> to vector<8x1xf32>
    %126 = vector.broadcast %125 : vector<8x1xf32> to vector<8x32xf32>
    %127 = arith.subf %123, %126 : vector<8x32xf32>
    %128 = math.exp %127 : vector<8x32xf32>
    %cst_70 = arith.constant dense<0.000000e+00> : vector<8xf32>
    %129 = vector.multi_reduction <add>, %128, %cst_70 [1] : vector<8x32xf32> to vector<8xf32>
    %130 = vector.shape_cast %129 : vector<8xf32> to vector<8x1xf32>
    %131 = vector.broadcast %35 : vector<8x1xi32> to vector<8x32xi32>
    %132 = arith.cmpi eq, %20, %131 : vector<8x32xi32>
    %cst_71 = arith.constant 0.000000e+00 : f32
    %133 = vector.broadcast %cst_71 : f32 to vector<8x32xf32>
    %134 = arith.select %132, %128, %133 : vector<8x32xi1>, vector<8x32xf32>
    %cst_72 = arith.constant dense<0.000000e+00> : vector<8xf32>
    %135 = vector.multi_reduction <add>, %134, %cst_72 [1] : vector<8x32xf32> to vector<8xf32>
    %136 = vector.shape_cast %135 : vector<8xf32> to vector<8x1xf32>
    %137 = arith.mulf %119, %136 : vector<8x1xf32>
    %138 = arith.divf %137, %130 : vector<8x1xf32>
    %139 = vector.broadcast %35 : vector<8x1xi32> to vector<8x6xi32>
    %140 = arith.cmpi eq, %23, %139 : vector<8x6xi32>
    %cst_73 = arith.constant 0.000000e+00 : f32
    %141 = vector.broadcast %cst_73 : f32 to vector<8x6xf32>
    %142 = arith.select %140, %7, %141 : vector<8x6xi1>, vector<8x6xf32>
    %cst_74 = arith.constant dense<0.000000e+00> : vector<8xf32>
    %143 = vector.multi_reduction <add>, %142, %cst_74 [1] : vector<8x6xf32> to vector<8xf32>
    %144 = vector.shape_cast %143 : vector<8xf32> to vector<8x1xf32>
    %145 = vector.broadcast %35 : vector<8x1xi32> to vector<8x10xi32>
    %146 = arith.cmpi eq, %6, %145 : vector<8x10xi32>
    %cst_75 = arith.constant 0.000000e+00 : f32
    %147 = vector.broadcast %cst_75 : f32 to vector<8x10xf32>
    %148 = arith.select %146, %92, %147 : vector<8x10xi1>, vector<8x10xf32>
    %cst_76 = arith.constant dense<0.000000e+00> : vector<8xf32>
    %149 = vector.multi_reduction <add>, %148, %cst_76 [1] : vector<8x10xf32> to vector<8xf32>
    %150 = vector.shape_cast %149 : vector<8xf32> to vector<8x1xf32>
    %cst_77 = arith.constant 1.000000e+00 : f32
    %151 = vector.broadcast %cst_77 : f32 to vector<8x1xf32>
    %152 = arith.subf %151, %119 : vector<8x1xf32>
    %153 = arith.mulf %150, %152 : vector<8x1xf32>
    %154 = arith.addf %138, %144 : vector<8x1xf32>
    %155 = arith.addf %154, %153 : vector<8x1xf32>
    %c0_i32_78 = arith.constant 0 : i32
    %156 = vector.broadcast %c0_i32_78 : i32 to vector<8x1xi32>
    %157 = arith.cmpi ne, %35, %156 : vector<8x1xi32>
    %158 = arith.extui %157 : vector<8x1xi1> to vector<8x1xi32>
    %159 = arith.sitofp %158 : vector<8x1xi32> to vector<8x1xf32>
    %cst_79 = arith.constant 1.000000e-30 : f32
    %160 = vector.broadcast %cst_79 : f32 to vector<8x1xf32>
    %161 = arith.addf %155, %160 : vector<8x1xf32>
    %162 = math.log %161 : vector<8x1xf32>
    %163 = arith.mulf %162, %159 : vector<8x1xf32>
    %164 = arith.addf %27, %163 : vector<8x1xf32>
    %165 = arith.mulf %99, %159 : vector<8x1xf32>
    %166 = arith.addf %28, %165 : vector<8x1xf32>
    %167 = arith.addf %29, %159 : vector<8x1xf32>
    %c1_i32 = arith.constant 1 : i32
    %168 = arith.index_cast %c1_i32 : i32 to index
    %c0_80 = arith.constant 0 : index
    %c0_81 = arith.constant 0 : index
    %169 = vector.load %arg1[%168, %c0_80, %c0_81] : memref<4x8x8xf32, #tpu.memory_space<vmem>>, vector<1x8x8xf32>
    %170 = vector.shape_cast %169 : vector<1x8x8xf32> to vector<8x8xf32>
    %171 = arith.index_cast %c1_i32 : i32 to index
    %c0_82 = arith.constant 0 : index
    %c0_83 = arith.constant 0 : index
    %172 = vector.load %arg2[%171, %c0_82, %c0_83] : memref<4x8x1xi32, #tpu.memory_space<vmem>>, vector<1x8x1xi32>
    %173 = vector.shape_cast %172 : vector<1x8x1xi32> to vector<8x1xi32>
    %cst_84 = arith.constant dense<0.000000e+00> : vector<8x64xf32>
    %174 = tpu.matmul %170, %8, %cst_84 {dimension_numbers = #tpu.dot_dimension_numbers<[1], [0], [0], [1], [0, 0, 1, 1], [], []>} : vector<8x8xf32>, vector<8x64xf32>, vector<8x64xf32> -> vector<8x64xf32>
    %cst_85 = arith.constant dense<0.000000e+00> : vector<8x64xf32>
    %175 = tpu.matmul %65, %9, %cst_85 {dimension_numbers = #tpu.dot_dimension_numbers<[1], [0], [0], [1], [0, 0, 1, 1], [], []>} : vector<8x16xf32>, vector<16x64xf32>, vector<8x64xf32> -> vector<8x64xf32>
    %176 = arith.addf %174, %175 : vector<8x64xf32>
    %177 = vector.broadcast %10 : vector<1x64xf32> to vector<8x64xf32>
    %178 = arith.addf %176, %177 : vector<8x64xf32>
    %179 = vector.extract_strided_slice %178 {offsets = [0, 0], sizes = [8, 16], strides = [1, 1]} : vector<8x64xf32> to vector<8x16xf32>
    %180 = arith.negf %179 : vector<8x16xf32>
    %181 = math.exp %180 : vector<8x16xf32>
    %cst_86 = arith.constant 1.000000e+00 : f32
    %182 = vector.broadcast %cst_86 : f32 to vector<8x16xf32>
    %183 = arith.addf %182, %181 : vector<8x16xf32>
    %184 = arith.divf %182, %183 : vector<8x16xf32>
    %185 = vector.extract_strided_slice %178 {offsets = [0, 16], sizes = [8, 16], strides = [1, 1]} : vector<8x64xf32> to vector<8x16xf32>
    %186 = arith.negf %185 : vector<8x16xf32>
    %187 = math.exp %186 : vector<8x16xf32>
    %cst_87 = arith.constant 1.000000e+00 : f32
    %188 = vector.broadcast %cst_87 : f32 to vector<8x16xf32>
    %189 = arith.addf %188, %187 : vector<8x16xf32>
    %190 = arith.divf %188, %189 : vector<8x16xf32>
    %191 = vector.extract_strided_slice %178 {offsets = [0, 32], sizes = [8, 16], strides = [1, 1]} : vector<8x64xf32> to vector<8x16xf32>
    %192 = math.tanh %191 : vector<8x16xf32>
    %193 = vector.extract_strided_slice %178 {offsets = [0, 48], sizes = [8, 16], strides = [1, 1]} : vector<8x64xf32> to vector<8x16xf32>
    %194 = arith.negf %193 : vector<8x16xf32>
    %195 = math.exp %194 : vector<8x16xf32>
    %cst_88 = arith.constant 1.000000e+00 : f32
    %196 = vector.broadcast %cst_88 : f32 to vector<8x16xf32>
    %197 = arith.addf %196, %195 : vector<8x16xf32>
    %198 = arith.divf %196, %197 : vector<8x16xf32>
    %199 = arith.mulf %190, %63 : vector<8x16xf32>
    %200 = arith.mulf %184, %192 : vector<8x16xf32>
    %201 = arith.addf %199, %200 : vector<8x16xf32>
    %202 = math.tanh %201 : vector<8x16xf32>
    %203 = arith.mulf %198, %202 : vector<8x16xf32>
    %cst_89 = arith.constant dense<0.000000e+00> : vector<8x16xf32>
    %204 = tpu.matmul %203, %11, %cst_89 {dimension_numbers = #tpu.dot_dimension_numbers<[1], [0], [0], [1], [0, 0, 1, 1], [], []>} : vector<8x16xf32>, vector<16x16xf32>, vector<8x16xf32> -> vector<8x16xf32>
    %205 = vector.shape_cast %204 : vector<8x16xf32> to vector<8x1x16xf32>
    %206 = vector.broadcast %205 : vector<8x1x16xf32> to vector<8x10x16xf32>
    %207 = arith.addf %4, %206 : vector<8x10x16xf32>
    %208 = vector.shape_cast %100 : vector<8x10xf32> to vector<8x10x1xf32>
    %209 = vector.shape_cast %12 : vector<1x16xf32> to vector<1x1x16xf32>
    %210 = vector.broadcast %208 : vector<8x10x1xf32> to vector<8x10x16xf32>
    %211 = vector.broadcast %209 : vector<1x1x16xf32> to vector<8x10x16xf32>
    %212 = arith.mulf %210, %211 : vector<8x10x16xf32>
    %213 = arith.addf %207, %212 : vector<8x10x16xf32>
    %214 = math.tanh %213 : vector<8x10x16xf32>
    %215 = vector.shape_cast %13 : vector<1x16xf32> to vector<1x1x16xf32>
    %216 = vector.broadcast %215 : vector<1x1x16xf32> to vector<8x10x16xf32>
    %217 = arith.mulf %214, %216 : vector<8x10x16xf32>
    %cst_90 = arith.constant dense<0.000000e+00> : vector<8x10xf32>
    %218 = vector.multi_reduction <add>, %217, %cst_90 [2] : vector<8x10x16xf32> to vector<8x10xf32>
    %219 = arith.addf %218, %5 : vector<8x10xf32>
    %cst_91 = arith.constant dense<0xFF800000> : vector<8xf32>
    %220 = vector.multi_reduction <maximumf>, %219, %cst_91 [1] : vector<8x10xf32> to vector<8xf32>
    %221 = vector.shape_cast %220 : vector<8xf32> to vector<8x1xf32>
    %222 = vector.broadcast %221 : vector<8x1xf32> to vector<8x10xf32>
    %223 = arith.subf %219, %222 : vector<8x10xf32>
    %224 = math.exp %223 : vector<8x10xf32>
    %cst_92 = arith.constant dense<0.000000e+00> : vector<8xf32>
    %225 = vector.multi_reduction <add>, %224, %cst_92 [1] : vector<8x10xf32> to vector<8xf32>
    %226 = vector.shape_cast %225 : vector<8xf32> to vector<8x1xf32>
    %cst_93 = arith.constant 1.000000e+00 : f32
    %227 = vector.broadcast %cst_93 : f32 to vector<8x1xf32>
    %228 = arith.divf %227, %226 : vector<8x1xf32>
    %229 = vector.broadcast %228 : vector<8x1xf32> to vector<8x10xf32>
    %230 = arith.mulf %224, %229 : vector<8x10xf32>
    %231 = vector.shape_cast %230 : vector<8x10xf32> to vector<8x10x1xf32>
    %232 = vector.broadcast %231 : vector<8x10x1xf32> to vector<8x10x32xf32>
    %233 = arith.mulf %232, %3 : vector<8x10x32xf32>
    %cst_94 = arith.constant dense<0.000000e+00> : vector<8x32xf32>
    %234 = vector.multi_reduction <add>, %233, %cst_94 [1] : vector<8x10x32xf32> to vector<8x32xf32>
    %235 = arith.minimumf %230, %100 : vector<8x10xf32>
    %cst_95 = arith.constant dense<0.000000e+00> : vector<8xf32>
    %236 = vector.multi_reduction <add>, %235, %cst_95 [1] : vector<8x10xf32> to vector<8xf32>
    %237 = vector.shape_cast %236 : vector<8xf32> to vector<8x1xf32>
    %238 = arith.addf %100, %230 : vector<8x10xf32>
    %239 = arith.truncf %234 : vector<8x32xf32> to vector<8x32xbf16>
    %cst_96 = arith.constant dense<0.000000e+00> : vector<8x128xf32>
    %240 = tpu.matmul %239, %14, %cst_96 {dimension_numbers = #tpu.dot_dimension_numbers<[1], [0], [0], [1], [0, 0, 1, 1], [], []>} : vector<8x32xbf16>, vector<32x128xbf16>, vector<8x128xf32> -> vector<8x128xf32>
    %241 = arith.truncf %203 : vector<8x16xf32> to vector<8x16xbf16>
    %cst_97 = arith.constant dense<0.000000e+00> : vector<8x128xf32>
    %242 = tpu.matmul %241, %15, %cst_97 {dimension_numbers = #tpu.dot_dimension_numbers<[1], [0], [0], [1], [0, 0, 1, 1], [], []>} : vector<8x16xbf16>, vector<16x128xbf16>, vector<8x128xf32> -> vector<8x128xf32>
    %243 = arith.addf %240, %242 : vector<8x128xf32>
    %244 = vector.broadcast %16 : vector<1x128xf32> to vector<8x128xf32>
    %245 = arith.addf %243, %244 : vector<8x128xf32>
    %246 = vector.extract_strided_slice %245 {offsets = [0, 0], sizes = [8, 32], strides = [1, 1]} : vector<8x128xf32> to vector<8x32xf32>
    %247 = vector.broadcast %17 : vector<1x8xf32> to vector<8x8xf32>
    %248 = arith.mulf %170, %247 : vector<8x8xf32>
    %cst_98 = arith.constant dense<0.000000e+00> : vector<8xf32>
    %249 = vector.multi_reduction <add>, %248, %cst_98 [1] : vector<8x8xf32> to vector<8xf32>
    %250 = vector.shape_cast %249 : vector<8xf32> to vector<8x1xf32>
    %251 = vector.extract_strided_slice %245 {offsets = [0, 32], sizes = [8, 1], strides = [1, 1]} : vector<8x128xf32> to vector<8x1xf32>
    %252 = arith.addf %251, %250 : vector<8x1xf32>
    %253 = arith.negf %252 : vector<8x1xf32>
    %254 = math.exp %253 : vector<8x1xf32>
    %cst_99 = arith.constant 1.000000e+00 : f32
    %255 = vector.broadcast %cst_99 : f32 to vector<8x1xf32>
    %256 = arith.addf %255, %254 : vector<8x1xf32>
    %257 = arith.divf %255, %256 : vector<8x1xf32>
    %258 = arith.truncf %246 : vector<8x32xf32> to vector<8x32xbf16>
    %cst_100 = arith.constant dense<0.000000e+00> : vector<8x32xf32>
    %259 = tpu.matmul %258, %18, %cst_100 {dimension_numbers = #tpu.dot_dimension_numbers<[1], [0], [0], [1], [0, 0, 1, 1], [], []>} : vector<8x32xbf16>, vector<32x32xbf16>, vector<8x32xf32> -> vector<8x32xf32>
    %260 = vector.broadcast %19 : vector<1x32xf32> to vector<8x32xf32>
    %261 = arith.addf %259, %260 : vector<8x32xf32>
    %cst_101 = arith.constant dense<0xFF800000> : vector<8xf32>
    %262 = vector.multi_reduction <maximumf>, %261, %cst_101 [1] : vector<8x32xf32> to vector<8xf32>
    %263 = vector.shape_cast %262 : vector<8xf32> to vector<8x1xf32>
    %264 = vector.broadcast %263 : vector<8x1xf32> to vector<8x32xf32>
    %265 = arith.subf %261, %264 : vector<8x32xf32>
    %266 = math.exp %265 : vector<8x32xf32>
    %cst_102 = arith.constant dense<0.000000e+00> : vector<8xf32>
    %267 = vector.multi_reduction <add>, %266, %cst_102 [1] : vector<8x32xf32> to vector<8xf32>
    %268 = vector.shape_cast %267 : vector<8xf32> to vector<8x1xf32>
    %269 = vector.broadcast %173 : vector<8x1xi32> to vector<8x32xi32>
    %270 = arith.cmpi eq, %20, %269 : vector<8x32xi32>
    %cst_103 = arith.constant 0.000000e+00 : f32
    %271 = vector.broadcast %cst_103 : f32 to vector<8x32xf32>
    %272 = arith.select %270, %266, %271 : vector<8x32xi1>, vector<8x32xf32>
    %cst_104 = arith.constant dense<0.000000e+00> : vector<8xf32>
    %273 = vector.multi_reduction <add>, %272, %cst_104 [1] : vector<8x32xf32> to vector<8xf32>
    %274 = vector.shape_cast %273 : vector<8xf32> to vector<8x1xf32>
    %275 = arith.mulf %257, %274 : vector<8x1xf32>
    %276 = arith.divf %275, %268 : vector<8x1xf32>
    %277 = vector.broadcast %173 : vector<8x1xi32> to vector<8x6xi32>
    %278 = arith.cmpi eq, %23, %277 : vector<8x6xi32>
    %cst_105 = arith.constant 0.000000e+00 : f32
    %279 = vector.broadcast %cst_105 : f32 to vector<8x6xf32>
    %280 = arith.select %278, %7, %279 : vector<8x6xi1>, vector<8x6xf32>
    %cst_106 = arith.constant dense<0.000000e+00> : vector<8xf32>
    %281 = vector.multi_reduction <add>, %280, %cst_106 [1] : vector<8x6xf32> to vector<8xf32>
    %282 = vector.shape_cast %281 : vector<8xf32> to vector<8x1xf32>
    %283 = vector.broadcast %173 : vector<8x1xi32> to vector<8x10xi32>
    %284 = arith.cmpi eq, %6, %283 : vector<8x10xi32>
    %cst_107 = arith.constant 0.000000e+00 : f32
    %285 = vector.broadcast %cst_107 : f32 to vector<8x10xf32>
    %286 = arith.select %284, %230, %285 : vector<8x10xi1>, vector<8x10xf32>
    %cst_108 = arith.constant dense<0.000000e+00> : vector<8xf32>
    %287 = vector.multi_reduction <add>, %286, %cst_108 [1] : vector<8x10xf32> to vector<8xf32>
    %288 = vector.shape_cast %287 : vector<8xf32> to vector<8x1xf32>
    %cst_109 = arith.constant 1.000000e+00 : f32
    %289 = vector.broadcast %cst_109 : f32 to vector<8x1xf32>
    %290 = arith.subf %289, %257 : vector<8x1xf32>
    %291 = arith.mulf %288, %290 : vector<8x1xf32>
    %292 = arith.addf %276, %282 : vector<8x1xf32>
    %293 = arith.addf %292, %291 : vector<8x1xf32>
    %c0_i32_110 = arith.constant 0 : i32
    %294 = vector.broadcast %c0_i32_110 : i32 to vector<8x1xi32>
    %295 = arith.cmpi ne, %173, %294 : vector<8x1xi32>
    %296 = arith.extui %295 : vector<8x1xi1> to vector<8x1xi32>
    %297 = arith.sitofp %296 : vector<8x1xi32> to vector<8x1xf32>
    %cst_111 = arith.constant 1.000000e-30 : f32
    %298 = vector.broadcast %cst_111 : f32 to vector<8x1xf32>
    %299 = arith.addf %293, %298 : vector<8x1xf32>
    %300 = math.log %299 : vector<8x1xf32>
    %301 = arith.mulf %300, %297 : vector<8x1xf32>
    %302 = arith.addf %164, %301 : vector<8x1xf32>
    %303 = arith.mulf %237, %297 : vector<8x1xf32>
    %304 = arith.addf %166, %303 : vector<8x1xf32>
    %305 = arith.addf %167, %297 : vector<8x1xf32>
    %c2_i32 = arith.constant 2 : i32
    %306 = arith.index_cast %c2_i32 : i32 to index
    %c0_112 = arith.constant 0 : index
    %c0_113 = arith.constant 0 : index
    %307 = vector.load %arg1[%306, %c0_112, %c0_113] : memref<4x8x8xf32, #tpu.memory_space<vmem>>, vector<1x8x8xf32>
    %308 = vector.shape_cast %307 : vector<1x8x8xf32> to vector<8x8xf32>
    %309 = arith.index_cast %c2_i32 : i32 to index
    %c0_114 = arith.constant 0 : index
    %c0_115 = arith.constant 0 : index
    %310 = vector.load %arg2[%309, %c0_114, %c0_115] : memref<4x8x1xi32, #tpu.memory_space<vmem>>, vector<1x8x1xi32>
    %311 = vector.shape_cast %310 : vector<1x8x1xi32> to vector<8x1xi32>
    %cst_116 = arith.constant dense<0.000000e+00> : vector<8x64xf32>
    %312 = tpu.matmul %308, %8, %cst_116 {dimension_numbers = #tpu.dot_dimension_numbers<[1], [0], [0], [1], [0, 0, 1, 1], [], []>} : vector<8x8xf32>, vector<8x64xf32>, vector<8x64xf32> -> vector<8x64xf32>
    %cst_117 = arith.constant dense<0.000000e+00> : vector<8x64xf32>
    %313 = tpu.matmul %203, %9, %cst_117 {dimension_numbers = #tpu.dot_dimension_numbers<[1], [0], [0], [1], [0, 0, 1, 1], [], []>} : vector<8x16xf32>, vector<16x64xf32>, vector<8x64xf32> -> vector<8x64xf32>
    %314 = arith.addf %312, %313 : vector<8x64xf32>
    %315 = vector.broadcast %10 : vector<1x64xf32> to vector<8x64xf32>
    %316 = arith.addf %314, %315 : vector<8x64xf32>
    %317 = vector.extract_strided_slice %316 {offsets = [0, 0], sizes = [8, 16], strides = [1, 1]} : vector<8x64xf32> to vector<8x16xf32>
    %318 = arith.negf %317 : vector<8x16xf32>
    %319 = math.exp %318 : vector<8x16xf32>
    %cst_118 = arith.constant 1.000000e+00 : f32
    %320 = vector.broadcast %cst_118 : f32 to vector<8x16xf32>
    %321 = arith.addf %320, %319 : vector<8x16xf32>
    %322 = arith.divf %320, %321 : vector<8x16xf32>
    %323 = vector.extract_strided_slice %316 {offsets = [0, 16], sizes = [8, 16], strides = [1, 1]} : vector<8x64xf32> to vector<8x16xf32>
    %324 = arith.negf %323 : vector<8x16xf32>
    %325 = math.exp %324 : vector<8x16xf32>
    %cst_119 = arith.constant 1.000000e+00 : f32
    %326 = vector.broadcast %cst_119 : f32 to vector<8x16xf32>
    %327 = arith.addf %326, %325 : vector<8x16xf32>
    %328 = arith.divf %326, %327 : vector<8x16xf32>
    %329 = vector.extract_strided_slice %316 {offsets = [0, 32], sizes = [8, 16], strides = [1, 1]} : vector<8x64xf32> to vector<8x16xf32>
    %330 = math.tanh %329 : vector<8x16xf32>
    %331 = vector.extract_strided_slice %316 {offsets = [0, 48], sizes = [8, 16], strides = [1, 1]} : vector<8x64xf32> to vector<8x16xf32>
    %332 = arith.negf %331 : vector<8x16xf32>
    %333 = math.exp %332 : vector<8x16xf32>
    %cst_120 = arith.constant 1.000000e+00 : f32
    %334 = vector.broadcast %cst_120 : f32 to vector<8x16xf32>
    %335 = arith.addf %334, %333 : vector<8x16xf32>
    %336 = arith.divf %334, %335 : vector<8x16xf32>
    %337 = arith.mulf %328, %201 : vector<8x16xf32>
    %338 = arith.mulf %322, %330 : vector<8x16xf32>
    %339 = arith.addf %337, %338 : vector<8x16xf32>
    %340 = math.tanh %339 : vector<8x16xf32>
    %341 = arith.mulf %336, %340 : vector<8x16xf32>
    %cst_121 = arith.constant dense<0.000000e+00> : vector<8x16xf32>
    %342 = tpu.matmul %341, %11, %cst_121 {dimension_numbers = #tpu.dot_dimension_numbers<[1], [0], [0], [1], [0, 0, 1, 1], [], []>} : vector<8x16xf32>, vector<16x16xf32>, vector<8x16xf32> -> vector<8x16xf32>
    %343 = vector.shape_cast %342 : vector<8x16xf32> to vector<8x1x16xf32>
    %344 = vector.broadcast %343 : vector<8x1x16xf32> to vector<8x10x16xf32>
    %345 = arith.addf %4, %344 : vector<8x10x16xf32>
    %346 = vector.shape_cast %238 : vector<8x10xf32> to vector<8x10x1xf32>
    %347 = vector.shape_cast %12 : vector<1x16xf32> to vector<1x1x16xf32>
    %348 = vector.broadcast %346 : vector<8x10x1xf32> to vector<8x10x16xf32>
    %349 = vector.broadcast %347 : vector<1x1x16xf32> to vector<8x10x16xf32>
    %350 = arith.mulf %348, %349 : vector<8x10x16xf32>
    %351 = arith.addf %345, %350 : vector<8x10x16xf32>
    %352 = math.tanh %351 : vector<8x10x16xf32>
    %353 = vector.shape_cast %13 : vector<1x16xf32> to vector<1x1x16xf32>
    %354 = vector.broadcast %353 : vector<1x1x16xf32> to vector<8x10x16xf32>
    %355 = arith.mulf %352, %354 : vector<8x10x16xf32>
    %cst_122 = arith.constant dense<0.000000e+00> : vector<8x10xf32>
    %356 = vector.multi_reduction <add>, %355, %cst_122 [2] : vector<8x10x16xf32> to vector<8x10xf32>
    %357 = arith.addf %356, %5 : vector<8x10xf32>
    %cst_123 = arith.constant dense<0xFF800000> : vector<8xf32>
    %358 = vector.multi_reduction <maximumf>, %357, %cst_123 [1] : vector<8x10xf32> to vector<8xf32>
    %359 = vector.shape_cast %358 : vector<8xf32> to vector<8x1xf32>
    %360 = vector.broadcast %359 : vector<8x1xf32> to vector<8x10xf32>
    %361 = arith.subf %357, %360 : vector<8x10xf32>
    %362 = math.exp %361 : vector<8x10xf32>
    %cst_124 = arith.constant dense<0.000000e+00> : vector<8xf32>
    %363 = vector.multi_reduction <add>, %362, %cst_124 [1] : vector<8x10xf32> to vector<8xf32>
    %364 = vector.shape_cast %363 : vector<8xf32> to vector<8x1xf32>
    %cst_125 = arith.constant 1.000000e+00 : f32
    %365 = vector.broadcast %cst_125 : f32 to vector<8x1xf32>
    %366 = arith.divf %365, %364 : vector<8x1xf32>
    %367 = vector.broadcast %366 : vector<8x1xf32> to vector<8x10xf32>
    %368 = arith.mulf %362, %367 : vector<8x10xf32>
    %369 = vector.shape_cast %368 : vector<8x10xf32> to vector<8x10x1xf32>
    %370 = vector.broadcast %369 : vector<8x10x1xf32> to vector<8x10x32xf32>
    %371 = arith.mulf %370, %3 : vector<8x10x32xf32>
    %cst_126 = arith.constant dense<0.000000e+00> : vector<8x32xf32>
    %372 = vector.multi_reduction <add>, %371, %cst_126 [1] : vector<8x10x32xf32> to vector<8x32xf32>
    %373 = arith.minimumf %368, %238 : vector<8x10xf32>
    %cst_127 = arith.constant dense<0.000000e+00> : vector<8xf32>
    %374 = vector.multi_reduction <add>, %373, %cst_127 [1] : vector<8x10xf32> to vector<8xf32>
    %375 = vector.shape_cast %374 : vector<8xf32> to vector<8x1xf32>
    %376 = arith.addf %238, %368 : vector<8x10xf32>
    %377 = arith.truncf %372 : vector<8x32xf32> to vector<8x32xbf16>
    %cst_128 = arith.constant dense<0.000000e+00> : vector<8x128xf32>
    %378 = tpu.matmul %377, %14, %cst_128 {dimension_numbers = #tpu.dot_dimension_numbers<[1], [0], [0], [1], [0, 0, 1, 1], [], []>} : vector<8x32xbf16>, vector<32x128xbf16>, vector<8x128xf32> -> vector<8x128xf32>
    %379 = arith.truncf %341 : vector<8x16xf32> to vector<8x16xbf16>
    %cst_129 = arith.constant dense<0.000000e+00> : vector<8x128xf32>
    %380 = tpu.matmul %379, %15, %cst_129 {dimension_numbers = #tpu.dot_dimension_numbers<[1], [0], [0], [1], [0, 0, 1, 1], [], []>} : vector<8x16xbf16>, vector<16x128xbf16>, vector<8x128xf32> -> vector<8x128xf32>
    %381 = arith.addf %378, %380 : vector<8x128xf32>
    %382 = vector.broadcast %16 : vector<1x128xf32> to vector<8x128xf32>
    %383 = arith.addf %381, %382 : vector<8x128xf32>
    %384 = vector.extract_strided_slice %383 {offsets = [0, 0], sizes = [8, 32], strides = [1, 1]} : vector<8x128xf32> to vector<8x32xf32>
    %385 = vector.broadcast %17 : vector<1x8xf32> to vector<8x8xf32>
    %386 = arith.mulf %308, %385 : vector<8x8xf32>
    %cst_130 = arith.constant dense<0.000000e+00> : vector<8xf32>
    %387 = vector.multi_reduction <add>, %386, %cst_130 [1] : vector<8x8xf32> to vector<8xf32>
    %388 = vector.shape_cast %387 : vector<8xf32> to vector<8x1xf32>
    %389 = vector.extract_strided_slice %383 {offsets = [0, 32], sizes = [8, 1], strides = [1, 1]} : vector<8x128xf32> to vector<8x1xf32>
    %390 = arith.addf %389, %388 : vector<8x1xf32>
    %391 = arith.negf %390 : vector<8x1xf32>
    %392 = math.exp %391 : vector<8x1xf32>
    %cst_131 = arith.constant 1.000000e+00 : f32
    %393 = vector.broadcast %cst_131 : f32 to vector<8x1xf32>
    %394 = arith.addf %393, %392 : vector<8x1xf32>
    %395 = arith.divf %393, %394 : vector<8x1xf32>
    %396 = arith.truncf %384 : vector<8x32xf32> to vector<8x32xbf16>
    %cst_132 = arith.constant dense<0.000000e+00> : vector<8x32xf32>
    %397 = tpu.matmul %396, %18, %cst_132 {dimension_numbers = #tpu.dot_dimension_numbers<[1], [0], [0], [1], [0, 0, 1, 1], [], []>} : vector<8x32xbf16>, vector<32x32xbf16>, vector<8x32xf32> -> vector<8x32xf32>
    %398 = vector.broadcast %19 : vector<1x32xf32> to vector<8x32xf32>
    %399 = arith.addf %397, %398 : vector<8x32xf32>
    %cst_133 = arith.constant dense<0xFF800000> : vector<8xf32>
    %400 = vector.multi_reduction <maximumf>, %399, %cst_133 [1] : vector<8x32xf32> to vector<8xf32>
    %401 = vector.shape_cast %400 : vector<8xf32> to vector<8x1xf32>
    %402 = vector.broadcast %401 : vector<8x1xf32> to vector<8x32xf32>
    %403 = arith.subf %399, %402 : vector<8x32xf32>
    %404 = math.exp %403 : vector<8x32xf32>
    %cst_134 = arith.constant dense<0.000000e+00> : vector<8xf32>
    %405 = vector.multi_reduction <add>, %404, %cst_134 [1] : vector<8x32xf32> to vector<8xf32>
    %406 = vector.shape_cast %405 : vector<8xf32> to vector<8x1xf32>
    %407 = vector.broadcast %311 : vector<8x1xi32> to vector<8x32xi32>
    %408 = arith.cmpi eq, %20, %407 : vector<8x32xi32>
    %cst_135 = arith.constant 0.000000e+00 : f32
    %409 = vector.broadcast %cst_135 : f32 to vector<8x32xf32>
    %410 = arith.select %408, %404, %409 : vector<8x32xi1>, vector<8x32xf32>
    %cst_136 = arith.constant dense<0.000000e+00> : vector<8xf32>
    %411 = vector.multi_reduction <add>, %410, %cst_136 [1] : vector<8x32xf32> to vector<8xf32>
    %412 = vector.shape_cast %411 : vector<8xf32> to vector<8x1xf32>
    %413 = arith.mulf %395, %412 : vector<8x1xf32>
    %414 = arith.divf %413, %406 : vector<8x1xf32>
    %415 = vector.broadcast %311 : vector<8x1xi32> to vector<8x6xi32>
    %416 = arith.cmpi eq, %23, %415 : vector<8x6xi32>
    %cst_137 = arith.constant 0.000000e+00 : f32
    %417 = vector.broadcast %cst_137 : f32 to vector<8x6xf32>
    %418 = arith.select %416, %7, %417 : vector<8x6xi1>, vector<8x6xf32>
    %cst_138 = arith.constant dense<0.000000e+00> : vector<8xf32>
    %419 = vector.multi_reduction <add>, %418, %cst_138 [1] : vector<8x6xf32> to vector<8xf32>
    %420 = vector.shape_cast %419 : vector<8xf32> to vector<8x1xf32>
    %421 = vector.broadcast %311 : vector<8x1xi32> to vector<8x10xi32>
    %422 = arith.cmpi eq, %6, %421 : vector<8x10xi32>
    %cst_139 = arith.constant 0.000000e+00 : f32
    %423 = vector.broadcast %cst_139 : f32 to vector<8x10xf32>
    %424 = arith.select %422, %368, %423 : vector<8x10xi1>, vector<8x10xf32>
    %cst_140 = arith.constant dense<0.000000e+00> : vector<8xf32>
    %425 = vector.multi_reduction <add>, %424, %cst_140 [1] : vector<8x10xf32> to vector<8xf32>
    %426 = vector.shape_cast %425 : vector<8xf32> to vector<8x1xf32>
    %cst_141 = arith.constant 1.000000e+00 : f32
    %427 = vector.broadcast %cst_141 : f32 to vector<8x1xf32>
    %428 = arith.subf %427, %395 : vector<8x1xf32>
    %429 = arith.mulf %426, %428 : vector<8x1xf32>
    %430 = arith.addf %414, %420 : vector<8x1xf32>
    %431 = arith.addf %430, %429 : vector<8x1xf32>
    %c0_i32_142 = arith.constant 0 : i32
    %432 = vector.broadcast %c0_i32_142 : i32 to vector<8x1xi32>
    %433 = arith.cmpi ne, %311, %432 : vector<8x1xi32>
    %434 = arith.extui %433 : vector<8x1xi1> to vector<8x1xi32>
    %435 = arith.sitofp %434 : vector<8x1xi32> to vector<8x1xf32>
    %cst_143 = arith.constant 1.000000e-30 : f32
    %436 = vector.broadcast %cst_143 : f32 to vector<8x1xf32>
    %437 = arith.addf %431, %436 : vector<8x1xf32>
    %438 = math.log %437 : vector<8x1xf32>
    %439 = arith.mulf %438, %435 : vector<8x1xf32>
    %440 = arith.addf %302, %439 : vector<8x1xf32>
    %441 = arith.mulf %375, %435 : vector<8x1xf32>
    %442 = arith.addf %304, %441 : vector<8x1xf32>
    %443 = arith.addf %305, %435 : vector<8x1xf32>
    %c3_i32 = arith.constant 3 : i32
    %444 = arith.index_cast %c3_i32 : i32 to index
    %c0_144 = arith.constant 0 : index
    %c0_145 = arith.constant 0 : index
    %445 = vector.load %arg1[%444, %c0_144, %c0_145] : memref<4x8x8xf32, #tpu.memory_space<vmem>>, vector<1x8x8xf32>
    %446 = vector.shape_cast %445 : vector<1x8x8xf32> to vector<8x8xf32>
    %447 = arith.index_cast %c3_i32 : i32 to index
    %c0_146 = arith.constant 0 : index
    %c0_147 = arith.constant 0 : index
    %448 = vector.load %arg2[%447, %c0_146, %c0_147] : memref<4x8x1xi32, #tpu.memory_space<vmem>>, vector<1x8x1xi32>
    %449 = vector.shape_cast %448 : vector<1x8x1xi32> to vector<8x1xi32>
    %cst_148 = arith.constant dense<0.000000e+00> : vector<8x64xf32>
    %450 = tpu.matmul %446, %8, %cst_148 {dimension_numbers = #tpu.dot_dimension_numbers<[1], [0], [0], [1], [0, 0, 1, 1], [], []>} : vector<8x8xf32>, vector<8x64xf32>, vector<8x64xf32> -> vector<8x64xf32>
    %cst_149 = arith.constant dense<0.000000e+00> : vector<8x64xf32>
    %451 = tpu.matmul %341, %9, %cst_149 {dimension_numbers = #tpu.dot_dimension_numbers<[1], [0], [0], [1], [0, 0, 1, 1], [], []>} : vector<8x16xf32>, vector<16x64xf32>, vector<8x64xf32> -> vector<8x64xf32>
    %452 = arith.addf %450, %451 : vector<8x64xf32>
    %453 = vector.broadcast %10 : vector<1x64xf32> to vector<8x64xf32>
    %454 = arith.addf %452, %453 : vector<8x64xf32>
    %455 = vector.extract_strided_slice %454 {offsets = [0, 0], sizes = [8, 16], strides = [1, 1]} : vector<8x64xf32> to vector<8x16xf32>
    %456 = arith.negf %455 : vector<8x16xf32>
    %457 = math.exp %456 : vector<8x16xf32>
    %cst_150 = arith.constant 1.000000e+00 : f32
    %458 = vector.broadcast %cst_150 : f32 to vector<8x16xf32>
    %459 = arith.addf %458, %457 : vector<8x16xf32>
    %460 = arith.divf %458, %459 : vector<8x16xf32>
    %461 = vector.extract_strided_slice %454 {offsets = [0, 16], sizes = [8, 16], strides = [1, 1]} : vector<8x64xf32> to vector<8x16xf32>
    %462 = arith.negf %461 : vector<8x16xf32>
    %463 = math.exp %462 : vector<8x16xf32>
    %cst_151 = arith.constant 1.000000e+00 : f32
    %464 = vector.broadcast %cst_151 : f32 to vector<8x16xf32>
    %465 = arith.addf %464, %463 : vector<8x16xf32>
    %466 = arith.divf %464, %465 : vector<8x16xf32>
    %467 = vector.extract_strided_slice %454 {offsets = [0, 32], sizes = [8, 16], strides = [1, 1]} : vector<8x64xf32> to vector<8x16xf32>
    %468 = math.tanh %467 : vector<8x16xf32>
    %469 = vector.extract_strided_slice %454 {offsets = [0, 48], sizes = [8, 16], strides = [1, 1]} : vector<8x64xf32> to vector<8x16xf32>
    %470 = arith.negf %469 : vector<8x16xf32>
    %471 = math.exp %470 : vector<8x16xf32>
    %cst_152 = arith.constant 1.000000e+00 : f32
    %472 = vector.broadcast %cst_152 : f32 to vector<8x16xf32>
    %473 = arith.addf %472, %471 : vector<8x16xf32>
    %474 = arith.divf %472, %473 : vector<8x16xf32>
    %475 = arith.mulf %466, %339 : vector<8x16xf32>
    %476 = arith.mulf %460, %468 : vector<8x16xf32>
    %477 = arith.addf %475, %476 : vector<8x16xf32>
    %478 = math.tanh %477 : vector<8x16xf32>
    %479 = arith.mulf %474, %478 : vector<8x16xf32>
    %cst_153 = arith.constant dense<0.000000e+00> : vector<8x16xf32>
    %480 = tpu.matmul %479, %11, %cst_153 {dimension_numbers = #tpu.dot_dimension_numbers<[1], [0], [0], [1], [0, 0, 1, 1], [], []>} : vector<8x16xf32>, vector<16x16xf32>, vector<8x16xf32> -> vector<8x16xf32>
    %481 = vector.shape_cast %480 : vector<8x16xf32> to vector<8x1x16xf32>
    %482 = vector.broadcast %481 : vector<8x1x16xf32> to vector<8x10x16xf32>
    %483 = arith.addf %4, %482 : vector<8x10x16xf32>
    %484 = vector.shape_cast %376 : vector<8x10xf32> to vector<8x10x1xf32>
    %485 = vector.shape_cast %12 : vector<1x16xf32> to vector<1x1x16xf32>
    %486 = vector.broadcast %484 : vector<8x10x1xf32> to vector<8x10x16xf32>
    %487 = vector.broadcast %485 : vector<1x1x16xf32> to vector<8x10x16xf32>
    %488 = arith.mulf %486, %487 : vector<8x10x16xf32>
    %489 = arith.addf %483, %488 : vector<8x10x16xf32>
    %490 = math.tanh %489 : vector<8x10x16xf32>
    %491 = vector.shape_cast %13 : vector<1x16xf32> to vector<1x1x16xf32>
    %492 = vector.broadcast %491 : vector<1x1x16xf32> to vector<8x10x16xf32>
    %493 = arith.mulf %490, %492 : vector<8x10x16xf32>
    %cst_154 = arith.constant dense<0.000000e+00> : vector<8x10xf32>
    %494 = vector.multi_reduction <add>, %493, %cst_154 [2] : vector<8x10x16xf32> to vector<8x10xf32>
    %495 = arith.addf %494, %5 : vector<8x10xf32>
    %cst_155 = arith.constant dense<0xFF800000> : vector<8xf32>
    %496 = vector.multi_reduction <maximumf>, %495, %cst_155 [1] : vector<8x10xf32> to vector<8xf32>
    %497 = vector.shape_cast %496 : vector<8xf32> to vector<8x1xf32>
    %498 = vector.broadcast %497 : vector<8x1xf32> to vector<8x10xf32>
    %499 = arith.subf %495, %498 : vector<8x10xf32>
    %500 = math.exp %499 : vector<8x10xf32>
    %cst_156 = arith.constant dense<0.000000e+00> : vector<8xf32>
    %501 = vector.multi_reduction <add>, %500, %cst_156 [1] : vector<8x10xf32> to vector<8xf32>
    %502 = vector.shape_cast %501 : vector<8xf32> to vector<8x1xf32>
    %cst_157 = arith.constant 1.000000e+00 : f32
    %503 = vector.broadcast %cst_157 : f32 to vector<8x1xf32>
    %504 = arith.divf %503, %502 : vector<8x1xf32>
    %505 = vector.broadcast %504 : vector<8x1xf32> to vector<8x10xf32>
    %506 = arith.mulf %500, %505 : vector<8x10xf32>
    %507 = vector.shape_cast %506 : vector<8x10xf32> to vector<8x10x1xf32>
    %508 = vector.broadcast %507 : vector<8x10x1xf32> to vector<8x10x32xf32>
    %509 = arith.mulf %508, %3 : vector<8x10x32xf32>
    %cst_158 = arith.constant dense<0.000000e+00> : vector<8x32xf32>
    %510 = vector.multi_reduction <add>, %509, %cst_158 [1] : vector<8x10x32xf32> to vector<8x32xf32>
    %511 = arith.minimumf %506, %376 : vector<8x10xf32>
    %cst_159 = arith.constant dense<0.000000e+00> : vector<8xf32>
    %512 = vector.multi_reduction <add>, %511, %cst_159 [1] : vector<8x10xf32> to vector<8xf32>
    %513 = vector.shape_cast %512 : vector<8xf32> to vector<8x1xf32>
    %514 = arith.addf %376, %506 : vector<8x10xf32>
    %515 = arith.truncf %510 : vector<8x32xf32> to vector<8x32xbf16>
    %cst_160 = arith.constant dense<0.000000e+00> : vector<8x128xf32>
    %516 = tpu.matmul %515, %14, %cst_160 {dimension_numbers = #tpu.dot_dimension_numbers<[1], [0], [0], [1], [0, 0, 1, 1], [], []>} : vector<8x32xbf16>, vector<32x128xbf16>, vector<8x128xf32> -> vector<8x128xf32>
    %517 = arith.truncf %479 : vector<8x16xf32> to vector<8x16xbf16>
    %cst_161 = arith.constant dense<0.000000e+00> : vector<8x128xf32>
    %518 = tpu.matmul %517, %15, %cst_161 {dimension_numbers = #tpu.dot_dimension_numbers<[1], [0], [0], [1], [0, 0, 1, 1], [], []>} : vector<8x16xbf16>, vector<16x128xbf16>, vector<8x128xf32> -> vector<8x128xf32>
    %519 = arith.addf %516, %518 : vector<8x128xf32>
    %520 = vector.broadcast %16 : vector<1x128xf32> to vector<8x128xf32>
    %521 = arith.addf %519, %520 : vector<8x128xf32>
    %522 = vector.extract_strided_slice %521 {offsets = [0, 0], sizes = [8, 32], strides = [1, 1]} : vector<8x128xf32> to vector<8x32xf32>
    %523 = vector.broadcast %17 : vector<1x8xf32> to vector<8x8xf32>
    %524 = arith.mulf %446, %523 : vector<8x8xf32>
    %cst_162 = arith.constant dense<0.000000e+00> : vector<8xf32>
    %525 = vector.multi_reduction <add>, %524, %cst_162 [1] : vector<8x8xf32> to vector<8xf32>
    %526 = vector.shape_cast %525 : vector<8xf32> to vector<8x1xf32>
    %527 = vector.extract_strided_slice %521 {offsets = [0, 32], sizes = [8, 1], strides = [1, 1]} : vector<8x128xf32> to vector<8x1xf32>
    %528 = arith.addf %527, %526 : vector<8x1xf32>
    %529 = arith.negf %528 : vector<8x1xf32>
    %530 = math.exp %529 : vector<8x1xf32>
    %cst_163 = arith.constant 1.000000e+00 : f32
    %531 = vector.broadcast %cst_163 : f32 to vector<8x1xf32>
    %532 = arith.addf %531, %530 : vector<8x1xf32>
    %533 = arith.divf %531, %532 : vector<8x1xf32>
    %534 = arith.truncf %522 : vector<8x32xf32> to vector<8x32xbf16>
    %cst_164 = arith.constant dense<0.000000e+00> : vector<8x32xf32>
    %535 = tpu.matmul %534, %18, %cst_164 {dimension_numbers = #tpu.dot_dimension_numbers<[1], [0], [0], [1], [0, 0, 1, 1], [], []>} : vector<8x32xbf16>, vector<32x32xbf16>, vector<8x32xf32> -> vector<8x32xf32>
    %536 = vector.broadcast %19 : vector<1x32xf32> to vector<8x32xf32>
    %537 = arith.addf %535, %536 : vector<8x32xf32>
    %cst_165 = arith.constant dense<0xFF800000> : vector<8xf32>
    %538 = vector.multi_reduction <maximumf>, %537, %cst_165 [1] : vector<8x32xf32> to vector<8xf32>
    %539 = vector.shape_cast %538 : vector<8xf32> to vector<8x1xf32>
    %540 = vector.broadcast %539 : vector<8x1xf32> to vector<8x32xf32>
    %541 = arith.subf %537, %540 : vector<8x32xf32>
    %542 = math.exp %541 : vector<8x32xf32>
    %cst_166 = arith.constant dense<0.000000e+00> : vector<8xf32>
    %543 = vector.multi_reduction <add>, %542, %cst_166 [1] : vector<8x32xf32> to vector<8xf32>
    %544 = vector.shape_cast %543 : vector<8xf32> to vector<8x1xf32>
    %545 = vector.broadcast %449 : vector<8x1xi32> to vector<8x32xi32>
    %546 = arith.cmpi eq, %20, %545 : vector<8x32xi32>
    %cst_167 = arith.constant 0.000000e+00 : f32
    %547 = vector.broadcast %cst_167 : f32 to vector<8x32xf32>
    %548 = arith.select %546, %542, %547 : vector<8x32xi1>, vector<8x32xf32>
    %cst_168 = arith.constant dense<0.000000e+00> : vector<8xf32>
    %549 = vector.multi_reduction <add>, %548, %cst_168 [1] : vector<8x32xf32> to vector<8xf32>
    %550 = vector.shape_cast %549 : vector<8xf32> to vector<8x1xf32>
    %551 = arith.mulf %533, %550 : vector<8x1xf32>
    %552 = arith.divf %551, %544 : vector<8x1xf32>
    %553 = vector.broadcast %449 : vector<8x1xi32> to vector<8x6xi32>
    %554 = arith.cmpi eq, %23, %553 : vector<8x6xi32>
    %cst_169 = arith.constant 0.000000e+00 : f32
    %555 = vector.broadcast %cst_169 : f32 to vector<8x6xf32>
    %556 = arith.select %554, %7, %555 : vector<8x6xi1>, vector<8x6xf32>
    %cst_170 = arith.constant dense<0.000000e+00> : vector<8xf32>
    %557 = vector.multi_reduction <add>, %556, %cst_170 [1] : vector<8x6xf32> to vector<8xf32>
    %558 = vector.shape_cast %557 : vector<8xf32> to vector<8x1xf32>
    %559 = vector.broadcast %449 : vector<8x1xi32> to vector<8x10xi32>
    %560 = arith.cmpi eq, %6, %559 : vector<8x10xi32>
    %cst_171 = arith.constant 0.000000e+00 : f32
    %561 = vector.broadcast %cst_171 : f32 to vector<8x10xf32>
    %562 = arith.select %560, %506, %561 : vector<8x10xi1>, vector<8x10xf32>
    %cst_172 = arith.constant dense<0.000000e+00> : vector<8xf32>
    %563 = vector.multi_reduction <add>, %562, %cst_172 [1] : vector<8x10xf32> to vector<8xf32>
    %564 = vector.shape_cast %563 : vector<8xf32> to vector<8x1xf32>
    %cst_173 = arith.constant 1.000000e+00 : f32
    %565 = vector.broadcast %cst_173 : f32 to vector<8x1xf32>
    %566 = arith.subf %565, %533 : vector<8x1xf32>
    %567 = arith.mulf %564, %566 : vector<8x1xf32>
    %568 = arith.addf %552, %558 : vector<8x1xf32>
    %569 = arith.addf %568, %567 : vector<8x1xf32>
    %c0_i32_174 = arith.constant 0 : i32
    %570 = vector.broadcast %c0_i32_174 : i32 to vector<8x1xi32>
    %571 = arith.cmpi ne, %449, %570 : vector<8x1xi32>
    %572 = arith.extui %571 : vector<8x1xi1> to vector<8x1xi32>
    %573 = arith.sitofp %572 : vector<8x1xi32> to vector<8x1xf32>
    %cst_175 = arith.constant 1.000000e-30 : f32
    %574 = vector.broadcast %cst_175 : f32 to vector<8x1xf32>
    %575 = arith.addf %569, %574 : vector<8x1xf32>
    %576 = math.log %575 : vector<8x1xf32>
    %577 = arith.mulf %576, %573 : vector<8x1xf32>
    %578 = arith.addf %440, %577 : vector<8x1xf32>
    %579 = arith.mulf %513, %573 : vector<8x1xf32>
    %580 = arith.addf %442, %579 : vector<8x1xf32>
    %581 = arith.addf %443, %573 : vector<8x1xf32>
    %c4_i32 = arith.constant 4 : i32
    %c0_176 = arith.constant 0 : index
    %c0_177 = arith.constant 0 : index
    %582 = vector.load %arg25[%c0_176, %c0_177] : memref<8x16xf32, #tpu.memory_space<vmem>>, vector<8x16xf32>
    tpu.vector_store %arg25[%c0_176, %c0_177], %479 {strides = array<i32>} : memref<8x16xf32, #tpu.memory_space<vmem>>, vector<8x16xf32>,
    %c0_178 = arith.constant 0 : index
    %c0_179 = arith.constant 0 : index
    %583 = vector.load %arg26[%c0_178, %c0_179] : memref<8x16xf32, #tpu.memory_space<vmem>>, vector<8x16xf32>
    tpu.vector_store %arg26[%c0_178, %c0_179], %477 {strides = array<i32>} : memref<8x16xf32, #tpu.memory_space<vmem>>, vector<8x16xf32>,
    %c0_180 = arith.constant 0 : index
    %c0_181 = arith.constant 0 : index
    %584 = vector.load %arg27[%c0_180, %c0_181] : memref<8x10xf32, #tpu.memory_space<vmem>>, vector<8x10xf32>
    tpu.vector_store %arg27[%c0_180, %c0_181], %514 {strides = array<i32>} : memref<8x10xf32, #tpu.memory_space<vmem>>, vector<8x10xf32>,
    %c0_182 = arith.constant 0 : index
    %c0_183 = arith.constant 0 : index
    %585 = vector.load %arg28[%c0_182, %c0_183] : memref<8x1xf32, #tpu.memory_space<vmem>>, vector<8x1xf32>
    tpu.vector_store %arg28[%c0_182, %c0_183], %578 {strides = array<i32>} : memref<8x1xf32, #tpu.memory_space<vmem>>, vector<8x1xf32>,
    %c0_184 = arith.constant 0 : index
    %c0_185 = arith.constant 0 : index
    %586 = vector.load %arg29[%c0_184, %c0_185] : memref<8x1xf32, #tpu.memory_space<vmem>>, vector<8x1xf32>
    tpu.vector_store %arg29[%c0_184, %c0_185], %580 {strides = array<i32>} : memref<8x1xf32, #tpu.memory_space<vmem>>, vector<8x1xf32>,
    %c0_186 = arith.constant 0 : index
    %c0_187 = arith.constant 0 : index
    %587 = vector.load %arg30[%c0_186, %c0_187] : memref<8x1xf32, #tpu.memory_space<vmem>>, vector<8x1xf32>
    tpu.vector_store %arg30[%c0_186, %c0_187], %581 {strides = array<i32>} : memref<8x1xf32, #tpu.memory_space<vmem>>, vector<8x1xf32>,
    %c1_i32_188 = arith.constant 1 : i32
    %588 = arith.cmpi eq, %arg0, %c1_i32_188 : i32
    %589 = arith.extui %588 : i1 to i32
    %c0_i32_189 = arith.constant 0 : i32
    %590 = arith.cmpi ne, %589, %c0_i32_189 : i32
    scf.if %590 {
      %c0_190 = arith.constant 0 : index
      %c0_191 = arith.constant 0 : index
      %591 = vector.load %arg30[%c0_190, %c0_191] : memref<8x1xf32, #tpu.memory_space<vmem>>, vector<8x1xf32>
      %cst_192 = arith.constant 1.000000e+00 : f32
      %592 = vector.broadcast %cst_192 : f32 to vector<8x1xf32>
      %593 = arith.maximumf %591, %592 : vector<8x1xf32>
      %c0_193 = arith.constant 0 : index
      %c0_194 = arith.constant 0 : index
      %594 = vector.load %arg28[%c0_193, %c0_194] : memref<8x1xf32, #tpu.memory_space<vmem>>, vector<8x1xf32>
      %cst_195 = arith.constant 0.000000e+00 : f32
      %595 = vector.broadcast %cst_195 : f32 to vector<8x1xf32>
      %596 = arith.subf %595, %594 : vector<8x1xf32>
      %597 = arith.divf %596, %593 : vector<8x1xf32>
      %c0_196 = arith.constant 0 : index
      %c0_197 = arith.constant 0 : index
      %598 = vector.load %arg23[%c0_196, %c0_197] : memref<8x1xf32, #tpu.memory_space<vmem>>, vector<8x1xf32>
      tpu.vector_store %arg23[%c0_196, %c0_197], %597 {strides = array<i32>} : memref<8x1xf32, #tpu.memory_space<vmem>>, vector<8x1xf32>,
      %c0_198 = arith.constant 0 : index
      %c0_199 = arith.constant 0 : index
      %599 = vector.load %arg29[%c0_198, %c0_199] : memref<8x1xf32, #tpu.memory_space<vmem>>, vector<8x1xf32>
      %cst_200 = arith.constant 1.000000e+00 : f32
      %600 = vector.broadcast %cst_200 : f32 to vector<8x1xf32>
      %601 = arith.mulf %600, %599 : vector<8x1xf32>
      %602 = arith.divf %601, %593 : vector<8x1xf32>
      %c0_201 = arith.constant 0 : index
      %c0_202 = arith.constant 0 : index
      %603 = vector.load %arg24[%c0_201, %c0_202] : memref<8x1xf32, #tpu.memory_space<vmem>>, vector<8x1xf32>
      tpu.vector_store %arg24[%c0_201, %c0_202], %602 {strides = array<i32>} : memref<8x1xf32, #tpu.memory_space<vmem>>, vector<8x1xf32>,
      %604 = arith.addf %597, %602 : vector<8x1xf32>
      %c0_203 = arith.constant 0 : index
      %c0_204 = arith.constant 0 : index
      %605 = vector.load %arg22[%c0_203, %c0_204] : memref<8x1xf32, #tpu.memory_space<vmem>>, vector<8x1xf32>
      tpu.vector_store %arg22[%c0_203, %c0_204], %604 {strides = array<i32>} : memref<8x1xf32, #tpu.memory_space<vmem>>, vector<8x1xf32>,
    } else {
    }
    return
  }
  func.func @transform_0(%arg0: i32) -> (i32, i32, i32) {
    %c0_i32 = arith.constant 0 : i32
    %c0_i32_0 = arith.constant 0 : i32
    %c0_i32_1 = arith.constant 0 : i32
    return %arg0, %c0_i32, %c0_i32_0 : i32, i32, i32
  }
  func.func @transform_1(%arg0: i32) -> (i32, i32, i32) {
    %c0_i32 = arith.constant 0 : i32
    %c0_i32_0 = arith.constant 0 : i32
    %c0_i32_1 = arith.constant 0 : i32
    return %arg0, %c0_i32, %c0_i32_0 : i32, i32, i32
  }
  func.func @transform_2(%arg0: i32) -> (i32, i32) {
    %c0_i32 = arith.constant 0 : i32
    %c0_i32_0 = arith.constant 0 : i32
    %c0_i32_1 = arith.constant 0 : i32
    return %c0_i32, %c0_i32_0 : i32, i32
  }
  func.func @transform_3(%arg0: i32) -> (i32, i32, i32) {
    %c0_i32 = arith.constant 0 : i32
    %c0_i32_0 = arith.constant 0 : i32
    %c0_i32_1 = arith.constant 0 : i32
    %c0_i32_2 = arith.constant 0 : i32
    return %c0_i32, %c0_i32_0, %c0_i32_1 : i32, i32, i32
  }
  func.func @transform_4(%arg0: i32) -> (i32, i32, i32) {
    %c0_i32 = arith.constant 0 : i32
    %c0_i32_0 = arith.constant 0 : i32
    %c0_i32_1 = arith.constant 0 : i32
    %c0_i32_2 = arith.constant 0 : i32
    return %c0_i32, %c0_i32_0, %c0_i32_1 : i32, i32, i32
  }
  func.func @transform_5(%arg0: i32) -> (i32, i32) {
    %c0_i32 = arith.constant 0 : i32
    %c0_i32_0 = arith.constant 0 : i32
    %c0_i32_1 = arith.constant 0 : i32
    return %c0_i32, %c0_i32_0 : i32, i32
  }
  func.func @transform_6(%arg0: i32) -> (i32, i32) {
    %c0_i32 = arith.constant 0 : i32
    %c0_i32_0 = arith.constant 0 : i32
    %c0_i32_1 = arith.constant 0 : i32
    return %c0_i32, %c0_i32_0 : i32, i32
  }
  func.func @transform_7(%arg0: i32) -> (i32, i32) {
    %c0_i32 = arith.constant 0 : i32
    %c0_i32_0 = arith.constant 0 : i32
    %c0_i32_1 = arith.constant 0 : i32
    return %c0_i32, %c0_i32_0 : i32, i32
  }
  func.func @transform_8(%arg0: i32) -> (i32, i32) {
    %c0_i32 = arith.constant 0 : i32
    %c0_i32_0 = arith.constant 0 : i32
    %c0_i32_1 = arith.constant 0 : i32
    return %c0_i32, %c0_i32_0 : i32, i32
  }
  func.func @transform_9(%arg0: i32) -> (i32, i32) {
    %c0_i32 = arith.constant 0 : i32
    %c0_i32_0 = arith.constant 0 : i32
    %c0_i32_1 = arith.constant 0 : i32
    return %c0_i32, %c0_i32_0 : i32, i32
  }
  func.func @transform_10(%arg0: i32) -> (i32, i32) {
    %c0_i32 = arith.constant 0 : i32
    %c0_i32_0 = arith.constant 0 : i32
    %c0_i32_1 = arith.constant 0 : i32
    return %c0_i32, %c0_i32_0 : i32, i32
  }
  func.func @transform_11(%arg0: i32) -> (i32, i32) {
    %c0_i32 = arith.constant 0 : i32
    %c0_i32_0 = arith.constant 0 : i32
    %c0_i32_1 = arith.constant 0 : i32
    return %c0_i32, %c0_i32_0 : i32, i32
  }
  func.func @transform_12(%arg0: i32) -> (i32, i32) {
    %c0_i32 = arith.constant 0 : i32
    %c0_i32_0 = arith.constant 0 : i32
    %c0_i32_1 = arith.constant 0 : i32
    return %c0_i32, %c0_i32_0 : i32, i32
  }
  func.func @transform_13(%arg0: i32) -> (i32, i32) {
    %c0_i32 = arith.constant 0 : i32
    %c0_i32_0 = arith.constant 0 : i32
    %c0_i32_1 = arith.constant 0 : i32
    return %c0_i32, %c0_i32_0 : i32, i32
  }
  func.func @transform_14(%arg0: i32) -> (i32, i32) {
    %c0_i32 = arith.constant 0 : i32
    %c0_i32_0 = arith.constant 0 : i32
    %c0_i32_1 = arith.constant 0 : i32
    return %c0_i32, %c0_i32_0 : i32, i32
  }
  func.func @transform_15(%arg0: i32) -> (i32, i32) {
    %c0_i32 = arith.constant 0 : i32
    %c0_i32_0 = arith.constant 0 : i32
    %c0_i32_1 = arith.constant 0 : i32
    return %c0_i32, %c0_i32_0 : i32, i32
  }
  func.func @transform_16(%arg0: i32) -> (i32, i32) {
    %c0_i32 = arith.constant 0 : i32
    %c0_i32_0 = arith.constant 0 : i32
    %c0_i32_1 = arith.constant 0 : i32
    return %c0_i32, %c0_i32_0 : i32, i32
  }
  func.func @transform_17(%arg0: i32) -> (i32, i32) {
    %c0_i32 = arith.constant 0 : i32
    %c0_i32_0 = arith.constant 0 : i32
    %c0_i32_1 = arith.constant 0 : i32
    return %c0_i32, %c0_i32_0 : i32, i32
  }
  func.func @transform_18(%arg0: i32) -> (i32, i32) {
    %c0_i32 = arith.constant 0 : i32
    %c0_i32_0 = arith.constant 0 : i32
    %c0_i32_1 = arith.constant 0 : i32
    return %c0_i32, %c0_i32_0 : i32, i32
  }
  func.func @transform_19(%arg0: i32) -> (i32, i32) {
    %c0_i32 = arith.constant 0 : i32
    %c0_i32_0 = arith.constant 0 : i32
    %c0_i32_1 = arith.constant 0 : i32
    return %c0_i32, %c0_i32_0 : i32, i32
  }
  func.func @transform_20(%arg0: i32) -> (i32, i32) {
    %c0_i32 = arith.constant 0 : i32
    %c0_i32_0 = arith.constant 0 : i32
    %c0_i32_1 = arith.constant 0 : i32
    return %c0_i32, %c0_i32_0 : i32, i32
  }
  func.func @transform_21(%arg0: i32) -> (i32, i32) {
    %c0_i32 = arith.constant 0 : i32
    %c0_i32_0 = arith.constant 0 : i32
    %c0_i32_1 = arith.constant 0 : i32
    return %c0_i32, %c0_i32_0 : i32, i32
  }
  func.func @transform_22(%arg0: i32) -> (i32, i32) {
    %c0_i32 = arith.constant 0 : i32
    %c0_i32_0 = arith.constant 0 : i32
    %c0_i32_1 = arith.constant 0 : i32
    return %c0_i32, %c0_i32_0 : i32, i32
  }
  func.func @transform_23(%arg0: i32) -> (i32, i32) {
    %c0_i32 = arith.constant 0 : i32
    %c0_i32_0 = arith.constant 0 : i32
    %c0_i32_1 = arith.constant 0 : i32
    return %c0_i32, %c0_i32_0 : i32, i32
  }
}

</mosaic_0001>

<llo_original>
// kernel: tpu_custom_call.1
$region0: #{tpu_custom_call.1}
  #allocation0 [shape = 'u32[]', space=smem, size = 0x4, offset = 0x4, fixed_abs, tag = 'smem constant byte address 0x4 - core index']
  #allocation1 [shape = 'u32[144,128]{1,0:T(1,128)}', space=vmem, size = 0x12000, scoped, tag = 'internal scratch']
  #allocation2 [shape = 'f32[8,16]{1,0:T(8,128)}', space=vmem, size = 0x1000, scoped, tag = 'scratch operand']
  #allocation3 [shape = 'f32[8,16]{1,0:T(8,128)}', space=vmem, size = 0x1000, scoped, tag = 'scratch operand']
  #allocation4 [shape = 'f32[8,10]{1,0:T(8,128)}', space=vmem, size = 0x1000, scoped, tag = 'scratch operand']
  #allocation5 [shape = 'f32[8,1]{1,0:T(8,128)}', space=vmem, size = 0x1000, scoped, tag = 'scratch operand']
  #allocation6 [shape = 'f32[8,1]{1,0:T(8,128)}', space=vmem, size = 0x1000, scoped, tag = 'scratch operand']
  #allocation7 [shape = 'f32[8,1]{1,0:T(8,128)}', space=vmem, size = 0x1000, scoped, tag = 'scratch operand']
  %s0 = inlined_call_operand.vmem [shape: f32[8,8,8], index: 0, kind: input, shape index: {}]
  %s1 = inlined_call_operand.vmem [shape: s32[8,8,1], index: 1, kind: input, shape index: {}]
  %s2 = inlined_call_operand.vmem [shape: s32[8,10], index: 2, kind: input, shape index: {}]
  %s3 = inlined_call_operand.vmem [shape: f32[8,10,32], index: 3, kind: input, shape index: {}]
  %s4 = inlined_call_operand.vmem [shape: f32[8,10,16], index: 4, kind: input, shape index: {}]
  %s5 = inlined_call_operand.vmem [shape: f32[8,6], index: 5, kind: input, shape index: {}]
  %s6 = inlined_call_operand.vmem [shape: f32[8,10], index: 6, kind: input, shape index: {}]
  %s7 = inlined_call_operand.vmem [shape: f32[8,16], index: 7, kind: input, shape index: {}]
  %s8 = inlined_call_operand.vmem [shape: f32[8,16], index: 8, kind: input, shape index: {}]
  %s9 = inlined_call_operand.vmem [shape: f32[8,64], index: 9, kind: input, shape index: {}]
  %s10 = inlined_call_operand.vmem [shape: f32[16,64], index: 10, kind: input, shape index: {}]
  %s11 = inlined_call_operand.vmem [shape: f32[1,64], index: 11, kind: input, shape index: {}]
  %s12 = inlined_call_operand.vmem [shape: f32[16,16], index: 12, kind: input, shape index: {}]
  %s13 = inlined_call_operand.vmem [shape: f32[1,16], index: 13, kind: input, shape index: {}]
  %s14 = inlined_call_operand.vmem [shape: f32[1,16], index: 14, kind: input, shape index: {}]
  %s15 = inlined_call_operand.vmem [shape: bf16[32,128], index: 15, kind: input, shape index: {}]
  %s16 = inlined_call_operand.vmem [shape: bf16[16,128], index: 16, kind: input, shape index: {}]
  %s17 = inlined_call_operand.vmem [shape: f32[1,128], index: 17, kind: input, shape index: {}]
  %s18 = inlined_call_operand.vmem [shape: f32[1,8], index: 18, kind: input, shape index: {}]
  %s19 = inlined_call_operand.vmem [shape: bf16[32,32], index: 19, kind: input, shape index: {}]
  %s20 = inlined_call_operand.vmem [shape: f32[1,32], index: 20, kind: input, shape index: {}]
  %s21 = inlined_call_operand.vmem [shape: f32[8,1], index: 21, kind: output, shape index: {0}]
  %s22 = inlined_call_operand.vmem [shape: f32[8,1], index: 22, kind: output, shape index: {1}]
  %s23 = inlined_call_operand.vmem [shape: f32[8,1], index: 23, kind: output, shape index: {2}]
  %24 = xla_tuple %s21, %s22, %s23
  %s25 = sld [smem:[#allocation0]]
  $region141: #{tpu_custom_call.1} parent=0
    _
  %s27 = ssub.s32 1, %s25
  %s28 = scalar_select 0, %s27, %s25
  loop: start=0, step=1, limit=4
  $region2: #{tpu_custom_call.1} parent=0 // loop_pre_header
    _
  $region3: #{tpu_custom_call.1} parent=0 // loop_header
    %s30 = sphi 0, %s34
    %p31 = scmp.ge.s32.totalorder %s30, 4
    %s40 = sphi 0, %s42
    %s43 = sphi 0, %s40
    %s44 = sphi 0, %s43
    %s60 = sphi 0, %s44
    %s66 = sphi 0, %s68
    %s69 = sphi 0, %s66
    %s70 = sphi 0, %s69
    %s86 = sphi 0, %s70
    %s90 = sphi 0, %s90
    %s92 = sphi 0, %s90
    %s93 = sphi 0, %s92
    %s107 = sphi 0, %s93
    %s111 = sphi 0, %s111
    %s113 = sphi 0, %s111
    %s114 = sphi 0, %s113
    %s128 = sphi 0, %s114
    %s132 = sphi 0, %s132
    %s134 = sphi 0, %s132
    %s135 = sphi 0, %s134
    %s149 = sphi 0, %s135
    %s153 = sphi 0, %s153
    %s155 = sphi 0, %s153
    %s156 = sphi 0, %s155
    %s170 = sphi 0, %s156
    %s174 = sphi 0, %s174
    %s176 = sphi 0, %s174
    %s177 = sphi 0, %s176
    %s191 = sphi 0, %s177
    %s195 = sphi 0, %s195
    %s197 = sphi 0, %s195
    %s198 = sphi 0, %s197
    %s212 = sphi 0, %s198
    %s216 = sphi 0, %s216
    %s218 = sphi 0, %s216
    %s219 = sphi 0, %s218
    %s233 = sphi 0, %s219
    %s237 = sphi 0, %s237
    %s239 = sphi 0, %s237
    %s240 = sphi 0, %s239
    %s254 = sphi 0, %s240
    %s258 = sphi 0, %s258
    %s260 = sphi 0, %s258
    %s261 = sphi 0, %s260
    %s275 = sphi 0, %s261
    %s279 = sphi 0, %s279
    %s281 = sphi 0, %s279
    %s282 = sphi 0, %s281
    %s296 = sphi 0, %s282
    %s300 = sphi 0, %s300
    %s302 = sphi 0, %s300
    %s303 = sphi 0, %s302
    %s317 = sphi 0, %s303
    %s321 = sphi 0, %s321
    %s323 = sphi 0, %s321
    %s324 = sphi 0, %s323
    %s338 = sphi 0, %s324
    %s342 = sphi 0, %s342
    %s344 = sphi 0, %s342
    %s345 = sphi 0, %s344
    %s359 = sphi 0, %s345
    %s363 = sphi 0, %s363
    %s365 = sphi 0, %s363
    %s366 = sphi 0, %s365
    %s380 = sphi 0, %s366
    %s384 = sphi 0, %s384
    %s386 = sphi 0, %s384
    %s387 = sphi 0, %s386
    %s401 = sphi 0, %s387
    %s405 = sphi 0, %s405
    %s407 = sphi 0, %s405
    %s408 = sphi 0, %s407
    %s422 = sphi 0, %s408
    %s426 = sphi 0, %s426
    %s428 = sphi 0, %s426
    %s429 = sphi 0, %s428
    %s443 = sphi 0, %s429
    %s447 = sphi 0, %s447
    %s449 = sphi 0, %s447
    %s450 = sphi 0, %s449
    %s464 = sphi 0, %s450
    %s468 = sphi 0, %s468
    %s470 = sphi 0, %s468
    %s471 = sphi 0, %s470
    %s485 = sphi 0, %s471
    %s489 = sphi 0, %s489
    %s491 = sphi 0, %s489
    %s492 = sphi 0, %s491
    %s506 = sphi 0, %s492
    %s510 = sphi 0, %s510
    %s512 = sphi 0, %s510
    %s513 = sphi 0, %s512
    %s527 = sphi 0, %s513
    %s531 = sphi 0, %s531
    %s533 = sphi 0, %s531
    %s534 = sphi 0, %s533
    %s548 = sphi 0, %s534
  $region4: #{tpu_custom_call.1} parent=0 // loop_header_branch
    %33 = sbr.rel (%p31) target = $region8
  $region5: #{tpu_custom_call.1} parent=0 // loop_body
    %s35 = ssub.s32 %s30, 1
    %s36 = ssub.s32 %s30, 2
    %s37 = sadd.s32 %s30, 1
    %s38 = ssub.s32 %s30, %s37
    %p39 = scmp.eq.s32.totalorder %s38, 0
    %s41 = sadd.s32 %s40, 1
    %s42 = scalar_select %p39, %s40, %s41
    %p45 = pneg %p39
    %p46 = scmp.eq.s32.totalorder %s30, 1
    %p47 = por %p45, %p46
    %p48 = scmp.ne.s32.totalorder %s40, %s43
    %p49 = scmp.eq.s32.totalorder %s30, 0
    %p50 = por %p48, %p49
    %p51 = scmp.ne.s32.totalorder %s40, %s43
    %p52 = scmp.eq.s32.totalorder %s35, 1
    %p53 = por %p51, %p52
    %p54 = scmp.ne.s32.totalorder %s43, %s44
    %p55 = scmp.eq.s32.totalorder %s35, 0
    %p56 = por %p54, %p55
    %p57 = scmp.ne.s32.totalorder %s43, %s44
    %p58 = scmp.eq.s32.totalorder %s36, 1
    %p59 = por %p57, %p58
    %p61 = scmp.ne.s32.totalorder %s44, %s60
    %p62 = scmp.eq.s32.totalorder %s36, 0
    %p63 = por %p61, %p62
    %s64 = ssub.s32 %s30, %s37
    %p65 = scmp.eq.s32.totalorder %s64, 0
    %s67 = sadd.s32 %s66, 1
    %s68 = scalar_select %p65, %s66, %s67
    %p71 = pneg %p65
    %p72 = scmp.eq.s32.totalorder %s30, 1
    %p73 = por %p71, %p72
    %p74 = scmp.ne.s32.totalorder %s66, %s69
    %p75 = scmp.eq.s32.totalorder %s30, 0
    %p76 = por %p74, %p75
    %p77 = scmp.ne.s32.totalorder %s66, %s69
    %p78 = scmp.eq.s32.totalorder %s35, 1
    %p79 = por %p77, %p78
    %p80 = scmp.ne.s32.totalorder %s69, %s70
    %p81 = scmp.eq.s32.totalorder %s35, 0
    %p82 = por %p80, %p81
    %p83 = scmp.ne.s32.totalorder %s69, %s70
    %p84 = scmp.eq.s32.totalorder %s36, 1
    %p85 = por %p83, %p84
    %p87 = scmp.ne.s32.totalorder %s70, %s86
    %p88 = scmp.eq.s32.totalorder %s36, 0
    %p89 = por %p87, %p88
    %s91 = sadd.s32 %s90, 1
    %p94 = scmp.eq.s32.totalorder %s30, 1
    %p95 = scmp.ne.s32.totalorder %s90, %s92
    %p96 = scmp.eq.s32.totalorder %s30, 0
    %p97 = por %p95, %p96
    %p98 = scmp.ne.s32.totalorder %s90, %s92
    %p99 = scmp.eq.s32.totalorder %s35, 1
    %p100 = por %p98, %p99
    %p101 = scmp.ne.s32.totalorder %s92, %s93
    %p102 = scmp.eq.s32.totalorder %s35, 0
    %p103 = por %p101, %p102
    %p104 = scmp.ne.s32.totalorder %s92, %s93
    %p105 = scmp.eq.s32.totalorder %s36, 1
    %p106 = por %p104, %p105
    %p108 = scmp.ne.s32.totalorder %s93, %s107
    %p109 = scmp.eq.s32.totalorder %s36, 0
    %p110 = por %p108, %p109
    %s112 = sadd.s32 %s111, 1
    %p115 = scmp.eq.s32.totalorder %s30, 1
    %p116 = scmp.ne.s32.totalorder %s111, %s113
    %p117 = scmp.eq.s32.totalorder %s30, 0
    %p118 = por %p116, %p117
    %p119 = scmp.ne.s32.totalorder %s111, %s113
    %p120 = scmp.eq.s32.totalorder %s35, 1
    %p121 = por %p119, %p120
    %p122 = scmp.ne.s32.totalorder %s113, %s114
    %p123 = scmp.eq.s32.totalorder %s35, 0
    %p124 = por %p122, %p123
    %p125 = scmp.ne.s32.totalorder %s113, %s114
    %p126 = scmp.eq.s32.totalorder %s36, 1
    %p127 = por %p125, %p126
    %p129 = scmp.ne.s32.totalorder %s114, %s128
    %p130 = scmp.eq.s32.totalorder %s36, 0
    %p131 = por %p129, %p130
    %s133 = sadd.s32 %s132, 1
    %p136 = scmp.eq.s32.totalorder %s30, 1
    %p137 = scmp.ne.s32.totalorder %s132, %s134
    %p138 = scmp.eq.s32.totalorder %s30, 0
    %p139 = por %p137, %p138
    %p140 = scmp.ne.s32.totalorder %s132, %s134
    %p141 = scmp.eq.s32.totalorder %s35, 1
    %p142 = por %p140, %p141
    %p143 = scmp.ne.s32.totalorder %s134, %s135
    %p144 = scmp.eq.s32.totalorder %s35, 0
    %p145 = por %p143, %p144
    %p146 = scmp.ne.s32.totalorder %s134, %s135
    %p147 = scmp.eq.s32.totalorder %s36, 1
    %p148 = por %p146, %p147
    %p150 = scmp.ne.s32.totalorder %s135, %s149
    %p151 = scmp.eq.s32.totalorder %s36, 0
    %p152 = por %p150, %p151
    %s154 = sadd.s32 %s153, 1
    %p157 = scmp.eq.s32.totalorder %s30, 1
    %p158 = scmp.ne.s32.totalorder %s153, %s155
    %p159 = scmp.eq.s32.totalorder %s30, 0
    %p160 = por %p158, %p159
    %p161 = scmp.ne.s32.totalorder %s153, %s155
    %p162 = scmp.eq.s32.totalorder %s35, 1
    %p163 = por %p161, %p162
    %p164 = scmp.ne.s32.totalorder %s155, %s156
    %p165 = scmp.eq.s32.totalorder %s35, 0
    %p166 = por %p164, %p165
    %p167 = scmp.ne.s32.totalorder %s155, %s156
    %p168 = scmp.eq.s32.totalorder %s36, 1
    %p169 = por %p167, %p168
    %p171 = scmp.ne.s32.totalorder %s156, %s170
    %p172 = scmp.eq.s32.totalorder %s36, 0
    %p173 = por %p171, %p172
    %s175 = sadd.s32 %s174, 1
    %p178 = scmp.eq.s32.totalorder %s30, 1
    %p179 = scmp.ne.s32.totalorder %s174, %s176
    %p180 = scmp.eq.s32.totalorder %s30, 0
    %p181 = por %p179, %p180
    %p182 = scmp.ne.s32.totalorder %s174, %s176
    %p183 = scmp.eq.s32.totalorder %s35, 1
    %p184 = por %p182, %p183
    %p185 = scmp.ne.s32.totalorder %s176, %s177
    %p186 = scmp.eq.s32.totalorder %s35, 0
    %p187 = por %p185, %p186
    %p188 = scmp.ne.s32.totalorder %s176, %s177
    %p189 = scmp.eq.s32.totalorder %s36, 1
    %p190 = por %p188, %p189
    %p192 = scmp.ne.s32.totalorder %s177, %s191
    %p193 = scmp.eq.s32.totalorder %s36, 0
    %p194 = por %p192, %p193
    %s196 = sadd.s32 %s195, 1
    %p199 = scmp.eq.s32.totalorder %s30, 1
    %p200 = scmp.ne.s32.totalorder %s195, %s197
    %p201 = scmp.eq.s32.totalorder %s30, 0
    %p202 = por %p200, %p201
    %p203 = scmp.ne.s32.totalorder %s195, %s197
    %p204 = scmp.eq.s32.totalorder %s35, 1
    %p205 = por %p203, %p204
    %p206 = scmp.ne.s32.totalorder %s197, %s198
    %p207 = scmp.eq.s32.totalorder %s35, 0
    %p208 = por %p206, %p207
    %p209 = scmp.ne.s32.totalorder %s197, %s198
    %p210 = scmp.eq.s32.totalorder %s36, 1
    %p211 = por %p209, %p210
    %p213 = scmp.ne.s32.totalorder %s198, %s212
    %p214 = scmp.eq.s32.totalorder %s36, 0
    %p215 = por %p213, %p214
    %s217 = sadd.s32 %s216, 1
    %p220 = scmp.eq.s32.totalorder %s30, 1
    %p221 = scmp.ne.s32.totalorder %s216, %s218
    %p222 = scmp.eq.s32.totalorder %s30, 0
    %p223 = por %p221, %p222
    %p224 = scmp.ne.s32.totalorder %s216, %s218
    %p225 = scmp.eq.s32.totalorder %s35, 1
    %p226 = por %p224, %p225
    %p227 = scmp.ne.s32.totalorder %s218, %s219
    %p228 = scmp.eq.s32.totalorder %s35, 0
    %p229 = por %p227, %p228
    %p230 = scmp.ne.s32.totalorder %s218, %s219
    %p231 = scmp.eq.s32.totalorder %s36, 1
    %p232 = por %p230, %p231
    %p234 = scmp.ne.s32.totalorder %s219, %s233
    %p235 = scmp.eq.s32.totalorder %s36, 0
    %p236 = por %p234, %p235
    %s238 = sadd.s32 %s237, 1
    %p241 = scmp.eq.s32.totalorder %s30, 1
    %p242 = scmp.ne.s32.totalorder %s237, %s239
    %p243 = scmp.eq.s32.totalorder %s30, 0
    %p244 = por %p242, %p243
    %p245 = scmp.ne.s32.totalorder %s237, %s239
    %p246 = scmp.eq.s32.totalorder %s35, 1
    %p247 = por %p245, %p246
    %p248 = scmp.ne.s32.totalorder %s239, %s240
    %p249 = scmp.eq.s32.totalorder %s35, 0
    %p250 = por %p248, %p249
    %p251 = scmp.ne.s32.totalorder %s239, %s240
    %p252 = scmp.eq.s32.totalorder %s36, 1
    %p253 = por %p251, %p252
    %p255 = scmp.ne.s32.totalorder %s240, %s254
    %p256 = scmp.eq.s32.totalorder %s36, 0
    %p257 = por %p255, %p256
    %s259 = sadd.s32 %s258, 1
    %p262 = scmp.eq.s32.totalorder %s30, 1
    %p263 = scmp.ne.s32.totalorder %s258, %s260
    %p264 = scmp.eq.s32.totalorder %s30, 0
    %p265 = por %p263, %p264
    %p266 = scmp.ne.s32.totalorder %s258, %s260
    %p267 = scmp.eq.s32.totalorder %s35, 1
    %p268 = por %p266, %p267
    %p269 = scmp.ne.s32.totalorder %s260, %s261
    %p270 = scmp.eq.s32.totalorder %s35, 0
    %p271 = por %p269, %p270
    %p272 = scmp.ne.s32.totalorder %s260, %s261
    %p273 = scmp.eq.s32.totalorder %s36, 1
    %p274 = por %p272, %p273
    %p276 = scmp.ne.s32.totalorder %s261, %s275
    %p277 = scmp.eq.s32.totalorder %s36, 0
    %p278 = por %p276, %p277
    %s280 = sadd.s32 %s279, 1
    %p283 = scmp.eq.s32.totalorder %s30, 1
    %p284 = scmp.ne.s32.totalorder %s279, %s281
    %p285 = scmp.eq.s32.totalorder %s30, 0
    %p286 = por %p284, %p285
    %p287 = scmp.ne.s32.totalorder %s279, %s281
    %p288 = scmp.eq.s32.totalorder %s35, 1
    %p289 = por %p287, %p288
    %p290 = scmp.ne.s32.totalorder %s281, %s282
    %p291 = scmp.eq.s32.totalorder %s35, 0
    %p292 = por %p290, %p291
    %p293 = scmp.ne.s32.totalorder %s281, %s282
    %p294 = scmp.eq.s32.totalorder %s36, 1
    %p295 = por %p293, %p294
    %p297 = scmp.ne.s32.totalorder %s282, %s296
    %p298 = scmp.eq.s32.totalorder %s36, 0
    %p299 = por %p297, %p298
    %s301 = sadd.s32 %s300, 1
    %p304 = scmp.eq.s32.totalorder %s30, 1
    %p305 = scmp.ne.s32.totalorder %s300, %s302
    %p306 = scmp.eq.s32.totalorder %s30, 0
    %p307 = por %p305, %p306
    %p308 = scmp.ne.s32.totalorder %s300, %s302
    %p309 = scmp.eq.s32.totalorder %s35, 1
    %p310 = por %p308, %p309
    %p311 = scmp.ne.s32.totalorder %s302, %s303
    %p312 = scmp.eq.s32.totalorder %s35, 0
    %p313 = por %p311, %p312
    %p314 = scmp.ne.s32.totalorder %s302, %s303
    %p315 = scmp.eq.s32.totalorder %s36, 1
    %p316 = por %p314, %p315
    %p318 = scmp.ne.s32.totalorder %s303, %s317
    %p319 = scmp.eq.s32.totalorder %s36, 0
    %p320 = por %p318, %p319
    %s322 = sadd.s32 %s321, 1
    %p325 = scmp.eq.s32.totalorder %s30, 1
    %p326 = scmp.ne.s32.totalorder %s321, %s323
    %p327 = scmp.eq.s32.totalorder %s30, 0
    %p328 = por %p326, %p327
    %p329 = scmp.ne.s32.totalorder %s321, %s323
    %p330 = scmp.eq.s32.totalorder %s35, 1
    %p331 = por %p329, %p330
    %p332 = scmp.ne.s32.totalorder %s323, %s324
    %p333 = scmp.eq.s32.totalorder %s35, 0
    %p334 = por %p332, %p333
    %p335 = scmp.ne.s32.totalorder %s323, %s324
    %p336 = scmp.eq.s32.totalorder %s36, 1
    %p337 = por %p335, %p336
    %p339 = scmp.ne.s32.totalorder %s324, %s338
    %p340 = scmp.eq.s32.totalorder %s36, 0
    %p341 = por %p339, %p340
    %s343 = sadd.s32 %s342, 1
    %p346 = scmp.eq.s32.totalorder %s30, 1
    %p347 = scmp.ne.s32.totalorder %s342, %s344
    %p348 = scmp.eq.s32.totalorder %s30, 0
    %p349 = por %p347, %p348
    %p350 = scmp.ne.s32.totalorder %s342, %s344
    %p351 = scmp.eq.s32.totalorder %s35, 1
    %p352 = por %p350, %p351
    %p353 = scmp.ne.s32.totalorder %s344, %s345
    %p354 = scmp.eq.s32.totalorder %s35, 0
    %p355 = por %p353, %p354
    %p356 = scmp.ne.s32.totalorder %s344, %s345
    %p357 = scmp.eq.s32.totalorder %s36, 1
    %p358 = por %p356, %p357
    %p360 = scmp.ne.s32.totalorder %s345, %s359
    %p361 = scmp.eq.s32.totalorder %s36, 0
    %p362 = por %p360, %p361
    %s364 = sadd.s32 %s363, 1
    %p367 = scmp.eq.s32.totalorder %s30, 1
    %p368 = scmp.ne.s32.totalorder %s363, %s365
    %p369 = scmp.eq.s32.totalorder %s30, 0
    %p370 = por %p368, %p369
    %p371 = scmp.ne.s32.totalorder %s363, %s365
    %p372 = scmp.eq.s32.totalorder %s35, 1
    %p373 = por %p371, %p372
    %p374 = scmp.ne.s32.totalorder %s365, %s366
    %p375 = scmp.eq.s32.totalorder %s35, 0
    %p376 = por %p374, %p375
    %p377 = scmp.ne.s32.totalorder %s365, %s366
    %p378 = scmp.eq.s32.totalorder %s36, 1
    %p379 = por %p377, %p378
    %p381 = scmp.ne.s32.totalorder %s366, %s380
    %p382 = scmp.eq.s32.totalorder %s36, 0
    %p383 = por %p381, %p382
    %s385 = sadd.s32 %s384, 1
    %p388 = scmp.eq.s32.totalorder %s30, 1
    %p389 = scmp.ne.s32.totalorder %s384, %s386
    %p390 = scmp.eq.s32.totalorder %s30, 0
    %p391 = por %p389, %p390
    %p392 = scmp.ne.s32.totalorder %s384, %s386
    %p393 = scmp.eq.s32.totalorder %s35, 1
    %p394 = por %p392, %p393
    %p395 = scmp.ne.s32.totalorder %s386, %s387
    %p396 = scmp.eq.s32.totalorder %s35, 0
    %p397 = por %p395, %p396
    %p398 = scmp.ne.s32.totalorder %s386, %s387
    %p399 = scmp.eq.s32.totalorder %s36, 1
    %p400 = por %p398, %p399
    %p402 = scmp.ne.s32.totalorder %s387, %s401
    %p403 = scmp.eq.s32.totalorder %s36, 0
    %p404 = por %p402, %p403
    %s406 = sadd.s32 %s405, 1
    %p409 = scmp.eq.s32.totalorder %s30, 1
    %p410 = scmp.ne.s32.totalorder %s405, %s407
    %p411 = scmp.eq.s32.totalorder %s30, 0
    %p412 = por %p410, %p411
    %p413 = scmp.ne.s32.totalorder %s405, %s407
    %p414 = scmp.eq.s32.totalorder %s35, 1
    %p415 = por %p413, %p414
    %p416 = scmp.ne.s32.totalorder %s407, %s408
    %p417 = scmp.eq.s32.totalorder %s35, 0
    %p418 = por %p416, %p417
    %p419 = scmp.ne.s32.totalorder %s407, %s408
    %p420 = scmp.eq.s32.totalorder %s36, 1
    %p421 = por %p419, %p420
    %p423 = scmp.ne.s32.totalorder %s408, %s422
    %p424 = scmp.eq.s32.totalorder %s36, 0
    %p425 = por %p423, %p424
    %s427 = sadd.s32 %s426, 1
    %p430 = scmp.eq.s32.totalorder %s30, 1
    %p431 = scmp.ne.s32.totalorder %s426, %s428
    %p432 = scmp.eq.s32.totalorder %s30, 0
    %p433 = por %p431, %p432
    %p434 = scmp.ne.s32.totalorder %s426, %s428
    %p435 = scmp.eq.s32.totalorder %s35, 1
    %p436 = por %p434, %p435
    %p437 = scmp.ne.s32.totalorder %s428, %s429
    %p438 = scmp.eq.s32.totalorder %s35, 0
    %p439 = por %p437, %p438
    %p440 = scmp.ne.s32.totalorder %s428, %s429
    %p441 = scmp.eq.s32.totalorder %s36, 1
    %p442 = por %p440, %p441
    %p444 = scmp.ne.s32.totalorder %s429, %s443
    %p445 = scmp.eq.s32.totalorder %s36, 0
    %p446 = por %p444, %p445
    %s448 = sadd.s32 %s447, 1
    %p451 = scmp.eq.s32.totalorder %s30, 1
    %p452 = scmp.ne.s32.totalorder %s447, %s449
    %p453 = scmp.eq.s32.totalorder %s30, 0
    %p454 = por %p452, %p453
    %p455 = scmp.ne.s32.totalorder %s447, %s449
    %p456 = scmp.eq.s32.totalorder %s35, 1
    %p457 = por %p455, %p456
    %p458 = scmp.ne.s32.totalorder %s449, %s450
    %p459 = scmp.eq.s32.totalorder %s35, 0
    %p460 = por %p458, %p459
    %p461 = scmp.ne.s32.totalorder %s449, %s450
    %p462 = scmp.eq.s32.totalorder %s36, 1
    %p463 = por %p461, %p462
    %p465 = scmp.ne.s32.totalorder %s450, %s464
    %p466 = scmp.eq.s32.totalorder %s36, 0
    %p467 = por %p465, %p466
    %s469 = sadd.s32 %s468, 1
    %p472 = scmp.eq.s32.totalorder %s30, 1
    %p473 = scmp.ne.s32.totalorder %s468, %s470
    %p474 = scmp.eq.s32.totalorder %s30, 0
    %p475 = por %p473, %p474
    %p476 = scmp.ne.s32.totalorder %s468, %s470
    %p477 = scmp.eq.s32.totalorder %s35, 1
    %p478 = por %p476, %p477
    %p479 = scmp.ne.s32.totalorder %s470, %s471
    %p480 = scmp.eq.s32.totalorder %s35, 0
    %p481 = por %p479, %p480
    %p482 = scmp.ne.s32.totalorder %s470, %s471
    %p483 = scmp.eq.s32.totalorder %s36, 1
    %p484 = por %p482, %p483
    %p486 = scmp.ne.s32.totalorder %s471, %s485
    %p487 = scmp.eq.s32.totalorder %s36, 0
    %p488 = por %p486, %p487
    %s490 = sadd.s32 %s489, 1
    %p493 = scmp.eq.s32.totalorder %s30, 1
    %p494 = scmp.ne.s32.totalorder %s489, %s491
    %p495 = scmp.eq.s32.totalorder %s30, 0
    %p496 = por %p494, %p495
    %p497 = scmp.ne.s32.totalorder %s489, %s491
    %p498 = scmp.eq.s32.totalorder %s35, 1
    %p499 = por %p497, %p498
    %p500 = scmp.ne.s32.totalorder %s491, %s492
    %p501 = scmp.eq.s32.totalorder %s35, 0
    %p502 = por %p500, %p501
    %p503 = scmp.ne.s32.totalorder %s491, %s492
    %p504 = scmp.eq.s32.totalorder %s36, 1
    %p505 = por %p503, %p504
    %p507 = scmp.ne.s32.totalorder %s492, %s506
    %p508 = scmp.eq.s32.totalorder %s36, 0
    %p509 = por %p507, %p508
    %s511 = sadd.s32 %s510, 1
    %p514 = scmp.eq.s32.totalorder %s30, 1
    %p515 = scmp.ne.s32.totalorder %s510, %s512
    %p516 = scmp.eq.s32.totalorder %s30, 0
    %p517 = por %p515, %p516
    %p518 = scmp.ne.s32.totalorder %s510, %s512
    %p519 = scmp.eq.s32.totalorder %s35, 1
    %p520 = por %p518, %p519
    %p521 = scmp.ne.s32.totalorder %s512, %s513
    %p522 = scmp.eq.s32.totalorder %s35, 0
    %p523 = por %p521, %p522
    %p524 = scmp.ne.s32.totalorder %s512, %s513
    %p525 = scmp.eq.s32.totalorder %s36, 1
    %p526 = por %p524, %p525
    %p528 = scmp.ne.s32.totalorder %s513, %s527
    %p529 = scmp.eq.s32.totalorder %s36, 0
    %p530 = por %p528, %p529
    %s532 = sadd.s32 %s531, 1
    %p535 = scmp.eq.s32.totalorder %s30, 1
    %p536 = scmp.ne.s32.totalorder %s531, %s533
    %p537 = scmp.eq.s32.totalorder %s30, 0
    %p538 = por %p536, %p537
    %p539 = scmp.ne.s32.totalorder %s531, %s533
    %p540 = scmp.eq.s32.totalorder %s35, 1
    %p541 = por %p539, %p540
    %p542 = scmp.ne.s32.totalorder %s533, %s534
    %p543 = scmp.eq.s32.totalorder %s35, 0
    %p544 = por %p542, %p543
    %p545 = scmp.ne.s32.totalorder %s533, %s534
    %p546 = scmp.eq.s32.totalorder %s36, 1
    %p547 = por %p545, %p546
    %p549 = scmp.ne.s32.totalorder %s534, %s548
    %p550 = scmp.eq.s32.totalorder %s36, 0
    %p551 = por %p549, %p550
    %p552 = scmp.le.s32.totalorder 1, %s30
    %p553 = scmp.lt.s32.totalorder %s30, 3
    %p554 = pnand %p552, %p553
    %p555 = pneg %p554
    // Predicated region
    $region9: #{tpu_custom_call.1} parent=5 // pred_check
      _
    $region10: #{tpu_custom_call.1} parent=5 // pred_check_branch
      %557 = sbr.rel (%p554) target = $region12
    $region11: #{tpu_custom_call.1} parent=5 // pred_region
      %s558 = ssub.s32 %s30, 1
      // Predicated region
      $region13: #{tpu_custom_call.1} parent=11 // pred_check
        %p559 = pneg %p103
      $region14: #{tpu_custom_call.1} parent=11 // pred_check_branch
        %561 = sbr.rel (%p559) target = $region16
      $region15: #{tpu_custom_call.1} parent=11 // pred_region
        _
      $region16: #{tpu_custom_call.1} parent=11 // pred_fallthru
        _
      // Predicated region
      $region17: #{tpu_custom_call.1} parent=11 // pred_check
        %p562 = pneg %p124
      $region18: #{tpu_custom_call.1} parent=11 // pred_check_branch
        %564 = sbr.rel (%p562) target = $region20
      $region19: #{tpu_custom_call.1} parent=11 // pred_region
        _
      $region20: #{tpu_custom_call.1} parent=11 // pred_fallthru
        _
      // Predicated region
      $region21: #{tpu_custom_call.1} parent=11 // pred_check
        %p565 = pneg %p145
      $region22: #{tpu_custom_call.1} parent=11 // pred_check_branch
        %567 = sbr.rel (%p565) target = $region24
      $region23: #{tpu_custom_call.1} parent=11 // pred_region
        _
      $region24: #{tpu_custom_call.1} parent=11 // pred_fallthru
        _
      // Predicated region
      $region25: #{tpu_custom_call.1} parent=11 // pred_check
        %p568 = pneg %p166
      $region26: #{tpu_custom_call.1} parent=11 // pred_check_branch
        %570 = sbr.rel (%p568) target = $region28
      $region27: #{tpu_custom_call.1} parent=11 // pred_region
        _
      $region28: #{tpu_custom_call.1} parent=11 // pred_fallthru
        _
      // Predicated region
      $region29: #{tpu_custom_call.1} parent=11 // pred_check
        %p571 = pneg %p187
      $region30: #{tpu_custom_call.1} parent=11 // pred_check_branch
        %573 = sbr.rel (%p571) target = $region32
      $region31: #{tpu_custom_call.1} parent=11 // pred_region
        _
      $region32: #{tpu_custom_call.1} parent=11 // pred_fallthru
        _
      // Predicated region
      $region33: #{tpu_custom_call.1} parent=11 // pred_check
        %p574 = pneg %p208
      $region34: #{tpu_custom_call.1} parent=11 // pred_check_branch
        %576 = sbr.rel (%p574) target = $region36
      $region35: #{tpu_custom_call.1} parent=11 // pred_region
        _
      $region36: #{tpu_custom_call.1} parent=11 // pred_fallthru
        _
      // Predicated region
      $region37: #{tpu_custom_call.1} parent=11 // pred_check
        %p577 = pneg %p229
      $region38: #{tpu_custom_call.1} parent=11 // pred_check_branch
        %579 = sbr.rel (%p577) target = $region40
      $region39: #{tpu_custom_call.1} parent=11 // pred_region
        _
      $region40: #{tpu_custom_call.1} parent=11 // pred_fallthru
        _
      // Predicated region
      $region41: #{tpu_custom_call.1} parent=11 // pred_check
        %p580 = pneg %p250
      $region42: #{tpu_custom_call.1} parent=11 // pred_check_branch
        %582 = sbr.rel (%p580) target = $region44
      $region43: #{tpu_custom_call.1} parent=11 // pred_region
        _
      $region44: #{tpu_custom_call.1} parent=11 // pred_fallthru
        _
      // Predicated region
      $region45: #{tpu_custom_call.1} parent=11 // pred_check
        %p583 = pneg %p271
      $region46: #{tpu_custom_call.1} parent=11 // pred_check_branch
        %585 = sbr.rel (%p583) target = $region48
      $region47: #{tpu_custom_call.1} parent=11 // pred_region
        _
      $region48: #{tpu_custom_call.1} parent=11 // pred_fallthru
        _
      // Predicated region
      $region49: #{tpu_custom_call.1} parent=11 // pred_check
        %p586 = pneg %p292
      $region50: #{tpu_custom_call.1} parent=11 // pred_check_branch
        %588 = sbr.rel (%p586) target = $region52
      $region51: #{tpu_custom_call.1} parent=11 // pred_region
        _
      $region52: #{tpu_custom_call.1} parent=11 // pred_fallthru
        _
      // Predicated region
      $region53: #{tpu_custom_call.1} parent=11 // pred_check
        %p589 = pneg %p313
      $region54: #{tpu_custom_call.1} parent=11 // pred_check_branch
        %591 = sbr.rel (%p589) target = $region56
      $region55: #{tpu_custom_call.1} parent=11 // pred_region
        _
      $region56: #{tpu_custom_call.1} parent=11 // pred_fallthru
        _
      // Predicated region
      $region57: #{tpu_custom_call.1} parent=11 // pred_check
        %p592 = pneg %p334
      $region58: #{tpu_custom_call.1} parent=11 // pred_check_branch
        %594 = sbr.rel (%p592) target = $region60
      $region59: #{tpu_custom_call.1} parent=11 // pred_region
        _
      $region60: #{tpu_custom_call.1} parent=11 // pred_fallthru
        _
      // Predicated region
      $region61: #{tpu_custom_call.1} parent=11 // pred_check
        %p595 = pneg %p355
      $region62: #{tpu_custom_call.1} parent=11 // pred_check_branch
        %597 = sbr.rel (%p595) target = $region64
      $region63: #{tpu_custom_call.1} parent=11 // pred_region
        _
      $region64: #{tpu_custom_call.1} parent=11 // pred_fallthru
        _
      // Predicated region
      $region65: #{tpu_custom_call.1} parent=11 // pred_check
        %p598 = pneg %p376
      $region66: #{tpu_custom_call.1} parent=11 // pred_check_branch
        %600 = sbr.rel (%p598) target = $region68
      $region67: #{tpu_custom_call.1} parent=11 // pred_region
        _
      $region68: #{tpu_custom_call.1} parent=11 // pred_fallthru
        _
      // Predicated region
      $region69: #{tpu_custom_call.1} parent=11 // pred_check
        %p601 = pneg %p397
      $region70: #{tpu_custom_call.1} parent=11 // pred_check_branch
        %603 = sbr.rel (%p601) target = $region72
      $region71: #{tpu_custom_call.1} parent=11 // pred_region
        _
      $region72: #{tpu_custom_call.1} parent=11 // pred_fallthru
        _
      // Predicated region
      $region73: #{tpu_custom_call.1} parent=11 // pred_check
        %p604 = pneg %p418
      $region74: #{tpu_custom_call.1} parent=11 // pred_check_branch
        %606 = sbr.rel (%p604) target = $region76
      $region75: #{tpu_custom_call.1} parent=11 // pred_region
        _
      $region76: #{tpu_custom_call.1} parent=11 // pred_fallthru
        _
      // Predicated region
      $region77: #{tpu_custom_call.1} parent=11 // pred_check
        %p607 = pneg %p439
      $region78: #{tpu_custom_call.1} parent=11 // pred_check_branch
        %609 = sbr.rel (%p607) target = $region80
      $region79: #{tpu_custom_call.1} parent=11 // pred_region
        _
      $region80: #{tpu_custom_call.1} parent=11 // pred_fallthru
        _
      // Predicated region
      $region81: #{tpu_custom_call.1} parent=11 // pred_check
        %p610 = pneg %p460
      $region82: #{tpu_custom_call.1} parent=11 // pred_check_branch
        %612 = sbr.rel (%p610) target = $region84
      $region83: #{tpu_custom_call.1} parent=11 // pred_region
        _
      $region84: #{tpu_custom_call.1} parent=11 // pred_fallthru
        _
      // Predicated region
      $region85: #{tpu_custom_call.1} parent=11 // pred_check
        %p613 = pneg %p481
      $region86: #{tpu_custom_call.1} parent=11 // pred_check_branch
        %615 = sbr.rel (%p613) target = $region88
      $region87: #{tpu_custom_call.1} parent=11 // pred_region
        _
      $region88: #{tpu_custom_call.1} parent=11 // pred_fallthru
        _
    $region12: #{tpu_custom_call.1} parent=5 // pred_fallthru
      _
    %p616 = scmp.lt.s32.totalorder %s30, 2
    // Predicated region
    $region89: #{tpu_custom_call.1} parent=5 // pred_check
      %p617 = pneg %p616
    $region90: #{tpu_custom_call.1} parent=5 // pred_check_branch
      %619 = sbr.rel (%p617) target = $region92
    $region91: #{tpu_custom_call.1} parent=5 // pred_region
      // Predicated region
      $region93: #{tpu_custom_call.1} parent=91 // pred_check
        %p620 = pneg %p50
      $region94: #{tpu_custom_call.1} parent=91 // pred_check_branch
        %622 = sbr.rel (%p620) target = $region96
      $region95: #{tpu_custom_call.1} parent=91 // pred_region
        %s623 = smul.u32 4, %s30
        %p624 = scmp.lt.s32.totalorder %s623, 7
        %s625 = scalar_select %p624, %s623, 7
        %s626 = smul.addr %s625, 8
        %s627 = scalar_lea.vmem %s0, %s626
        %s628 = smul.u32 4, %s30
      $region96: #{tpu_custom_call.1} parent=91 // pred_fallthru
        _
      // Predicated region
      $region97: #{tpu_custom_call.1} parent=91 // pred_check
        %p629 = pneg %p76
      $region98: #{tpu_custom_call.1} parent=91 // pred_check_branch
        %631 = sbr.rel (%p629) target = $region100
      $region99: #{tpu_custom_call.1} parent=91 // pred_region
        %s632 = smul.u32 4, %s30
        %p633 = scmp.lt.s32.totalorder %s632, 7
        %s634 = scalar_select %p633, %s632, 7
        %s635 = smul.addr %s634, 8
        %s636 = scalar_lea.vmem %s1, %s635
        %s637 = smul.u32 4, %s30
      $region100: #{tpu_custom_call.1} parent=91 // pred_fallthru
        _
    $region92: #{tpu_custom_call.1} parent=5 // pred_fallthru
      _
    %p638 = scmp.le.s32.totalorder 1, %s30
    %p639 = scmp.lt.s32.totalorder %s30, 3
    %p640 = pnand %p638, %p639
    %p641 = pneg %p640
    // Predicated region
    $region101: #{tpu_custom_call.1} parent=5 // pred_check
      _
    $region102: #{tpu_custom_call.1} parent=5 // pred_check_branch
      %643 = sbr.rel (%p640) target = $region104
    $region103: #{tpu_custom_call.1} parent=5 // pred_region
      %s644 = ssub.s32 %s30, 1
      %s645 = smul.u32 4, %s35
      %p646 = scmp.lt.s32.totalorder %s645, 7
      %s647 = scalar_select %p646, %s645, 7
      %s648 = smul.addr %s647, 8
      %s649 = scalar_lea.vmem %s0, %s648
      %p650 = pneg %p56
      %p651 = pneg %p53
      %s652 = smul.u32 4, %s35
      %p653 = scmp.lt.s32.totalorder %s652, 7
      %s654 = scalar_select %p653, %s652, 7
      %s655 = smul.addr %s654, 8
      %s656 = scalar_lea.vmem %s1, %s655
      %p657 = pneg %p82
      %p658 = pneg %p79
      %p659 = pneg %p103
      %p660 = pneg %p100
      %p661 = pneg %p124
      %p662 = pneg %p121
      %p663 = pneg %p145
      %p664 = pneg %p142
      %p665 = pneg %p166
      %p666 = pneg %p163
      %p667 = pneg %p187
      %p668 = pneg %p184
      %p669 = pneg %p208
      %p670 = pneg %p205
      %p671 = pneg %p229
      %p672 = pneg %p226
      %p673 = pneg %p250
      %p674 = pneg %p247
      %p675 = pneg %p271
      %p676 = pneg %p268
      %p677 = pneg %p292
      %p678 = pneg %p289
      %p679 = pneg %p313
      %p680 = pneg %p310
      %p681 = pneg %p334
      %p682 = pneg %p331
      %p683 = pneg %p355
      %p684 = pneg %p352
      %p685 = pneg %p376
      %p686 = pneg %p373
      %p687 = pneg %p397
      %p688 = pneg %p394
      %p689 = pneg %p418
      %p690 = pneg %p415
      %p691 = pneg %p439
      %p692 = pneg %p436
      %p693 = pneg %p460
      %p694 = pneg %p457
      %p695 = pneg %p481
      %p696 = pneg %p478
      %p697 = pneg %p502
      %p698 = pneg %p499
      %p699 = pneg %p523
      %p700 = pneg %p520
      %p701 = pneg %p544
      %p702 = pneg %p541
      %s703 = smul.u32 4, %s35
      %p704 = scmp.lt.s32.totalorder %s703, 7
      %s705 = scalar_select %p704, %s703, 7
      %s706 = smul.addr %s705, 8
      %s707 = scalar_lea.vmem %s0, %s706
      %s708 = smul.u32 4, %s35
      %s709 = smul.u32 4, %s35
      %p710 = scmp.lt.s32.totalorder %s709, 7
      %s711 = scalar_select %p710, %s709, 7
      %s712 = smul.addr %s711, 8
      %s713 = scalar_lea.vmem %s1, %s712
      %s714 = smul.u32 4, %s35
      %p716 = scmp.eq.s32.totalorder %s35, 0
      // Predicated region
      $region105: #{tpu_custom_call.1} parent=103 // pred_check
        %p717 = pneg %p716
      $region106: #{tpu_custom_call.1} parent=103 // pred_check_branch
        %719 = sbr.rel (%p717) target = $region108
      $region107: #{tpu_custom_call.1} parent=103 // pred_region
        %v720 = vld [vmem:[%s7] sm:$0xff]
        %vm721 = vcmask 130048
        %722 = vst.msk [vmem:[#allocation2] sm:$0xff] %vm721, %v720
        %v723 = vld [vmem:[%s8] sm:$0xff]
        %724 = vst.msk [vmem:[#allocation3] sm:$0xff] %vm721, %v723
        %vm725 = vcmask 80896
        %726 = vst.msk [vmem:[#allocation4] sm:$0xff] %vm725, 0.0
        %vm727 = vcmask 7168
        %728 = vst.msk [vmem:[#allocation5] sm:$0xff] %vm727, 0.0
        %729 = vst.msk [vmem:[#allocation6] sm:$0xff] %vm727, 0.0
        %730 = vst.msk [vmem:[#allocation7] sm:$0xff] %vm727, 0.0
      $region108: #{tpu_custom_call.1} parent=103 // pred_fallthru
        _
      %v731 = vld [vmem:[%s3] sm:$0xff]
      %v732 = vld [vmem:[%s3 + $0x8] sm:$0x3]
      %v733 = vld [vmem:[%s3 + $0x10] sm:$0xff]
      %v734 = vld [vmem:[%s3 + $0x18] sm:$0x3]
      %v735 = vld [vmem:[%s3 + $0x20] sm:$0xff]
      %v736 = vld [vmem:[%s3 + $0x28] sm:$0x3]
      %v737 = vld [vmem:[%s3 + $0x30] sm:$0xff]
      %v738 = vld [vmem:[%s3 + $0x38] sm:$0x3]
      %v739 = vld [vmem:[%s3 + $0x40] sm:$0xff]
      %v740 = vld [vmem:[%s3 + $0x48] sm:$0x3]
      %v741 = vld [vmem:[%s3 + $0x50] sm:$0xff]
      %v742 = vld [vmem:[%s3 + $0x58] sm:$0x3]
      %v743 = vld [vmem:[%s3 + $0x60] sm:$0xff]
      %v744 = vld [vmem:[%s3 + $0x68] sm:$0x3]
      %v745 = vld [vmem:[%s3 + $0x70] sm:$0xff]
      %v746 = vld [vmem:[%s3 + $0x78] sm:$0x3]
      %v747 = vld [vmem:[%s4] sm:$0xff]
      %v748 = vld [vmem:[%s4 + $0x8] sm:$0x3]
      %v749 = vld [vmem:[%s4 + $0x10] sm:$0xff]
      %v750 = vld [vmem:[%s4 + $0x18] sm:$0x3]
      %v751 = vld [vmem:[%s4 + $0x20] sm:$0xff]
      %v752 = vld [vmem:[%s4 + $0x28] sm:$0x3]
      %v753 = vld [vmem:[%s4 + $0x30] sm:$0xff]
      %v754 = vld [vmem:[%s4 + $0x38] sm:$0x3]
      %v755 = vld [vmem:[%s4 + $0x40] sm:$0xff]
      %v756 = vld [vmem:[%s4 + $0x48] sm:$0x3]
      %v757 = vld [vmem:[%s4 + $0x50] sm:$0xff]
      %v758 = vld [vmem:[%s4 + $0x58] sm:$0x3]
      %v759 = vld [vmem:[%s4 + $0x60] sm:$0xff]
      %v760 = vld [vmem:[%s4 + $0x68] sm:$0x3]
      %v761 = vld [vmem:[%s4 + $0x70] sm:$0xff]
      %v762 = vld [vmem:[%s4 + $0x78] sm:$0x3]
      %v763 = vld [vmem:[%s6] sm:$0xff]
      %v764 = vld [vmem:[%s2] sm:$0xff]
      %v765 = vld [vmem:[%s5] sm:$0xff]
      %v766 = vld [vmem:[%s9] sm:$0xff]
      %v767 = vld [vmem:[%s10] sm:$0xff]
      %v768 = vld [vmem:[%s10 + $0x8] sm:$0xff]
      %v769 = vld [vmem:[%s11] sm:$0x1]
      %v770 = vld [vmem:[%s12] sm:$0xff]
      %v771 = vld [vmem:[%s12 + $0x8] sm:$0xff]
      %v772 = vld [vmem:[%s13] sm:$0x1]
      %v773 = vld [vmem:[%s14] sm:$0x1]
      %v774 = vld [vmem:[%s15] sm:$0xf]
      %v775 = vld [vmem:[%s15 + $0x4] sm:$0xf]
      %v776 = vld [vmem:[%s15 + $0x8] sm:$0xf]
      %v777 = vld [vmem:[%s15 + $0xc] sm:$0xf]
      %v778 = vld [vmem:[%s16] sm:$0xf]
      %v779 = vld [vmem:[%s16 + $0x4] sm:$0xf]
      %v780 = vld [vmem:[%s17] sm:$0x1]
      %v781 = vld [vmem:[%s18] sm:$0x1]
      %v782 = vld [vmem:[%s19] sm:$0xf]
      %v783 = vld [vmem:[%s19 + $0x4] sm:$0xf]
      %v784 = vld [vmem:[%s19 + $0x8] sm:$0xf]
      %v785 = vld [vmem:[%s19 + $0xc] sm:$0xf]
      %v786 = vld [vmem:[%s20] sm:$0x1]
      %v787 = vlaneseq
      %v788 = vand.u32 %v787, 127
      %v789 = vadd.s32 %v788, 32
      %v790 = vld [vmem:[#allocation2] sm:$0xff]
      %v791 = vld [vmem:[#allocation3] sm:$0xff]
      %v792 = vld [vmem:[#allocation4] sm:$0xff]
      %v793 = vld [vmem:[#allocation5] sm:$0xff]
      %v794 = vld [vmem:[#allocation6] sm:$0xff]
      %v795 = vld [vmem:[#allocation7] sm:$0xff]
      %v796 = vld [vmem:[%s707] sm:$0xff]
      %v797 = vld [vmem:[%s713] sm:$0xff]
      %vm798 = vcmask 130048
      %v800 = vsel %vm798, %v790, 0
      %802 = vmatprep.subr.mxu0 0.0
      %803 = vmatpush1.msra.mxu0 %v767
      %804 = vmatprep.subr.mxu0 0.0
      %805 = vmatpush1.msra.mxu0 %v768
      %806 = vmatprep.subr.mxu0 0.0
      %807 = vmatpush1.msra.mxu0 0.0
      %808 = vmatprep.subr.mxu0 0.0
      %809 = vmatpush1.msra.mxu0 0.0
      %810 = vmatprep.subr.mxu0 0.0
      %811 = vmatpush1.msra.mxu0 0.0
      %812 = vmatprep.subr.mxu0 0.0
      %813 = vmatpush1.msra.mxu0 0.0
      %814 = vmatprep.subr.mxu0 0.0
      %815 = vmatpush1.msra.mxu0 0.0
      %816 = vmatprep.subr.mxu0 0.0
      %817 = vmatpush1.msra.mxu0 0.0
      %818 = vmatprep.subr.mxu0 0.0
      %819 = vmatpush1.msra.mxu0 0.0
      %820 = vmatprep.subr.mxu0 0.0
      %821 = vmatpush1.msra.mxu0 0.0
      %822 = vmatprep.subr.mxu0 0.0
      %823 = vmatpush1.msra.mxu0 0.0
      %824 = vmatprep.subr.mxu0 0.0
      %825 = vmatpush1.msra.mxu0 0.0
      %826 = vmatprep.subr.mxu0 0.0
      %827 = vmatpush1.msra.mxu0 0.0
      %828 = vmatprep.subr.mxu0 0.0
      %829 = vmatpush1.msra.mxu0 0.0
      %830 = vmatprep.subr.mxu0 0.0
      %831 = vmatpush1.msra.mxu0 0.0
      %832 = vmatprep.subr.mxu0 0.0
      %833 = vmatpush1.msra.mxu0 0.0
      %834 = vmatprep.subr.mxu0 0.0
      %835 = vmatpush1.msra.mxu0 0.0
      %836 = vmatprep.subr.mxu0 0.0
      %837 = vmatpush1.msra.mxu0 0.0
      %838 = vmatprep.subr.mxu0 0.0
      %839 = vmatpush1.msra.mxu0 0.0
      %840 = vmatprep.subr.mxu0 0.0
      %841 = vmatpush1.msra.mxu0 0.0
      %842 = vmatprep.subr.mxu0 0.0
      %843 = vmatpush1.msra.mxu0 0.0
      %844 = vmatprep.subr.mxu0 0.0
      %845 = vmatpush1.msra.mxu0 0.0
      %846 = vmatprep.subr.mxu0 0.0
      %847 = vmatpush1.msra.mxu0 0.0
      %848 = vmatprep.subr.mxu0 0.0
      %849 = vmatpush1.msra.mxu0 0.0
      %850 = vmatprep.subr.mxu0 0.0
      %851 = vmatpush1.msra.mxu0 0.0
      %852 = vmatprep.subr.mxu0 0.0
      %853 = vmatpush1.msra.mxu0 0.0
      %854 = vmatprep.subr.mxu0 0.0
      %855 = vmatpush1.msra.mxu0 0.0
      %856 = vmatprep.subr.mxu0 0.0
      %857 = vmatpush1.msra.mxu0 0.0
      %858 = vmatprep.subr.mxu0 0.0
      %859 = vmatpush1.msra.mxu0 0.0
      %860 = vmatprep.subr.mxu0 0.0
      %861 = vmatpush1.msra.mxu0 0.0
      %862 = vmatprep.subr.mxu0 0.0
      %863 = vmatpush1.msra.mxu0 0.0
      %864 = vmatprep.subr.mxu0 0.0
      %865 = vmatpush1.msra.mxu0 0.0
      %866 = vmatprep.mubr.f32.mxu0 0.0
      %867 = vmatmul.mubr.f32.gmra.mrb[0].mxu0 %v800
      %v868 = vpop.f32.mrb[0].mxu0
      %v869 = vadd.f32 0.0, %v868
      %v870 = vpop.f32.mrb[0].mxu0
      %871 = vdwg.mxu0
      %vm872 = vcmask 64512
      %v874 = vsel %vm872, %v796, 0
      %876 = vmatprep.subr.mxu0 0.0
      %877 = vmatpush1.msra.mxu0 %v766
      %878 = vmatprep.subr.mxu0 0.0
      %879 = vmatpush1.msra.mxu0 0.0
      %880 = vmatprep.subr.mxu0 0.0
      %881 = vmatpush1.msra.mxu0 0.0
      %882 = vmatprep.subr.mxu0 0.0
      %883 = vmatpush1.msra.mxu0 0.0
      %884 = vmatprep.subr.mxu0 0.0
      %885 = vmatpush1.msra.mxu0 0.0
      %886 = vmatprep.subr.mxu0 0.0
      %887 = vmatpush1.msra.mxu0 0.0
      %888 = vmatprep.subr.mxu0 0.0
      %889 = vmatpush1.msra.mxu0 0.0
      %890 = vmatprep.subr.mxu0 0.0
      %891 = vmatpush1.msra.mxu0 0.0
      %892 = vmatprep.subr.mxu0 0.0
      %893 = vmatpush1.msra.mxu0 0.0
      %894 = vmatprep.subr.mxu0 0.0
      %895 = vmatpush1.msra.mxu0 0.0
      %896 = vmatprep.subr.mxu0 0.0
      %897 = vmatpush1.msra.mxu0 0.0
      %898 = vmatprep.subr.mxu0 0.0
      %899 = vmatpush1.msra.mxu0 0.0
      %900 = vmatprep.subr.mxu0 0.0
      %901 = vmatpush1.msra.mxu0 0.0
      %902 = vmatprep.subr.mxu0 0.0
      %903 = vmatpush1.msra.mxu0 0.0
      %904 = vmatprep.subr.mxu0 0.0
      %905 = vmatpush1.msra.mxu0 0.0
      %906 = vmatprep.subr.mxu0 0.0
      %907 = vmatpush1.msra.mxu0 0.0
      %908 = vmatprep.subr.mxu0 0.0
      %909 = vmatpush1.msra.mxu0 0.0
      %910 = vmatprep.subr.mxu0 0.0
      %911 = vmatpush1.msra.mxu0 0.0
      %912 = vmatprep.subr.mxu0 0.0
      %913 = vmatpush1.msra.mxu0 0.0
      %914 = vmatprep.subr.mxu0 0.0
      %915 = vmatpush1.msra.mxu0 0.0
      %916 = vmatprep.subr.mxu0 0.0
      %917 = vmatpush1.msra.mxu0 0.0
      %918 = vmatprep.subr.mxu0 0.0
      %919 = vmatpush1.msra.mxu0 0.0
      %920 = vmatprep.subr.mxu0 0.0
      %921 = vmatpush1.msra.mxu0 0.0
      %922 = vmatprep.subr.mxu0 0.0
      %923 = vmatpush1.msra.mxu0 0.0
      %924 = vmatprep.subr.mxu0 0.0
      %925 = vmatpush1.msra.mxu0 0.0
      %926 = vmatprep.subr.mxu0 0.0
      %927 = vmatpush1.msra.mxu0 0.0
      %928 = vmatprep.subr.mxu0 0.0
      %929 = vmatpush1.msra.mxu0 0.0
      %930 = vmatprep.subr.mxu0 0.0
      %931 = vmatpush1.msra.mxu0 0.0
      %932 = vmatprep.subr.mxu0 0.0
      %933 = vmatpush1.msra.mxu0 0.0
      %934 = vmatprep.subr.mxu0 0.0
      %935 = vmatpush1.msra.mxu0 0.0
      %936 = vmatprep.subr.mxu0 0.0
      %937 = vmatpush1.msra.mxu0 0.0
      %938 = vmatprep.subr.mxu0 0.0
      %939 = vmatpush1.msra.mxu0 0.0
      %940 = vmatprep.mubr.f32.mxu0 0.0
      %941 = vmatmul.mubr.f32.gmra.mrb[0].mxu0 %v874
      %v942 = vpop.f32.mrb[0].mxu0
      %v943 = vadd.f32 %v869, %v942
      %v944 = vpop.f32.mrb[0].mxu0
      %945 = vdwg.mxu0
      %v947 = vlaneseq
      %v948 = vshrl.u32 %v947, 7
      %v949 = vsub.s32 0, %v948
      %v950 = vrot.slane %v769, %v949
      %v952 = vadd.f32 %v943, %v950
      %v953 = vxor.u32 %v952, 2147483648
      %v954 = vmul.f32 %v953, 1.442695
      %v955 = vpow.pop %v954
      %v956 = vadd.f32 %v955, 1.0
      %v957 = vrcp.pop %v956
      %v958 = vmul.f32 1.0, %v957
      %v959 = vtanh.pop %v952
      %961 = vrot.lane.b32.xlu0 %v791, 16
      %v962 = vpop.permute.xlu0 %961
      %v964 = vmul.f32 %v958, %v962
      %966 = vrot.lane.b32.xlu0 %v959, 96
      %v967 = vpop.permute.xlu0 %966
      %v969 = vmul.f32 %v958, %v967
      %971 = vrot.lane.b32.xlu0 %v969, 16
      %v972 = vpop.permute.xlu0 %971
      %v974 = vadd.f32 %v964, %v972
      %v975 = vtanh.pop %v974
      %977 = vrot.lane.b32.xlu0 %v975, 32
      %v978 = vpop.permute.xlu0 %977
      %v980 = vmul.f32 %v958, %v978
      %982 = vrot.lane.b32.xlu0 %v980, 80
      %v983 = vpop.permute.xlu0 %982
      %v984 = vsel %vm798, %v983, 0
      %986 = vmatprep.subr.mxu0 0.0
      %987 = vmatpush1.msra.mxu0 %v770
      %988 = vmatprep.subr.mxu0 0.0
      %989 = vmatpush1.msra.mxu0 %v771
      %990 = vmatprep.subr.mxu0 0.0
      %991 = vmatpush1.msra.mxu0 0.0
      %992 = vmatprep.subr.mxu0 0.0
      %993 = vmatpush1.msra.mxu0 0.0
      %994 = vmatprep.subr.mxu0 0.0
      %995 = vmatpush1.msra.mxu0 0.0
      %996 = vmatprep.subr.mxu0 0.0
      %997 = vmatpush1.msra.mxu0 0.0
      %998 = vmatprep.subr.mxu0 0.0
      %999 = vmatpush1.msra.mxu0 0.0
      %1000 = vmatprep.subr.mxu0 0.0
      %1001 = vmatpush1.msra.mxu0 0.0
      %1002 = vmatprep.subr.mxu0 0.0
      %1003 = vmatpush1.msra.mxu0 0.0
      %1004 = vmatprep.subr.mxu0 0.0
      %1005 = vmatpush1.msra.mxu0 0.0
      %1006 = vmatprep.subr.mxu0 0.0
      %1007 = vmatpush1.msra.mxu0 0.0
      %1008 = vmatprep.subr.mxu0 0.0
      %1009 = vmatpush1.msra.mxu0 0.0
      %1010 = vmatprep.subr.mxu0 0.0
      %1011 = vmatpush1.msra.mxu0 0.0
      %1012 = vmatprep.subr.mxu0 0.0
      %1013 = vmatpush1.msra.mxu0 0.0
      %1014 = vmatprep.subr.mxu0 0.0
      %1015 = vmatpush1.msra.mxu0 0.0
      %1016 = vmatprep.subr.mxu0 0.0
      %1017 = vmatpush1.msra.mxu0 0.0
      %1018 = vmatprep.subr.mxu0 0.0
      %1019 = vmatpush1.msra.mxu0 0.0
      %1020 = vmatprep.subr.mxu0 0.0
      %1021 = vmatpush1.msra.mxu0 0.0
      %1022 = vmatprep.subr.mxu0 0.0
      %1023 = vmatpush1.msra.mxu0 0.0
      %1024 = vmatprep.subr.mxu0 0.0
      %1025 = vmatpush1.msra.mxu0 0.0
      %1026 = vmatprep.subr.mxu0 0.0
      %1027 = vmatpush1.msra.mxu0 0.0
      %1028 = vmatprep.subr.mxu0 0.0
      %1029 = vmatpush1.msra.mxu0 0.0
      %1030 = vmatprep.subr.mxu0 0.0
      %1031 = vmatpush1.msra.mxu0 0.0
      %1032 = vmatprep.subr.mxu0 0.0
      %1033 = vmatpush1.msra.mxu0 0.0
      %1034 = vmatprep.subr.mxu0 0.0
      %1035 = vmatpush1.msra.mxu0 0.0
      %1036 = vmatprep.subr.mxu0 0.0
      %1037 = vmatpush1.msra.mxu0 0.0
      %1038 = vmatprep.subr.mxu0 0.0
      %1039 = vmatpush1.msra.mxu0 0.0
      %1040 = vmatprep.subr.mxu0 0.0
      %1041 = vmatpush1.msra.mxu0 0.0
      %1042 = vmatprep.subr.mxu0 0.0
      %1043 = vmatpush1.msra.mxu0 0.0
      %1044 = vmatprep.subr.mxu0 0.0
      %1045 = vmatpush1.msra.mxu0 0.0
      %1046 = vmatprep.subr.mxu0 0.0
      %1047 = vmatpush1.msra.mxu0 0.0
      %1048 = vmatprep.subr.mxu0 0.0
      %1049 = vmatpush1.msra.mxu0 0.0
      %1050 = vmatprep.mubr.f32.mxu0 0.0
      %1051 = vmatmul.mubr.f32.gmra.mrb[0].mxu0 %v984
      %v1052 = vpop.f32.mrb[0].mxu0
      %v1053 = vadd.f32 0.0, %v1052
      %v1054 = vpop.f32.mrb[0].mxu0
      %1055 = vdwg.mxu0
      %v1057 = vcombine.high %v1053, %v1053
      %v1059 = vunpack.c.l.s4 1966171168
      %v1060 = vunpack.c.0.s8 %v1059
      %v1061 = vlaneseq
      %v1062 = vshrl.u32 %v1061, 7
      %v1063 = vsub.s32 %v1060, %v1062
      %v1064 = vrot.slane %v1053, %v1063
      %v1066 = vunpack.c.l.s4 1966171168
      %v1067 = vunpack.c.0.s8 %v1066
      %v1068 = vlaneseq
      %v1069 = vshrl.u32 %v1068, 7
      %v1070 = vsub.s32 %v1067, %v1069
      %v1071 = vrot.slane %v1057, %v1070
      %v1072 = vcombine.high %v1064, %v1064
      %v1073 = vcombine.high %v1071, %v1071
      %v1075 = vunpack.c.l.s4 1966171168
      %v1076 = vunpack.c.0.s8 %v1075
      %v1077 = vlaneseq
      %v1078 = vshrl.u32 %v1077, 7
      %v1079 = vsub.s32 %v1076, %v1078
      %v1080 = vrot.slane %v1064, %v1079
      %v1082 = vunpack.c.l.s4 1966171168
      %v1083 = vunpack.c.0.s8 %v1082
      %v1084 = vlaneseq
      %v1085 = vshrl.u32 %v1084, 7
      %v1086 = vsub.s32 %v1083, %v1085
      %v1087 = vrot.slane %v1071, %v1086
      %v1089 = vunpack.c.l.s4 1966171168
      %v1090 = vunpack.c.0.s8 %v1089
      %v1091 = vlaneseq
      %v1092 = vshrl.u32 %v1091, 7
      %v1093 = vsub.s32 %v1090, %v1092
      %v1094 = vrot.slane %v1072, %v1093
      %v1096 = vunpack.c.l.s4 1966171168
      %v1097 = vunpack.c.0.s8 %v1096
      %v1098 = vlaneseq
      %v1099 = vshrl.u32 %v1098, 7
      %v1100 = vsub.s32 %v1097, %v1099
      %v1101 = vrot.slane %v1073, %v1100
      %v1102 = vcombine.high %v1080, %v1080
      %v1103 = vcombine.high %v1087, %v1087
      %v1104 = vcombine.high %v1094, %v1094
      %v1105 = vcombine.high %v1101, %v1101
      %v1106 = vlaneseq
      %v1107 = vshrl.u32 %v1106, 7
      %v1108 = vsub.s32 0, %v1107
      %v1109 = vrot.slane %v1080, %v1108
      %v1110 = vlaneseq
      %v1111 = vshrl.u32 %v1110, 7
      %v1112 = vsub.s32 0, %v1111
      %v1113 = vrot.slane %v1094, %v1112
      %v1114 = vlaneseq
      %v1115 = vshrl.u32 %v1114, 7
      %v1116 = vsub.s32 0, %v1115
      %v1117 = vrot.slane %v1102, %v1116
      %v1118 = vlaneseq
      %v1119 = vshrl.u32 %v1118, 7
      %v1120 = vsub.s32 0, %v1119
      %v1121 = vrot.slane %v1104, %v1120
      %v1122 = vlaneseq
      %v1123 = vshrl.u32 %v1122, 7
      %v1124 = vsub.s32 0, %v1123
      %v1125 = vrot.slane %v1087, %v1124
      %v1126 = vlaneseq
      %v1127 = vshrl.u32 %v1126, 7
      %v1128 = vsub.s32 0, %v1127
      %v1129 = vrot.slane %v1101, %v1128
      %v1130 = vlaneseq
      %v1131 = vshrl.u32 %v1130, 7
      %v1132 = vsub.s32 0, %v1131
      %v1133 = vrot.slane %v1103, %v1132
      %v1134 = vlaneseq
      %v1135 = vshrl.u32 %v1134, 7
      %v1136 = vsub.s32 0, %v1135
      %v1137 = vrot.slane %v1105, %v1136
      %v1146 = vadd.f32 %v747, %v1109
      %v1147 = vadd.f32 %v748, %v1109
      %v1148 = vadd.f32 %v749, %v1113
      %v1149 = vadd.f32 %v750, %v1113
      %v1150 = vadd.f32 %v751, %v1117
      %v1151 = vadd.f32 %v752, %v1117
      %v1152 = vadd.f32 %v753, %v1121
      %v1153 = vadd.f32 %v754, %v1121
      %v1154 = vadd.f32 %v755, %v1125
      %v1155 = vadd.f32 %v756, %v1125
      %v1156 = vadd.f32 %v757, %v1129
      %v1157 = vadd.f32 %v758, %v1129
      %v1158 = vadd.f32 %v759, %v1133
      %v1159 = vadd.f32 %v760, %v1133
      %v1160 = vadd.f32 %v761, %v1137
      %v1161 = vadd.f32 %v762, %v1137
      %v1162 = vlaneseq
      %v1163 = vshrl.u32 %v1162, 7
      %v1164 = vsub.s32 0, %v1163
      %v1165 = vrot.slane %v792, %v1164
      %1167 = vbcast.lane.b32.xlu0 %v1165, 256
      %v1168 = vpop.permute.xlu0 %1167
      %s1170 = sor.u32 256, 8
      %1171 = vbcast.lane.b32.xlu0 %v1165, %s1170
      %v1172 = vpop.permute.xlu0 %1171
      %v1173 = vlaneseq
      %v1174 = vshrl.u32 %v1173, 7
      %v1175 = vsub.s32 1, %v1174
      %v1176 = vrot.slane %v792, %v1175
      %1178 = vbcast.lane.b32.xlu0 %v1176, 256
      %v1179 = vpop.permute.xlu0 %1178
      %s1181 = sor.u32 256, 8
      %1182 = vbcast.lane.b32.xlu0 %v1176, %s1181
      %v1183 = vpop.permute.xlu0 %1182
      %v1184 = vlaneseq
      %v1185 = vshrl.u32 %v1184, 7
      %v1186 = vsub.s32 2, %v1185
      %v1187 = vrot.slane %v792, %v1186
      %1189 = vbcast.lane.b32.xlu0 %v1187, 256
      %v1190 = vpop.permute.xlu0 %1189
      %s1192 = sor.u32 256, 8
      %1193 = vbcast.lane.b32.xlu0 %v1187, %s1192
      %v1194 = vpop.permute.xlu0 %1193
      %v1195 = vlaneseq
      %v1196 = vshrl.u32 %v1195, 7
      %v1197 = vsub.s32 3, %v1196
      %v1198 = vrot.slane %v792, %v1197
      %1200 = vbcast.lane.b32.xlu0 %v1198, 256
      %v1201 = vpop.permute.xlu0 %1200
      %s1203 = sor.u32 256, 8
      %1204 = vbcast.lane.b32.xlu0 %v1198, %s1203
      %v1205 = vpop.permute.xlu0 %1204
      %v1206 = vlaneseq
      %v1207 = vshrl.u32 %v1206, 7
      %v1208 = vsub.s32 4, %v1207
      %v1209 = vrot.slane %v792, %v1208
      %1211 = vbcast.lane.b32.xlu0 %v1209, 256
      %v1212 = vpop.permute.xlu0 %1211
      %s1214 = sor.u32 256, 8
      %1215 = vbcast.lane.b32.xlu0 %v1209, %s1214
      %v1216 = vpop.permute.xlu0 %1215
      %v1217 = vlaneseq
      %v1218 = vshrl.u32 %v1217, 7
      %v1219 = vsub.s32 5, %v1218
      %v1220 = vrot.slane %v792, %v1219
      %1222 = vbcast.lane.b32.xlu0 %v1220, 256
      %v1223 = vpop.permute.xlu0 %1222
      %s1225 = sor.u32 256, 8
      %1226 = vbcast.lane.b32.xlu0 %v1220, %s1225
      %v1227 = vpop.permute.xlu0 %1226
      %v1228 = vlaneseq
      %v1229 = vshrl.u32 %v1228, 7
      %v1230 = vsub.s32 6, %v1229
      %v1231 = vrot.slane %v792, %v1230
      %1233 = vbcast.lane.b32.xlu0 %v1231, 256
      %v1234 = vpop.permute.xlu0 %1233
      %s1236 = sor.u32 256, 8
      %1237 = vbcast.lane.b32.xlu0 %v1231, %s1236
      %v1238 = vpop.permute.xlu0 %1237
      %v1239 = vlaneseq
      %v1240 = vshrl.u32 %v1239, 7
      %v1241 = vsub.s32 7, %v1240
      %v1242 = vrot.slane %v792, %v1241
      %1244 = vbcast.lane.b32.xlu0 %v1242, 256
      %v1245 = vpop.permute.xlu0 %1244
      %s1247 = sor.u32 256, 8
      %1248 = vbcast.lane.b32.xlu0 %v1242, %s1247
      %v1249 = vpop.permute.xlu0 %1248
      %v1251 = vlaneseq
      %v1252 = vshrl.u32 %v1251, 7
      %v1253 = vsub.s32 0, %v1252
      %v1254 = vrot.slane %v772, %v1253
      %v1256 = vmul.f32 %v1168, %v1254
      %v1257 = vmul.f32 %v1172, %v1254
      %v1258 = vmul.f32 %v1179, %v1254
      %v1259 = vmul.f32 %v1183, %v1254
      %v1260 = vmul.f32 %v1190, %v1254
      %v1261 = vmul.f32 %v1194, %v1254
      %v1262 = vmul.f32 %v1201, %v1254
      %v1263 = vmul.f32 %v1205, %v1254
      %v1264 = vmul.f32 %v1212, %v1254
      %v1265 = vmul.f32 %v1216, %v1254
      %v1266 = vmul.f32 %v1223, %v1254
      %v1267 = vmul.f32 %v1227, %v1254
      %v1268 = vmul.f32 %v1234, %v1254
      %v1269 = vmul.f32 %v1238, %v1254
      %v1270 = vmul.f32 %v1245, %v1254
      %v1271 = vmul.f32 %v1249, %v1254
      %v1272 = vadd.f32 %v1146, %v1256
      %v1273 = vadd.f32 %v1147, %v1257
      %v1274 = vadd.f32 %v1148, %v1258
      %v1275 = vadd.f32 %v1149, %v1259
      %v1276 = vadd.f32 %v1150, %v1260
      %v1277 = vadd.f32 %v1151, %v1261
      %v1278 = vadd.f32 %v1152, %v1262
      %v1279 = vadd.f32 %v1153, %v1263
      %v1280 = vadd.f32 %v1154, %v1264
      %v1281 = vadd.f32 %v1155, %v1265
      %v1282 = vadd.f32 %v1156, %v1266
      %v1283 = vadd.f32 %v1157, %v1267
      %v1284 = vadd.f32 %v1158, %v1268
      %v1285 = vadd.f32 %v1159, %v1269
      %v1286 = vadd.f32 %v1160, %v1270
      %v1287 = vadd.f32 %v1161, %v1271
      %v1288 = vtanh.pop %v1272
      %v1289 = vtanh.pop %v1273
      %v1290 = vtanh.pop %v1274
      %v1291 = vtanh.pop %v1275
      %v1292 = vtanh.pop %v1276
      %v1293 = vtanh.pop %v1277
      %v1294 = vtanh.pop %v1278
      %v1295 = vtanh.pop %v1279
      %v1296 = vtanh.pop %v1280
      %v1297 = vtanh.pop %v1281
      %v1298 = vtanh.pop %v1282
      %v1299 = vtanh.pop %v1283
      %v1300 = vtanh.pop %v1284
      %v1301 = vtanh.pop %v1285
      %v1302 = vtanh.pop %v1286
      %v1303 = vtanh.pop %v1287
      %v1305 = vlaneseq
      %v1306 = vshrl.u32 %v1305, 7
      %v1307 = vsub.s32 0, %v1306
      %v1308 = vrot.slane %v773, %v1307
      %v1310 = vmul.f32 %v1288, %v1308
      %v1311 = vmul.f32 %v1289, %v1308
      %v1312 = vmul.f32 %v1290, %v1308
      %v1313 = vmul.f32 %v1291, %v1308
      %v1314 = vmul.f32 %v1292, %v1308
      %v1315 = vmul.f32 %v1293, %v1308
      %v1316 = vmul.f32 %v1294, %v1308
      %v1317 = vmul.f32 %v1295, %v1308
      %v1318 = vmul.f32 %v1296, %v1308
      %v1319 = vmul.f32 %v1297, %v1308
      %v1320 = vmul.f32 %v1298, %v1308
      %v1321 = vmul.f32 %v1299, %v1308
      %v1322 = vmul.f32 %v1300, %v1308
      %v1323 = vmul.f32 %v1301, %v1308
      %v1324 = vmul.f32 %v1302, %v1308
      %v1325 = vmul.f32 %v1303, %v1308
      %v1326 = vsel %vm798, %v1310, 0.0
      %1327 = vadd.xlane.f32.xlu0 %v1326
      %v1328 = vpop.xlane.xlu0 %1327
      %vm1329 = vcmask 123904
      %v1330 = vsel %vm1329, %v1311, 0.0
      %1331 = vadd.xlane.f32.xlu0 %v1330
      %v1332 = vpop.xlane.xlu0 %1331
      %v1333 = vsel %vm798, %v1312, 0.0
      %1334 = vadd.xlane.f32.xlu0 %v1333
      %v1335 = vpop.xlane.xlu0 %1334
      %v1336 = vsel %vm1329, %v1313, 0.0
      %1337 = vadd.xlane.f32.xlu0 %v1336
      %v1338 = vpop.xlane.xlu0 %1337
      %v1339 = vsel %vm798, %v1314, 0.0
      %1340 = vadd.xlane.f32.xlu0 %v1339
      %v1341 = vpop.xlane.xlu0 %1340
      %v1342 = vsel %vm1329, %v1315, 0.0
      %1343 = vadd.xlane.f32.xlu0 %v1342
      %v1344 = vpop.xlane.xlu0 %1343
      %v1345 = vsel %vm798, %v1316, 0.0
      %1346 = vadd.xlane.f32.xlu0 %v1345
      %v1347 = vpop.xlane.xlu0 %1346
      %v1348 = vsel %vm1329, %v1317, 0.0
      %1349 = vadd.xlane.f32.xlu0 %v1348
      %v1350 = vpop.xlane.xlu0 %1349
      %v1351 = vsel %vm798, %v1318, 0.0
      %1352 = vadd.xlane.f32.xlu0 %v1351
      %v1353 = vpop.xlane.xlu0 %1352
      %v1354 = vsel %vm1329, %v1319, 0.0
      %1355 = vadd.xlane.f32.xlu0 %v1354
      %v1356 = vpop.xlane.xlu0 %1355
      %v1357 = vsel %vm798, %v1320, 0.0
      %1358 = vadd.xlane.f32.xlu0 %v1357
      %v1359 = vpop.xlane.xlu0 %1358
      %v1360 = vsel %vm1329, %v1321, 0.0
      %1361 = vadd.xlane.f32.xlu0 %v1360
      %v1362 = vpop.xlane.xlu0 %1361
      %v1363 = vsel %vm798, %v1322, 0.0
      %1364 = vadd.xlane.f32.xlu0 %v1363
      %v1365 = vpop.xlane.xlu0 %1364
      %v1366 = vsel %vm1329, %v1323, 0.0
      %1367 = vadd.xlane.f32.xlu0 %v1366
      %v1368 = vpop.xlane.xlu0 %1367
      %v1369 = vsel %vm798, %v1324, 0.0
      %1370 = vadd.xlane.f32.xlu0 %v1369
      %v1371 = vpop.xlane.xlu0 %1370
      %v1372 = vsel %vm1329, %v1325, 0.0
      %1373 = vadd.xlane.f32.xlu0 %v1372
      %v1374 = vpop.xlane.xlu0 %1373
      %v1376 = vlaneseq
      %v1377 = vshrl.u32 %v1376, 7
      %v1378 = vsub.s32 0, %v1377
      %v1379 = vrot.slane %v763, %v1378
      %1381 = vbcast.lane.b32.xlu0 %v1379, 256
      %v1382 = vpop.permute.xlu0 %1381
      %s1384 = sor.u32 256, 8
      %1385 = vbcast.lane.b32.xlu0 %v1379, %s1384
      %v1386 = vpop.permute.xlu0 %1385
      %v1387 = vlaneseq
      %v1388 = vshrl.u32 %v1387, 7
      %v1389 = vsub.s32 1, %v1388
      %v1390 = vrot.slane %v763, %v1389
      %1392 = vbcast.lane.b32.xlu0 %v1390, 256
      %v1393 = vpop.permute.xlu0 %1392
      %s1395 = sor.u32 256, 8
      %1396 = vbcast.lane.b32.xlu0 %v1390, %s1395
      %v1397 = vpop.permute.xlu0 %1396
      %v1398 = vlaneseq
      %v1399 = vshrl.u32 %v1398, 7
      %v1400 = vsub.s32 2, %v1399
      %v1401 = vrot.slane %v763, %v1400
      %1403 = vbcast.lane.b32.xlu0 %v1401, 256
      %v1404 = vpop.permute.xlu0 %1403
      %s1406 = sor.u32 256, 8
      %1407 = vbcast.lane.b32.xlu0 %v1401, %s1406
      %v1408 = vpop.permute.xlu0 %1407
      %v1409 = vlaneseq
      %v1410 = vshrl.u32 %v1409, 7
      %v1411 = vsub.s32 3, %v1410
      %v1412 = vrot.slane %v763, %v1411
      %1414 = vbcast.lane.b32.xlu0 %v1412, 256
      %v1415 = vpop.permute.xlu0 %1414
      %s1417 = sor.u32 256, 8
      %1418 = vbcast.lane.b32.xlu0 %v1412, %s1417
      %v1419 = vpop.permute.xlu0 %1418
      %v1420 = vlaneseq
      %v1421 = vshrl.u32 %v1420, 7
      %v1422 = vsub.s32 4, %v1421
      %v1423 = vrot.slane %v763, %v1422
      %1425 = vbcast.lane.b32.xlu0 %v1423, 256
      %v1426 = vpop.permute.xlu0 %1425
      %s1428 = sor.u32 256, 8
      %1429 = vbcast.lane.b32.xlu0 %v1423, %s1428
      %v1430 = vpop.permute.xlu0 %1429
      %v1431 = vlaneseq
      %v1432 = vshrl.u32 %v1431, 7
      %v1433 = vsub.s32 5, %v1432
      %v1434 = vrot.slane %v763, %v1433
      %1436 = vbcast.lane.b32.xlu0 %v1434, 256
      %v1437 = vpop.permute.xlu0 %1436
      %s1439 = sor.u32 256, 8
      %1440 = vbcast.lane.b32.xlu0 %v1434, %s1439
      %v1441 = vpop.permute.xlu0 %1440
      %v1442 = vlaneseq
      %v1443 = vshrl.u32 %v1442, 7
      %v1444 = vsub.s32 6, %v1443
      %v1445 = vrot.slane %v763, %v1444
      %1447 = vbcast.lane.b32.xlu0 %v1445, 256
      %v1448 = vpop.permute.xlu0 %1447
      %s1450 = sor.u32 256, 8
      %1451 = vbcast.lane.b32.xlu0 %v1445, %s1450
      %v1452 = vpop.permute.xlu0 %1451
      %v1453 = vlaneseq
      %v1454 = vshrl.u32 %v1453, 7
      %v1455 = vsub.s32 7, %v1454
      %v1456 = vrot.slane %v763, %v1455
      %1458 = vbcast.lane.b32.xlu0 %v1456, 256
      %v1459 = vpop.permute.xlu0 %1458
      %s1461 = sor.u32 256, 8
      %1462 = vbcast.lane.b32.xlu0 %v1456, %s1461
      %v1463 = vpop.permute.xlu0 %1462
      %v1480 = vadd.f32 %v1328, %v1382
      %v1481 = vadd.f32 %v1332, %v1386
      %v1482 = vadd.f32 %v1335, %v1393
      %v1483 = vadd.f32 %v1338, %v1397
      %v1484 = vadd.f32 %v1341, %v1404
      %v1485 = vadd.f32 %v1344, %v1408
      %v1486 = vadd.f32 %v1347, %v1415
      %v1487 = vadd.f32 %v1350, %v1419
      %v1488 = vadd.f32 %v1353, %v1426
      %v1489 = vadd.f32 %v1356, %v1430
      %v1490 = vadd.f32 %v1359, %v1437
      %v1491 = vadd.f32 %v1362, %v1441
      %v1492 = vadd.f32 %v1365, %v1448
      %v1493 = vadd.f32 %v1368, %v1452
      %v1494 = vadd.f32 %v1371, %v1459
      %v1495 = vadd.f32 %v1374, %v1463
      %1512 = vset.pattern.permute.xlu0 0
      %1513 = vperm.xlu0 %1512, %v1480
      %v1514 = vpop.permute.xlu0 %1513
      %1515 = vset.pattern.permute.xlu0 0
      %1516 = vperm.xlu0 %1515, %v1481
      %v1517 = vpop.permute.xlu0 %1516
      %1518 = vset.pattern.permute.xlu0 0
      %1519 = vperm.xlu0 %1518, %v1482
      %v1520 = vpop.permute.xlu0 %1519
      %1521 = vset.pattern.permute.xlu0 0
      %1522 = vperm.xlu0 %1521, %v1483
      %v1523 = vpop.permute.xlu0 %1522
      %1524 = vset.pattern.permute.xlu0 0
      %1525 = vperm.xlu0 %1524, %v1484
      %v1526 = vpop.permute.xlu0 %1525
      %1527 = vset.pattern.permute.xlu0 0
      %1528 = vperm.xlu0 %1527, %v1485
      %v1529 = vpop.permute.xlu0 %1528
      %1530 = vset.pattern.permute.xlu0 0
      %1531 = vperm.xlu0 %1530, %v1486
      %v1532 = vpop.permute.xlu0 %1531
      %1533 = vset.pattern.permute.xlu0 0
      %1534 = vperm.xlu0 %1533, %v1487
      %v1535 = vpop.permute.xlu0 %1534
      %1536 = vset.pattern.permute.xlu0 0
      %1537 = vperm.xlu0 %1536, %v1488
      %v1538 = vpop.permute.xlu0 %1537
      %1539 = vset.pattern.permute.xlu0 0
      %1540 = vperm.xlu0 %1539, %v1489
      %v1541 = vpop.permute.xlu0 %1540
      %1542 = vset.pattern.permute.xlu0 0
      %1543 = vperm.xlu0 %1542, %v1490
      %v1544 = vpop.permute.xlu0 %1543
      %1545 = vset.pattern.permute.xlu0 0
      %1546 = vperm.xlu0 %1545, %v1491
      %v1547 = vpop.permute.xlu0 %1546
      %1548 = vset.pattern.permute.xlu0 0
      %1549 = vperm.xlu0 %1548, %v1492
      %v1550 = vpop.permute.xlu0 %1549
      %1551 = vset.pattern.permute.xlu0 0
      %1552 = vperm.xlu0 %1551, %v1493
      %v1553 = vpop.permute.xlu0 %1552
      %1554 = vset.pattern.permute.xlu0 0
      %1555 = vperm.xlu0 %1554, %v1494
      %v1556 = vpop.permute.xlu0 %1555
      %1557 = vset.pattern.permute.xlu0 0
      %1558 = vperm.xlu0 %1557, %v1495
      %v1559 = vpop.permute.xlu0 %1558
      %v1560 = vlaneseq
      %v1561 = vshrl.u32 %v1560, 7
      %v1562 = vsub.s32 %v788, %v1561
      %v1563 = vrot.slane %v1514, %v1562
      %v1564 = vadd.s32 %v788, 4294967288
      %v1565 = vlaneseq
      %v1566 = vshrl.u32 %v1565, 7
      %v1567 = vsub.s32 %v1564, %v1566
      %v1568 = vrot.slane %v1517, %v1567
      %vm1569 = vcmask 130112
      %v1570 = vsel %vm1569, %v1568, %v1563
      %v1571 = vlaneseq
      %v1572 = vshrl.u32 %v1571, 7
      %v1573 = vsub.s32 %v788, %v1572
      %v1574 = vrot.slane %v1520, %v1573
      %v1575 = vlaneseq
      %v1576 = vshrl.u32 %v1575, 7
      %v1577 = vsub.s32 %v1564, %v1576
      %v1578 = vrot.slane %v1523, %v1577
      %v1579 = vsel %vm1569, %v1578, %v1574
      %v1580 = vlaneseq
      %v1581 = vshrl.u32 %v1580, 7
      %v1582 = vsub.s32 %v788, %v1581
      %v1583 = vrot.slane %v1526, %v1582
      %v1584 = vlaneseq
      %v1585 = vshrl.u32 %v1584, 7
      %v1586 = vsub.s32 %v1564, %v1585
      %v1587 = vrot.slane %v1529, %v1586
      %v1588 = vsel %vm1569, %v1587, %v1583
      %v1589 = vlaneseq
      %v1590 = vshrl.u32 %v1589, 7
      %v1591 = vsub.s32 %v788, %v1590
      %v1592 = vrot.slane %v1532, %v1591
      %v1593 = vlaneseq
      %v1594 = vshrl.u32 %v1593, 7
      %v1595 = vsub.s32 %v1564, %v1594
      %v1596 = vrot.slane %v1535, %v1595
      %v1597 = vsel %vm1569, %v1596, %v1592
      %v1598 = vlaneseq
      %v1599 = vshrl.u32 %v1598, 7
      %v1600 = vsub.s32 %v788, %v1599
      %v1601 = vrot.slane %v1538, %v1600
      %v1602 = vlaneseq
      %v1603 = vshrl.u32 %v1602, 7
      %v1604 = vsub.s32 %v1564, %v1603
      %v1605 = vrot.slane %v1541, %v1604
      %v1606 = vsel %vm1569, %v1605, %v1601
      %v1607 = vlaneseq
      %v1608 = vshrl.u32 %v1607, 7
      %v1609 = vsub.s32 %v788, %v1608
      %v1610 = vrot.slane %v1544, %v1609
      %v1611 = vlaneseq
      %v1612 = vshrl.u32 %v1611, 7
      %v1613 = vsub.s32 %v1564, %v1612
      %v1614 = vrot.slane %v1547, %v1613
      %v1615 = vsel %vm1569, %v1614, %v1610
      %v1616 = vlaneseq
      %v1617 = vshrl.u32 %v1616, 7
      %v1618 = vsub.s32 %v788, %v1617
      %v1619 = vrot.slane %v1550, %v1618
      %v1620 = vlaneseq
      %v1621 = vshrl.u32 %v1620, 7
      %v1622 = vsub.s32 %v1564, %v1621
      %v1623 = vrot.slane %v1553, %v1622
      %v1624 = vsel %vm1569, %v1623, %v1619
      %v1625 = vlaneseq
      %v1626 = vshrl.u32 %v1625, 7
      %v1627 = vsub.s32 %v788, %v1626
      %v1628 = vrot.slane %v1556, %v1627
      %v1629 = vlaneseq
      %v1630 = vshrl.u32 %v1629, 7
      %v1631 = vsub.s32 %v1564, %v1630
      %v1632 = vrot.slane %v1559, %v1631
      %v1633 = vsel %vm1569, %v1632, %v1628
      %vm1634 = vcmask 1041409
      %v1635 = vsel %vm1634, %v1579, %v1570
      %vm1636 = vcmask 1042434
      %v1637 = vsel %vm1636, %v1588, %v1635
      %vm1638 = vcmask 1043459
      %v1639 = vsel %vm1638, %v1597, %v1637
      %vm1640 = vcmask 1044484
      %v1641 = vsel %vm1640, %v1606, %v1639
      %vm1642 = vcmask 1045509
      %v1643 = vsel %vm1642, %v1615, %v1641
      %vm1644 = vcmask 1046534
      %v1645 = vsel %vm1644, %v1624, %v1643
      %vm1646 = vcmask 1047559
      %v1647 = vsel %vm1646, %v1633, %v1645
      %vm1649 = vcmask 80896
      %v1650 = vsel %vm1649, %v1647, -inf
      %1651 = vmax.xlane.f32.xlu0 %v1650
      %v1652 = vpop.xlane.xlu0 %1651
      %v1654 = vlaneseq
      %v1655 = vshrl.u32 %v1654, 7
      %v1656 = vsub.s32 0, %v1655
      %v1657 = vrot.slane %v1652, %v1656
      %v1658 = vlaneseq
      %v1659 = vshrl.u32 %v1658, 7
      %v1660 = vsub.s32 1, %v1659
      %v1661 = vrot.slane %v1652, %v1660
      %v1662 = vlaneseq
      %v1663 = vshrl.u32 %v1662, 7
      %v1664 = vsub.s32 2, %v1663
      %v1665 = vrot.slane %v1652, %v1664
      %v1666 = vlaneseq
      %v1667 = vshrl.u32 %v1666, 7
      %v1668 = vsub.s32 3, %v1667
      %v1669 = vrot.slane %v1652, %v1668
      %v1670 = vlaneseq
      %v1671 = vshrl.u32 %v1670, 7
      %v1672 = vsub.s32 4, %v1671
      %v1673 = vrot.slane %v1652, %v1672
      %v1674 = vlaneseq
      %v1675 = vshrl.u32 %v1674, 7
      %v1676 = vsub.s32 5, %v1675
      %v1677 = vrot.slane %v1652, %v1676
      %v1678 = vlaneseq
      %v1679 = vshrl.u32 %v1678, 7
      %v1680 = vsub.s32 6, %v1679
      %v1681 = vrot.slane %v1652, %v1680
      %v1682 = vlaneseq
      %v1683 = vshrl.u32 %v1682, 7
      %v1684 = vsub.s32 7, %v1683
      %v1685 = vrot.slane %v1652, %v1684
      %v1694 = vsub.f32 %v1480, %v1657
      %v1695 = vsub.f32 %v1481, %v1657
      %v1696 = vsub.f32 %v1482, %v1661
      %v1697 = vsub.f32 %v1483, %v1661
      %v1698 = vsub.f32 %v1484, %v1665
      %v1699 = vsub.f32 %v1485, %v1665
      %v1700 = vsub.f32 %v1486, %v1669
      %v1701 = vsub.f32 %v1487, %v1669
      %v1702 = vsub.f32 %v1488, %v1673
      %v1703 = vsub.f32 %v1489, %v1673
      %v1704 = vsub.f32 %v1490, %v1677
      %v1705 = vsub.f32 %v1491, %v1677
      %v1706 = vsub.f32 %v1492, %v1681
      %v1707 = vsub.f32 %v1493, %v1681
      %v1708 = vsub.f32 %v1494, %v1685
      %v1709 = vsub.f32 %v1495, %v1685
      %v1710 = vmul.f32 %v1694, 1.442695
      %v1711 = vpow.pop %v1710
      %v1712 = vmul.f32 %v1695, 1.442695
      %v1713 = vpow.pop %v1712
      %v1714 = vmul.f32 %v1696, 1.442695
      %v1715 = vpow.pop %v1714
      %v1716 = vmul.f32 %v1697, 1.442695
      %v1717 = vpow.pop %v1716
      %v1718 = vmul.f32 %v1698, 1.442695
      %v1719 = vpow.pop %v1718
      %v1720 = vmul.f32 %v1699, 1.442695
      %v1721 = vpow.pop %v1720
      %v1722 = vmul.f32 %v1700, 1.442695
      %v1723 = vpow.pop %v1722
      %v1724 = vmul.f32 %v1701, 1.442695
      %v1725 = vpow.pop %v1724
      %v1726 = vmul.f32 %v1702, 1.442695
      %v1727 = vpow.pop %v1726
      %v1728 = vmul.f32 %v1703, 1.442695
      %v1729 = vpow.pop %v1728
      %v1730 = vmul.f32 %v1704, 1.442695
      %v1731 = vpow.pop %v1730
      %v1732 = vmul.f32 %v1705, 1.442695
      %v1733 = vpow.pop %v1732
      %v1734 = vmul.f32 %v1706, 1.442695
      %v1735 = vpow.pop %v1734
      %v1736 = vmul.f32 %v1707, 1.442695
      %v1737 = vpow.pop %v1736
      %v1738 = vmul.f32 %v1708, 1.442695
      %v1739 = vpow.pop %v1738
      %v1740 = vmul.f32 %v1709, 1.442695
      %v1741 = vpow.pop %v1740
      %1758 = vset.pattern.permute.xlu0 0
      %1759 = vperm.xlu0 %1758, %v1711
      %v1760 = vpop.permute.xlu0 %1759
      %1761 = vset.pattern.permute.xlu0 0
      %1762 = vperm.xlu0 %1761, %v1713
      %v1763 = vpop.permute.xlu0 %1762
      %1764 = vset.pattern.permute.xlu0 0
      %1765 = vperm.xlu0 %1764, %v1715
      %v1766 = vpop.permute.xlu0 %1765
      %1767 = vset.pattern.permute.xlu0 0
      %1768 = vperm.xlu0 %1767, %v1717
      %v1769 = vpop.permute.xlu0 %1768
      %1770 = vset.pattern.permute.xlu0 0
      %1771 = vperm.xlu0 %1770, %v1719
      %v1772 = vpop.permute.xlu0 %1771
      %1773 = vset.pattern.permute.xlu0 0
      %1774 = vperm.xlu0 %1773, %v1721
      %v1775 = vpop.permute.xlu0 %1774
      %1776 = vset.pattern.permute.xlu0 0
      %1777 = vperm.xlu0 %1776, %v1723
      %v1778 = vpop.permute.xlu0 %1777
      %1779 = vset.pattern.permute.xlu0 0
      %1780 = vperm.xlu0 %1779, %v1725
      %v1781 = vpop.permute.xlu0 %1780
      %1782 = vset.pattern.permute.xlu0 0
      %1783 = vperm.xlu0 %1782, %v1727
      %v1784 = vpop.permute.xlu0 %1783
      %1785 = vset.pattern.permute.xlu0 0
      %1786 = vperm.xlu0 %1785, %v1729
      %v1787 = vpop.permute.xlu0 %1786
      %1788 = vset.pattern.permute.xlu0 0
      %1789 = vperm.xlu0 %1788, %v1731
      %v1790 = vpop.permute.xlu0 %1789
      %1791 = vset.pattern.permute.xlu0 0
      %1792 = vperm.xlu0 %1791, %v1733
      %v1793 = vpop.permute.xlu0 %1792
      %1794 = vset.pattern.permute.xlu0 0
      %1795 = vperm.xlu0 %1794, %v1735
      %v1796 = vpop.permute.xlu0 %1795
      %1797 = vset.pattern.permute.xlu0 0
      %1798 = vperm.xlu0 %1797, %v1737
      %v1799 = vpop.permute.xlu0 %1798
      %1800 = vset.pattern.permute.xlu0 0
      %1801 = vperm.xlu0 %1800, %v1739
      %v1802 = vpop.permute.xlu0 %1801
      %1803 = vset.pattern.permute.xlu0 0
      %1804 = vperm.xlu0 %1803, %v1741
      %v1805 = vpop.permute.xlu0 %1804
      %v1806 = vlaneseq
      %v1807 = vshrl.u32 %v1806, 7
      %v1808 = vsub.s32 %v788, %v1807
      %v1809 = vrot.slane %v1760, %v1808
      %v1810 = vlaneseq
      %v1811 = vshrl.u32 %v1810, 7
      %v1812 = vsub.s32 %v1564, %v1811
      %v1813 = vrot.slane %v1763, %v1812
      %v1814 = vsel %vm1569, %v1813, %v1809
      %v1815 = vlaneseq
      %v1816 = vshrl.u32 %v1815, 7
      %v1817 = vsub.s32 %v788, %v1816
      %v1818 = vrot.slane %v1766, %v1817
      %v1819 = vlaneseq
      %v1820 = vshrl.u32 %v1819, 7
      %v1821 = vsub.s32 %v1564, %v1820
      %v1822 = vrot.slane %v1769, %v1821
      %v1823 = vsel %vm1569, %v1822, %v1818
      %v1824 = vlaneseq
      %v1825 = vshrl.u32 %v1824, 7
      %v1826 = vsub.s32 %v788, %v1825
      %v1827 = vrot.slane %v1772, %v1826
      %v1828 = vlaneseq
      %v1829 = vshrl.u32 %v1828, 7
      %v1830 = vsub.s32 %v1564, %v1829
      %v1831 = vrot.slane %v1775, %v1830
      %v1832 = vsel %vm1569, %v1831, %v1827
      %v1833 = vlaneseq
      %v1834 = vshrl.u32 %v1833, 7
      %v1835 = vsub.s32 %v788, %v1834
      %v1836 = vrot.slane %v1778, %v1835
      %v1837 = vlaneseq
      %v1838 = vshrl.u32 %v1837, 7
      %v1839 = vsub.s32 %v1564, %v1838
      %v1840 = vrot.slane %v1781, %v1839
      %v1841 = vsel %vm1569, %v1840, %v1836
      %v1842 = vlaneseq
      %v1843 = vshrl.u32 %v1842, 7
      %v1844 = vsub.s32 %v788, %v1843
      %v1845 = vrot.slane %v1784, %v1844
      %v1846 = vlaneseq
      %v1847 = vshrl.u32 %v1846, 7
      %v1848 = vsub.s32 %v1564, %v1847
      %v1849 = vrot.slane %v1787, %v1848
      %v1850 = vsel %vm1569, %v1849, %v1845
      %v1851 = vlaneseq
      %v1852 = vshrl.u32 %v1851, 7
      %v1853 = vsub.s32 %v788, %v1852
      %v1854 = vrot.slane %v1790, %v1853
      %v1855 = vlaneseq
      %v1856 = vshrl.u32 %v1855, 7
      %v1857 = vsub.s32 %v1564, %v1856
      %v1858 = vrot.slane %v1793, %v1857
      %v1859 = vsel %vm1569, %v1858, %v1854
      %v1860 = vlaneseq
      %v1861 = vshrl.u32 %v1860, 7
      %v1862 = vsub.s32 %v788, %v1861
      %v1863 = vrot.slane %v1796, %v1862
      %v1864 = vlaneseq
      %v1865 = vshrl.u32 %v1864, 7
      %v1866 = vsub.s32 %v1564, %v1865
      %v1867 = vrot.slane %v1799, %v1866
      %v1868 = vsel %vm1569, %v1867, %v1863
      %v1869 = vlaneseq
      %v1870 = vshrl.u32 %v1869, 7
      %v1871 = vsub.s32 %v788, %v1870
      %v1872 = vrot.slane %v1802, %v1871
      %v1873 = vlaneseq
      %v1874 = vshrl.u32 %v1873, 7
      %v1875 = vsub.s32 %v1564, %v1874
      %v1876 = vrot.slane %v1805, %v1875
      %v1877 = vsel %vm1569, %v1876, %v1872
      %v1878 = vsel %vm1634, %v1823, %v1814
      %v1879 = vsel %vm1636, %v1832, %v1878
      %v1880 = vsel %vm1638, %v1841, %v1879
      %v1881 = vsel %vm1640, %v1850, %v1880
      %v1882 = vsel %vm1642, %v1859, %v1881
      %v1883 = vsel %vm1644, %v1868, %v1882
      %v1884 = vsel %vm1646, %v1877, %v1883
      %v1886 = vsel %vm1649, %v1884, 0.0
      %1887 = vadd.xlane.f32.xlu0 %v1886
      %v1888 = vpop.xlane.xlu0 %1887
      %v1889 = vrcp.pop %v1888
      %v1890 = vmul.f32 1.0, %v1889
      %v1892 = vlaneseq
      %v1893 = vshrl.u32 %v1892, 7
      %v1894 = vsub.s32 0, %v1893
      %v1895 = vrot.slane %v1890, %v1894
      %v1896 = vlaneseq
      %v1897 = vshrl.u32 %v1896, 7
      %v1898 = vsub.s32 1, %v1897
      %v1899 = vrot.slane %v1890, %v1898
      %v1900 = vlaneseq
      %v1901 = vshrl.u32 %v1900, 7
      %v1902 = vsub.s32 2, %v1901
      %v1903 = vrot.slane %v1890, %v1902
      %v1904 = vlaneseq
      %v1905 = vshrl.u32 %v1904, 7
      %v1906 = vsub.s32 3, %v1905
      %v1907 = vrot.slane %v1890, %v1906
      %v1908 = vlaneseq
      %v1909 = vshrl.u32 %v1908, 7
      %v1910 = vsub.s32 4, %v1909
      %v1911 = vrot.slane %v1890, %v1910
      %v1912 = vlaneseq
      %v1913 = vshrl.u32 %v1912, 7
      %v1914 = vsub.s32 5, %v1913
      %v1915 = vrot.slane %v1890, %v1914
      %v1916 = vlaneseq
      %v1917 = vshrl.u32 %v1916, 7
      %v1918 = vsub.s32 6, %v1917
      %v1919 = vrot.slane %v1890, %v1918
      %v1920 = vlaneseq
      %v1921 = vshrl.u32 %v1920, 7
      %v1922 = vsub.s32 7, %v1921
      %v1923 = vrot.slane %v1890, %v1922
      %v1932 = vmul.f32 %v1711, %v1895
      %v1933 = vmul.f32 %v1713, %v1895
      %v1934 = vmul.f32 %v1715, %v1899
      %v1935 = vmul.f32 %v1717, %v1899
      %v1936 = vmul.f32 %v1719, %v1903
      %v1937 = vmul.f32 %v1721, %v1903
      %v1938 = vmul.f32 %v1723, %v1907
      %v1939 = vmul.f32 %v1725, %v1907
      %v1940 = vmul.f32 %v1727, %v1911
      %v1941 = vmul.f32 %v1729, %v1911
      %v1942 = vmul.f32 %v1731, %v1915
      %v1943 = vmul.f32 %v1733, %v1915
      %v1944 = vmul.f32 %v1735, %v1919
      %v1945 = vmul.f32 %v1737, %v1919
      %v1946 = vmul.f32 %v1739, %v1923
      %v1947 = vmul.f32 %v1741, %v1923
      %1949 = vset.pattern.permute.xlu0 0
      %1950 = vperm.xlu0 %1949, %v1932
      %v1951 = vpop.permute.xlu0 %1950
      %1954 = vset.pattern.permute.xlu0 0
      %1955 = vperm.xlu0 %1954, %v1933
      %v1956 = vpop.permute.xlu0 %1955
      %1959 = vset.pattern.permute.xlu0 0
      %1960 = vperm.xlu0 %1959, %v1934
      %v1961 = vpop.permute.xlu0 %1960
      %1964 = vset.pattern.permute.xlu0 0
      %1965 = vperm.xlu0 %1964, %v1935
      %v1966 = vpop.permute.xlu0 %1965
      %1969 = vset.pattern.permute.xlu0 0
      %1970 = vperm.xlu0 %1969, %v1936
      %v1971 = vpop.permute.xlu0 %1970
      %1974 = vset.pattern.permute.xlu0 0
      %1975 = vperm.xlu0 %1974, %v1937
      %v1976 = vpop.permute.xlu0 %1975
      %1979 = vset.pattern.permute.xlu0 0
      %1980 = vperm.xlu0 %1979, %v1938
      %v1981 = vpop.permute.xlu0 %1980
      %1984 = vset.pattern.permute.xlu0 0
      %1985 = vperm.xlu0 %1984, %v1939
      %v1986 = vpop.permute.xlu0 %1985
      %1989 = vset.pattern.permute.xlu0 0
      %1990 = vperm.xlu0 %1989, %v1940
      %v1991 = vpop.permute.xlu0 %1990
      %1994 = vset.pattern.permute.xlu0 0
      %1995 = vperm.xlu0 %1994, %v1941
      %v1996 = vpop.permute.xlu0 %1995
      %1999 = vset.pattern.permute.xlu0 0
      %2000 = vperm.xlu0 %1999, %v1942
      %v2001 = vpop.permute.xlu0 %2000
      %2004 = vset.pattern.permute.xlu0 0
      %2005 = vperm.xlu0 %2004, %v1943
      %v2006 = vpop.permute.xlu0 %2005
      %2009 = vset.pattern.permute.xlu0 0
      %2010 = vperm.xlu0 %2009, %v1944
      %v2011 = vpop.permute.xlu0 %2010
      %2014 = vset.pattern.permute.xlu0 0
      %2015 = vperm.xlu0 %2014, %v1945
      %v2016 = vpop.permute.xlu0 %2015
      %2019 = vset.pattern.permute.xlu0 0
      %2020 = vperm.xlu0 %2019, %v1946
      %v2021 = vpop.permute.xlu0 %2020
      %2024 = vset.pattern.permute.xlu0 0
      %2025 = vperm.xlu0 %2024, %v1947
      %v2026 = vpop.permute.xlu0 %2025
      %v2028 = vmul.f32 %v1951, %v731
      %v2029 = vmul.f32 %v1956, %v732
      %v2030 = vmul.f32 %v1961, %v733
      %v2031 = vmul.f32 %v1966, %v734
      %v2032 = vmul.f32 %v1971, %v735
      %v2033 = vmul.f32 %v1976, %v736
      %v2034 = vmul.f32 %v1981, %v737
      %v2035 = vmul.f32 %v1986, %v738
      %v2036 = vmul.f32 %v1991, %v739
      %v2037 = vmul.f32 %v1996, %v740
      %v2038 = vmul.f32 %v2001, %v741
      %v2039 = vmul.f32 %v2006, %v742
      %v2040 = vmul.f32 %v2011, %v743
      %v2041 = vmul.f32 %v2016, %v744
      %v2042 = vmul.f32 %v2021, %v745
      %v2043 = vmul.f32 %v2026, %v746
      %vm2044 = vcmask 261120
      %v2045 = vsel %vm2044, %v2028, 0.0
      %vm2046 = vcmask 254976
      %v2047 = vsel %vm2046, %v2029, 0.0
      %v2048 = vadd.f32 %v2045, %v2047
      %v2049 = vrot.slane %v2048, 4
      %v2050 = vadd.f32 %v2048, %v2049
      %v2051 = vrot.slane %v2050, 2
      %v2052 = vadd.f32 %v2050, %v2051
      %v2053 = vrot.slane %v2052, 1
      %v2054 = vadd.f32 %v2052, %v2053
      %v2055 = vsel %vm2044, %v2030, 0.0
      %v2056 = vsel %vm2046, %v2031, 0.0
      %v2057 = vadd.f32 %v2055, %v2056
      %v2058 = vrot.slane %v2057, 4
      %v2059 = vadd.f32 %v2057, %v2058
      %v2060 = vrot.slane %v2059, 2
      %v2061 = vadd.f32 %v2059, %v2060
      %v2062 = vrot.slane %v2061, 1
      %v2063 = vadd.f32 %v2061, %v2062
      %v2064 = vsel %vm2044, %v2032, 0.0
      %v2065 = vsel %vm2046, %v2033, 0.0
      %v2066 = vadd.f32 %v2064, %v2065
      %v2067 = vrot.slane %v2066, 4
      %v2068 = vadd.f32 %v2066, %v2067
      %v2069 = vrot.slane %v2068, 2
      %v2070 = vadd.f32 %v2068, %v2069
      %v2071 = vrot.slane %v2070, 1
      %v2072 = vadd.f32 %v2070, %v2071
      %v2073 = vsel %vm2044, %v2034, 0.0
      %v2074 = vsel %vm2046, %v2035, 0.0
      %v2075 = vadd.f32 %v2073, %v2074
      %v2076 = vrot.slane %v2075, 4
      %v2077 = vadd.f32 %v2075, %v2076
      %v2078 = vrot.slane %v2077, 2
      %v2079 = vadd.f32 %v2077, %v2078
      %v2080 = vrot.slane %v2079, 1
      %v2081 = vadd.f32 %v2079, %v2080
      %v2082 = vsel %vm2044, %v2036, 0.0
      %v2083 = vsel %vm2046, %v2037, 0.0
      %v2084 = vadd.f32 %v2082, %v2083
      %v2085 = vrot.slane %v2084, 4
      %v2086 = vadd.f32 %v2084, %v2085
      %v2087 = vrot.slane %v2086, 2
      %v2088 = vadd.f32 %v2086, %v2087
      %v2089 = vrot.slane %v2088, 1
      %v2090 = vadd.f32 %v2088, %v2089
      %v2091 = vsel %vm2044, %v2038, 0.0
      %v2092 = vsel %vm2046, %v2039, 0.0
      %v2093 = vadd.f32 %v2091, %v2092
      %v2094 = vrot.slane %v2093, 4
      %v2095 = vadd.f32 %v2093, %v2094
      %v2096 = vrot.slane %v2095, 2
      %v2097 = vadd.f32 %v2095, %v2096
      %v2098 = vrot.slane %v2097, 1
      %v2099 = vadd.f32 %v2097, %v2098
      %v2100 = vsel %vm2044, %v2040, 0.0
      %v2101 = vsel %vm2046, %v2041, 0.0
      %v2102 = vadd.f32 %v2100, %v2101
      %v2103 = vrot.slane %v2102, 4
      %v2104 = vadd.f32 %v2102, %v2103
      %v2105 = vrot.slane %v2104, 2
      %v2106 = vadd.f32 %v2104, %v2105
      %v2107 = vrot.slane %v2106, 1
      %v2108 = vadd.f32 %v2106, %v2107
      %v2109 = vsel %vm2044, %v2042, 0.0
      %v2110 = vsel %vm2046, %v2043, 0.0
      %v2111 = vadd.f32 %v2109, %v2110
      %v2112 = vrot.slane %v2111, 4
      %v2113 = vadd.f32 %v2111, %v2112
      %v2114 = vrot.slane %v2113, 2
      %v2115 = vadd.f32 %v2113, %v2114
      %v2116 = vrot.slane %v2115, 1
      %v2117 = vadd.f32 %v2115, %v2116
      %v2119 = vlaneseq
      %v2120 = vshrl.u32 %v2119, 7
      %v2121 = vsub.s32 0, %v2120
      %v2122 = vrot.slane %v792, %v2121
      %2124 = vbcast.lane.b32.xlu0 %v2122, 256
      %v2125 = vpop.permute.xlu0 %2124
      %s2127 = sor.u32 256, 8
      %2128 = vbcast.lane.b32.xlu0 %v2122, %s2127
      %v2129 = vpop.permute.xlu0 %2128
      %v2130 = vlaneseq
      %v2131 = vshrl.u32 %v2130, 7
      %v2132 = vsub.s32 1, %v2131
      %v2133 = vrot.slane %v792, %v2132
      %2135 = vbcast.lane.b32.xlu0 %v2133, 256
      %v2136 = vpop.permute.xlu0 %2135
      %s2138 = sor.u32 256, 8
      %2139 = vbcast.lane.b32.xlu0 %v2133, %s2138
      %v2140 = vpop.permute.xlu0 %2139
      %v2141 = vlaneseq
      %v2142 = vshrl.u32 %v2141, 7
      %v2143 = vsub.s32 2, %v2142
      %v2144 = vrot.slane %v792, %v2143
      %2146 = vbcast.lane.b32.xlu0 %v2144, 256
      %v2147 = vpop.permute.xlu0 %2146
      %s2149 = sor.u32 256, 8
      %2150 = vbcast.lane.b32.xlu0 %v2144, %s2149
      %v2151 = vpop.permute.xlu0 %2150
      %v2152 = vlaneseq
      %v2153 = vshrl.u32 %v2152, 7
      %v2154 = vsub.s32 3, %v2153
      %v2155 = vrot.slane %v792, %v2154
      %2157 = vbcast.lane.b32.xlu0 %v2155, 256
      %v2158 = vpop.permute.xlu0 %2157
      %s2160 = sor.u32 256, 8
      %2161 = vbcast.lane.b32.xlu0 %v2155, %s2160
      %v2162 = vpop.permute.xlu0 %2161
      %v2163 = vlaneseq
      %v2164 = vshrl.u32 %v2163, 7
      %v2165 = vsub.s32 4, %v2164
      %v2166 = vrot.slane %v792, %v2165
      %2168 = vbcast.lane.b32.xlu0 %v2166, 256
      %v2169 = vpop.permute.xlu0 %2168
      %s2171 = sor.u32 256, 8
      %2172 = vbcast.lane.b32.xlu0 %v2166, %s2171
      %v2173 = vpop.permute.xlu0 %2172
      %v2174 = vlaneseq
      %v2175 = vshrl.u32 %v2174, 7
      %v2176 = vsub.s32 5, %v2175
      %v2177 = vrot.slane %v792, %v2176
      %2179 = vbcast.lane.b32.xlu0 %v2177, 256
      %v2180 = vpop.permute.xlu0 %2179
      %s2182 = sor.u32 256, 8
      %2183 = vbcast.lane.b32.xlu0 %v2177, %s2182
      %v2184 = vpop.permute.xlu0 %2183
      %v2185 = vlaneseq
      %v2186 = vshrl.u32 %v2185, 7
      %v2187 = vsub.s32 6, %v2186
      %v2188 = vrot.slane %v792, %v2187
      %2190 = vbcast.lane.b32.xlu0 %v2188, 256
      %v2191 = vpop.permute.xlu0 %2190
      %s2193 = sor.u32 256, 8
      %2194 = vbcast.lane.b32.xlu0 %v2188, %s2193
      %v2195 = vpop.permute.xlu0 %2194
      %v2196 = vlaneseq
      %v2197 = vshrl.u32 %v2196, 7
      %v2198 = vsub.s32 7, %v2197
      %v2199 = vrot.slane %v792, %v2198
      %2201 = vbcast.lane.b32.xlu0 %v2199, 256
      %v2202 = vpop.permute.xlu0 %2201
      %s2204 = sor.u32 256, 8
      %2205 = vbcast.lane.b32.xlu0 %v2199, %s2204
      %v2206 = vpop.permute.xlu0 %2205
      %v2223 = vmin.f32 %v1932, %v2125
      %v2224 = vmin.f32 %v1933, %v2129
      %v2225 = vmin.f32 %v1934, %v2136
      %v2226 = vmin.f32 %v1935, %v2140
      %v2227 = vmin.f32 %v1936, %v2147
      %v2228 = vmin.f32 %v1937, %v2151
      %v2229 = vmin.f32 %v1938, %v2158
      %v2230 = vmin.f32 %v1939, %v2162
      %v2231 = vmin.f32 %v1940, %v2169
      %v2232 = vmin.f32 %v1941, %v2173
      %v2233 = vmin.f32 %v1942, %v2180
      %v2234 = vmin.f32 %v1943, %v2184
      %v2235 = vmin.f32 %v1944, %v2191
      %v2236 = vmin.f32 %v1945, %v2195
      %v2237 = vmin.f32 %v1946, %v2202
      %v2238 = vmin.f32 %v1947, %v2206
      %2255 = vset.pattern.permute.xlu0 0
      %2256 = vperm.xlu0 %2255, %v2223
      %v2257 = vpop.permute.xlu0 %2256
      %2258 = vset.pattern.permute.xlu0 0
      %2259 = vperm.xlu0 %2258, %v2224
      %v2260 = vpop.permute.xlu0 %2259
      %2261 = vset.pattern.permute.xlu0 0
      %2262 = vperm.xlu0 %2261, %v2225
      %v2263 = vpop.permute.xlu0 %2262
      %2264 = vset.pattern.permute.xlu0 0
      %2265 = vperm.xlu0 %2264, %v2226
      %v2266 = vpop.permute.xlu0 %2265
      %2267 = vset.pattern.permute.xlu0 0
      %2268 = vperm.xlu0 %2267, %v2227
      %v2269 = vpop.permute.xlu0 %2268
      %2270 = vset.pattern.permute.xlu0 0
      %2271 = vperm.xlu0 %2270, %v2228
      %v2272 = vpop.permute.xlu0 %2271
      %2273 = vset.pattern.permute.xlu0 0
      %2274 = vperm.xlu0 %2273, %v2229
      %v2275 = vpop.permute.xlu0 %2274
      %2276 = vset.pattern.permute.xlu0 0
      %2277 = vperm.xlu0 %2276, %v2230
      %v2278 = vpop.permute.xlu0 %2277
      %2279 = vset.pattern.permute.xlu0 0
      %2280 = vperm.xlu0 %2279, %v2231
      %v2281 = vpop.permute.xlu0 %2280
      %2282 = vset.pattern.permute.xlu0 0
      %2283 = vperm.xlu0 %2282, %v2232
      %v2284 = vpop.permute.xlu0 %2283
      %2285 = vset.pattern.permute.xlu0 0
      %2286 = vperm.xlu0 %2285, %v2233
      %v2287 = vpop.permute.xlu0 %2286
      %2288 = vset.pattern.permute.xlu0 0
      %2289 = vperm.xlu0 %2288, %v2234
      %v2290 = vpop.permute.xlu0 %2289
      %2291 = vset.pattern.permute.xlu0 0
      %2292 = vperm.xlu0 %2291, %v2235
      %v2293 = vpop.permute.xlu0 %2292
      %2294 = vset.pattern.permute.xlu0 0
      %2295 = vperm.xlu0 %2294, %v2236
      %v2296 = vpop.permute.xlu0 %2295
      %2297 = vset.pattern.permute.xlu0 0
      %2298 = vperm.xlu0 %2297, %v2237
      %v2299 = vpop.permute.xlu0 %2298
      %2300 = vset.pattern.permute.xlu0 0
      %2301 = vperm.xlu0 %2300, %v2238
      %v2302 = vpop.permute.xlu0 %2301
      %v2303 = vlaneseq
      %v2304 = vshrl.u32 %v2303, 7
      %v2305 = vsub.s32 %v788, %v2304
      %v2306 = vrot.slane %v2257, %v2305
      %v2307 = vlaneseq
      %v2308 = vshrl.u32 %v2307, 7
      %v2309 = vsub.s32 %v1564, %v2308
      %v2310 = vrot.slane %v2260, %v2309
      %v2311 = vsel %vm1569, %v2310, %v2306
      %v2312 = vlaneseq
      %v2313 = vshrl.u32 %v2312, 7
      %v2314 = vsub.s32 %v788, %v2313
      %v2315 = vrot.slane %v2263, %v2314
      %v2316 = vlaneseq
      %v2317 = vshrl.u32 %v2316, 7
      %v2318 = vsub.s32 %v1564, %v2317
      %v2319 = vrot.slane %v2266, %v2318
      %v2320 = vsel %vm1569, %v2319, %v2315
      %v2321 = vlaneseq
      %v2322 = vshrl.u32 %v2321, 7
      %v2323 = vsub.s32 %v788, %v2322
      %v2324 = vrot.slane %v2269, %v2323
      %v2325 = vlaneseq
      %v2326 = vshrl.u32 %v2325, 7
      %v2327 = vsub.s32 %v1564, %v2326
      %v2328 = vrot.slane %v2272, %v2327
      %v2329 = vsel %vm1569, %v2328, %v2324
      %v2330 = vlaneseq
      %v2331 = vshrl.u32 %v2330, 7
      %v2332 = vsub.s32 %v788, %v2331
      %v2333 = vrot.slane %v2275, %v2332
      %v2334 = vlaneseq
      %v2335 = vshrl.u32 %v2334, 7
      %v2336 = vsub.s32 %v1564, %v2335
      %v2337 = vrot.slane %v2278, %v2336
      %v2338 = vsel %vm1569, %v2337, %v2333
      %v2339 = vlaneseq
      %v2340 = vshrl.u32 %v2339, 7
      %v2341 = vsub.s32 %v788, %v2340
      %v2342 = vrot.slane %v2281, %v2341
      %v2343 = vlaneseq
      %v2344 = vshrl.u32 %v2343, 7
      %v2345 = vsub.s32 %v1564, %v2344
      %v2346 = vrot.slane %v2284, %v2345
      %v2347 = vsel %vm1569, %v2346, %v2342
      %v2348 = vlaneseq
      %v2349 = vshrl.u32 %v2348, 7
      %v2350 = vsub.s32 %v788, %v2349
      %v2351 = vrot.slane %v2287, %v2350
      %v2352 = vlaneseq
      %v2353 = vshrl.u32 %v2352, 7
      %v2354 = vsub.s32 %v1564, %v2353
      %v2355 = vrot.slane %v2290, %v2354
      %v2356 = vsel %vm1569, %v2355, %v2351
      %v2357 = vlaneseq
      %v2358 = vshrl.u32 %v2357, 7
      %v2359 = vsub.s32 %v788, %v2358
      %v2360 = vrot.slane %v2293, %v2359
      %v2361 = vlaneseq
      %v2362 = vshrl.u32 %v2361, 7
      %v2363 = vsub.s32 %v1564, %v2362
      %v2364 = vrot.slane %v2296, %v2363
      %v2365 = vsel %vm1569, %v2364, %v2360
      %v2366 = vlaneseq
      %v2367 = vshrl.u32 %v2366, 7
      %v2368 = vsub.s32 %v788, %v2367
      %v2369 = vrot.slane %v2299, %v2368
      %v2370 = vlaneseq
      %v2371 = vshrl.u32 %v2370, 7
      %v2372 = vsub.s32 %v1564, %v2371
      %v2373 = vrot.slane %v2302, %v2372
      %v2374 = vsel %vm1569, %v2373, %v2369
      %v2375 = vsel %vm1634, %v2320, %v2311
      %v2376 = vsel %vm1636, %v2329, %v2375
      %v2377 = vsel %vm1638, %v2338, %v2376
      %v2378 = vsel %vm1640, %v2347, %v2377
      %v2379 = vsel %vm1642, %v2356, %v2378
      %v2380 = vsel %vm1644, %v2365, %v2379
      %v2381 = vsel %vm1646, %v2374, %v2380
      %v2383 = vsel %vm1649, %v2381, 0.0
      %2384 = vadd.xlane.f32.xlu0 %v2383
      %v2385 = vpop.xlane.xlu0 %2384
      %v2386 = vlaneseq
      %v2387 = vshrl.u32 %v2386, 7
      %v2388 = vsub.s32 %v788, %v2387
      %v2389 = vrot.slane %v1951, %v2388
      %v2390 = vlaneseq
      %v2391 = vshrl.u32 %v2390, 7
      %v2392 = vsub.s32 %v1564, %v2391
      %v2393 = vrot.slane %v1956, %v2392
      %v2394 = vsel %vm1569, %v2393, %v2389
      %v2395 = vlaneseq
      %v2396 = vshrl.u32 %v2395, 7
      %v2397 = vsub.s32 %v788, %v2396
      %v2398 = vrot.slane %v1961, %v2397
      %v2399 = vlaneseq
      %v2400 = vshrl.u32 %v2399, 7
      %v2401 = vsub.s32 %v1564, %v2400
      %v2402 = vrot.slane %v1966, %v2401
      %v2403 = vsel %vm1569, %v2402, %v2398
      %v2404 = vlaneseq
      %v2405 = vshrl.u32 %v2404, 7
      %v2406 = vsub.s32 %v788, %v2405
      %v2407 = vrot.slane %v1971, %v2406
      %v2408 = vlaneseq
      %v2409 = vshrl.u32 %v2408, 7
      %v2410 = vsub.s32 %v1564, %v2409
      %v2411 = vrot.slane %v1976, %v2410
      %v2412 = vsel %vm1569, %v2411, %v2407
      %v2413 = vlaneseq
      %v2414 = vshrl.u32 %v2413, 7
      %v2415 = vsub.s32 %v788, %v2414
      %v2416 = vrot.slane %v1981, %v2415
      %v2417 = vlaneseq
      %v2418 = vshrl.u32 %v2417, 7
      %v2419 = vsub.s32 %v1564, %v2418
      %v2420 = vrot.slane %v1986, %v2419
      %v2421 = vsel %vm1569, %v2420, %v2416
      %v2422 = vlaneseq
      %v2423 = vshrl.u32 %v2422, 7
      %v2424 = vsub.s32 %v788, %v2423
      %v2425 = vrot.slane %v1991, %v2424
      %v2426 = vlaneseq
      %v2427 = vshrl.u32 %v2426, 7
      %v2428 = vsub.s32 %v1564, %v2427
      %v2429 = vrot.slane %v1996, %v2428
      %v2430 = vsel %vm1569, %v2429, %v2425
      %v2431 = vlaneseq
      %v2432 = vshrl.u32 %v2431, 7
      %v2433 = vsub.s32 %v788, %v2432
      %v2434 = vrot.slane %v2001, %v2433
      %v2435 = vlaneseq
      %v2436 = vshrl.u32 %v2435, 7
      %v2437 = vsub.s32 %v1564, %v2436
      %v2438 = vrot.slane %v2006, %v2437
      %v2439 = vsel %vm1569, %v2438, %v2434
      %v2440 = vlaneseq
      %v2441 = vshrl.u32 %v2440, 7
      %v2442 = vsub.s32 %v788, %v2441
      %v2443 = vrot.slane %v2011, %v2442
      %v2444 = vlaneseq
      %v2445 = vshrl.u32 %v2444, 7
      %v2446 = vsub.s32 %v1564, %v2445
      %v2447 = vrot.slane %v2016, %v2446
      %v2448 = vsel %vm1569, %v2447, %v2443
      %v2449 = vlaneseq
      %v2450 = vshrl.u32 %v2449, 7
      %v2451 = vsub.s32 %v788, %v2450
      %v2452 = vrot.slane %v2021, %v2451
      %v2453 = vlaneseq
      %v2454 = vshrl.u32 %v2453, 7
      %v2455 = vsub.s32 %v1564, %v2454
      %v2456 = vrot.slane %v2026, %v2455
      %v2457 = vsel %vm1569, %v2456, %v2452
      %v2458 = vsel %vm1634, %v2403, %v2394
      %v2459 = vsel %vm1636, %v2412, %v2458
      %v2460 = vsel %vm1638, %v2421, %v2459
      %v2461 = vsel %vm1640, %v2430, %v2460
      %v2462 = vsel %vm1642, %v2439, %v2461
      %v2463 = vsel %vm1644, %v2448, %v2462
      %v2464 = vsel %vm1646, %v2457, %v2463
      %v2466 = vadd.f32 %v792, %v2464
      %v2467 = vpack.c.bf16 %v2054, %v2054
      %v2468 = vpack.c.bf16 %v2063, %v2063
      %v2469 = vpack.c.bf16 %v2072, %v2072
      %v2470 = vpack.c.bf16 %v2081, %v2081
      %v2471 = vpack.c.bf16 %v2090, %v2090
      %v2472 = vpack.c.bf16 %v2099, %v2099
      %v2473 = vpack.c.bf16 %v2108, %v2108
      %v2474 = vpack.c.bf16 %v2117, %v2117
      %v2475 = vpack.c.bf16 %v980, %v980
      %2477 = vrot.lane.b32.xlu0 %v2475, 80
      %v2478 = vpop.permute.xlu0 %2477
      %v2481 = vunpack.c.l.b16 %v778
      %v2482 = vunpack.c.l.b16 %v779
      %v2483 = vpack.c.b16 %v2482, %v2481
      %v2486 = vsel %vm798, %v2478, 0
      %2488 = vmatprep.subr.bf16.mxu0 0
      %2489 = vmatpush1.bf16.msra.mxu0 %v2483
      %2490 = vmatprep.subr.bf16.mxu0 0
      %2491 = vmatpush1.bf16.msra.mxu0 0
      %2492 = vmatprep.subr.bf16.mxu0 0
      %2493 = vmatpush1.bf16.msra.mxu0 0
      %2494 = vmatprep.subr.bf16.mxu0 0
      %2495 = vmatpush1.bf16.msra.mxu0 0
      %2496 = vmatprep.subr.bf16.mxu0 0
      %2497 = vmatpush1.bf16.msra.mxu0 0
      %2498 = vmatprep.subr.bf16.mxu0 0
      %2499 = vmatpush1.bf16.msra.mxu0 0
      %2500 = vmatprep.subr.bf16.mxu0 0
      %2501 = vmatpush1.bf16.msra.mxu0 0
      %2502 = vmatprep.subr.bf16.mxu0 0
      %2503 = vmatpush1.bf16.msra.mxu0 0
      %2504 = vmatprep.subr.bf16.mxu0 0
      %2505 = vmatpush1.bf16.msra.mxu0 0
      %2506 = vmatprep.subr.bf16.mxu0 0
      %2507 = vmatpush1.bf16.msra.mxu0 0
      %2508 = vmatprep.subr.bf16.mxu0 0
      %2509 = vmatpush1.bf16.msra.mxu0 0
      %2510 = vmatprep.subr.bf16.mxu0 0
      %2511 = vmatpush1.bf16.msra.mxu0 0
      %2512 = vmatprep.subr.bf16.mxu0 0
      %2513 = vmatpush1.bf16.msra.mxu0 0
      %2514 = vmatprep.subr.bf16.mxu0 0
      %2515 = vmatpush1.bf16.msra.mxu0 0
      %2516 = vmatprep.subr.bf16.mxu0 0
      %2517 = vmatpush1.bf16.msra.mxu0 0
      %2518 = vmatprep.subr.bf16.mxu0 0
      %2519 = vmatpush1.bf16.msra.mxu0 0
      %2520 = vmatprep.mubr.bf16.mxu0 0
      %2521 = vmatmul.mubr.bf16.gmra.mrb[0].mxu0 %v2486
      %v2522 = vpop.f32.mrb[0].mxu0
      %v2523 = vadd.f32 0.0, %v2522
      %v2524 = vpop.f32.mrb[0].mxu0
      %v2525 = vpop.f32.mrb[0].mxu0
      %v2526 = vpop.f32.mrb[0].mxu0
      %2527 = vdwg.mxu0
      %v2536 = vunpack.c.l.b16 %v2467
      %v2537 = vunpack.c.l.b16 %v2468
      %v2538 = vunpack.c.l.b16 %v2469
      %v2539 = vunpack.c.l.b16 %v2470
      %v2540 = vunpack.c.l.b16 %v2471
      %v2541 = vunpack.c.l.b16 %v2472
      %v2542 = vunpack.c.l.b16 %v2473
      %v2543 = vunpack.c.l.b16 %v2474
      %v2544 = vsel %vm1634, %v2537, %v2536
      %v2545 = vsel %vm1636, %v2538, %v2544
      %v2546 = vsel %vm1638, %v2539, %v2545
      %v2547 = vsel %vm1640, %v2540, %v2546
      %v2548 = vsel %vm1642, %v2541, %v2547
      %v2549 = vsel %vm1644, %v2542, %v2548
      %v2550 = vsel %vm1646, %v2543, %v2549
      %v2551 = vpack.c.b16 %v2550, %v2550
      %v2556 = vunpack.c.l.b16 %v774
      %v2557 = vunpack.c.l.b16 %v775
      %v2558 = vunpack.c.l.b16 %v776
      %v2559 = vunpack.c.l.b16 %v777
      %v2560 = vpack.c.b16 %v2557, %v2556
      %v2561 = vpack.c.b16 %v2559, %v2558
      %v2565 = vsel %vm2044, %v2551, 0
      %2567 = vmatprep.subr.bf16.mxu0 0
      %2568 = vmatpush1.bf16.msra.mxu0 %v2560
      %2569 = vmatprep.subr.bf16.mxu0 0
      %2570 = vmatpush1.bf16.msra.mxu0 %v2561
      %2571 = vmatprep.subr.bf16.mxu0 0
      %2572 = vmatpush1.bf16.msra.mxu0 0
      %2573 = vmatprep.subr.bf16.mxu0 0
      %2574 = vmatpush1.bf16.msra.mxu0 0
      %2575 = vmatprep.subr.bf16.mxu0 0
      %2576 = vmatpush1.bf16.msra.mxu0 0
      %2577 = vmatprep.subr.bf16.mxu0 0
      %2578 = vmatpush1.bf16.msra.mxu0 0
      %2579 = vmatprep.subr.bf16.mxu0 0
      %2580 = vmatpush1.bf16.msra.mxu0 0
      %2581 = vmatprep.subr.bf16.mxu0 0
      %2582 = vmatpush1.bf16.msra.mxu0 0
      %2583 = vmatprep.subr.bf16.mxu0 0
      %2584 = vmatpush1.bf16.msra.mxu0 0
      %2585 = vmatprep.subr.bf16.mxu0 0
      %2586 = vmatpush1.bf16.msra.mxu0 0
      %2587 = vmatprep.subr.bf16.mxu0 0
      %2588 = vmatpush1.bf16.msra.mxu0 0
      %2589 = vmatprep.subr.bf16.mxu0 0
      %2590 = vmatpush1.bf16.msra.mxu0 0
      %2591 = vmatprep.subr.bf16.mxu0 0
      %2592 = vmatpush1.bf16.msra.mxu0 0
      %2593 = vmatprep.subr.bf16.mxu0 0
      %2594 = vmatpush1.bf16.msra.mxu0 0
      %2595 = vmatprep.subr.bf16.mxu0 0
      %2596 = vmatpush1.bf16.msra.mxu0 0
      %2597 = vmatprep.subr.bf16.mxu0 0
      %2598 = vmatpush1.bf16.msra.mxu0 0
      %2599 = vmatprep.mubr.bf16.mxu0 0
      %2600 = vmatmul.mubr.bf16.gmra.mrb[0].mxu0 %v2565
      %v2601 = vpop.f32.mrb[0].mxu0
      %v2602 = vadd.f32 %v2523, %v2601
      %v2603 = vpop.f32.mrb[0].mxu0
      %v2604 = vpop.f32.mrb[0].mxu0
      %v2605 = vpop.f32.mrb[0].mxu0
      %2606 = vdwg.mxu0
      %v2608 = vlaneseq
      %v2609 = vshrl.u32 %v2608, 7
      %v2610 = vsub.s32 0, %v2609
      %v2611 = vrot.slane %v780, %v2610
      %v2613 = vadd.f32 %v2602, %v2611
      %v2615 = vlaneseq
      %v2616 = vshrl.u32 %v2615, 7
      %v2617 = vsub.s32 0, %v2616
      %v2618 = vrot.slane %v781, %v2617
      %v2620 = vmul.f32 %v796, %v2618
      %v2621 = vsel %vm872, %v2620, 0.0
      %2622 = vadd.xlane.f32.xlu0 %v2621
      %v2623 = vpop.xlane.xlu0 %2622
      %v2624 = vadd.f32 %v2613, %v2623
      %v2625 = vxor.u32 %v2624, 2147483648
      %v2626 = vmul.f32 %v2625, 1.442695
      %v2627 = vpow.pop %v2626
      %v2628 = vadd.f32 %v2627, 1.0
      %v2629 = vrcp.pop %v2628
      %v2630 = vmul.f32 1.0, %v2629
      %v2631 = vpack.c.bf16 %v2613, %v2613
      %v2633 = vlaneseq
      %v2634 = vshrl.u32 %v2633, 7
      %v2635 = vsub.s32 0, %v2634
      %v2636 = vrot.slane %v786, %v2635
      %v2642 = vunpack.c.l.b16 %v782
      %v2643 = vunpack.c.l.b16 %v783
      %v2644 = vunpack.c.l.b16 %v784
      %v2645 = vunpack.c.l.b16 %v785
      %v2646 = vpack.c.b16 %v2643, %v2642
      %v2647 = vpack.c.b16 %v2645, %v2644
      %v2651 = vsel %vm2044, %v2631, 0
      %2653 = vmatprep.subr.bf16.mxu0 0
      %2654 = vmatpush1.bf16.msra.mxu0 %v2646
      %2655 = vmatprep.subr.bf16.mxu0 0
      %2656 = vmatpush1.bf16.msra.mxu0 %v2647
      %2657 = vmatprep.subr.bf16.mxu0 0
      %2658 = vmatpush1.bf16.msra.mxu0 0
      %2659 = vmatprep.subr.bf16.mxu0 0
      %2660 = vmatpush1.bf16.msra.mxu0 0
      %2661 = vmatprep.subr.bf16.mxu0 0
      %2662 = vmatpush1.bf16.msra.mxu0 0
      %2663 = vmatprep.subr.bf16.mxu0 0
      %2664 = vmatpush1.bf16.msra.mxu0 0
      %2665 = vmatprep.subr.bf16.mxu0 0
      %2666 = vmatpush1.bf16.msra.mxu0 0
      %2667 = vmatprep.subr.bf16.mxu0 0
      %2668 = vmatpush1.bf16.msra.mxu0 0
      %2669 = vmatprep.subr.bf16.mxu0 0
      %2670 = vmatpush1.bf16.msra.mxu0 0
      %2671 = vmatprep.subr.bf16.mxu0 0
      %2672 = vmatpush1.bf16.msra.mxu0 0
      %2673 = vmatprep.subr.bf16.mxu0 0
      %2674 = vmatpush1.bf16.msra.mxu0 0
      %2675 = vmatprep.subr.bf16.mxu0 0
      %2676 = vmatpush1.bf16.msra.mxu0 0
      %2677 = vmatprep.subr.bf16.mxu0 0
      %2678 = vmatpush1.bf16.msra.mxu0 0
      %2679 = vmatprep.subr.bf16.mxu0 0
      %2680 = vmatpush1.bf16.msra.mxu0 0
      %2681 = vmatprep.subr.bf16.mxu0 0
      %2682 = vmatpush1.bf16.msra.mxu0 0
      %2683 = vmatprep.subr.bf16.mxu0 0
      %2684 = vmatpush1.bf16.msra.mxu0 0
      %2685 = vmatprep.mubr.bf16.mxu0 0
      %2686 = vmatmul.mubr.bf16.gmra.mrb[0].mxu0 %v2651
      %v2687 = vpop.f32.mrb[0].mxu0
      %v2688 = vadd.f32 %v2636, %v2687
      %v2689 = vpop.f32.mrb[0].mxu0
      %v2690 = vpop.f32.mrb[0].mxu0
      %v2691 = vpop.f32.mrb[0].mxu0
      %2692 = vdwg.mxu0
      %v2693 = vsel %vm2044, %v2688, -inf
      %2694 = vmax.xlane.f32.xlu0 %v2693
      %v2695 = vpop.xlane.xlu0 %2694
      %v2696 = vsub.f32 %v2688, %v2695
      %v2697 = vmul.f32 %v2696, 1.442695
      %v2698 = vpow.pop %v2697
      %v2699 = vsel %vm2044, %v2698, 0.0
      %2700 = vadd.xlane.f32.xlu0 %v2699
      %v2701 = vpop.xlane.xlu0 %2700
      %2702 = vset.pattern.permute.xlu0 0
      %2703 = vperm.xlu0 %2702, %v797
      %v2704 = vpop.permute.xlu0 %2703
      %vm2705 = vcmp.eq.s32.totalorder %v788, %v2704
      %v2706 = vsel %vm2705, %v2698, 0.0
      %v2707 = vsel %vm2044, %v2706, 0.0
      %2708 = vadd.xlane.f32.xlu0 %v2707
      %v2709 = vpop.xlane.xlu0 %2708
      %v2710 = vmul.f32 %v2630, %v2709
      %v2711 = vrcp.pop %v2701
      %v2712 = vmul.f32 %v2710, %v2711
      %vm2713 = vcmp.eq.s32.totalorder %v789, %v2704
      %v2714 = vsel %vm2713, %v765, 0.0
      %vm2715 = vcmask 48128
      %v2716 = vsel %vm2715, %v2714, 0.0
      %2717 = vadd.xlane.f32.xlu0 %v2716
      %v2718 = vpop.xlane.xlu0 %2717
      %vm2719 = vcmp.eq.s32.totalorder %v764, %v2704
      %v2720 = vsel %vm2719, %v2464, 0.0
      %v2721 = vsel %vm1649, %v2720, 0.0
      %2722 = vadd.xlane.f32.xlu0 %v2721
      %v2723 = vpop.xlane.xlu0 %2722
      %v2724 = vsub.f32 1.0, %v2630
      %v2725 = vmul.f32 %v2723, %v2724
      %v2726 = vadd.f32 %v2712, %v2718
      %v2727 = vadd.f32 %v2726, %v2725
      %vm2728 = vcmp.ne.s32.totalorder %v797, 0
      %v2729 = vsel %vm2728, 1, 0
      %v2730 = vcvt.s32.f32 %v2729
      %v2731 = vadd.f32 %v2727, 1e-30
      %v2732 = vlog2.pop %v2731
      %v2733 = vmul.f32 %v2732, 0.6931472
      %2735 = vrot.lane.b32.xlu0 %v2730, 32
      %v2736 = vpop.permute.xlu0 %2735
      %v2738 = vmul.f32 %v2733, %v2736
      %2740 = vrot.lane.b32.xlu0 %v2738, 96
      %v2741 = vpop.permute.xlu0 %2740
      %v2743 = vadd.f32 %v793, %v2741
      %v2744 = vmul.f32 %v2385, %v2730
      %v2745 = vadd.f32 %v794, %v2744
      %v2746 = vadd.f32 %v795, %v2730
      %s2747 = scalar_lea.vmem %s707, 8
      %v2748 = vld [vmem:[%s2747] sm:$0xff]
      %s2749 = scalar_lea.vmem %s713, 8
      %v2750 = vld [vmem:[%s2749] sm:$0xff]
      %2751 = vmatprep.subr.mxu0 0.0
      %2752 = vmatpush1.msra.mxu0 %v767
      %2753 = vmatprep.subr.mxu0 0.0
      %2754 = vmatpush1.msra.mxu0 %v768
      %2755 = vmatprep.subr.mxu0 0.0
      %2756 = vmatpush1.msra.mxu0 0.0
      %2757 = vmatprep.subr.mxu0 0.0
      %2758 = vmatpush1.msra.mxu0 0.0
      %2759 = vmatprep.subr.mxu0 0.0
      %2760 = vmatpush1.msra.mxu0 0.0
      %2761 = vmatprep.subr.mxu0 0.0
      %2762 = vmatpush1.msra.mxu0 0.0
      %2763 = vmatprep.subr.mxu0 0.0
      %2764 = vmatpush1.msra.mxu0 0.0
      %2765 = vmatprep.subr.mxu0 0.0
      %2766 = vmatpush1.msra.mxu0 0.0
      %2767 = vmatprep.subr.mxu0 0.0
      %2768 = vmatpush1.msra.mxu0 0.0
      %2769 = vmatprep.subr.mxu0 0.0
      %2770 = vmatpush1.msra.mxu0 0.0
      %2771 = vmatprep.subr.mxu0 0.0
      %2772 = vmatpush1.msra.mxu0 0.0
      %2773 = vmatprep.subr.mxu0 0.0
      %2774 = vmatpush1.msra.mxu0 0.0
      %2775 = vmatprep.subr.mxu0 0.0
      %2776 = vmatpush1.msra.mxu0 0.0
      %2777 = vmatprep.subr.mxu0 0.0
      %2778 = vmatpush1.msra.mxu0 0.0
      %2779 = vmatprep.subr.mxu0 0.0
      %2780 = vmatpush1.msra.mxu0 0.0
      %2781 = vmatprep.subr.mxu0 0.0
      %2782 = vmatpush1.msra.mxu0 0.0
      %2783 = vmatprep.subr.mxu0 0.0
      %2784 = vmatpush1.msra.mxu0 0.0
      %2785 = vmatprep.subr.mxu0 0.0
      %2786 = vmatpush1.msra.mxu0 0.0
      %2787 = vmatprep.subr.mxu0 0.0
      %2788 = vmatpush1.msra.mxu0 0.0
      %2789 = vmatprep.subr.mxu0 0.0
      %2790 = vmatpush1.msra.mxu0 0.0
      %2791 = vmatprep.subr.mxu0 0.0
      %2792 = vmatpush1.msra.mxu0 0.0
      %2793 = vmatprep.subr.mxu0 0.0
      %2794 = vmatpush1.msra.mxu0 0.0
      %2795 = vmatprep.subr.mxu0 0.0
      %2796 = vmatpush1.msra.mxu0 0.0
      %2797 = vmatprep.subr.mxu0 0.0
      %2798 = vmatpush1.msra.mxu0 0.0
      %2799 = vmatprep.subr.mxu0 0.0
      %2800 = vmatpush1.msra.mxu0 0.0
      %2801 = vmatprep.subr.mxu0 0.0
      %2802 = vmatpush1.msra.mxu0 0.0
      %2803 = vmatprep.subr.mxu0 0.0
      %2804 = vmatpush1.msra.mxu0 0.0
      %2805 = vmatprep.subr.mxu0 0.0
      %2806 = vmatpush1.msra.mxu0 0.0
      %2807 = vmatprep.subr.mxu0 0.0
      %2808 = vmatpush1.msra.mxu0 0.0
      %2809 = vmatprep.subr.mxu0 0.0
      %2810 = vmatpush1.msra.mxu0 0.0
      %2811 = vmatprep.subr.mxu0 0.0
      %2812 = vmatpush1.msra.mxu0 0.0
      %2813 = vmatprep.subr.mxu0 0.0
      %2814 = vmatpush1.msra.mxu0 0.0
      %2815 = vmatprep.mubr.f32.mxu0 0.0
      %2816 = vmatmul.mubr.f32.gmra.mrb[0].mxu0 %v984
      %v2817 = vpop.f32.mrb[0].mxu0
      %v2818 = vadd.f32 0.0, %v2817
      %v2819 = vpop.f32.mrb[0].mxu0
      %2820 = vdwg.mxu0
      %v2822 = vsel %vm872, %v2748, 0
      %2824 = vmatprep.subr.mxu0 0.0
      %2825 = vmatpush1.msra.mxu0 %v766
      %2826 = vmatprep.subr.mxu0 0.0
      %2827 = vmatpush1.msra.mxu0 0.0
      %2828 = vmatprep.subr.mxu0 0.0
      %2829 = vmatpush1.msra.mxu0 0.0
      %2830 = vmatprep.subr.mxu0 0.0
      %2831 = vmatpush1.msra.mxu0 0.0
      %2832 = vmatprep.subr.mxu0 0.0
      %2833 = vmatpush1.msra.mxu0 0.0
      %2834 = vmatprep.subr.mxu0 0.0
      %2835 = vmatpush1.msra.mxu0 0.0
      %2836 = vmatprep.subr.mxu0 0.0
      %2837 = vmatpush1.msra.mxu0 0.0
      %2838 = vmatprep.subr.mxu0 0.0
      %2839 = vmatpush1.msra.mxu0 0.0
      %2840 = vmatprep.subr.mxu0 0.0
      %2841 = vmatpush1.msra.mxu0 0.0
      %2842 = vmatprep.subr.mxu0 0.0
      %2843 = vmatpush1.msra.mxu0 0.0
      %2844 = vmatprep.subr.mxu0 0.0
      %2845 = vmatpush1.msra.mxu0 0.0
      %2846 = vmatprep.subr.mxu0 0.0
      %2847 = vmatpush1.msra.mxu0 0.0
      %2848 = vmatprep.subr.mxu0 0.0
      %2849 = vmatpush1.msra.mxu0 0.0
      %2850 = vmatprep.subr.mxu0 0.0
      %2851 = vmatpush1.msra.mxu0 0.0
      %2852 = vmatprep.subr.mxu0 0.0
      %2853 = vmatpush1.msra.mxu0 0.0
      %2854 = vmatprep.subr.mxu0 0.0
      %2855 = vmatpush1.msra.mxu0 0.0
      %2856 = vmatprep.subr.mxu0 0.0
      %2857 = vmatpush1.msra.mxu0 0.0
      %2858 = vmatprep.subr.mxu0 0.0
      %2859 = vmatpush1.msra.mxu0 0.0
      %2860 = vmatprep.subr.mxu0 0.0
      %2861 = vmatpush1.msra.mxu0 0.0
      %2862 = vmatprep.subr.mxu0 0.0
      %2863 = vmatpush1.msra.mxu0 0.0
      %2864 = vmatprep.subr.mxu0 0.0
      %2865 = vmatpush1.msra.mxu0 0.0
      %2866 = vmatprep.subr.mxu0 0.0
      %2867 = vmatpush1.msra.mxu0 0.0
      %2868 = vmatprep.subr.mxu0 0.0
      %2869 = vmatpush1.msra.mxu0 0.0
      %2870 = vmatprep.subr.mxu0 0.0
      %2871 = vmatpush1.msra.mxu0 0.0
      %2872 = vmatprep.subr.mxu0 0.0
      %2873 = vmatpush1.msra.mxu0 0.0
      %2874 = vmatprep.subr.mxu0 0.0
      %2875 = vmatpush1.msra.mxu0 0.0
      %2876 = vmatprep.subr.mxu0 0.0
      %2877 = vmatpush1.msra.mxu0 0.0
      %2878 = vmatprep.subr.mxu0 0.0
      %2879 = vmatpush1.msra.mxu0 0.0
      %2880 = vmatprep.subr.mxu0 0.0
      %2881 = vmatpush1.msra.mxu0 0.0
      %2882 = vmatprep.subr.mxu0 0.0
      %2883 = vmatpush1.msra.mxu0 0.0
      %2884 = vmatprep.subr.mxu0 0.0
      %2885 = vmatpush1.msra.mxu0 0.0
      %2886 = vmatprep.subr.mxu0 0.0
      %2887 = vmatpush1.msra.mxu0 0.0
      %2888 = vmatprep.mubr.f32.mxu0 0.0
      %2889 = vmatmul.mubr.f32.gmra.mrb[0].mxu0 %v2822
      %v2890 = vpop.f32.mrb[0].mxu0
      %v2891 = vadd.f32 %v2818, %v2890
      %v2892 = vpop.f32.mrb[0].mxu0
      %2893 = vdwg.mxu0
      %v2894 = vadd.f32 %v2891, %v950
      %v2895 = vxor.u32 %v2894, 2147483648
      %v2896 = vmul.f32 %v2895, 1.442695
      %v2897 = vpow.pop %v2896
      %v2898 = vadd.f32 %v2897, 1.0
      %v2899 = vrcp.pop %v2898
      %v2900 = vmul.f32 1.0, %v2899
      %v2901 = vtanh.pop %v2894
      %v2902 = vmul.f32 %v2900, %v974
      %2904 = vrot.lane.b32.xlu0 %v2901, 96
      %v2905 = vpop.permute.xlu0 %2904
      %v2907 = vmul.f32 %v2900, %v2905
      %2909 = vrot.lane.b32.xlu0 %v2907, 16
      %v2910 = vpop.permute.xlu0 %2909
      %v2912 = vadd.f32 %v2902, %v2910
      %v2913 = vtanh.pop %v2912
      %2915 = vrot.lane.b32.xlu0 %v2913, 32
      %v2916 = vpop.permute.xlu0 %2915
      %v2918 = vmul.f32 %v2900, %v2916
      %2920 = vrot.lane.b32.xlu0 %v2918, 80
      %v2921 = vpop.permute.xlu0 %2920
      %v2922 = vsel %vm798, %v2921, 0
      %2924 = vmatprep.subr.mxu0 0.0
      %2925 = vmatpush1.msra.mxu0 %v770
      %2926 = vmatprep.subr.mxu0 0.0
      %2927 = vmatpush1.msra.mxu0 %v771
      %2928 = vmatprep.subr.mxu0 0.0
      %2929 = vmatpush1.msra.mxu0 0.0
      %2930 = vmatprep.subr.mxu0 0.0
      %2931 = vmatpush1.msra.mxu0 0.0
      %2932 = vmatprep.subr.mxu0 0.0
      %2933 = vmatpush1.msra.mxu0 0.0
      %2934 = vmatprep.subr.mxu0 0.0
      %2935 = vmatpush1.msra.mxu0 0.0
      %2936 = vmatprep.subr.mxu0 0.0
      %2937 = vmatpush1.msra.mxu0 0.0
      %2938 = vmatprep.subr.mxu0 0.0
      %2939 = vmatpush1.msra.mxu0 0.0
      %2940 = vmatprep.subr.mxu0 0.0
      %2941 = vmatpush1.msra.mxu0 0.0
      %2942 = vmatprep.subr.mxu0 0.0
      %2943 = vmatpush1.msra.mxu0 0.0
      %2944 = vmatprep.subr.mxu0 0.0
      %2945 = vmatpush1.msra.mxu0 0.0
      %2946 = vmatprep.subr.mxu0 0.0
      %2947 = vmatpush1.msra.mxu0 0.0
      %2948 = vmatprep.subr.mxu0 0.0
      %2949 = vmatpush1.msra.mxu0 0.0
      %2950 = vmatprep.subr.mxu0 0.0
      %2951 = vmatpush1.msra.mxu0 0.0
      %2952 = vmatprep.subr.mxu0 0.0
      %2953 = vmatpush1.msra.mxu0 0.0
      %2954 = vmatprep.subr.mxu0 0.0
      %2955 = vmatpush1.msra.mxu0 0.0
      %2956 = vmatprep.subr.mxu0 0.0
      %2957 = vmatpush1.msra.mxu0 0.0
      %2958 = vmatprep.subr.mxu0 0.0
      %2959 = vmatpush1.msra.mxu0 0.0
      %2960 = vmatprep.subr.mxu0 0.0
      %2961 = vmatpush1.msra.mxu0 0.0
      %2962 = vmatprep.subr.mxu0 0.0
      %2963 = vmatpush1.msra.mxu0 0.0
      %2964 = vmatprep.subr.mxu0 0.0
      %2965 = vmatpush1.msra.mxu0 0.0
      %2966 = vmatprep.subr.mxu0 0.0
      %2967 = vmatpush1.msra.mxu0 0.0
      %2968 = vmatprep.subr.mxu0 0.0
      %2969 = vmatpush1.msra.mxu0 0.0
      %2970 = vmatprep.subr.mxu0 0.0
      %2971 = vmatpush1.msra.mxu0 0.0
      %2972 = vmatprep.subr.mxu0 0.0
      %2973 = vmatpush1.msra.mxu0 0.0
      %2974 = vmatprep.subr.mxu0 0.0
      %2975 = vmatpush1.msra.mxu0 0.0
      %2976 = vmatprep.subr.mxu0 0.0
      %2977 = vmatpush1.msra.mxu0 0.0
      %2978 = vmatprep.subr.mxu0 0.0
      %2979 = vmatpush1.msra.mxu0 0.0
      %2980 = vmatprep.subr.mxu0 0.0
      %2981 = vmatpush1.msra.mxu0 0.0
      %2982 = vmatprep.subr.mxu0 0.0
      %2983 = vmatpush1.msra.mxu0 0.0
      %2984 = vmatprep.subr.mxu0 0.0
      %2985 = vmatpush1.msra.mxu0 0.0
      %2986 = vmatprep.subr.mxu0 0.0
      %2987 = vmatpush1.msra.mxu0 0.0
      %2988 = vmatprep.mubr.f32.mxu0 0.0
      %2989 = vmatmul.mubr.f32.gmra.mrb[0].mxu0 %v2922
      %v2990 = vpop.f32.mrb[0].mxu0
      %v2991 = vadd.f32 0.0, %v2990
      %v2992 = vpop.f32.mrb[0].mxu0
      %2993 = vdwg.mxu0
      %v2995 = vcombine.high %v2991, %v2991
      %v2997 = vunpack.c.l.s4 1966171168
      %v2998 = vunpack.c.0.s8 %v2997
      %v2999 = vlaneseq
      %v3000 = vshrl.u32 %v2999, 7
      %v3001 = vsub.s32 %v2998, %v3000
      %v3002 = vrot.slane %v2991, %v3001
      %v3004 = vunpack.c.l.s4 1966171168
      %v3005 = vunpack.c.0.s8 %v3004
      %v3006 = vlaneseq
      %v3007 = vshrl.u32 %v3006, 7
      %v3008 = vsub.s32 %v3005, %v3007
      %v3009 = vrot.slane %v2995, %v3008
      %v3010 = vcombine.high %v3002, %v3002
      %v3011 = vcombine.high %v3009, %v3009
      %v3013 = vunpack.c.l.s4 1966171168
      %v3014 = vunpack.c.0.s8 %v3013
      %v3015 = vlaneseq
      %v3016 = vshrl.u32 %v3015, 7
      %v3017 = vsub.s32 %v3014, %v3016
      %v3018 = vrot.slane %v3002, %v3017
      %v3020 = vunpack.c.l.s4 1966171168
      %v3021 = vunpack.c.0.s8 %v3020
      %v3022 = vlaneseq
      %v3023 = vshrl.u32 %v3022, 7
      %v3024 = vsub.s32 %v3021, %v3023
      %v3025 = vrot.slane %v3009, %v3024
      %v3027 = vunpack.c.l.s4 1966171168
      %v3028 = vunpack.c.0.s8 %v3027
      %v3029 = vlaneseq
      %v3030 = vshrl.u32 %v3029, 7
      %v3031 = vsub.s32 %v3028, %v3030
      %v3032 = vrot.slane %v3010, %v3031
      %v3034 = vunpack.c.l.s4 1966171168
      %v3035 = vunpack.c.0.s8 %v3034
      %v3036 = vlaneseq
      %v3037 = vshrl.u32 %v3036, 7
      %v3038 = vsub.s32 %v3035, %v3037
      %v3039 = vrot.slane %v3011, %v3038
      %v3040 = vcombine.high %v3018, %v3018
      %v3041 = vcombine.high %v3025, %v3025
      %v3042 = vcombine.high %v3032, %v3032
      %v3043 = vcombine.high %v3039, %v3039
      %v3044 = vlaneseq
      %v3045 = vshrl.u32 %v3044, 7
      %v3046 = vsub.s32 0, %v3045
      %v3047 = vrot.slane %v3018, %v3046
      %v3048 = vlaneseq
      %v3049 = vshrl.u32 %v3048, 7
      %v3050 = vsub.s32 0, %v3049
      %v3051 = vrot.slane %v3032, %v3050
      %v3052 = vlaneseq
      %v3053 = vshrl.u32 %v3052, 7
      %v3054 = vsub.s32 0, %v3053
      %v3055 = vrot.slane %v3040, %v3054
      %v3056 = vlaneseq
      %v3057 = vshrl.u32 %v3056, 7
      %v3058 = vsub.s32 0, %v3057
      %v3059 = vrot.slane %v3042, %v3058
      %v3060 = vlaneseq
      %v3061 = vshrl.u32 %v3060, 7
      %v3062 = vsub.s32 0, %v3061
      %v3063 = vrot.slane %v3025, %v3062
      %v3064 = vlaneseq
      %v3065 = vshrl.u32 %v3064, 7
      %v3066 = vsub.s32 0, %v3065
      %v3067 = vrot.slane %v3039, %v3066
      %v3068 = vlaneseq
      %v3069 = vshrl.u32 %v3068, 7
      %v3070 = vsub.s32 0, %v3069
      %v3071 = vrot.slane %v3041, %v3070
      %v3072 = vlaneseq
      %v3073 = vshrl.u32 %v3072, 7
      %v3074 = vsub.s32 0, %v3073
      %v3075 = vrot.slane %v3043, %v3074
      %v3084 = vadd.f32 %v747, %v3047
      %v3085 = vadd.f32 %v748, %v3047
      %v3086 = vadd.f32 %v749, %v3051
      %v3087 = vadd.f32 %v750, %v3051
      %v3088 = vadd.f32 %v751, %v3055
      %v3089 = vadd.f32 %v752, %v3055
      %v3090 = vadd.f32 %v753, %v3059
      %v3091 = vadd.f32 %v754, %v3059
      %v3092 = vadd.f32 %v755, %v3063
      %v3093 = vadd.f32 %v756, %v3063
      %v3094 = vadd.f32 %v757, %v3067
      %v3095 = vadd.f32 %v758, %v3067
      %v3096 = vadd.f32 %v759, %v3071
      %v3097 = vadd.f32 %v760, %v3071
      %v3098 = vadd.f32 %v761, %v3075
      %v3099 = vadd.f32 %v762, %v3075
      %v3100 = vlaneseq
      %v3101 = vshrl.u32 %v3100, 7
      %v3102 = vsub.s32 0, %v3101
      %v3103 = vrot.slane %v2466, %v3102
      %3105 = vbcast.lane.b32.xlu0 %v3103, 256
      %v3106 = vpop.permute.xlu0 %3105
      %s3108 = sor.u32 256, 8
      %3109 = vbcast.lane.b32.xlu0 %v3103, %s3108
      %v3110 = vpop.permute.xlu0 %3109
      %v3111 = vlaneseq
      %v3112 = vshrl.u32 %v3111, 7
      %v3113 = vsub.s32 1, %v3112
      %v3114 = vrot.slane %v2466, %v3113
      %3116 = vbcast.lane.b32.xlu0 %v3114, 256
      %v3117 = vpop.permute.xlu0 %3116
      %s3119 = sor.u32 256, 8
      %3120 = vbcast.lane.b32.xlu0 %v3114, %s3119
      %v3121 = vpop.permute.xlu0 %3120
      %v3122 = vlaneseq
      %v3123 = vshrl.u32 %v3122, 7
      %v3124 = vsub.s32 2, %v3123
      %v3125 = vrot.slane %v2466, %v3124
      %3127 = vbcast.lane.b32.xlu0 %v3125, 256
      %v3128 = vpop.permute.xlu0 %3127
      %s3130 = sor.u32 256, 8
      %3131 = vbcast.lane.b32.xlu0 %v3125, %s3130
      %v3132 = vpop.permute.xlu0 %3131
      %v3133 = vlaneseq
      %v3134 = vshrl.u32 %v3133, 7
      %v3135 = vsub.s32 3, %v3134
      %v3136 = vrot.slane %v2466, %v3135
      %3138 = vbcast.lane.b32.xlu0 %v3136, 256
      %v3139 = vpop.permute.xlu0 %3138
      %s3141 = sor.u32 256, 8
      %3142 = vbcast.lane.b32.xlu0 %v3136, %s3141
      %v3143 = vpop.permute.xlu0 %3142
      %v3144 = vlaneseq
      %v3145 = vshrl.u32 %v3144, 7
      %v3146 = vsub.s32 4, %v3145
      %v3147 = vrot.slane %v2466, %v3146
      %3149 = vbcast.lane.b32.xlu0 %v3147, 256
      %v3150 = vpop.permute.xlu0 %3149
      %s3152 = sor.u32 256, 8
      %3153 = vbcast.lane.b32.xlu0 %v3147, %s3152
      %v3154 = vpop.permute.xlu0 %3153
      %v3155 = vlaneseq
      %v3156 = vshrl.u32 %v3155, 7
      %v3157 = vsub.s32 5, %v3156
      %v3158 = vrot.slane %v2466, %v3157
      %3160 = vbcast.lane.b32.xlu0 %v3158, 256
      %v3161 = vpop.permute.xlu0 %3160
      %s3163 = sor.u32 256, 8
      %3164 = vbcast.lane.b32.xlu0 %v3158, %s3163
      %v3165 = vpop.permute.xlu0 %3164
      %v3166 = vlaneseq
      %v3167 = vshrl.u32 %v3166, 7
      %v3168 = vsub.s32 6, %v3167
      %v3169 = vrot.slane %v2466, %v3168
      %3171 = vbcast.lane.b32.xlu0 %v3169, 256
      %v3172 = vpop.permute.xlu0 %3171
      %s3174 = sor.u32 256, 8
      %3175 = vbcast.lane.b32.xlu0 %v3169, %s3174
      %v3176 = vpop.permute.xlu0 %3175
      %v3177 = vlaneseq
      %v3178 = vshrl.u32 %v3177, 7
      %v3179 = vsub.s32 7, %v3178
      %v3180 = vrot.slane %v2466, %v3179
      %3182 = vbcast.lane.b32.xlu0 %v3180, 256
      %v3183 = vpop.permute.xlu0 %3182
      %s3185 = sor.u32 256, 8
      %3186 = vbcast.lane.b32.xlu0 %v3180, %s3185
      %v3187 = vpop.permute.xlu0 %3186
      %v3188 = vmul.f32 %v3106, %v1254
      %v3189 = vmul.f32 %v3110, %v1254
      %v3190 = vmul.f32 %v3117, %v1254
      %v3191 = vmul.f32 %v3121, %v1254
      %v3192 = vmul.f32 %v3128, %v1254
      %v3193 = vmul.f32 %v3132, %v1254
      %v3194 = vmul.f32 %v3139, %v1254
      %v3195 = vmul.f32 %v3143, %v1254
      %v3196 = vmul.f32 %v3150, %v1254
      %v3197 = vmul.f32 %v3154, %v1254
      %v3198 = vmul.f32 %v3161, %v1254
      %v3199 = vmul.f32 %v3165, %v1254
      %v3200 = vmul.f32 %v3172, %v1254
      %v3201 = vmul.f32 %v3176, %v1254
      %v3202 = vmul.f32 %v3183, %v1254
      %v3203 = vmul.f32 %v3187, %v1254
      %v3204 = vadd.f32 %v3084, %v3188
      %v3205 = vadd.f32 %v3085, %v3189
      %v3206 = vadd.f32 %v3086, %v3190
      %v3207 = vadd.f32 %v3087, %v3191
      %v3208 = vadd.f32 %v3088, %v3192
      %v3209 = vadd.f32 %v3089, %v3193
      %v3210 = vadd.f32 %v3090, %v3194
      %v3211 = vadd.f32 %v3091, %v3195
      %v3212 = vadd.f32 %v3092, %v3196
      %v3213 = vadd.f32 %v3093, %v3197
      %v3214 = vadd.f32 %v3094, %v3198
      %v3215 = vadd.f32 %v3095, %v3199
      %v3216 = vadd.f32 %v3096, %v3200
      %v3217 = vadd.f32 %v3097, %v3201
      %v3218 = vadd.f32 %v3098, %v3202
      %v3219 = vadd.f32 %v3099, %v3203
      %v3220 = vtanh.pop %v3204
      %v3221 = vtanh.pop %v3205
      %v3222 = vtanh.pop %v3206
      %v3223 = vtanh.pop %v3207
      %v3224 = vtanh.pop %v3208
      %v3225 = vtanh.pop %v3209
      %v3226 = vtanh.pop %v3210
      %v3227 = vtanh.pop %v3211
      %v3228 = vtanh.pop %v3212
      %v3229 = vtanh.pop %v3213
      %v3230 = vtanh.pop %v3214
      %v3231 = vtanh.pop %v3215
      %v3232 = vtanh.pop %v3216
      %v3233 = vtanh.pop %v3217
      %v3234 = vtanh.pop %v3218
      %v3235 = vtanh.pop %v3219
      %v3236 = vmul.f32 %v3220, %v1308
      %v3237 = vmul.f32 %v3221, %v1308
      %v3238 = vmul.f32 %v3222, %v1308
      %v3239 = vmul.f32 %v3223, %v1308
      %v3240 = vmul.f32 %v3224, %v1308
      %v3241 = vmul.f32 %v3225, %v1308
      %v3242 = vmul.f32 %v3226, %v1308
      %v3243 = vmul.f32 %v3227, %v1308
      %v3244 = vmul.f32 %v3228, %v1308
      %v3245 = vmul.f32 %v3229, %v1308
      %v3246 = vmul.f32 %v3230, %v1308
      %v3247 = vmul.f32 %v3231, %v1308
      %v3248 = vmul.f32 %v3232, %v1308
      %v3249 = vmul.f32 %v3233, %v1308
      %v3250 = vmul.f32 %v3234, %v1308
      %v3251 = vmul.f32 %v3235, %v1308
      %v3252 = vsel %vm798, %v3236, 0.0
      %3253 = vadd.xlane.f32.xlu0 %v3252
      %v3254 = vpop.xlane.xlu0 %3253
      %v3255 = vsel %vm1329, %v3237, 0.0
      %3256 = vadd.xlane.f32.xlu0 %v3255
      %v3257 = vpop.xlane.xlu0 %3256
      %v3258 = vsel %vm798, %v3238, 0.0
      %3259 = vadd.xlane.f32.xlu0 %v3258
      %v3260 = vpop.xlane.xlu0 %3259
      %v3261 = vsel %vm1329, %v3239, 0.0
      %3262 = vadd.xlane.f32.xlu0 %v3261
      %v3263 = vpop.xlane.xlu0 %3262
      %v3264 = vsel %vm798, %v3240, 0.0
      %3265 = vadd.xlane.f32.xlu0 %v3264
      %v3266 = vpop.xlane.xlu0 %3265
      %v3267 = vsel %vm1329, %v3241, 0.0
      %3268 = vadd.xlane.f32.xlu0 %v3267
      %v3269 = vpop.xlane.xlu0 %3268
      %v3270 = vsel %vm798, %v3242, 0.0
      %3271 = vadd.xlane.f32.xlu0 %v3270
      %v3272 = vpop.xlane.xlu0 %3271
      %v3273 = vsel %vm1329, %v3243, 0.0
      %3274 = vadd.xlane.f32.xlu0 %v3273
      %v3275 = vpop.xlane.xlu0 %3274
      %v3276 = vsel %vm798, %v3244, 0.0
      %3277 = vadd.xlane.f32.xlu0 %v3276
      %v3278 = vpop.xlane.xlu0 %3277
      %v3279 = vsel %vm1329, %v3245, 0.0
      %3280 = vadd.xlane.f32.xlu0 %v3279
      %v3281 = vpop.xlane.xlu0 %3280
      %v3282 = vsel %vm798, %v3246, 0.0
      %3283 = vadd.xlane.f32.xlu0 %v3282
      %v3284 = vpop.xlane.xlu0 %3283
      %v3285 = vsel %vm1329, %v3247, 0.0
      %3286 = vadd.xlane.f32.xlu0 %v3285
      %v3287 = vpop.xlane.xlu0 %3286
      %v3288 = vsel %vm798, %v3248, 0.0
      %3289 = vadd.xlane.f32.xlu0 %v3288
      %v3290 = vpop.xlane.xlu0 %3289
      %v3291 = vsel %vm1329, %v3249, 0.0
      %3292 = vadd.xlane.f32.xlu0 %v3291
      %v3293 = vpop.xlane.xlu0 %3292
      %v3294 = vsel %vm798, %v3250, 0.0
      %3295 = vadd.xlane.f32.xlu0 %v3294
      %v3296 = vpop.xlane.xlu0 %3295
      %v3297 = vsel %vm1329, %v3251, 0.0
      %3298 = vadd.xlane.f32.xlu0 %v3297
      %v3299 = vpop.xlane.xlu0 %3298
      %v3300 = vadd.f32 %v3254, %v1382
      %v3301 = vadd.f32 %v3257, %v1386
      %v3302 = vadd.f32 %v3260, %v1393
      %v3303 = vadd.f32 %v3263, %v1397
      %v3304 = vadd.f32 %v3266, %v1404
      %v3305 = vadd.f32 %v3269, %v1408
      %v3306 = vadd.f32 %v3272, %v1415
      %v3307 = vadd.f32 %v3275, %v1419
      %v3308 = vadd.f32 %v3278, %v1426
      %v3309 = vadd.f32 %v3281, %v1430
      %v3310 = vadd.f32 %v3284, %v1437
      %v3311 = vadd.f32 %v3287, %v1441
      %v3312 = vadd.f32 %v3290, %v1448
      %v3313 = vadd.f32 %v3293, %v1452
      %v3314 = vadd.f32 %v3296, %v1459
      %v3315 = vadd.f32 %v3299, %v1463
      %3332 = vset.pattern.permute.xlu0 0
      %3333 = vperm.xlu0 %3332, %v3300
      %v3334 = vpop.permute.xlu0 %3333
      %3335 = vset.pattern.permute.xlu0 0
      %3336 = vperm.xlu0 %3335, %v3301
      %v3337 = vpop.permute.xlu0 %3336
      %3338 = vset.pattern.permute.xlu0 0
      %3339 = vperm.xlu0 %3338, %v3302
      %v3340 = vpop.permute.xlu0 %3339
      %3341 = vset.pattern.permute.xlu0 0
      %3342 = vperm.xlu0 %3341, %v3303
      %v3343 = vpop.permute.xlu0 %3342
      %3344 = vset.pattern.permute.xlu0 0
      %3345 = vperm.xlu0 %3344, %v3304
      %v3346 = vpop.permute.xlu0 %3345
      %3347 = vset.pattern.permute.xlu0 0
      %3348 = vperm.xlu0 %3347, %v3305
      %v3349 = vpop.permute.xlu0 %3348
      %3350 = vset.pattern.permute.xlu0 0
      %3351 = vperm.xlu0 %3350, %v3306
      %v3352 = vpop.permute.xlu0 %3351
      %3353 = vset.pattern.permute.xlu0 0
      %3354 = vperm.xlu0 %3353, %v3307
      %v3355 = vpop.permute.xlu0 %3354
      %3356 = vset.pattern.permute.xlu0 0
      %3357 = vperm.xlu0 %3356, %v3308
      %v3358 = vpop.permute.xlu0 %3357
      %3359 = vset.pattern.permute.xlu0 0
      %3360 = vperm.xlu0 %3359, %v3309
      %v3361 = vpop.permute.xlu0 %3360
      %3362 = vset.pattern.permute.xlu0 0
      %3363 = vperm.xlu0 %3362, %v3310
      %v3364 = vpop.permute.xlu0 %3363
      %3365 = vset.pattern.permute.xlu0 0
      %3366 = vperm.xlu0 %3365, %v3311
      %v3367 = vpop.permute.xlu0 %3366
      %3368 = vset.pattern.permute.xlu0 0
      %3369 = vperm.xlu0 %3368, %v3312
      %v3370 = vpop.permute.xlu0 %3369
      %3371 = vset.pattern.permute.xlu0 0
      %3372 = vperm.xlu0 %3371, %v3313
      %v3373 = vpop.permute.xlu0 %3372
      %3374 = vset.pattern.permute.xlu0 0
      %3375 = vperm.xlu0 %3374, %v3314
      %v3376 = vpop.permute.xlu0 %3375
      %3377 = vset.pattern.permute.xlu0 0
      %3378 = vperm.xlu0 %3377, %v3315
      %v3379 = vpop.permute.xlu0 %3378
      %v3380 = vlaneseq
      %v3381 = vshrl.u32 %v3380, 7
      %v3382 = vsub.s32 %v788, %v3381
      %v3383 = vrot.slane %v3334, %v3382
      %v3384 = vlaneseq
      %v3385 = vshrl.u32 %v3384, 7
      %v3386 = vsub.s32 %v1564, %v3385
      %v3387 = vrot.slane %v3337, %v3386
      %v3388 = vsel %vm1569, %v3387, %v3383
      %v3389 = vlaneseq
      %v3390 = vshrl.u32 %v3389, 7
      %v3391 = vsub.s32 %v788, %v3390
      %v3392 = vrot.slane %v3340, %v3391
      %v3393 = vlaneseq
      %v3394 = vshrl.u32 %v3393, 7
      %v3395 = vsub.s32 %v1564, %v3394
      %v3396 = vrot.slane %v3343, %v3395
      %v3397 = vsel %vm1569, %v3396, %v3392
      %v3398 = vlaneseq
      %v3399 = vshrl.u32 %v3398, 7
      %v3400 = vsub.s32 %v788, %v3399
      %v3401 = vrot.slane %v3346, %v3400
      %v3402 = vlaneseq
      %v3403 = vshrl.u32 %v3402, 7
      %v3404 = vsub.s32 %v1564, %v3403
      %v3405 = vrot.slane %v3349, %v3404
      %v3406 = vsel %vm1569, %v3405, %v3401
      %v3407 = vlaneseq
      %v3408 = vshrl.u32 %v3407, 7
      %v3409 = vsub.s32 %v788, %v3408
      %v3410 = vrot.slane %v3352, %v3409
      %v3411 = vlaneseq
      %v3412 = vshrl.u32 %v3411, 7
      %v3413 = vsub.s32 %v1564, %v3412
      %v3414 = vrot.slane %v3355, %v3413
      %v3415 = vsel %vm1569, %v3414, %v3410
      %v3416 = vlaneseq
      %v3417 = vshrl.u32 %v3416, 7
      %v3418 = vsub.s32 %v788, %v3417
      %v3419 = vrot.slane %v3358, %v3418
      %v3420 = vlaneseq
      %v3421 = vshrl.u32 %v3420, 7
      %v3422 = vsub.s32 %v1564, %v3421
      %v3423 = vrot.slane %v3361, %v3422
      %v3424 = vsel %vm1569, %v3423, %v3419
      %v3425 = vlaneseq
      %v3426 = vshrl.u32 %v3425, 7
      %v3427 = vsub.s32 %v788, %v3426
      %v3428 = vrot.slane %v3364, %v3427
      %v3429 = vlaneseq
      %v3430 = vshrl.u32 %v3429, 7
      %v3431 = vsub.s32 %v1564, %v3430
      %v3432 = vrot.slane %v3367, %v3431
      %v3433 = vsel %vm1569, %v3432, %v3428
      %v3434 = vlaneseq
      %v3435 = vshrl.u32 %v3434, 7
      %v3436 = vsub.s32 %v788, %v3435
      %v3437 = vrot.slane %v3370, %v3436
      %v3438 = vlaneseq
      %v3439 = vshrl.u32 %v3438, 7
      %v3440 = vsub.s32 %v1564, %v3439
      %v3441 = vrot.slane %v3373, %v3440
      %v3442 = vsel %vm1569, %v3441, %v3437
      %v3443 = vlaneseq
      %v3444 = vshrl.u32 %v3443, 7
      %v3445 = vsub.s32 %v788, %v3444
      %v3446 = vrot.slane %v3376, %v3445
      %v3447 = vlaneseq
      %v3448 = vshrl.u32 %v3447, 7
      %v3449 = vsub.s32 %v1564, %v3448
      %v3450 = vrot.slane %v3379, %v3449
      %v3451 = vsel %vm1569, %v3450, %v3446
      %v3452 = vsel %vm1634, %v3397, %v3388
      %v3453 = vsel %vm1636, %v3406, %v3452
      %v3454 = vsel %vm1638, %v3415, %v3453
      %v3455 = vsel %vm1640, %v3424, %v3454
      %v3456 = vsel %vm1642, %v3433, %v3455
      %v3457 = vsel %vm1644, %v3442, %v3456
      %v3458 = vsel %vm1646, %v3451, %v3457
      %v3460 = vsel %vm1649, %v3458, -inf
      %3461 = vmax.xlane.f32.xlu0 %v3460
      %v3462 = vpop.xlane.xlu0 %3461
      %v3464 = vlaneseq
      %v3465 = vshrl.u32 %v3464, 7
      %v3466 = vsub.s32 0, %v3465
      %v3467 = vrot.slane %v3462, %v3466
      %v3468 = vlaneseq
      %v3469 = vshrl.u32 %v3468, 7
      %v3470 = vsub.s32 1, %v3469
      %v3471 = vrot.slane %v3462, %v3470
      %v3472 = vlaneseq
      %v3473 = vshrl.u32 %v3472, 7
      %v3474 = vsub.s32 2, %v3473
      %v3475 = vrot.slane %v3462, %v3474
      %v3476 = vlaneseq
      %v3477 = vshrl.u32 %v3476, 7
      %v3478 = vsub.s32 3, %v3477
      %v3479 = vrot.slane %v3462, %v3478
      %v3480 = vlaneseq
      %v3481 = vshrl.u32 %v3480, 7
      %v3482 = vsub.s32 4, %v3481
      %v3483 = vrot.slane %v3462, %v3482
      %v3484 = vlaneseq
      %v3485 = vshrl.u32 %v3484, 7
      %v3486 = vsub.s32 5, %v3485
      %v3487 = vrot.slane %v3462, %v3486
      %v3488 = vlaneseq
      %v3489 = vshrl.u32 %v3488, 7
      %v3490 = vsub.s32 6, %v3489
      %v3491 = vrot.slane %v3462, %v3490
      %v3492 = vlaneseq
      %v3493 = vshrl.u32 %v3492, 7
      %v3494 = vsub.s32 7, %v3493
      %v3495 = vrot.slane %v3462, %v3494
      %v3504 = vsub.f32 %v3300, %v3467
      %v3505 = vsub.f32 %v3301, %v3467
      %v3506 = vsub.f32 %v3302, %v3471
      %v3507 = vsub.f32 %v3303, %v3471
      %v3508 = vsub.f32 %v3304, %v3475
      %v3509 = vsub.f32 %v3305, %v3475
      %v3510 = vsub.f32 %v3306, %v3479
      %v3511 = vsub.f32 %v3307, %v3479
      %v3512 = vsub.f32 %v3308, %v3483
      %v3513 = vsub.f32 %v3309, %v3483
      %v3514 = vsub.f32 %v3310, %v3487
      %v3515 = vsub.f32 %v3311, %v3487
      %v3516 = vsub.f32 %v3312, %v3491
      %v3517 = vsub.f32 %v3313, %v3491
      %v3518 = vsub.f32 %v3314, %v3495
      %v3519 = vsub.f32 %v3315, %v3495
      %v3520 = vmul.f32 %v3504, 1.442695
      %v3521 = vpow.pop %v3520
      %v3522 = vmul.f32 %v3505, 1.442695
      %v3523 = vpow.pop %v3522
      %v3524 = vmul.f32 %v3506, 1.442695
      %v3525 = vpow.pop %v3524
      %v3526 = vmul.f32 %v3507, 1.442695
      %v3527 = vpow.pop %v3526
      %v3528 = vmul.f32 %v3508, 1.442695
      %v3529 = vpow.pop %v3528
      %v3530 = vmul.f32 %v3509, 1.442695
      %v3531 = vpow.pop %v3530
      %v3532 = vmul.f32 %v3510, 1.442695
      %v3533 = vpow.pop %v3532
      %v3534 = vmul.f32 %v3511, 1.442695
      %v3535 = vpow.pop %v3534
      %v3536 = vmul.f32 %v3512, 1.442695
      %v3537 = vpow.pop %v3536
      %v3538 = vmul.f32 %v3513, 1.442695
      %v3539 = vpow.pop %v3538
      %v3540 = vmul.f32 %v3514, 1.442695
      %v3541 = vpow.pop %v3540
      %v3542 = vmul.f32 %v3515, 1.442695
      %v3543 = vpow.pop %v3542
      %v3544 = vmul.f32 %v3516, 1.442695
      %v3545 = vpow.pop %v3544
      %v3546 = vmul.f32 %v3517, 1.442695
      %v3547 = vpow.pop %v3546
      %v3548 = vmul.f32 %v3518, 1.442695
      %v3549 = vpow.pop %v3548
      %v3550 = vmul.f32 %v3519, 1.442695
      %v3551 = vpow.pop %v3550
      %3568 = vset.pattern.permute.xlu0 0
      %3569 = vperm.xlu0 %3568, %v3521
      %v3570 = vpop.permute.xlu0 %3569
      %3571 = vset.pattern.permute.xlu0 0
      %3572 = vperm.xlu0 %3571, %v3523
      %v3573 = vpop.permute.xlu0 %3572
      %3574 = vset.pattern.permute.xlu0 0
      %3575 = vperm.xlu0 %3574, %v3525
      %v3576 = vpop.permute.xlu0 %3575
      %3577 = vset.pattern.permute.xlu0 0
      %3578 = vperm.xlu0 %3577, %v3527
      %v3579 = vpop.permute.xlu0 %3578
      %3580 = vset.pattern.permute.xlu0 0
      %3581 = vperm.xlu0 %3580, %v3529
      %v3582 = vpop.permute.xlu0 %3581
      %3583 = vset.pattern.permute.xlu0 0
      %3584 = vperm.xlu0 %3583, %v3531
      %v3585 = vpop.permute.xlu0 %3584
      %3586 = vset.pattern.permute.xlu0 0
      %3587 = vperm.xlu0 %3586, %v3533
      %v3588 = vpop.permute.xlu0 %3587
      %3589 = vset.pattern.permute.xlu0 0
      %3590 = vperm.xlu0 %3589, %v3535
      %v3591 = vpop.permute.xlu0 %3590
      %3592 = vset.pattern.permute.xlu0 0
      %3593 = vperm.xlu0 %3592, %v3537
      %v3594 = vpop.permute.xlu0 %3593
      %3595 = vset.pattern.permute.xlu0 0
      %3596 = vperm.xlu0 %3595, %v3539
      %v3597 = vpop.permute.xlu0 %3596
      %3598 = vset.pattern.permute.xlu0 0
      %3599 = vperm.xlu0 %3598, %v3541
      %v3600 = vpop.permute.xlu0 %3599
      %3601 = vset.pattern.permute.xlu0 0
      %3602 = vperm.xlu0 %3601, %v3543
      %v3603 = vpop.permute.xlu0 %3602
      %3604 = vset.pattern.permute.xlu0 0
      %3605 = vperm.xlu0 %3604, %v3545
      %v3606 = vpop.permute.xlu0 %3605
      %3607 = vset.pattern.permute.xlu0 0
      %3608 = vperm.xlu0 %3607, %v3547
      %v3609 = vpop.permute.xlu0 %3608
      %3610 = vset.pattern.permute.xlu0 0
      %3611 = vperm.xlu0 %3610, %v3549
      %v3612 = vpop.permute.xlu0 %3611
      %3613 = vset.pattern.permute.xlu0 0
      %3614 = vperm.xlu0 %3613, %v3551
      %v3615 = vpop.permute.xlu0 %3614
      %v3616 = vlaneseq
      %v3617 = vshrl.u32 %v3616, 7
      %v3618 = vsub.s32 %v788, %v3617
      %v3619 = vrot.slane %v3570, %v3618
      %v3620 = vlaneseq
      %v3621 = vshrl.u32 %v3620, 7
      %v3622 = vsub.s32 %v1564, %v3621
      %v3623 = vrot.slane %v3573, %v3622
      %v3624 = vsel %vm1569, %v3623, %v3619
      %v3625 = vlaneseq
      %v3626 = vshrl.u32 %v3625, 7
      %v3627 = vsub.s32 %v788, %v3626
      %v3628 = vrot.slane %v3576, %v3627
      %v3629 = vlaneseq
      %v3630 = vshrl.u32 %v3629, 7
      %v3631 = vsub.s32 %v1564, %v3630
      %v3632 = vrot.slane %v3579, %v3631
      %v3633 = vsel %vm1569, %v3632, %v3628
      %v3634 = vlaneseq
      %v3635 = vshrl.u32 %v3634, 7
      %v3636 = vsub.s32 %v788, %v3635
      %v3637 = vrot.slane %v3582, %v3636
      %v3638 = vlaneseq
      %v3639 = vshrl.u32 %v3638, 7
      %v3640 = vsub.s32 %v1564, %v3639
      %v3641 = vrot.slane %v3585, %v3640
      %v3642 = vsel %vm1569, %v3641, %v3637
      %v3643 = vlaneseq
      %v3644 = vshrl.u32 %v3643, 7
      %v3645 = vsub.s32 %v788, %v3644
      %v3646 = vrot.slane %v3588, %v3645
      %v3647 = vlaneseq
      %v3648 = vshrl.u32 %v3647, 7
      %v3649 = vsub.s32 %v1564, %v3648
      %v3650 = vrot.slane %v3591, %v3649
      %v3651 = vsel %vm1569, %v3650, %v3646
      %v3652 = vlaneseq
      %v3653 = vshrl.u32 %v3652, 7
      %v3654 = vsub.s32 %v788, %v3653
      %v3655 = vrot.slane %v3594, %v3654
      %v3656 = vlaneseq
      %v3657 = vshrl.u32 %v3656, 7
      %v3658 = vsub.s32 %v1564, %v3657
      %v3659 = vrot.slane %v3597, %v3658
      %v3660 = vsel %vm1569, %v3659, %v3655
      %v3661 = vlaneseq
      %v3662 = vshrl.u32 %v3661, 7
      %v3663 = vsub.s32 %v788, %v3662
      %v3664 = vrot.slane %v3600, %v3663
      %v3665 = vlaneseq
      %v3666 = vshrl.u32 %v3665, 7
      %v3667 = vsub.s32 %v1564, %v3666
      %v3668 = vrot.slane %v3603, %v3667
      %v3669 = vsel %vm1569, %v3668, %v3664
      %v3670 = vlaneseq
      %v3671 = vshrl.u32 %v3670, 7
      %v3672 = vsub.s32 %v788, %v3671
      %v3673 = vrot.slane %v3606, %v3672
      %v3674 = vlaneseq
      %v3675 = vshrl.u32 %v3674, 7
      %v3676 = vsub.s32 %v1564, %v3675
      %v3677 = vrot.slane %v3609, %v3676
      %v3678 = vsel %vm1569, %v3677, %v3673
      %v3679 = vlaneseq
      %v3680 = vshrl.u32 %v3679, 7
      %v3681 = vsub.s32 %v788, %v3680
      %v3682 = vrot.slane %v3612, %v3681
      %v3683 = vlaneseq
      %v3684 = vshrl.u32 %v3683, 7
      %v3685 = vsub.s32 %v1564, %v3684
      %v3686 = vrot.slane %v3615, %v3685
      %v3687 = vsel %vm1569, %v3686, %v3682
      %v3688 = vsel %vm1634, %v3633, %v3624
      %v3689 = vsel %vm1636, %v3642, %v3688
      %v3690 = vsel %vm1638, %v3651, %v3689
      %v3691 = vsel %vm1640, %v3660, %v3690
      %v3692 = vsel %vm1642, %v3669, %v3691
      %v3693 = vsel %vm1644, %v3678, %v3692
      %v3694 = vsel %vm1646, %v3687, %v3693
      %v3696 = vsel %vm1649, %v3694, 0.0
      %3697 = vadd.xlane.f32.xlu0 %v3696
      %v3698 = vpop.xlane.xlu0 %3697
      %v3699 = vrcp.pop %v3698
      %v3700 = vmul.f32 1.0, %v3699
      %v3702 = vlaneseq
      %v3703 = vshrl.u32 %v3702, 7
      %v3704 = vsub.s32 0, %v3703
      %v3705 = vrot.slane %v3700, %v3704
      %v3706 = vlaneseq
      %v3707 = vshrl.u32 %v3706, 7
      %v3708 = vsub.s32 1, %v3707
      %v3709 = vrot.slane %v3700, %v3708
      %v3710 = vlaneseq
      %v3711 = vshrl.u32 %v3710, 7
      %v3712 = vsub.s32 2, %v3711
      %v3713 = vrot.slane %v3700, %v3712
      %v3714 = vlaneseq
      %v3715 = vshrl.u32 %v3714, 7
      %v3716 = vsub.s32 3, %v3715
      %v3717 = vrot.slane %v3700, %v3716
      %v3718 = vlaneseq
      %v3719 = vshrl.u32 %v3718, 7
      %v3720 = vsub.s32 4, %v3719
      %v3721 = vrot.slane %v3700, %v3720
      %v3722 = vlaneseq
      %v3723 = vshrl.u32 %v3722, 7
      %v3724 = vsub.s32 5, %v3723
      %v3725 = vrot.slane %v3700, %v3724
      %v3726 = vlaneseq
      %v3727 = vshrl.u32 %v3726, 7
      %v3728 = vsub.s32 6, %v3727
      %v3729 = vrot.slane %v3700, %v3728
      %v3730 = vlaneseq
      %v3731 = vshrl.u32 %v3730, 7
      %v3732 = vsub.s32 7, %v3731
      %v3733 = vrot.slane %v3700, %v3732
      %v3742 = vmul.f32 %v3521, %v3705
      %v3743 = vmul.f32 %v3523, %v3705
      %v3744 = vmul.f32 %v3525, %v3709
      %v3745 = vmul.f32 %v3527, %v3709
      %v3746 = vmul.f32 %v3529, %v3713
      %v3747 = vmul.f32 %v3531, %v3713
      %v3748 = vmul.f32 %v3533, %v3717
      %v3749 = vmul.f32 %v3535, %v3717
      %v3750 = vmul.f32 %v3537, %v3721
      %v3751 = vmul.f32 %v3539, %v3721
      %v3752 = vmul.f32 %v3541, %v3725
      %v3753 = vmul.f32 %v3543, %v3725
      %v3754 = vmul.f32 %v3545, %v3729
      %v3755 = vmul.f32 %v3547, %v3729
      %v3756 = vmul.f32 %v3549, %v3733
      %v3757 = vmul.f32 %v3551, %v3733
      %3759 = vset.pattern.permute.xlu0 0
      %3760 = vperm.xlu0 %3759, %v3742
      %v3761 = vpop.permute.xlu0 %3760
      %3764 = vset.pattern.permute.xlu0 0
      %3765 = vperm.xlu0 %3764, %v3743
      %v3766 = vpop.permute.xlu0 %3765
      %3769 = vset.pattern.permute.xlu0 0
      %3770 = vperm.xlu0 %3769, %v3744
      %v3771 = vpop.permute.xlu0 %3770
      %3774 = vset.pattern.permute.xlu0 0
      %3775 = vperm.xlu0 %3774, %v3745
      %v3776 = vpop.permute.xlu0 %3775
      %3779 = vset.pattern.permute.xlu0 0
      %3780 = vperm.xlu0 %3779, %v3746
      %v3781 = vpop.permute.xlu0 %3780
      %3784 = vset.pattern.permute.xlu0 0
      %3785 = vperm.xlu0 %3784, %v3747
      %v3786 = vpop.permute.xlu0 %3785
      %3789 = vset.pattern.permute.xlu0 0
      %3790 = vperm.xlu0 %3789, %v3748
      %v3791 = vpop.permute.xlu0 %3790
      %3794 = vset.pattern.permute.xlu0 0
      %3795 = vperm.xlu0 %3794, %v3749
      %v3796 = vpop.permute.xlu0 %3795
      %3799 = vset.pattern.permute.xlu0 0
      %3800 = vperm.xlu0 %3799, %v3750
      %v3801 = vpop.permute.xlu0 %3800
      %3804 = vset.pattern.permute.xlu0 0
      %3805 = vperm.xlu0 %3804, %v3751
      %v3806 = vpop.permute.xlu0 %3805
      %3809 = vset.pattern.permute.xlu0 0
      %3810 = vperm.xlu0 %3809, %v3752
      %v3811 = vpop.permute.xlu0 %3810
      %3814 = vset.pattern.permute.xlu0 0
      %3815 = vperm.xlu0 %3814, %v3753
      %v3816 = vpop.permute.xlu0 %3815
      %3819 = vset.pattern.permute.xlu0 0
      %3820 = vperm.xlu0 %3819, %v3754
      %v3821 = vpop.permute.xlu0 %3820
      %3824 = vset.pattern.permute.xlu0 0
      %3825 = vperm.xlu0 %3824, %v3755
      %v3826 = vpop.permute.xlu0 %3825
      %3829 = vset.pattern.permute.xlu0 0
      %3830 = vperm.xlu0 %3829, %v3756
      %v3831 = vpop.permute.xlu0 %3830
      %3834 = vset.pattern.permute.xlu0 0
      %3835 = vperm.xlu0 %3834, %v3757
      %v3836 = vpop.permute.xlu0 %3835
      %v3838 = vmul.f32 %v3761, %v731
      %v3839 = vmul.f32 %v3766, %v732
      %v3840 = vmul.f32 %v3771, %v733
      %v3841 = vmul.f32 %v3776, %v734
      %v3842 = vmul.f32 %v3781, %v735
      %v3843 = vmul.f32 %v3786, %v736
      %v3844 = vmul.f32 %v3791, %v737
      %v3845 = vmul.f32 %v3796, %v738
      %v3846 = vmul.f32 %v3801, %v739
      %v3847 = vmul.f32 %v3806, %v740
      %v3848 = vmul.f32 %v3811, %v741
      %v3849 = vmul.f32 %v3816, %v742
      %v3850 = vmul.f32 %v3821, %v743
      %v3851 = vmul.f32 %v3826, %v744
      %v3852 = vmul.f32 %v3831, %v745
      %v3853 = vmul.f32 %v3836, %v746
      %v3854 = vsel %vm2044, %v3838, 0.0
      %v3855 = vsel %vm2046, %v3839, 0.0
      %v3856 = vadd.f32 %v3854, %v3855
      %v3857 = vrot.slane %v3856, 4
      %v3858 = vadd.f32 %v3856, %v3857
      %v3859 = vrot.slane %v3858, 2
      %v3860 = vadd.f32 %v3858, %v3859
      %v3861 = vrot.slane %v3860, 1
      %v3862 = vadd.f32 %v3860, %v3861
      %v3863 = vsel %vm2044, %v3840, 0.0
      %v3864 = vsel %vm2046, %v3841, 0.0
      %v3865 = vadd.f32 %v3863, %v3864
      %v3866 = vrot.slane %v3865, 4
      %v3867 = vadd.f32 %v3865, %v3866
      %v3868 = vrot.slane %v3867, 2
      %v3869 = vadd.f32 %v3867, %v3868
      %v3870 = vrot.slane %v3869, 1
      %v3871 = vadd.f32 %v3869, %v3870
      %v3872 = vsel %vm2044, %v3842, 0.0
      %v3873 = vsel %vm2046, %v3843, 0.0
      %v3874 = vadd.f32 %v3872, %v3873
      %v3875 = vrot.slane %v3874, 4
      %v3876 = vadd.f32 %v3874, %v3875
      %v3877 = vrot.slane %v3876, 2
      %v3878 = vadd.f32 %v3876, %v3877
      %v3879 = vrot.slane %v3878, 1
      %v3880 = vadd.f32 %v3878, %v3879
      %v3881 = vsel %vm2044, %v3844, 0.0
      %v3882 = vsel %vm2046, %v3845, 0.0
      %v3883 = vadd.f32 %v3881, %v3882
      %v3884 = vrot.slane %v3883, 4
      %v3885 = vadd.f32 %v3883, %v3884
      %v3886 = vrot.slane %v3885, 2
      %v3887 = vadd.f32 %v3885, %v3886
      %v3888 = vrot.slane %v3887, 1
      %v3889 = vadd.f32 %v3887, %v3888
      %v3890 = vsel %vm2044, %v3846, 0.0
      %v3891 = vsel %vm2046, %v3847, 0.0
      %v3892 = vadd.f32 %v3890, %v3891
      %v3893 = vrot.slane %v3892, 4
      %v3894 = vadd.f32 %v3892, %v3893
      %v3895 = vrot.slane %v3894, 2
      %v3896 = vadd.f32 %v3894, %v3895
      %v3897 = vrot.slane %v3896, 1
      %v3898 = vadd.f32 %v3896, %v3897
      %v3899 = vsel %vm2044, %v3848, 0.0
      %v3900 = vsel %vm2046, %v3849, 0.0
      %v3901 = vadd.f32 %v3899, %v3900
      %v3902 = vrot.slane %v3901, 4
      %v3903 = vadd.f32 %v3901, %v3902
      %v3904 = vrot.slane %v3903, 2
      %v3905 = vadd.f32 %v3903, %v3904
      %v3906 = vrot.slane %v3905, 1
      %v3907 = vadd.f32 %v3905, %v3906
      %v3908 = vsel %vm2044, %v3850, 0.0
      %v3909 = vsel %vm2046, %v3851, 0.0
      %v3910 = vadd.f32 %v3908, %v3909
      %v3911 = vrot.slane %v3910, 4
      %v3912 = vadd.f32 %v3910, %v3911
      %v3913 = vrot.slane %v3912, 2
      %v3914 = vadd.f32 %v3912, %v3913
      %v3915 = vrot.slane %v3914, 1
      %v3916 = vadd.f32 %v3914, %v3915
      %v3917 = vsel %vm2044, %v3852, 0.0
      %v3918 = vsel %vm2046, %v3853, 0.0
      %v3919 = vadd.f32 %v3917, %v3918
      %v3920 = vrot.slane %v3919, 4
      %v3921 = vadd.f32 %v3919, %v3920
      %v3922 = vrot.slane %v3921, 2
      %v3923 = vadd.f32 %v3921, %v3922
      %v3924 = vrot.slane %v3923, 1
      %v3925 = vadd.f32 %v3923, %v3924
      %v3927 = vlaneseq
      %v3928 = vshrl.u32 %v3927, 7
      %v3929 = vsub.s32 0, %v3928
      %v3930 = vrot.slane %v2466, %v3929
      %3932 = vbcast.lane.b32.xlu0 %v3930, 256
      %v3933 = vpop.permute.xlu0 %3932
      %s3935 = sor.u32 256, 8
      %3936 = vbcast.lane.b32.xlu0 %v3930, %s3935
      %v3937 = vpop.permute.xlu0 %3936
      %v3938 = vlaneseq
      %v3939 = vshrl.u32 %v3938, 7
      %v3940 = vsub.s32 1, %v3939
      %v3941 = vrot.slane %v2466, %v3940
      %3943 = vbcast.lane.b32.xlu0 %v3941, 256
      %v3944 = vpop.permute.xlu0 %3943
      %s3946 = sor.u32 256, 8
      %3947 = vbcast.lane.b32.xlu0 %v3941, %s3946
      %v3948 = vpop.permute.xlu0 %3947
      %v3949 = vlaneseq
      %v3950 = vshrl.u32 %v3949, 7
      %v3951 = vsub.s32 2, %v3950
      %v3952 = vrot.slane %v2466, %v3951
      %3954 = vbcast.lane.b32.xlu0 %v3952, 256
      %v3955 = vpop.permute.xlu0 %3954
      %s3957 = sor.u32 256, 8
      %3958 = vbcast.lane.b32.xlu0 %v3952, %s3957
      %v3959 = vpop.permute.xlu0 %3958
      %v3960 = vlaneseq
      %v3961 = vshrl.u32 %v3960, 7
      %v3962 = vsub.s32 3, %v3961
      %v3963 = vrot.slane %v2466, %v3962
      %3965 = vbcast.lane.b32.xlu0 %v3963, 256
      %v3966 = vpop.permute.xlu0 %3965
      %s3968 = sor.u32 256, 8
      %3969 = vbcast.lane.b32.xlu0 %v3963, %s3968
      %v3970 = vpop.permute.xlu0 %3969
      %v3971 = vlaneseq
      %v3972 = vshrl.u32 %v3971, 7
      %v3973 = vsub.s32 4, %v3972
      %v3974 = vrot.slane %v2466, %v3973
      %3976 = vbcast.lane.b32.xlu0 %v3974, 256
      %v3977 = vpop.permute.xlu0 %3976
      %s3979 = sor.u32 256, 8
      %3980 = vbcast.lane.b32.xlu0 %v3974, %s3979
      %v3981 = vpop.permute.xlu0 %3980
      %v3982 = vlaneseq
      %v3983 = vshrl.u32 %v3982, 7
      %v3984 = vsub.s32 5, %v3983
      %v3985 = vrot.slane %v2466, %v3984
      %3987 = vbcast.lane.b32.xlu0 %v3985, 256
      %v3988 = vpop.permute.xlu0 %3987
      %s3990 = sor.u32 256, 8
      %3991 = vbcast.lane.b32.xlu0 %v3985, %s3990
      %v3992 = vpop.permute.xlu0 %3991
      %v3993 = vlaneseq
      %v3994 = vshrl.u32 %v3993, 7
      %v3995 = vsub.s32 6, %v3994
      %v3996 = vrot.slane %v2466, %v3995
      %3998 = vbcast.lane.b32.xlu0 %v3996, 256
      %v3999 = vpop.permute.xlu0 %3998
      %s4001 = sor.u32 256, 8
      %4002 = vbcast.lane.b32.xlu0 %v3996, %s4001
      %v4003 = vpop.permute.xlu0 %4002
      %v4004 = vlaneseq
      %v4005 = vshrl.u32 %v4004, 7
      %v4006 = vsub.s32 7, %v4005
      %v4007 = vrot.slane %v2466, %v4006
      %4009 = vbcast.lane.b32.xlu0 %v4007, 256
      %v4010 = vpop.permute.xlu0 %4009
      %s4012 = sor.u32 256, 8
      %4013 = vbcast.lane.b32.xlu0 %v4007, %s4012
      %v4014 = vpop.permute.xlu0 %4013
      %v4031 = vmin.f32 %v3742, %v3933
      %v4032 = vmin.f32 %v3743, %v3937
      %v4033 = vmin.f32 %v3744, %v3944
      %v4034 = vmin.f32 %v3745, %v3948
      %v4035 = vmin.f32 %v3746, %v3955
      %v4036 = vmin.f32 %v3747, %v3959
      %v4037 = vmin.f32 %v3748, %v3966
      %v4038 = vmin.f32 %v3749, %v3970
      %v4039 = vmin.f32 %v3750, %v3977
      %v4040 = vmin.f32 %v3751, %v3981
      %v4041 = vmin.f32 %v3752, %v3988
      %v4042 = vmin.f32 %v3753, %v3992
      %v4043 = vmin.f32 %v3754, %v3999
      %v4044 = vmin.f32 %v3755, %v4003
      %v4045 = vmin.f32 %v3756, %v4010
      %v4046 = vmin.f32 %v3757, %v4014
      %4063 = vset.pattern.permute.xlu0 0
      %4064 = vperm.xlu0 %4063, %v4031
      %v4065 = vpop.permute.xlu0 %4064
      %4066 = vset.pattern.permute.xlu0 0
      %4067 = vperm.xlu0 %4066, %v4032
      %v4068 = vpop.permute.xlu0 %4067
      %4069 = vset.pattern.permute.xlu0 0
      %4070 = vperm.xlu0 %4069, %v4033
      %v4071 = vpop.permute.xlu0 %4070
      %4072 = vset.pattern.permute.xlu0 0
      %4073 = vperm.xlu0 %4072, %v4034
      %v4074 = vpop.permute.xlu0 %4073
      %4075 = vset.pattern.permute.xlu0 0
      %4076 = vperm.xlu0 %4075, %v4035
      %v4077 = vpop.permute.xlu0 %4076
      %4078 = vset.pattern.permute.xlu0 0
      %4079 = vperm.xlu0 %4078, %v4036
      %v4080 = vpop.permute.xlu0 %4079
      %4081 = vset.pattern.permute.xlu0 0
      %4082 = vperm.xlu0 %4081, %v4037
      %v4083 = vpop.permute.xlu0 %4082
      %4084 = vset.pattern.permute.xlu0 0
      %4085 = vperm.xlu0 %4084, %v4038
      %v4086 = vpop.permute.xlu0 %4085
      %4087 = vset.pattern.permute.xlu0 0
      %4088 = vperm.xlu0 %4087, %v4039
      %v4089 = vpop.permute.xlu0 %4088
      %4090 = vset.pattern.permute.xlu0 0
      %4091 = vperm.xlu0 %4090, %v4040
      %v4092 = vpop.permute.xlu0 %4091
      %4093 = vset.pattern.permute.xlu0 0
      %4094 = vperm.xlu0 %4093, %v4041
      %v4095 = vpop.permute.xlu0 %4094
      %4096 = vset.pattern.permute.xlu0 0
      %4097 = vperm.xlu0 %4096, %v4042
      %v4098 = vpop.permute.xlu0 %4097
      %4099 = vset.pattern.permute.xlu0 0
      %4100 = vperm.xlu0 %4099, %v4043
      %v4101 = vpop.permute.xlu0 %4100
      %4102 = vset.pattern.permute.xlu0 0
      %4103 = vperm.xlu0 %4102, %v4044
      %v4104 = vpop.permute.xlu0 %4103
      %4105 = vset.pattern.permute.xlu0 0
      %4106 = vperm.xlu0 %4105, %v4045
      %v4107 = vpop.permute.xlu0 %4106
      %4108 = vset.pattern.permute.xlu0 0
      %4109 = vperm.xlu0 %4108, %v4046
      %v4110 = vpop.permute.xlu0 %4109
      %v4111 = vlaneseq
      %v4112 = vshrl.u32 %v4111, 7
      %v4113 = vsub.s32 %v788, %v4112
      %v4114 = vrot.slane %v4065, %v4113
      %v4115 = vlaneseq
      %v4116 = vshrl.u32 %v4115, 7
      %v4117 = vsub.s32 %v1564, %v4116
      %v4118 = vrot.slane %v4068, %v4117
      %v4119 = vsel %vm1569, %v4118, %v4114
      %v4120 = vlaneseq
      %v4121 = vshrl.u32 %v4120, 7
      %v4122 = vsub.s32 %v788, %v4121
      %v4123 = vrot.slane %v4071, %v4122
      %v4124 = vlaneseq
      %v4125 = vshrl.u32 %v4124, 7
      %v4126 = vsub.s32 %v1564, %v4125
      %v4127 = vrot.slane %v4074, %v4126
      %v4128 = vsel %vm1569, %v4127, %v4123
      %v4129 = vlaneseq
      %v4130 = vshrl.u32 %v4129, 7
      %v4131 = vsub.s32 %v788, %v4130
      %v4132 = vrot.slane %v4077, %v4131
      %v4133 = vlaneseq
      %v4134 = vshrl.u32 %v4133, 7
      %v4135 = vsub.s32 %v1564, %v4134
      %v4136 = vrot.slane %v4080, %v4135
      %v4137 = vsel %vm1569, %v4136, %v4132
      %v4138 = vlaneseq
      %v4139 = vshrl.u32 %v4138, 7
      %v4140 = vsub.s32 %v788, %v4139
      %v4141 = vrot.slane %v4083, %v4140
      %v4142 = vlaneseq
      %v4143 = vshrl.u32 %v4142, 7
      %v4144 = vsub.s32 %v1564, %v4143
      %v4145 = vrot.slane %v4086, %v4144
      %v4146 = vsel %vm1569, %v4145, %v4141
      %v4147 = vlaneseq
      %v4148 = vshrl.u32 %v4147, 7
      %v4149 = vsub.s32 %v788, %v4148
      %v4150 = vrot.slane %v4089, %v4149
      %v4151 = vlaneseq
      %v4152 = vshrl.u32 %v4151, 7
      %v4153 = vsub.s32 %v1564, %v4152
      %v4154 = vrot.slane %v4092, %v4153
      %v4155 = vsel %vm1569, %v4154, %v4150
      %v4156 = vlaneseq
      %v4157 = vshrl.u32 %v4156, 7
      %v4158 = vsub.s32 %v788, %v4157
      %v4159 = vrot.slane %v4095, %v4158
      %v4160 = vlaneseq
      %v4161 = vshrl.u32 %v4160, 7
      %v4162 = vsub.s32 %v1564, %v4161
      %v4163 = vrot.slane %v4098, %v4162
      %v4164 = vsel %vm1569, %v4163, %v4159
      %v4165 = vlaneseq
      %v4166 = vshrl.u32 %v4165, 7
      %v4167 = vsub.s32 %v788, %v4166
      %v4168 = vrot.slane %v4101, %v4167
      %v4169 = vlaneseq
      %v4170 = vshrl.u32 %v4169, 7
      %v4171 = vsub.s32 %v1564, %v4170
      %v4172 = vrot.slane %v4104, %v4171
      %v4173 = vsel %vm1569, %v4172, %v4168
      %v4174 = vlaneseq
      %v4175 = vshrl.u32 %v4174, 7
      %v4176 = vsub.s32 %v788, %v4175
      %v4177 = vrot.slane %v4107, %v4176
      %v4178 = vlaneseq
      %v4179 = vshrl.u32 %v4178, 7
      %v4180 = vsub.s32 %v1564, %v4179
      %v4181 = vrot.slane %v4110, %v4180
      %v4182 = vsel %vm1569, %v4181, %v4177
      %v4183 = vsel %vm1634, %v4128, %v4119
      %v4184 = vsel %vm1636, %v4137, %v4183
      %v4185 = vsel %vm1638, %v4146, %v4184
      %v4186 = vsel %vm1640, %v4155, %v4185
      %v4187 = vsel %vm1642, %v4164, %v4186
      %v4188 = vsel %vm1644, %v4173, %v4187
      %v4189 = vsel %vm1646, %v4182, %v4188
      %v4191 = vsel %vm1649, %v4189, 0.0
      %4192 = vadd.xlane.f32.xlu0 %v4191
      %v4193 = vpop.xlane.xlu0 %4192
      %v4194 = vlaneseq
      %v4195 = vshrl.u32 %v4194, 7
      %v4196 = vsub.s32 %v788, %v4195
      %v4197 = vrot.slane %v3761, %v4196
      %v4198 = vlaneseq
      %v4199 = vshrl.u32 %v4198, 7
      %v4200 = vsub.s32 %v1564, %v4199
      %v4201 = vrot.slane %v3766, %v4200
      %v4202 = vsel %vm1569, %v4201, %v4197
      %v4203 = vlaneseq
      %v4204 = vshrl.u32 %v4203, 7
      %v4205 = vsub.s32 %v788, %v4204
      %v4206 = vrot.slane %v3771, %v4205
      %v4207 = vlaneseq
      %v4208 = vshrl.u32 %v4207, 7
      %v4209 = vsub.s32 %v1564, %v4208
      %v4210 = vrot.slane %v3776, %v4209
      %v4211 = vsel %vm1569, %v4210, %v4206
      %v4212 = vlaneseq
      %v4213 = vshrl.u32 %v4212, 7
      %v4214 = vsub.s32 %v788, %v4213
      %v4215 = vrot.slane %v3781, %v4214
      %v4216 = vlaneseq
      %v4217 = vshrl.u32 %v4216, 7
      %v4218 = vsub.s32 %v1564, %v4217
      %v4219 = vrot.slane %v3786, %v4218
      %v4220 = vsel %vm1569, %v4219, %v4215
      %v4221 = vlaneseq
      %v4222 = vshrl.u32 %v4221, 7
      %v4223 = vsub.s32 %v788, %v4222
      %v4224 = vrot.slane %v3791, %v4223
      %v4225 = vlaneseq
      %v4226 = vshrl.u32 %v4225, 7
      %v4227 = vsub.s32 %v1564, %v4226
      %v4228 = vrot.slane %v3796, %v4227
      %v4229 = vsel %vm1569, %v4228, %v4224
      %v4230 = vlaneseq
      %v4231 = vshrl.u32 %v4230, 7
      %v4232 = vsub.s32 %v788, %v4231
      %v4233 = vrot.slane %v3801, %v4232
      %v4234 = vlaneseq
      %v4235 = vshrl.u32 %v4234, 7
      %v4236 = vsub.s32 %v1564, %v4235
      %v4237 = vrot.slane %v3806, %v4236
      %v4238 = vsel %vm1569, %v4237, %v4233
      %v4239 = vlaneseq
      %v4240 = vshrl.u32 %v4239, 7
      %v4241 = vsub.s32 %v788, %v4240
      %v4242 = vrot.slane %v3811, %v4241
      %v4243 = vlaneseq
      %v4244 = vshrl.u32 %v4243, 7
      %v4245 = vsub.s32 %v1564, %v4244
      %v4246 = vrot.slane %v3816, %v4245
      %v4247 = vsel %vm1569, %v4246, %v4242
      %v4248 = vlaneseq
      %v4249 = vshrl.u32 %v4248, 7
      %v4250 = vsub.s32 %v788, %v4249
      %v4251 = vrot.slane %v3821, %v4250
      %v4252 = vlaneseq
      %v4253 = vshrl.u32 %v4252, 7
      %v4254 = vsub.s32 %v1564, %v4253
      %v4255 = vrot.slane %v3826, %v4254
      %v4256 = vsel %vm1569, %v4255, %v4251
      %v4257 = vlaneseq
      %v4258 = vshrl.u32 %v4257, 7
      %v4259 = vsub.s32 %v788, %v4258
      %v4260 = vrot.slane %v3831, %v4259
      %v4261 = vlaneseq
      %v4262 = vshrl.u32 %v4261, 7
      %v4263 = vsub.s32 %v1564, %v4262
      %v4264 = vrot.slane %v3836, %v4263
      %v4265 = vsel %vm1569, %v4264, %v4260
      %v4266 = vsel %vm1634, %v4211, %v4202
      %v4267 = vsel %vm1636, %v4220, %v4266
      %v4268 = vsel %vm1638, %v4229, %v4267
      %v4269 = vsel %vm1640, %v4238, %v4268
      %v4270 = vsel %vm1642, %v4247, %v4269
      %v4271 = vsel %vm1644, %v4256, %v4270
      %v4272 = vsel %vm1646, %v4265, %v4271
      %v4274 = vadd.f32 %v2466, %v4272
      %v4275 = vpack.c.bf16 %v3862, %v3862
      %v4276 = vpack.c.bf16 %v3871, %v3871
      %v4277 = vpack.c.bf16 %v3880, %v3880
      %v4278 = vpack.c.bf16 %v3889, %v3889
      %v4279 = vpack.c.bf16 %v3898, %v3898
      %v4280 = vpack.c.bf16 %v3907, %v3907
      %v4281 = vpack.c.bf16 %v3916, %v3916
      %v4282 = vpack.c.bf16 %v3925, %v3925
      %v4283 = vpack.c.bf16 %v2918, %v2918
      %4285 = vrot.lane.b32.xlu0 %v4283, 80
      %v4286 = vpop.permute.xlu0 %4285
      %v4288 = vsel %vm798, %v4286, 0
      %4290 = vmatprep.subr.bf16.mxu0 0
      %4291 = vmatpush1.bf16.msra.mxu0 %v2483
      %4292 = vmatprep.subr.bf16.mxu0 0
      %4293 = vmatpush1.bf16.msra.mxu0 0
      %4294 = vmatprep.subr.bf16.mxu0 0
      %4295 = vmatpush1.bf16.msra.mxu0 0
      %4296 = vmatprep.subr.bf16.mxu0 0
      %4297 = vmatpush1.bf16.msra.mxu0 0
      %4298 = vmatprep.subr.bf16.mxu0 0
      %4299 = vmatpush1.bf16.msra.mxu0 0
      %4300 = vmatprep.subr.bf16.mxu0 0
      %4301 = vmatpush1.bf16.msra.mxu0 0
      %4302 = vmatprep.subr.bf16.mxu0 0
      %4303 = vmatpush1.bf16.msra.mxu0 0
      %4304 = vmatprep.subr.bf16.mxu0 0
      %4305 = vmatpush1.bf16.msra.mxu0 0
      %4306 = vmatprep.subr.bf16.mxu0 0
      %4307 = vmatpush1.bf16.msra.mxu0 0
      %4308 = vmatprep.subr.bf16.mxu0 0
      %4309 = vmatpush1.bf16.msra.mxu0 0
      %4310 = vmatprep.subr.bf16.mxu0 0
      %4311 = vmatpush1.bf16.msra.mxu0 0
      %4312 = vmatprep.subr.bf16.mxu0 0
      %4313 = vmatpush1.bf16.msra.mxu0 0
      %4314 = vmatprep.subr.bf16.mxu0 0
      %4315 = vmatpush1.bf16.msra.mxu0 0
      %4316 = vmatprep.subr.bf16.mxu0 0
      %4317 = vmatpush1.bf16.msra.mxu0 0
      %4318 = vmatprep.subr.bf16.mxu0 0
      %4319 = vmatpush1.bf16.msra.mxu0 0
      %4320 = vmatprep.subr.bf16.mxu0 0
      %4321 = vmatpush1.bf16.msra.mxu0 0
      %4322 = vmatprep.mubr.bf16.mxu0 0
      %4323 = vmatmul.mubr.bf16.gmra.mrb[0].mxu0 %v4288
      %v4324 = vpop.f32.mrb[0].mxu0
      %v4325 = vadd.f32 0.0, %v4324
      %v4326 = vpop.f32.mrb[0].mxu0
      %v4327 = vpop.f32.mrb[0].mxu0
      %v4328 = vpop.f32.mrb[0].mxu0
      %4329 = vdwg.mxu0
      %v4338 = vunpack.c.l.b16 %v4275
      %v4339 = vunpack.c.l.b16 %v4276
      %v4340 = vunpack.c.l.b16 %v4277
      %v4341 = vunpack.c.l.b16 %v4278
      %v4342 = vunpack.c.l.b16 %v4279
      %v4343 = vunpack.c.l.b16 %v4280
      %v4344 = vunpack.c.l.b16 %v4281
      %v4345 = vunpack.c.l.b16 %v4282
      %v4346 = vsel %vm1634, %v4339, %v4338
      %v4347 = vsel %vm1636, %v4340, %v4346
      %v4348 = vsel %vm1638, %v4341, %v4347
      %v4349 = vsel %vm1640, %v4342, %v4348
      %v4350 = vsel %vm1642, %v4343, %v4349
      %v4351 = vsel %vm1644, %v4344, %v4350
      %v4352 = vsel %vm1646, %v4345, %v4351
      %v4353 = vpack.c.b16 %v4352, %v4352
      %v4355 = vsel %vm2044, %v4353, 0
      %4357 = vmatprep.subr.bf16.mxu0 0
      %4358 = vmatpush1.bf16.msra.mxu0 %v2560
      %4359 = vmatprep.subr.bf16.mxu0 0
      %4360 = vmatpush1.bf16.msra.mxu0 %v2561
      %4361 = vmatprep.subr.bf16.mxu0 0
      %4362 = vmatpush1.bf16.msra.mxu0 0
      %4363 = vmatprep.subr.bf16.mxu0 0
      %4364 = vmatpush1.bf16.msra.mxu0 0
      %4365 = vmatprep.subr.bf16.mxu0 0
      %4366 = vmatpush1.bf16.msra.mxu0 0
      %4367 = vmatprep.subr.bf16.mxu0 0
      %4368 = vmatpush1.bf16.msra.mxu0 0
      %4369 = vmatprep.subr.bf16.mxu0 0
      %4370 = vmatpush1.bf16.msra.mxu0 0
      %4371 = vmatprep.subr.bf16.mxu0 0
      %4372 = vmatpush1.bf16.msra.mxu0 0
      %4373 = vmatprep.subr.bf16.mxu0 0
      %4374 = vmatpush1.bf16.msra.mxu0 0
      %4375 = vmatprep.subr.bf16.mxu0 0
      %4376 = vmatpush1.bf16.msra.mxu0 0
      %4377 = vmatprep.subr.bf16.mxu0 0
      %4378 = vmatpush1.bf16.msra.mxu0 0
      %4379 = vmatprep.subr.bf16.mxu0 0
      %4380 = vmatpush1.bf16.msra.mxu0 0
      %4381 = vmatprep.subr.bf16.mxu0 0
      %4382 = vmatpush1.bf16.msra.mxu0 0
      %4383 = vmatprep.subr.bf16.mxu0 0
      %4384 = vmatpush1.bf16.msra.mxu0 0
      %4385 = vmatprep.subr.bf16.mxu0 0
      %4386 = vmatpush1.bf16.msra.mxu0 0
      %4387 = vmatprep.subr.bf16.mxu0 0
      %4388 = vmatpush1.bf16.msra.mxu0 0
      %4389 = vmatprep.mubr.bf16.mxu0 0
      %4390 = vmatmul.mubr.bf16.gmra.mrb[0].mxu0 %v4355
      %v4391 = vpop.f32.mrb[0].mxu0
      %v4392 = vadd.f32 %v4325, %v4391
      %v4393 = vpop.f32.mrb[0].mxu0
      %v4394 = vpop.f32.mrb[0].mxu0
      %v4395 = vpop.f32.mrb[0].mxu0
      %4396 = vdwg.mxu0
      %v4397 = vadd.f32 %v4392, %v2611
      %v4398 = vmul.f32 %v2748, %v2618
      %v4399 = vsel %vm872, %v4398, 0.0
      %4400 = vadd.xlane.f32.xlu0 %v4399
      %v4401 = vpop.xlane.xlu0 %4400
      %v4402 = vadd.f32 %v4397, %v4401
      %v4403 = vxor.u32 %v4402, 2147483648
      %v4404 = vmul.f32 %v4403, 1.442695
      %v4405 = vpow.pop %v4404
      %v4406 = vadd.f32 %v4405, 1.0
      %v4407 = vrcp.pop %v4406
      %v4408 = vmul.f32 1.0, %v4407
      %v4409 = vpack.c.bf16 %v4397, %v4397
      %v4411 = vsel %vm2044, %v4409, 0
      %4413 = vmatprep.subr.bf16.mxu0 0
      %4414 = vmatpush1.bf16.msra.mxu0 %v2646
      %4415 = vmatprep.subr.bf16.mxu0 0
      %4416 = vmatpush1.bf16.msra.mxu0 %v2647
      %4417 = vmatprep.subr.bf16.mxu0 0
      %4418 = vmatpush1.bf16.msra.mxu0 0
      %4419 = vmatprep.subr.bf16.mxu0 0
      %4420 = vmatpush1.bf16.msra.mxu0 0
      %4421 = vmatprep.subr.bf16.mxu0 0
      %4422 = vmatpush1.bf16.msra.mxu0 0
      %4423 = vmatprep.subr.bf16.mxu0 0
      %4424 = vmatpush1.bf16.msra.mxu0 0
      %4425 = vmatprep.subr.bf16.mxu0 0
      %4426 = vmatpush1.bf16.msra.mxu0 0
      %4427 = vmatprep.subr.bf16.mxu0 0
      %4428 = vmatpush1.bf16.msra.mxu0 0
      %4429 = vmatprep.subr.bf16.mxu0 0
      %4430 = vmatpush1.bf16.msra.mxu0 0
      %4431 = vmatprep.subr.bf16.mxu0 0
      %4432 = vmatpush1.bf16.msra.mxu0 0
      %4433 = vmatprep.subr.bf16.mxu0 0
      %4434 = vmatpush1.bf16.msra.mxu0 0
      %4435 = vmatprep.subr.bf16.mxu0 0
      %4436 = vmatpush1.bf16.msra.mxu0 0
      %4437 = vmatprep.subr.bf16.mxu0 0
      %4438 = vmatpush1.bf16.msra.mxu0 0
      %4439 = vmatprep.subr.bf16.mxu0 0
      %4440 = vmatpush1.bf16.msra.mxu0 0
      %4441 = vmatprep.subr.bf16.mxu0 0
      %4442 = vmatpush1.bf16.msra.mxu0 0
      %4443 = vmatprep.subr.bf16.mxu0 0
      %4444 = vmatpush1.bf16.msra.mxu0 0
      %4445 = vmatprep.mubr.bf16.mxu0 0
      %4446 = vmatmul.mubr.bf16.gmra.mrb[0].mxu0 %v4411
      %v4447 = vpop.f32.mrb[0].mxu0
      %v4448 = vadd.f32 %v2636, %v4447
      %v4449 = vpop.f32.mrb[0].mxu0
      %v4450 = vpop.f32.mrb[0].mxu0
      %v4451 = vpop.f32.mrb[0].mxu0
      %4452 = vdwg.mxu0
      %v4453 = vsel %vm2044, %v4448, -inf
      %4454 = vmax.xlane.f32.xlu0 %v4453
      %v4455 = vpop.xlane.xlu0 %4454
      %v4456 = vsub.f32 %v4448, %v4455
      %v4457 = vmul.f32 %v4456, 1.442695
      %v4458 = vpow.pop %v4457
      %v4459 = vsel %vm2044, %v4458, 0.0
      %4460 = vadd.xlane.f32.xlu0 %v4459
      %v4461 = vpop.xlane.xlu0 %4460
      %4462 = vset.pattern.permute.xlu0 0
      %4463 = vperm.xlu0 %4462, %v2750
      %v4464 = vpop.permute.xlu0 %4463
      %vm4465 = vcmp.eq.s32.totalorder %v788, %v4464
      %v4466 = vsel %vm4465, %v4458, 0.0
      %v4467 = vsel %vm2044, %v4466, 0.0
      %4468 = vadd.xlane.f32.xlu0 %v4467
      %v4469 = vpop.xlane.xlu0 %4468
      %v4470 = vmul.f32 %v4408, %v4469
      %v4471 = vrcp.pop %v4461
      %v4472 = vmul.f32 %v4470, %v4471
      %vm4473 = vcmp.eq.s32.totalorder %v789, %v4464
      %v4474 = vsel %vm4473, %v765, 0.0
      %v4475 = vsel %vm2715, %v4474, 0.0
      %4476 = vadd.xlane.f32.xlu0 %v4475
      %v4477 = vpop.xlane.xlu0 %4476
      %vm4478 = vcmp.eq.s32.totalorder %v764, %v4464
      %v4479 = vsel %vm4478, %v4272, 0.0
      %v4480 = vsel %vm1649, %v4479, 0.0
      %4481 = vadd.xlane.f32.xlu0 %v4480
      %v4482 = vpop.xlane.xlu0 %4481
      %v4483 = vsub.f32 1.0, %v4408
      %v4484 = vmul.f32 %v4482, %v4483
      %v4485 = vadd.f32 %v4472, %v4477
      %v4486 = vadd.f32 %v4485, %v4484
      %vm4487 = vcmp.ne.s32.totalorder %v2750, 0
      %v4488 = vsel %vm4487, 1, 0
      %v4489 = vcvt.s32.f32 %v4488
      %v4490 = vadd.f32 %v4486, 1e-30
      %v4491 = vlog2.pop %v4490
      %v4492 = vmul.f32 %v4491, 0.6931472
      %4494 = vrot.lane.b32.xlu0 %v4489, 32
      %v4495 = vpop.permute.xlu0 %4494
      %v4497 = vmul.f32 %v4492, %v4495
      %4499 = vrot.lane.b32.xlu0 %v4497, 96
      %v4500 = vpop.permute.xlu0 %4499
      %v4502 = vadd.f32 %v2743, %v4500
      %v4503 = vmul.f32 %v4193, %v4489
      %v4504 = vadd.f32 %v2745, %v4503
      %v4505 = vadd.f32 %v2746, %v4489
      %s4506 = scalar_lea.vmem %s707, 16
      %v4507 = vld [vmem:[%s4506] sm:$0xff]
      %s4508 = scalar_lea.vmem %s713, 16
      %v4509 = vld [vmem:[%s4508] sm:$0xff]
      %4510 = vmatprep.subr.mxu0 0.0
      %4511 = vmatpush1.msra.mxu0 %v767
      %4512 = vmatprep.subr.mxu0 0.0
      %4513 = vmatpush1.msra.mxu0 %v768
      %4514 = vmatprep.subr.mxu0 0.0
      %4515 = vmatpush1.msra.mxu0 0.0
      %4516 = vmatprep.subr.mxu0 0.0
      %4517 = vmatpush1.msra.mxu0 0.0
      %4518 = vmatprep.subr.mxu0 0.0
      %4519 = vmatpush1.msra.mxu0 0.0
      %4520 = vmatprep.subr.mxu0 0.0
      %4521 = vmatpush1.msra.mxu0 0.0
      %4522 = vmatprep.subr.mxu0 0.0
      %4523 = vmatpush1.msra.mxu0 0.0
      %4524 = vmatprep.subr.mxu0 0.0
      %4525 = vmatpush1.msra.mxu0 0.0
      %4526 = vmatprep.subr.mxu0 0.0
      %4527 = vmatpush1.msra.mxu0 0.0
      %4528 = vmatprep.subr.mxu0 0.0
      %4529 = vmatpush1.msra.mxu0 0.0
      %4530 = vmatprep.subr.mxu0 0.0
      %4531 = vmatpush1.msra.mxu0 0.0
      %4532 = vmatprep.subr.mxu0 0.0
      %4533 = vmatpush1.msra.mxu0 0.0
      %4534 = vmatprep.subr.mxu0 0.0
      %4535 = vmatpush1.msra.mxu0 0.0
      %4536 = vmatprep.subr.mxu0 0.0
      %4537 = vmatpush1.msra.mxu0 0.0
      %4538 = vmatprep.subr.mxu0 0.0
      %4539 = vmatpush1.msra.mxu0 0.0
      %4540 = vmatprep.subr.mxu0 0.0
      %4541 = vmatpush1.msra.mxu0 0.0
      %4542 = vmatprep.subr.mxu0 0.0
      %4543 = vmatpush1.msra.mxu0 0.0
      %4544 = vmatprep.subr.mxu0 0.0
      %4545 = vmatpush1.msra.mxu0 0.0
      %4546 = vmatprep.subr.mxu0 0.0
      %4547 = vmatpush1.msra.mxu0 0.0
      %4548 = vmatprep.subr.mxu0 0.0
      %4549 = vmatpush1.msra.mxu0 0.0
      %4550 = vmatprep.subr.mxu0 0.0
      %4551 = vmatpush1.msra.mxu0 0.0
      %4552 = vmatprep.subr.mxu0 0.0
      %4553 = vmatpush1.msra.mxu0 0.0
      %4554 = vmatprep.subr.mxu0 0.0
      %4555 = vmatpush1.msra.mxu0 0.0
      %4556 = vmatprep.subr.mxu0 0.0
      %4557 = vmatpush1.msra.mxu0 0.0
      %4558 = vmatprep.subr.mxu0 0.0
      %4559 = vmatpush1.msra.mxu0 0.0
      %4560 = vmatprep.subr.mxu0 0.0
      %4561 = vmatpush1.msra.mxu0 0.0
      %4562 = vmatprep.subr.mxu0 0.0
      %4563 = vmatpush1.msra.mxu0 0.0
      %4564 = vmatprep.subr.mxu0 0.0
      %4565 = vmatpush1.msra.mxu0 0.0
      %4566 = vmatprep.subr.mxu0 0.0
      %4567 = vmatpush1.msra.mxu0 0.0
      %4568 = vmatprep.subr.mxu0 0.0
      %4569 = vmatpush1.msra.mxu0 0.0
      %4570 = vmatprep.subr.mxu0 0.0
      %4571 = vmatpush1.msra.mxu0 0.0
      %4572 = vmatprep.subr.mxu0 0.0
      %4573 = vmatpush1.msra.mxu0 0.0
      %4574 = vmatprep.mubr.f32.mxu0 0.0
      %4575 = vmatmul.mubr.f32.gmra.mrb[0].mxu0 %v2922
      %v4576 = vpop.f32.mrb[0].mxu0
      %v4577 = vadd.f32 0.0, %v4576
      %v4578 = vpop.f32.mrb[0].mxu0
      %4579 = vdwg.mxu0
      %v4581 = vsel %vm872, %v4507, 0
      %4583 = vmatprep.subr.mxu0 0.0
      %4584 = vmatpush1.msra.mxu0 %v766
      %4585 = vmatprep.subr.mxu0 0.0
      %4586 = vmatpush1.msra.mxu0 0.0
      %4587 = vmatprep.subr.mxu0 0.0
      %4588 = vmatpush1.msra.mxu0 0.0
      %4589 = vmatprep.subr.mxu0 0.0
      %4590 = vmatpush1.msra.mxu0 0.0
      %4591 = vmatprep.subr.mxu0 0.0
      %4592 = vmatpush1.msra.mxu0 0.0
      %4593 = vmatprep.subr.mxu0 0.0
      %4594 = vmatpush1.msra.mxu0 0.0
      %4595 = vmatprep.subr.mxu0 0.0
      %4596 = vmatpush1.msra.mxu0 0.0
      %4597 = vmatprep.subr.mxu0 0.0
      %4598 = vmatpush1.msra.mxu0 0.0
      %4599 = vmatprep.subr.mxu0 0.0
      %4600 = vmatpush1.msra.mxu0 0.0
      %4601 = vmatprep.subr.mxu0 0.0
      %4602 = vmatpush1.msra.mxu0 0.0
      %4603 = vmatprep.subr.mxu0 0.0
      %4604 = vmatpush1.msra.mxu0 0.0
      %4605 = vmatprep.subr.mxu0 0.0
      %4606 = vmatpush1.msra.mxu0 0.0
      %4607 = vmatprep.subr.mxu0 0.0
      %4608 = vmatpush1.msra.mxu0 0.0
      %4609 = vmatprep.subr.mxu0 0.0
      %4610 = vmatpush1.msra.mxu0 0.0
      %4611 = vmatprep.subr.mxu0 0.0
      %4612 = vmatpush1.msra.mxu0 0.0
      %4613 = vmatprep.subr.mxu0 0.0
      %4614 = vmatpush1.msra.mxu0 0.0
      %4615 = vmatprep.subr.mxu0 0.0
      %4616 = vmatpush1.msra.mxu0 0.0
      %4617 = vmatprep.subr.mxu0 0.0
      %4618 = vmatpush1.msra.mxu0 0.0
      %4619 = vmatprep.subr.mxu0 0.0
      %4620 = vmatpush1.msra.mxu0 0.0
      %4621 = vmatprep.subr.mxu0 0.0
      %4622 = vmatpush1.msra.mxu0 0.0
      %4623 = vmatprep.subr.mxu0 0.0
      %4624 = vmatpush1.msra.mxu0 0.0
      %4625 = vmatprep.subr.mxu0 0.0
      %4626 = vmatpush1.msra.mxu0 0.0
      %4627 = vmatprep.subr.mxu0 0.0
      %4628 = vmatpush1.msra.mxu0 0.0
      %4629 = vmatprep.subr.mxu0 0.0
      %4630 = vmatpush1.msra.mxu0 0.0
      %4631 = vmatprep.subr.mxu0 0.0
      %4632 = vmatpush1.msra.mxu0 0.0
      %4633 = vmatprep.subr.mxu0 0.0
      %4634 = vmatpush1.msra.mxu0 0.0
      %4635 = vmatprep.subr.mxu0 0.0
      %4636 = vmatpush1.msra.mxu0 0.0
      %4637 = vmatprep.subr.mxu0 0.0
      %4638 = vmatpush1.msra.mxu0 0.0
      %4639 = vmatprep.subr.mxu0 0.0
      %4640 = vmatpush1.msra.mxu0 0.0
      %4641 = vmatprep.subr.mxu0 0.0
      %4642 = vmatpush1.msra.mxu0 0.0
      %4643 = vmatprep.subr.mxu0 0.0
      %4644 = vmatpush1.msra.mxu0 0.0
      %4645 = vmatprep.subr.mxu0 0.0
      %4646 = vmatpush1.msra.mxu0 0.0
      %4647 = vmatprep.mubr.f32.mxu0 0.0
      %4648 = vmatmul.mubr.f32.gmra.mrb[0].mxu0 %v4581
      %v4649 = vpop.f32.mrb[0].mxu0
      %v4650 = vadd.f32 %v4577, %v4649
      %v4651 = vpop.f32.mrb[0].mxu0
      %4652 = vdwg.mxu0
      %v4653 = vadd.f32 %v4650, %v950
      %v4654 = vxor.u32 %v4653, 2147483648
      %v4655 = vmul.f32 %v4654, 1.442695
      %v4656 = vpow.pop %v4655
      %v4657 = vadd.f32 %v4656, 1.0
      %v4658 = vrcp.pop %v4657
      %v4659 = vmul.f32 1.0, %v4658
      %v4660 = vtanh.pop %v4653
      %v4661 = vmul.f32 %v4659, %v2912
      %4663 = vrot.lane.b32.xlu0 %v4660, 96
      %v4664 = vpop.permute.xlu0 %4663
      %v4666 = vmul.f32 %v4659, %v4664
      %4668 = vrot.lane.b32.xlu0 %v4666, 16
      %v4669 = vpop.permute.xlu0 %4668
      %v4671 = vadd.f32 %v4661, %v4669
      %v4672 = vtanh.pop %v4671
      %4674 = vrot.lane.b32.xlu0 %v4672, 32
      %v4675 = vpop.permute.xlu0 %4674
      %v4677 = vmul.f32 %v4659, %v4675
      %4679 = vrot.lane.b32.xlu0 %v4677, 80
      %v4680 = vpop.permute.xlu0 %4679
      %v4681 = vsel %vm798, %v4680, 0
      %4683 = vmatprep.subr.mxu0 0.0
      %4684 = vmatpush1.msra.mxu0 %v770
      %4685 = vmatprep.subr.mxu0 0.0
      %4686 = vmatpush1.msra.mxu0 %v771
      %4687 = vmatprep.subr.mxu0 0.0
      %4688 = vmatpush1.msra.mxu0 0.0
      %4689 = vmatprep.subr.mxu0 0.0
      %4690 = vmatpush1.msra.mxu0 0.0
      %4691 = vmatprep.subr.mxu0 0.0
      %4692 = vmatpush1.msra.mxu0 0.0
      %4693 = vmatprep.subr.mxu0 0.0
      %4694 = vmatpush1.msra.mxu0 0.0
      %4695 = vmatprep.subr.mxu0 0.0
      %4696 = vmatpush1.msra.mxu0 0.0
      %4697 = vmatprep.subr.mxu0 0.0
      %4698 = vmatpush1.msra.mxu0 0.0
      %4699 = vmatprep.subr.mxu0 0.0
      %4700 = vmatpush1.msra.mxu0 0.0
      %4701 = vmatprep.subr.mxu0 0.0
      %4702 = vmatpush1.msra.mxu0 0.0
      %4703 = vmatprep.subr.mxu0 0.0
      %4704 = vmatpush1.msra.mxu0 0.0
      %4705 = vmatprep.subr.mxu0 0.0
      %4706 = vmatpush1.msra.mxu0 0.0
      %4707 = vmatprep.subr.mxu0 0.0
      %4708 = vmatpush1.msra.mxu0 0.0
      %4709 = vmatprep.subr.mxu0 0.0
      %4710 = vmatpush1.msra.mxu0 0.0
      %4711 = vmatprep.subr.mxu0 0.0
      %4712 = vmatpush1.msra.mxu0 0.0
      %4713 = vmatprep.subr.mxu0 0.0
      %4714 = vmatpush1.msra.mxu0 0.0
      %4715 = vmatprep.subr.mxu0 0.0
      %4716 = vmatpush1.msra.mxu0 0.0
      %4717 = vmatprep.subr.mxu0 0.0
      %4718 = vmatpush1.msra.mxu0 0.0
      %4719 = vmatprep.subr.mxu0 0.0
      %4720 = vmatpush1.msra.mxu0 0.0
      %4721 = vmatprep.subr.mxu0 0.0
      %4722 = vmatpush1.msra.mxu0 0.0
      %4723 = vmatprep.subr.mxu0 0.0
      %4724 = vmatpush1.msra.mxu0 0.0
      %4725 = vmatprep.subr.mxu0 0.0
      %4726 = vmatpush1.msra.mxu0 0.0
      %4727 = vmatprep.subr.mxu0 0.0
      %4728 = vmatpush1.msra.mxu0 0.0
      %4729 = vmatprep.subr.mxu0 0.0
      %4730 = vmatpush1.msra.mxu0 0.0
      %4731 = vmatprep.subr.mxu0 0.0
      %4732 = vmatpush1.msra.mxu0 0.0
      %4733 = vmatprep.subr.mxu0 0.0
      %4734 = vmatpush1.msra.mxu0 0.0
      %4735 = vmatprep.subr.mxu0 0.0
      %4736 = vmatpush1.msra.mxu0 0.0
      %4737 = vmatprep.subr.mxu0 0.0
      %4738 = vmatpush1.msra.mxu0 0.0
      %4739 = vmatprep.subr.mxu0 0.0
      %4740 = vmatpush1.msra.mxu0 0.0
      %4741 = vmatprep.subr.mxu0 0.0
      %4742 = vmatpush1.msra.mxu0 0.0
      %4743 = vmatprep.subr.mxu0 0.0
      %4744 = vmatpush1.msra.mxu0 0.0
      %4745 = vmatprep.subr.mxu0 0.0
      %4746 = vmatpush1.msra.mxu0 0.0
      %4747 = vmatprep.mubr.f32.mxu0 0.0
      %4748 = vmatmul.mubr.f32.gmra.mrb[0].mxu0 %v4681
      %v4749 = vpop.f32.mrb[0].mxu0
      %v4750 = vadd.f32 0.0, %v4749
      %v4751 = vpop.f32.mrb[0].mxu0
      %4752 = vdwg.mxu0
      %v4754 = vcombine.high %v4750, %v4750
      %v4756 = vunpack.c.l.s4 1966171168
      %v4757 = vunpack.c.0.s8 %v4756
      %v4758 = vlaneseq
      %v4759 = vshrl.u32 %v4758, 7
      %v4760 = vsub.s32 %v4757, %v4759
      %v4761 = vrot.slane %v4750, %v4760
      %v4763 = vunpack.c.l.s4 1966171168
      %v4764 = vunpack.c.0.s8 %v4763
      %v4765 = vlaneseq
      %v4766 = vshrl.u32 %v4765, 7
      %v4767 = vsub.s32 %v4764, %v4766
      %v4768 = vrot.slane %v4754, %v4767
      %v4769 = vcombine.high %v4761, %v4761
      %v4770 = vcombine.high %v4768, %v4768
      %v4772 = vunpack.c.l.s4 1966171168
      %v4773 = vunpack.c.0.s8 %v4772
      %v4774 = vlaneseq
      %v4775 = vshrl.u32 %v4774, 7
      %v4776 = vsub.s32 %v4773, %v4775
      %v4777 = vrot.slane %v4761, %v4776
      %v4779 = vunpack.c.l.s4 1966171168
      %v4780 = vunpack.c.0.s8 %v4779
      %v4781 = vlaneseq
      %v4782 = vshrl.u32 %v4781, 7
      %v4783 = vsub.s32 %v4780, %v4782
      %v4784 = vrot.slane %v4768, %v4783
      %v4786 = vunpack.c.l.s4 1966171168
      %v4787 = vunpack.c.0.s8 %v4786
      %v4788 = vlaneseq
      %v4789 = vshrl.u32 %v4788, 7
      %v4790 = vsub.s32 %v4787, %v4789
      %v4791 = vrot.slane %v4769, %v4790
      %v4793 = vunpack.c.l.s4 1966171168
      %v4794 = vunpack.c.0.s8 %v4793
      %v4795 = vlaneseq
      %v4796 = vshrl.u32 %v4795, 7
      %v4797 = vsub.s32 %v4794, %v4796
      %v4798 = vrot.slane %v4770, %v4797
      %v4799 = vcombine.high %v4777, %v4777
      %v4800 = vcombine.high %v4784, %v4784
      %v4801 = vcombine.high %v4791, %v4791
      %v4802 = vcombine.high %v4798, %v4798
      %v4803 = vlaneseq
      %v4804 = vshrl.u32 %v4803, 7
      %v4805 = vsub.s32 0, %v4804
      %v4806 = vrot.slane %v4777, %v4805
      %v4807 = vlaneseq
      %v4808 = vshrl.u32 %v4807, 7
      %v4809 = vsub.s32 0, %v4808
      %v4810 = vrot.slane %v4791, %v4809
      %v4811 = vlaneseq
      %v4812 = vshrl.u32 %v4811, 7
      %v4813 = vsub.s32 0, %v4812
      %v4814 = vrot.slane %v4799, %v4813
      %v4815 = vlaneseq
      %v4816 = vshrl.u32 %v4815, 7
      %v4817 = vsub.s32 0, %v4816
      %v4818 = vrot.slane %v4801, %v4817
      %v4819 = vlaneseq
      %v4820 = vshrl.u32 %v4819, 7
      %v4821 = vsub.s32 0, %v4820
      %v4822 = vrot.slane %v4784, %v4821
      %v4823 = vlaneseq
      %v4824 = vshrl.u32 %v4823, 7
      %v4825 = vsub.s32 0, %v4824
      %v4826 = vrot.slane %v4798, %v4825
      %v4827 = vlaneseq
      %v4828 = vshrl.u32 %v4827, 7
      %v4829 = vsub.s32 0, %v4828
      %v4830 = vrot.slane %v4800, %v4829
      %v4831 = vlaneseq
      %v4832 = vshrl.u32 %v4831, 7
      %v4833 = vsub.s32 0, %v4832
      %v4834 = vrot.slane %v4802, %v4833
      %v4843 = vadd.f32 %v747, %v4806
      %v4844 = vadd.f32 %v748, %v4806
      %v4845 = vadd.f32 %v749, %v4810
      %v4846 = vadd.f32 %v750, %v4810
      %v4847 = vadd.f32 %v751, %v4814
      %v4848 = vadd.f32 %v752, %v4814
      %v4849 = vadd.f32 %v753, %v4818
      %v4850 = vadd.f32 %v754, %v4818
      %v4851 = vadd.f32 %v755, %v4822
      %v4852 = vadd.f32 %v756, %v4822
      %v4853 = vadd.f32 %v757, %v4826
      %v4854 = vadd.f32 %v758, %v4826
      %v4855 = vadd.f32 %v759, %v4830
      %v4856 = vadd.f32 %v760, %v4830
      %v4857 = vadd.f32 %v761, %v4834
      %v4858 = vadd.f32 %v762, %v4834
      %v4859 = vlaneseq
      %v4860 = vshrl.u32 %v4859, 7
      %v4861 = vsub.s32 0, %v4860
      %v4862 = vrot.slane %v4274, %v4861
      %4864 = vbcast.lane.b32.xlu0 %v4862, 256
      %v4865 = vpop.permute.xlu0 %4864
      %s4867 = sor.u32 256, 8
      %4868 = vbcast.lane.b32.xlu0 %v4862, %s4867
      %v4869 = vpop.permute.xlu0 %4868
      %v4870 = vlaneseq
      %v4871 = vshrl.u32 %v4870, 7
      %v4872 = vsub.s32 1, %v4871
      %v4873 = vrot.slane %v4274, %v4872
      %4875 = vbcast.lane.b32.xlu0 %v4873, 256
      %v4876 = vpop.permute.xlu0 %4875
      %s4878 = sor.u32 256, 8
      %4879 = vbcast.lane.b32.xlu0 %v4873, %s4878
      %v4880 = vpop.permute.xlu0 %4879
      %v4881 = vlaneseq
      %v4882 = vshrl.u32 %v4881, 7
      %v4883 = vsub.s32 2, %v4882
      %v4884 = vrot.slane %v4274, %v4883
      %4886 = vbcast.lane.b32.xlu0 %v4884, 256
      %v4887 = vpop.permute.xlu0 %4886
      %s4889 = sor.u32 256, 8
      %4890 = vbcast.lane.b32.xlu0 %v4884, %s4889
      %v4891 = vpop.permute.xlu0 %4890
      %v4892 = vlaneseq
      %v4893 = vshrl.u32 %v4892, 7
      %v4894 = vsub.s32 3, %v4893
      %v4895 = vrot.slane %v4274, %v4894
      %4897 = vbcast.lane.b32.xlu0 %v4895, 256
      %v4898 = vpop.permute.xlu0 %4897
      %s4900 = sor.u32 256, 8
      %4901 = vbcast.lane.b32.xlu0 %v4895, %s4900
      %v4902 = vpop.permute.xlu0 %4901
      %v4903 = vlaneseq
      %v4904 = vshrl.u32 %v4903, 7
      %v4905 = vsub.s32 4, %v4904
      %v4906 = vrot.slane %v4274, %v4905
      %4908 = vbcast.lane.b32.xlu0 %v4906, 256
      %v4909 = vpop.permute.xlu0 %4908
      %s4911 = sor.u32 256, 8
      %4912 = vbcast.lane.b32.xlu0 %v4906, %s4911
      %v4913 = vpop.permute.xlu0 %4912
      %v4914 = vlaneseq
      %v4915 = vshrl.u32 %v4914, 7
      %v4916 = vsub.s32 5, %v4915
      %v4917 = vrot.slane %v4274, %v4916
      %4919 = vbcast.lane.b32.xlu0 %v4917, 256
      %v4920 = vpop.permute.xlu0 %4919
      %s4922 = sor.u32 256, 8
      %4923 = vbcast.lane.b32.xlu0 %v4917, %s4922
      %v4924 = vpop.permute.xlu0 %4923
      %v4925 = vlaneseq
      %v4926 = vshrl.u32 %v4925, 7
      %v4927 = vsub.s32 6, %v4926
      %v4928 = vrot.slane %v4274, %v4927
      %4930 = vbcast.lane.b32.xlu0 %v4928, 256
      %v4931 = vpop.permute.xlu0 %4930
      %s4933 = sor.u32 256, 8
      %4934 = vbcast.lane.b32.xlu0 %v4928, %s4933
      %v4935 = vpop.permute.xlu0 %4934
      %v4936 = vlaneseq
      %v4937 = vshrl.u32 %v4936, 7
      %v4938 = vsub.s32 7, %v4937
      %v4939 = vrot.slane %v4274, %v4938
      %4941 = vbcast.lane.b32.xlu0 %v4939, 256
      %v4942 = vpop.permute.xlu0 %4941
      %s4944 = sor.u32 256, 8
      %4945 = vbcast.lane.b32.xlu0 %v4939, %s4944
      %v4946 = vpop.permute.xlu0 %4945
      %v4947 = vmul.f32 %v4865, %v1254
      %v4948 = vmul.f32 %v4869, %v1254
      %v4949 = vmul.f32 %v4876, %v1254
      %v4950 = vmul.f32 %v4880, %v1254
      %v4951 = vmul.f32 %v4887, %v1254
      %v4952 = vmul.f32 %v4891, %v1254
      %v4953 = vmul.f32 %v4898, %v1254
      %v4954 = vmul.f32 %v4902, %v1254
      %v4955 = vmul.f32 %v4909, %v1254
      %v4956 = vmul.f32 %v4913, %v1254
      %v4957 = vmul.f32 %v4920, %v1254
      %v4958 = vmul.f32 %v4924, %v1254
      %v4959 = vmul.f32 %v4931, %v1254
      %v4960 = vmul.f32 %v4935, %v1254
      %v4961 = vmul.f32 %v4942, %v1254
      %v4962 = vmul.f32 %v4946, %v1254
      %v4963 = vadd.f32 %v4843, %v4947
      %v4964 = vadd.f32 %v4844, %v4948
      %v4965 = vadd.f32 %v4845, %v4949
      %v4966 = vadd.f32 %v4846, %v4950
      %v4967 = vadd.f32 %v4847, %v4951
      %v4968 = vadd.f32 %v4848, %v4952
      %v4969 = vadd.f32 %v4849, %v4953
      %v4970 = vadd.f32 %v4850, %v4954
      %v4971 = vadd.f32 %v4851, %v4955
      %v4972 = vadd.f32 %v4852, %v4956
      %v4973 = vadd.f32 %v4853, %v4957
      %v4974 = vadd.f32 %v4854, %v4958
      %v4975 = vadd.f32 %v4855, %v4959
      %v4976 = vadd.f32 %v4856, %v4960
      %v4977 = vadd.f32 %v4857, %v4961
      %v4978 = vadd.f32 %v4858, %v4962
      %v4979 = vtanh.pop %v4963
      %v4980 = vtanh.pop %v4964
      %v4981 = vtanh.pop %v4965
      %v4982 = vtanh.pop %v4966
      %v4983 = vtanh.pop %v4967
      %v4984 = vtanh.pop %v4968
      %v4985 = vtanh.pop %v4969
      %v4986 = vtanh.pop %v4970
      %v4987 = vtanh.pop %v4971
      %v4988 = vtanh.pop %v4972
      %v4989 = vtanh.pop %v4973
      %v4990 = vtanh.pop %v4974
      %v4991 = vtanh.pop %v4975
      %v4992 = vtanh.pop %v4976
      %v4993 = vtanh.pop %v4977
      %v4994 = vtanh.pop %v4978
      %v4995 = vmul.f32 %v4979, %v1308
      %v4996 = vmul.f32 %v4980, %v1308
      %v4997 = vmul.f32 %v4981, %v1308
      %v4998 = vmul.f32 %v4982, %v1308
      %v4999 = vmul.f32 %v4983, %v1308
      %v5000 = vmul.f32 %v4984, %v1308
      %v5001 = vmul.f32 %v4985, %v1308
      %v5002 = vmul.f32 %v4986, %v1308
      %v5003 = vmul.f32 %v4987, %v1308
      %v5004 = vmul.f32 %v4988, %v1308
      %v5005 = vmul.f32 %v4989, %v1308
      %v5006 = vmul.f32 %v4990, %v1308
      %v5007 = vmul.f32 %v4991, %v1308
      %v5008 = vmul.f32 %v4992, %v1308
      %v5009 = vmul.f32 %v4993, %v1308
      %v5010 = vmul.f32 %v4994, %v1308
      %v5011 = vsel %vm798, %v4995, 0.0
      %5012 = vadd.xlane.f32.xlu0 %v5011
      %v5013 = vpop.xlane.xlu0 %5012
      %v5014 = vsel %vm1329, %v4996, 0.0
      %5015 = vadd.xlane.f32.xlu0 %v5014
      %v5016 = vpop.xlane.xlu0 %5015
      %v5017 = vsel %vm798, %v4997, 0.0
      %5018 = vadd.xlane.f32.xlu0 %v5017
      %v5019 = vpop.xlane.xlu0 %5018
      %v5020 = vsel %vm1329, %v4998, 0.0
      %5021 = vadd.xlane.f32.xlu0 %v5020
      %v5022 = vpop.xlane.xlu0 %5021
      %v5023 = vsel %vm798, %v4999, 0.0
      %5024 = vadd.xlane.f32.xlu0 %v5023
      %v5025 = vpop.xlane.xlu0 %5024
      %v5026 = vsel %vm1329, %v5000, 0.0
      %5027 = vadd.xlane.f32.xlu0 %v5026
      %v5028 = vpop.xlane.xlu0 %5027
      %v5029 = vsel %vm798, %v5001, 0.0
      %5030 = vadd.xlane.f32.xlu0 %v5029
      %v5031 = vpop.xlane.xlu0 %5030
      %v5032 = vsel %vm1329, %v5002, 0.0
      %5033 = vadd.xlane.f32.xlu0 %v5032
      %v5034 = vpop.xlane.xlu0 %5033
      %v5035 = vsel %vm798, %v5003, 0.0
      %5036 = vadd.xlane.f32.xlu0 %v5035
      %v5037 = vpop.xlane.xlu0 %5036
      %v5038 = vsel %vm1329, %v5004, 0.0
      %5039 = vadd.xlane.f32.xlu0 %v5038
      %v5040 = vpop.xlane.xlu0 %5039
      %v5041 = vsel %vm798, %v5005, 0.0
      %5042 = vadd.xlane.f32.xlu0 %v5041
      %v5043 = vpop.xlane.xlu0 %5042
      %v5044 = vsel %vm1329, %v5006, 0.0
      %5045 = vadd.xlane.f32.xlu0 %v5044
      %v5046 = vpop.xlane.xlu0 %5045
      %v5047 = vsel %vm798, %v5007, 0.0
      %5048 = vadd.xlane.f32.xlu0 %v5047
      %v5049 = vpop.xlane.xlu0 %5048
      %v5050 = vsel %vm1329, %v5008, 0.0
      %5051 = vadd.xlane.f32.xlu0 %v5050
      %v5052 = vpop.xlane.xlu0 %5051
      %v5053 = vsel %vm798, %v5009, 0.0
      %5054 = vadd.xlane.f32.xlu0 %v5053
      %v5055 = vpop.xlane.xlu0 %5054
      %v5056 = vsel %vm1329, %v5010, 0.0
      %5057 = vadd.xlane.f32.xlu0 %v5056
      %v5058 = vpop.xlane.xlu0 %5057
      %v5059 = vadd.f32 %v5013, %v1382
      %v5060 = vadd.f32 %v5016, %v1386
      %v5061 = vadd.f32 %v5019, %v1393
      %v5062 = vadd.f32 %v5022, %v1397
      %v5063 = vadd.f32 %v5025, %v1404
      %v5064 = vadd.f32 %v5028, %v1408
      %v5065 = vadd.f32 %v5031, %v1415
      %v5066 = vadd.f32 %v5034, %v1419
      %v5067 = vadd.f32 %v5037, %v1426
      %v5068 = vadd.f32 %v5040, %v1430
      %v5069 = vadd.f32 %v5043, %v1437
      %v5070 = vadd.f32 %v5046, %v1441
      %v5071 = vadd.f32 %v5049, %v1448
      %v5072 = vadd.f32 %v5052, %v1452
      %v5073 = vadd.f32 %v5055, %v1459
      %v5074 = vadd.f32 %v5058, %v1463
      %5091 = vset.pattern.permute.xlu0 0
      %5092 = vperm.xlu0 %5091, %v5059
      %v5093 = vpop.permute.xlu0 %5092
      %5094 = vset.pattern.permute.xlu0 0
      %5095 = vperm.xlu0 %5094, %v5060
      %v5096 = vpop.permute.xlu0 %5095
      %5097 = vset.pattern.permute.xlu0 0
      %5098 = vperm.xlu0 %5097, %v5061
      %v5099 = vpop.permute.xlu0 %5098
      %5100 = vset.pattern.permute.xlu0 0
      %5101 = vperm.xlu0 %5100, %v5062
      %v5102 = vpop.permute.xlu0 %5101
      %5103 = vset.pattern.permute.xlu0 0
      %5104 = vperm.xlu0 %5103, %v5063
      %v5105 = vpop.permute.xlu0 %5104
      %5106 = vset.pattern.permute.xlu0 0
      %5107 = vperm.xlu0 %5106, %v5064
      %v5108 = vpop.permute.xlu0 %5107
      %5109 = vset.pattern.permute.xlu0 0
      %5110 = vperm.xlu0 %5109, %v5065
      %v5111 = vpop.permute.xlu0 %5110
      %5112 = vset.pattern.permute.xlu0 0
      %5113 = vperm.xlu0 %5112, %v5066
      %v5114 = vpop.permute.xlu0 %5113
      %5115 = vset.pattern.permute.xlu0 0
      %5116 = vperm.xlu0 %5115, %v5067
      %v5117 = vpop.permute.xlu0 %5116
      %5118 = vset.pattern.permute.xlu0 0
      %5119 = vperm.xlu0 %5118, %v5068
      %v5120 = vpop.permute.xlu0 %5119
      %5121 = vset.pattern.permute.xlu0 0
      %5122 = vperm.xlu0 %5121, %v5069
      %v5123 = vpop.permute.xlu0 %5122
      %5124 = vset.pattern.permute.xlu0 0
      %5125 = vperm.xlu0 %5124, %v5070
      %v5126 = vpop.permute.xlu0 %5125
      %5127 = vset.pattern.permute.xlu0 0
      %5128 = vperm.xlu0 %5127, %v5071
      %v5129 = vpop.permute.xlu0 %5128
      %5130 = vset.pattern.permute.xlu0 0
      %5131 = vperm.xlu0 %5130, %v5072
      %v5132 = vpop.permute.xlu0 %5131
      %5133 = vset.pattern.permute.xlu0 0
      %5134 = vperm.xlu0 %5133, %v5073
      %v5135 = vpop.permute.xlu0 %5134
      %5136 = vset.pattern.permute.xlu0 0
      %5137 = vperm.xlu0 %5136, %v5074
      %v5138 = vpop.permute.xlu0 %5137
      %v5139 = vlaneseq
      %v5140 = vshrl.u32 %v5139, 7
      %v5141 = vsub.s32 %v788, %v5140
      %v5142 = vrot.slane %v5093, %v5141
      %v5143 = vlaneseq
      %v5144 = vshrl.u32 %v5143, 7
      %v5145 = vsub.s32 %v1564, %v5144
      %v5146 = vrot.slane %v5096, %v5145
      %v5147 = vsel %vm1569, %v5146, %v5142
      %v5148 = vlaneseq
      %v5149 = vshrl.u32 %v5148, 7
      %v5150 = vsub.s32 %v788, %v5149
      %v5151 = vrot.slane %v5099, %v5150
      %v5152 = vlaneseq
      %v5153 = vshrl.u32 %v5152, 7
      %v5154 = vsub.s32 %v1564, %v5153
      %v5155 = vrot.slane %v5102, %v5154
      %v5156 = vsel %vm1569, %v5155, %v5151
      %v5157 = vlaneseq
      %v5158 = vshrl.u32 %v5157, 7
      %v5159 = vsub.s32 %v788, %v5158
      %v5160 = vrot.slane %v5105, %v5159
      %v5161 = vlaneseq
      %v5162 = vshrl.u32 %v5161, 7
      %v5163 = vsub.s32 %v1564, %v5162
      %v5164 = vrot.slane %v5108, %v5163
      %v5165 = vsel %vm1569, %v5164, %v5160
      %v5166 = vlaneseq
      %v5167 = vshrl.u32 %v5166, 7
      %v5168 = vsub.s32 %v788, %v5167
      %v5169 = vrot.slane %v5111, %v5168
      %v5170 = vlaneseq
      %v5171 = vshrl.u32 %v5170, 7
      %v5172 = vsub.s32 %v1564, %v5171
      %v5173 = vrot.slane %v5114, %v5172
      %v5174 = vsel %vm1569, %v5173, %v5169
      %v5175 = vlaneseq
      %v5176 = vshrl.u32 %v5175, 7
      %v5177 = vsub.s32 %v788, %v5176
      %v5178 = vrot.slane %v5117, %v5177
      %v5179 = vlaneseq
      %v5180 = vshrl.u32 %v5179, 7
      %v5181 = vsub.s32 %v1564, %v5180
      %v5182 = vrot.slane %v5120, %v5181
      %v5183 = vsel %vm1569, %v5182, %v5178
      %v5184 = vlaneseq
      %v5185 = vshrl.u32 %v5184, 7
      %v5186 = vsub.s32 %v788, %v5185
      %v5187 = vrot.slane %v5123, %v5186
      %v5188 = vlaneseq
      %v5189 = vshrl.u32 %v5188, 7
      %v5190 = vsub.s32 %v1564, %v5189
      %v5191 = vrot.slane %v5126, %v5190
      %v5192 = vsel %vm1569, %v5191, %v5187
      %v5193 = vlaneseq
      %v5194 = vshrl.u32 %v5193, 7
      %v5195 = vsub.s32 %v788, %v5194
      %v5196 = vrot.slane %v5129, %v5195
      %v5197 = vlaneseq
      %v5198 = vshrl.u32 %v5197, 7
      %v5199 = vsub.s32 %v1564, %v5198
      %v5200 = vrot.slane %v5132, %v5199
      %v5201 = vsel %vm1569, %v5200, %v5196
      %v5202 = vlaneseq
      %v5203 = vshrl.u32 %v5202, 7
      %v5204 = vsub.s32 %v788, %v5203
      %v5205 = vrot.slane %v5135, %v5204
      %v5206 = vlaneseq
      %v5207 = vshrl.u32 %v5206, 7
      %v5208 = vsub.s32 %v1564, %v5207
      %v5209 = vrot.slane %v5138, %v5208
      %v5210 = vsel %vm1569, %v5209, %v5205
      %v5211 = vsel %vm1634, %v5156, %v5147
      %v5212 = vsel %vm1636, %v5165, %v5211
      %v5213 = vsel %vm1638, %v5174, %v5212
      %v5214 = vsel %vm1640, %v5183, %v5213
      %v5215 = vsel %vm1642, %v5192, %v5214
      %v5216 = vsel %vm1644, %v5201, %v5215
      %v5217 = vsel %vm1646, %v5210, %v5216
      %v5219 = vsel %vm1649, %v5217, -inf
      %5220 = vmax.xlane.f32.xlu0 %v5219
      %v5221 = vpop.xlane.xlu0 %5220
      %v5223 = vlaneseq
      %v5224 = vshrl.u32 %v5223, 7
      %v5225 = vsub.s32 0, %v5224
      %v5226 = vrot.slane %v5221, %v5225
      %v5227 = vlaneseq
      %v5228 = vshrl.u32 %v5227, 7
      %v5229 = vsub.s32 1, %v5228
      %v5230 = vrot.slane %v5221, %v5229
      %v5231 = vlaneseq
      %v5232 = vshrl.u32 %v5231, 7
      %v5233 = vsub.s32 2, %v5232
      %v5234 = vrot.slane %v5221, %v5233
      %v5235 = vlaneseq
      %v5236 = vshrl.u32 %v5235, 7
      %v5237 = vsub.s32 3, %v5236
      %v5238 = vrot.slane %v5221, %v5237
      %v5239 = vlaneseq
      %v5240 = vshrl.u32 %v5239, 7
      %v5241 = vsub.s32 4, %v5240
      %v5242 = vrot.slane %v5221, %v5241
      %v5243 = vlaneseq
      %v5244 = vshrl.u32 %v5243, 7
      %v5245 = vsub.s32 5, %v5244
      %v5246 = vrot.slane %v5221, %v5245
      %v5247 = vlaneseq
      %v5248 = vshrl.u32 %v5247, 7
      %v5249 = vsub.s32 6, %v5248
      %v5250 = vrot.slane %v5221, %v5249
      %v5251 = vlaneseq
      %v5252 = vshrl.u32 %v5251, 7
      %v5253 = vsub.s32 7, %v5252
      %v5254 = vrot.slane %v5221, %v5253
      %v5263 = vsub.f32 %v5059, %v5226
      %v5264 = vsub.f32 %v5060, %v5226
      %v5265 = vsub.f32 %v5061, %v5230
      %v5266 = vsub.f32 %v5062, %v5230
      %v5267 = vsub.f32 %v5063, %v5234
      %v5268 = vsub.f32 %v5064, %v5234
      %v5269 = vsub.f32 %v5065, %v5238
      %v5270 = vsub.f32 %v5066, %v5238
      %v5271 = vsub.f32 %v5067, %v5242
      %v5272 = vsub.f32 %v5068, %v5242
      %v5273 = vsub.f32 %v5069, %v5246
      %v5274 = vsub.f32 %v5070, %v5246
      %v5275 = vsub.f32 %v5071, %v5250
      %v5276 = vsub.f32 %v5072, %v5250
      %v5277 = vsub.f32 %v5073, %v5254
      %v5278 = vsub.f32 %v5074, %v5254
      %v5279 = vmul.f32 %v5263, 1.442695
      %v5280 = vpow.pop %v5279
      %v5281 = vmul.f32 %v5264, 1.442695
      %v5282 = vpow.pop %v5281
      %v5283 = vmul.f32 %v5265, 1.442695
      %v5284 = vpow.pop %v5283
      %v5285 = vmul.f32 %v5266, 1.442695
      %v5286 = vpow.pop %v5285
      %v5287 = vmul.f32 %v5267, 1.442695
      %v5288 = vpow.pop %v5287
      %v5289 = vmul.f32 %v5268, 1.442695
      %v5290 = vpow.pop %v5289
      %v5291 = vmul.f32 %v5269, 1.442695
      %v5292 = vpow.pop %v5291
      %v5293 = vmul.f32 %v5270, 1.442695
      %v5294 = vpow.pop %v5293
      %v5295 = vmul.f32 %v5271, 1.442695
      %v5296 = vpow.pop %v5295
      %v5297 = vmul.f32 %v5272, 1.442695
      %v5298 = vpow.pop %v5297
      %v5299 = vmul.f32 %v5273, 1.442695
      %v5300 = vpow.pop %v5299
      %v5301 = vmul.f32 %v5274, 1.442695
      %v5302 = vpow.pop %v5301
      %v5303 = vmul.f32 %v5275, 1.442695
      %v5304 = vpow.pop %v5303
      %v5305 = vmul.f32 %v5276, 1.442695
      %v5306 = vpow.pop %v5305
      %v5307 = vmul.f32 %v5277, 1.442695
      %v5308 = vpow.pop %v5307
      %v5309 = vmul.f32 %v5278, 1.442695
      %v5310 = vpow.pop %v5309
      %5327 = vset.pattern.permute.xlu0 0
      %5328 = vperm.xlu0 %5327, %v5280
      %v5329 = vpop.permute.xlu0 %5328
      %5330 = vset.pattern.permute.xlu0 0
      %5331 = vperm.xlu0 %5330, %v5282
      %v5332 = vpop.permute.xlu0 %5331
      %5333 = vset.pattern.permute.xlu0 0
      %5334 = vperm.xlu0 %5333, %v5284
      %v5335 = vpop.permute.xlu0 %5334
      %5336 = vset.pattern.permute.xlu0 0
      %5337 = vperm.xlu0 %5336, %v5286
      %v5338 = vpop.permute.xlu0 %5337
      %5339 = vset.pattern.permute.xlu0 0
      %5340 = vperm.xlu0 %5339, %v5288
      %v5341 = vpop.permute.xlu0 %5340
      %5342 = vset.pattern.permute.xlu0 0
      %5343 = vperm.xlu0 %5342, %v5290
      %v5344 = vpop.permute.xlu0 %5343
      %5345 = vset.pattern.permute.xlu0 0
      %5346 = vperm.xlu0 %5345, %v5292
      %v5347 = vpop.permute.xlu0 %5346
      %5348 = vset.pattern.permute.xlu0 0
      %5349 = vperm.xlu0 %5348, %v5294
      %v5350 = vpop.permute.xlu0 %5349
      %5351 = vset.pattern.permute.xlu0 0
      %5352 = vperm.xlu0 %5351, %v5296
      %v5353 = vpop.permute.xlu0 %5352
      %5354 = vset.pattern.permute.xlu0 0
      %5355 = vperm.xlu0 %5354, %v5298
      %v5356 = vpop.permute.xlu0 %5355
      %5357 = vset.pattern.permute.xlu0 0
      %5358 = vperm.xlu0 %5357, %v5300
      %v5359 = vpop.permute.xlu0 %5358
      %5360 = vset.pattern.permute.xlu0 0
      %5361 = vperm.xlu0 %5360, %v5302
      %v5362 = vpop.permute.xlu0 %5361
      %5363 = vset.pattern.permute.xlu0 0
      %5364 = vperm.xlu0 %5363, %v5304
      %v5365 = vpop.permute.xlu0 %5364
      %5366 = vset.pattern.permute.xlu0 0
      %5367 = vperm.xlu0 %5366, %v5306
      %v5368 = vpop.permute.xlu0 %5367
      %5369 = vset.pattern.permute.xlu0 0
      %5370 = vperm.xlu0 %5369, %v5308
      %v5371 = vpop.permute.xlu0 %5370
      %5372 = vset.pattern.permute.xlu0 0
      %5373 = vperm.xlu0 %5372, %v5310
      %v5374 = vpop.permute.xlu0 %5373
      %v5375 = vlaneseq
      %v5376 = vshrl.u32 %v5375, 7
      %v5377 = vsub.s32 %v788, %v5376
      %v5378 = vrot.slane %v5329, %v5377
      %v5379 = vlaneseq
      %v5380 = vshrl.u32 %v5379, 7
      %v5381 = vsub.s32 %v1564, %v5380
      %v5382 = vrot.slane %v5332, %v5381
      %v5383 = vsel %vm1569, %v5382, %v5378
      %v5384 = vlaneseq
      %v5385 = vshrl.u32 %v5384, 7
      %v5386 = vsub.s32 %v788, %v5385
      %v5387 = vrot.slane %v5335, %v5386
      %v5388 = vlaneseq
      %v5389 = vshrl.u32 %v5388, 7
      %v5390 = vsub.s32 %v1564, %v5389
      %v5391 = vrot.slane %v5338, %v5390
      %v5392 = vsel %vm1569, %v5391, %v5387
      %v5393 = vlaneseq
      %v5394 = vshrl.u32 %v5393, 7
      %v5395 = vsub.s32 %v788, %v5394
      %v5396 = vrot.slane %v5341, %v5395
      %v5397 = vlaneseq
      %v5398 = vshrl.u32 %v5397, 7
      %v5399 = vsub.s32 %v1564, %v5398
      %v5400 = vrot.slane %v5344, %v5399
      %v5401 = vsel %vm1569, %v5400, %v5396
      %v5402 = vlaneseq
      %v5403 = vshrl.u32 %v5402, 7
      %v5404 = vsub.s32 %v788, %v5403
      %v5405 = vrot.slane %v5347, %v5404
      %v5406 = vlaneseq
      %v5407 = vshrl.u32 %v5406, 7
      %v5408 = vsub.s32 %v1564, %v5407
      %v5409 = vrot.slane %v5350, %v5408
      %v5410 = vsel %vm1569, %v5409, %v5405
      %v5411 = vlaneseq
      %v5412 = vshrl.u32 %v5411, 7
      %v5413 = vsub.s32 %v788, %v5412
      %v5414 = vrot.slane %v5353, %v5413
      %v5415 = vlaneseq
      %v5416 = vshrl.u32 %v5415, 7
      %v5417 = vsub.s32 %v1564, %v5416
      %v5418 = vrot.slane %v5356, %v5417
      %v5419 = vsel %vm1569, %v5418, %v5414
      %v5420 = vlaneseq
      %v5421 = vshrl.u32 %v5420, 7
      %v5422 = vsub.s32 %v788, %v5421
      %v5423 = vrot.slane %v5359, %v5422
      %v5424 = vlaneseq
      %v5425 = vshrl.u32 %v5424, 7
      %v5426 = vsub.s32 %v1564, %v5425
      %v5427 = vrot.slane %v5362, %v5426
      %v5428 = vsel %vm1569, %v5427, %v5423
      %v5429 = vlaneseq
      %v5430 = vshrl.u32 %v5429, 7
      %v5431 = vsub.s32 %v788, %v5430
      %v5432 = vrot.slane %v5365, %v5431
      %v5433 = vlaneseq
      %v5434 = vshrl.u32 %v5433, 7
      %v5435 = vsub.s32 %v1564, %v5434
      %v5436 = vrot.slane %v5368, %v5435
      %v5437 = vsel %vm1569, %v5436, %v5432
      %v5438 = vlaneseq
      %v5439 = vshrl.u32 %v5438, 7
      %v5440 = vsub.s32 %v788, %v5439
      %v5441 = vrot.slane %v5371, %v5440
      %v5442 = vlaneseq
      %v5443 = vshrl.u32 %v5442, 7
      %v5444 = vsub.s32 %v1564, %v5443
      %v5445 = vrot.slane %v5374, %v5444
      %v5446 = vsel %vm1569, %v5445, %v5441
      %v5447 = vsel %vm1634, %v5392, %v5383
      %v5448 = vsel %vm1636, %v5401, %v5447
      %v5449 = vsel %vm1638, %v5410, %v5448
      %v5450 = vsel %vm1640, %v5419, %v5449
      %v5451 = vsel %vm1642, %v5428, %v5450
      %v5452 = vsel %vm1644, %v5437, %v5451
      %v5453 = vsel %vm1646, %v5446, %v5452
      %v5455 = vsel %vm1649, %v5453, 0.0
      %5456 = vadd.xlane.f32.xlu0 %v5455
      %v5457 = vpop.xlane.xlu0 %5456
      %v5458 = vrcp.pop %v5457
      %v5459 = vmul.f32 1.0, %v5458
      %v5461 = vlaneseq
      %v5462 = vshrl.u32 %v5461, 7
      %v5463 = vsub.s32 0, %v5462
      %v5464 = vrot.slane %v5459, %v5463
      %v5465 = vlaneseq
      %v5466 = vshrl.u32 %v5465, 7
      %v5467 = vsub.s32 1, %v5466
      %v5468 = vrot.slane %v5459, %v5467
      %v5469 = vlaneseq
      %v5470 = vshrl.u32 %v5469, 7
      %v5471 = vsub.s32 2, %v5470
      %v5472 = vrot.slane %v5459, %v5471
      %v5473 = vlaneseq
      %v5474 = vshrl.u32 %v5473, 7
      %v5475 = vsub.s32 3, %v5474
      %v5476 = vrot.slane %v5459, %v5475
      %v5477 = vlaneseq
      %v5478 = vshrl.u32 %v5477, 7
      %v5479 = vsub.s32 4, %v5478
      %v5480 = vrot.slane %v5459, %v5479
      %v5481 = vlaneseq
      %v5482 = vshrl.u32 %v5481, 7
      %v5483 = vsub.s32 5, %v5482
      %v5484 = vrot.slane %v5459, %v5483
      %v5485 = vlaneseq
      %v5486 = vshrl.u32 %v5485, 7
      %v5487 = vsub.s32 6, %v5486
      %v5488 = vrot.slane %v5459, %v5487
      %v5489 = vlaneseq
      %v5490 = vshrl.u32 %v5489, 7
      %v5491 = vsub.s32 7, %v5490
      %v5492 = vrot.slane %v5459, %v5491
      %v5501 = vmul.f32 %v5280, %v5464
      %v5502 = vmul.f32 %v5282, %v5464
      %v5503 = vmul.f32 %v5284, %v5468
      %v5504 = vmul.f32 %v5286, %v5468
      %v5505 = vmul.f32 %v5288, %v5472
      %v5506 = vmul.f32 %v5290, %v5472
      %v5507 = vmul.f32 %v5292, %v5476
      %v5508 = vmul.f32 %v5294, %v5476
      %v5509 = vmul.f32 %v5296, %v5480
      %v5510 = vmul.f32 %v5298, %v5480
      %v5511 = vmul.f32 %v5300, %v5484
      %v5512 = vmul.f32 %v5302, %v5484
      %v5513 = vmul.f32 %v5304, %v5488
      %v5514 = vmul.f32 %v5306, %v5488
      %v5515 = vmul.f32 %v5308, %v5492
      %v5516 = vmul.f32 %v5310, %v5492
      %5518 = vset.pattern.permute.xlu0 0
      %5519 = vperm.xlu0 %5518, %v5501
      %v5520 = vpop.permute.xlu0 %5519
      %5523 = vset.pattern.permute.xlu0 0
      %5524 = vperm.xlu0 %5523, %v5502
      %v5525 = vpop.permute.xlu0 %5524
      %5528 = vset.pattern.permute.xlu0 0
      %5529 = vperm.xlu0 %5528, %v5503
      %v5530 = vpop.permute.xlu0 %5529
      %5533 = vset.pattern.permute.xlu0 0
      %5534 = vperm.xlu0 %5533, %v5504
      %v5535 = vpop.permute.xlu0 %5534
      %5538 = vset.pattern.permute.xlu0 0
      %5539 = vperm.xlu0 %5538, %v5505
      %v5540 = vpop.permute.xlu0 %5539
      %5543 = vset.pattern.permute.xlu0 0
      %5544 = vperm.xlu0 %5543, %v5506
      %v5545 = vpop.permute.xlu0 %5544
      %5548 = vset.pattern.permute.xlu0 0
      %5549 = vperm.xlu0 %5548, %v5507
      %v5550 = vpop.permute.xlu0 %5549
      %5553 = vset.pattern.permute.xlu0 0
      %5554 = vperm.xlu0 %5553, %v5508
      %v5555 = vpop.permute.xlu0 %5554
      %5558 = vset.pattern.permute.xlu0 0
      %5559 = vperm.xlu0 %5558, %v5509
      %v5560 = vpop.permute.xlu0 %5559
      %5563 = vset.pattern.permute.xlu0 0
      %5564 = vperm.xlu0 %5563, %v5510
      %v5565 = vpop.permute.xlu0 %5564
      %5568 = vset.pattern.permute.xlu0 0
      %5569 = vperm.xlu0 %5568, %v5511
      %v5570 = vpop.permute.xlu0 %5569
      %5573 = vset.pattern.permute.xlu0 0
      %5574 = vperm.xlu0 %5573, %v5512
      %v5575 = vpop.permute.xlu0 %5574
      %5578 = vset.pattern.permute.xlu0 0
      %5579 = vperm.xlu0 %5578, %v5513
      %v5580 = vpop.permute.xlu0 %5579
      %5583 = vset.pattern.permute.xlu0 0
      %5584 = vperm.xlu0 %5583, %v5514
      %v5585 = vpop.permute.xlu0 %5584
      %5588 = vset.pattern.permute.xlu0 0
      %5589 = vperm.xlu0 %5588, %v5515
      %v5590 = vpop.permute.xlu0 %5589
      %5593 = vset.pattern.permute.xlu0 0
      %5594 = vperm.xlu0 %5593, %v5516
      %v5595 = vpop.permute.xlu0 %5594
      %v5597 = vmul.f32 %v5520, %v731
      %v5598 = vmul.f32 %v5525, %v732
      %v5599 = vmul.f32 %v5530, %v733
      %v5600 = vmul.f32 %v5535, %v734
      %v5601 = vmul.f32 %v5540, %v735
      %v5602 = vmul.f32 %v5545, %v736
      %v5603 = vmul.f32 %v5550, %v737
      %v5604 = vmul.f32 %v5555, %v738
      %v5605 = vmul.f32 %v5560, %v739
      %v5606 = vmul.f32 %v5565, %v740
      %v5607 = vmul.f32 %v5570, %v741
      %v5608 = vmul.f32 %v5575, %v742
      %v5609 = vmul.f32 %v5580, %v743
      %v5610 = vmul.f32 %v5585, %v744
      %v5611 = vmul.f32 %v5590, %v745
      %v5612 = vmul.f32 %v5595, %v746
      %v5613 = vsel %vm2044, %v5597, 0.0
      %v5614 = vsel %vm2046, %v5598, 0.0
      %v5615 = vadd.f32 %v5613, %v5614
      %v5616 = vrot.slane %v5615, 4
      %v5617 = vadd.f32 %v5615, %v5616
      %v5618 = vrot.slane %v5617, 2
      %v5619 = vadd.f32 %v5617, %v5618
      %v5620 = vrot.slane %v5619, 1
      %v5621 = vadd.f32 %v5619, %v5620
      %v5622 = vsel %vm2044, %v5599, 0.0
      %v5623 = vsel %vm2046, %v5600, 0.0
      %v5624 = vadd.f32 %v5622, %v5623
      %v5625 = vrot.slane %v5624, 4
      %v5626 = vadd.f32 %v5624, %v5625
      %v5627 = vrot.slane %v5626, 2
      %v5628 = vadd.f32 %v5626, %v5627
      %v5629 = vrot.slane %v5628, 1
      %v5630 = vadd.f32 %v5628, %v5629
      %v5631 = vsel %vm2044, %v5601, 0.0
      %v5632 = vsel %vm2046, %v5602, 0.0
      %v5633 = vadd.f32 %v5631, %v5632
      %v5634 = vrot.slane %v5633, 4
      %v5635 = vadd.f32 %v5633, %v5634
      %v5636 = vrot.slane %v5635, 2
      %v5637 = vadd.f32 %v5635, %v5636
      %v5638 = vrot.slane %v5637, 1
      %v5639 = vadd.f32 %v5637, %v5638
      %v5640 = vsel %vm2044, %v5603, 0.0
      %v5641 = vsel %vm2046, %v5604, 0.0
      %v5642 = vadd.f32 %v5640, %v5641
      %v5643 = vrot.slane %v5642, 4
      %v5644 = vadd.f32 %v5642, %v5643
      %v5645 = vrot.slane %v5644, 2
      %v5646 = vadd.f32 %v5644, %v5645
      %v5647 = vrot.slane %v5646, 1
      %v5648 = vadd.f32 %v5646, %v5647
      %v5649 = vsel %vm2044, %v5605, 0.0
      %v5650 = vsel %vm2046, %v5606, 0.0
      %v5651 = vadd.f32 %v5649, %v5650
      %v5652 = vrot.slane %v5651, 4
      %v5653 = vadd.f32 %v5651, %v5652
      %v5654 = vrot.slane %v5653, 2
      %v5655 = vadd.f32 %v5653, %v5654
      %v5656 = vrot.slane %v5655, 1
      %v5657 = vadd.f32 %v5655, %v5656
      %v5658 = vsel %vm2044, %v5607, 0.0
      %v5659 = vsel %vm2046, %v5608, 0.0
      %v5660 = vadd.f32 %v5658, %v5659
      %v5661 = vrot.slane %v5660, 4
      %v5662 = vadd.f32 %v5660, %v5661
      %v5663 = vrot.slane %v5662, 2
      %v5664 = vadd.f32 %v5662, %v5663
      %v5665 = vrot.slane %v5664, 1
      %v5666 = vadd.f32 %v5664, %v5665
      %v5667 = vsel %vm2044, %v5609, 0.0
      %v5668 = vsel %vm2046, %v5610, 0.0
      %v5669 = vadd.f32 %v5667, %v5668
      %v5670 = vrot.slane %v5669, 4
      %v5671 = vadd.f32 %v5669, %v5670
      %v5672 = vrot.slane %v5671, 2
      %v5673 = vadd.f32 %v5671, %v5672
      %v5674 = vrot.slane %v5673, 1
      %v5675 = vadd.f32 %v5673, %v5674
      %v5676 = vsel %vm2044, %v5611, 0.0
      %v5677 = vsel %vm2046, %v5612, 0.0
      %v5678 = vadd.f32 %v5676, %v5677
      %v5679 = vrot.slane %v5678, 4
      %v5680 = vadd.f32 %v5678, %v5679
      %v5681 = vrot.slane %v5680, 2
      %v5682 = vadd.f32 %v5680, %v5681
      %v5683 = vrot.slane %v5682, 1
      %v5684 = vadd.f32 %v5682, %v5683
      %v5686 = vlaneseq
      %v5687 = vshrl.u32 %v5686, 7
      %v5688 = vsub.s32 0, %v5687
      %v5689 = vrot.slane %v4274, %v5688
      %5691 = vbcast.lane.b32.xlu0 %v5689, 256
      %v5692 = vpop.permute.xlu0 %5691
      %s5694 = sor.u32 256, 8
      %5695 = vbcast.lane.b32.xlu0 %v5689, %s5694
      %v5696 = vpop.permute.xlu0 %5695
      %v5697 = vlaneseq
      %v5698 = vshrl.u32 %v5697, 7
      %v5699 = vsub.s32 1, %v5698
      %v5700 = vrot.slane %v4274, %v5699
      %5702 = vbcast.lane.b32.xlu0 %v5700, 256
      %v5703 = vpop.permute.xlu0 %5702
      %s5705 = sor.u32 256, 8
      %5706 = vbcast.lane.b32.xlu0 %v5700, %s5705
      %v5707 = vpop.permute.xlu0 %5706
      %v5708 = vlaneseq
      %v5709 = vshrl.u32 %v5708, 7
      %v5710 = vsub.s32 2, %v5709
      %v5711 = vrot.slane %v4274, %v5710
      %5713 = vbcast.lane.b32.xlu0 %v5711, 256
      %v5714 = vpop.permute.xlu0 %5713
      %s5716 = sor.u32 256, 8
      %5717 = vbcast.lane.b32.xlu0 %v5711, %s5716
      %v5718 = vpop.permute.xlu0 %5717
      %v5719 = vlaneseq
      %v5720 = vshrl.u32 %v5719, 7
      %v5721 = vsub.s32 3, %v5720
      %v5722 = vrot.slane %v4274, %v5721
      %5724 = vbcast.lane.b32.xlu0 %v5722, 256
      %v5725 = vpop.permute.xlu0 %5724
      %s5727 = sor.u32 256, 8
      %5728 = vbcast.lane.b32.xlu0 %v5722, %s5727
      %v5729 = vpop.permute.xlu0 %5728
      %v5730 = vlaneseq
      %v5731 = vshrl.u32 %v5730, 7
      %v5732 = vsub.s32 4, %v5731
      %v5733 = vrot.slane %v4274, %v5732
      %5735 = vbcast.lane.b32.xlu0 %v5733, 256
      %v5736 = vpop.permute.xlu0 %5735
      %s5738 = sor.u32 256, 8
      %5739 = vbcast.lane.b32.xlu0 %v5733, %s5738
      %v5740 = vpop.permute.xlu0 %5739
      %v5741 = vlaneseq
      %v5742 = vshrl.u32 %v5741, 7
      %v5743 = vsub.s32 5, %v5742
      %v5744 = vrot.slane %v4274, %v5743
      %5746 = vbcast.lane.b32.xlu0 %v5744, 256
      %v5747 = vpop.permute.xlu0 %5746
      %s5749 = sor.u32 256, 8
      %5750 = vbcast.lane.b32.xlu0 %v5744, %s5749
      %v5751 = vpop.permute.xlu0 %5750
      %v5752 = vlaneseq
      %v5753 = vshrl.u32 %v5752, 7
      %v5754 = vsub.s32 6, %v5753
      %v5755 = vrot.slane %v4274, %v5754
      %5757 = vbcast.lane.b32.xlu0 %v5755, 256
      %v5758 = vpop.permute.xlu0 %5757
      %s5760 = sor.u32 256, 8
      %5761 = vbcast.lane.b32.xlu0 %v5755, %s5760
      %v5762 = vpop.permute.xlu0 %5761
      %v5763 = vlaneseq
      %v5764 = vshrl.u32 %v5763, 7
      %v5765 = vsub.s32 7, %v5764
      %v5766 = vrot.slane %v4274, %v5765
      %5768 = vbcast.lane.b32.xlu0 %v5766, 256
      %v5769 = vpop.permute.xlu0 %5768
      %s5771 = sor.u32 256, 8
      %5772 = vbcast.lane.b32.xlu0 %v5766, %s5771
      %v5773 = vpop.permute.xlu0 %5772
      %v5790 = vmin.f32 %v5501, %v5692
      %v5791 = vmin.f32 %v5502, %v5696
      %v5792 = vmin.f32 %v5503, %v5703
      %v5793 = vmin.f32 %v5504, %v5707
      %v5794 = vmin.f32 %v5505, %v5714
      %v5795 = vmin.f32 %v5506, %v5718
      %v5796 = vmin.f32 %v5507, %v5725
      %v5797 = vmin.f32 %v5508, %v5729
      %v5798 = vmin.f32 %v5509, %v5736
      %v5799 = vmin.f32 %v5510, %v5740
      %v5800 = vmin.f32 %v5511, %v5747
      %v5801 = vmin.f32 %v5512, %v5751
      %v5802 = vmin.f32 %v5513, %v5758
      %v5803 = vmin.f32 %v5514, %v5762
      %v5804 = vmin.f32 %v5515, %v5769
      %v5805 = vmin.f32 %v5516, %v5773
      %5822 = vset.pattern.permute.xlu0 0
      %5823 = vperm.xlu0 %5822, %v5790
      %v5824 = vpop.permute.xlu0 %5823
      %5825 = vset.pattern.permute.xlu0 0
      %5826 = vperm.xlu0 %5825, %v5791
      %v5827 = vpop.permute.xlu0 %5826
      %5828 = vset.pattern.permute.xlu0 0
      %5829 = vperm.xlu0 %5828, %v5792
      %v5830 = vpop.permute.xlu0 %5829
      %5831 = vset.pattern.permute.xlu0 0
      %5832 = vperm.xlu0 %5831, %v5793
      %v5833 = vpop.permute.xlu0 %5832
      %5834 = vset.pattern.permute.xlu0 0
      %5835 = vperm.xlu0 %5834, %v5794
      %v5836 = vpop.permute.xlu0 %5835
      %5837 = vset.pattern.permute.xlu0 0
      %5838 = vperm.xlu0 %5837, %v5795
      %v5839 = vpop.permute.xlu0 %5838
      %5840 = vset.pattern.permute.xlu0 0
      %5841 = vperm.xlu0 %5840, %v5796
      %v5842 = vpop.permute.xlu0 %5841
      %5843 = vset.pattern.permute.xlu0 0
      %5844 = vperm.xlu0 %5843, %v5797
      %v5845 = vpop.permute.xlu0 %5844
      %5846 = vset.pattern.permute.xlu0 0
      %5847 = vperm.xlu0 %5846, %v5798
      %v5848 = vpop.permute.xlu0 %5847
      %5849 = vset.pattern.permute.xlu0 0
      %5850 = vperm.xlu0 %5849, %v5799
      %v5851 = vpop.permute.xlu0 %5850
      %5852 = vset.pattern.permute.xlu0 0
      %5853 = vperm.xlu0 %5852, %v5800
      %v5854 = vpop.permute.xlu0 %5853
      %5855 = vset.pattern.permute.xlu0 0
      %5856 = vperm.xlu0 %5855, %v5801
      %v5857 = vpop.permute.xlu0 %5856
      %5858 = vset.pattern.permute.xlu0 0
      %5859 = vperm.xlu0 %5858, %v5802
      %v5860 = vpop.permute.xlu0 %5859
      %5861 = vset.pattern.permute.xlu0 0
      %5862 = vperm.xlu0 %5861, %v5803
      %v5863 = vpop.permute.xlu0 %5862
      %5864 = vset.pattern.permute.xlu0 0
      %5865 = vperm.xlu0 %5864, %v5804
      %v5866 = vpop.permute.xlu0 %5865
      %5867 = vset.pattern.permute.xlu0 0
      %5868 = vperm.xlu0 %5867, %v5805
      %v5869 = vpop.permute.xlu0 %5868
      %v5870 = vlaneseq
      %v5871 = vshrl.u32 %v5870, 7
      %v5872 = vsub.s32 %v788, %v5871
      %v5873 = vrot.slane %v5824, %v5872
      %v5874 = vlaneseq
      %v5875 = vshrl.u32 %v5874, 7
      %v5876 = vsub.s32 %v1564, %v5875
      %v5877 = vrot.slane %v5827, %v5876
      %v5878 = vsel %vm1569, %v5877, %v5873
      %v5879 = vlaneseq
      %v5880 = vshrl.u32 %v5879, 7
      %v5881 = vsub.s32 %v788, %v5880
      %v5882 = vrot.slane %v5830, %v5881
      %v5883 = vlaneseq
      %v5884 = vshrl.u32 %v5883, 7
      %v5885 = vsub.s32 %v1564, %v5884
      %v5886 = vrot.slane %v5833, %v5885
      %v5887 = vsel %vm1569, %v5886, %v5882
      %v5888 = vlaneseq
      %v5889 = vshrl.u32 %v5888, 7
      %v5890 = vsub.s32 %v788, %v5889
      %v5891 = vrot.slane %v5836, %v5890
      %v5892 = vlaneseq
      %v5893 = vshrl.u32 %v5892, 7
      %v5894 = vsub.s32 %v1564, %v5893
      %v5895 = vrot.slane %v5839, %v5894
      %v5896 = vsel %vm1569, %v5895, %v5891
      %v5897 = vlaneseq
      %v5898 = vshrl.u32 %v5897, 7
      %v5899 = vsub.s32 %v788, %v5898
      %v5900 = vrot.slane %v5842, %v5899
      %v5901 = vlaneseq
      %v5902 = vshrl.u32 %v5901, 7
      %v5903 = vsub.s32 %v1564, %v5902
      %v5904 = vrot.slane %v5845, %v5903
      %v5905 = vsel %vm1569, %v5904, %v5900
      %v5906 = vlaneseq
      %v5907 = vshrl.u32 %v5906, 7
      %v5908 = vsub.s32 %v788, %v5907
      %v5909 = vrot.slane %v5848, %v5908
      %v5910 = vlaneseq
      %v5911 = vshrl.u32 %v5910, 7
      %v5912 = vsub.s32 %v1564, %v5911
      %v5913 = vrot.slane %v5851, %v5912
      %v5914 = vsel %vm1569, %v5913, %v5909
      %v5915 = vlaneseq
      %v5916 = vshrl.u32 %v5915, 7
      %v5917 = vsub.s32 %v788, %v5916
      %v5918 = vrot.slane %v5854, %v5917
      %v5919 = vlaneseq
      %v5920 = vshrl.u32 %v5919, 7
      %v5921 = vsub.s32 %v1564, %v5920
      %v5922 = vrot.slane %v5857, %v5921
      %v5923 = vsel %vm1569, %v5922, %v5918
      %v5924 = vlaneseq
      %v5925 = vshrl.u32 %v5924, 7
      %v5926 = vsub.s32 %v788, %v5925
      %v5927 = vrot.slane %v5860, %v5926
      %v5928 = vlaneseq
      %v5929 = vshrl.u32 %v5928, 7
      %v5930 = vsub.s32 %v1564, %v5929
      %v5931 = vrot.slane %v5863, %v5930
      %v5932 = vsel %vm1569, %v5931, %v5927
      %v5933 = vlaneseq
      %v5934 = vshrl.u32 %v5933, 7
      %v5935 = vsub.s32 %v788, %v5934
      %v5936 = vrot.slane %v5866, %v5935
      %v5937 = vlaneseq
      %v5938 = vshrl.u32 %v5937, 7
      %v5939 = vsub.s32 %v1564, %v5938
      %v5940 = vrot.slane %v5869, %v5939
      %v5941 = vsel %vm1569, %v5940, %v5936
      %v5942 = vsel %vm1634, %v5887, %v5878
      %v5943 = vsel %vm1636, %v5896, %v5942
      %v5944 = vsel %vm1638, %v5905, %v5943
      %v5945 = vsel %vm1640, %v5914, %v5944
      %v5946 = vsel %vm1642, %v5923, %v5945
      %v5947 = vsel %vm1644, %v5932, %v5946
      %v5948 = vsel %vm1646, %v5941, %v5947
      %v5950 = vsel %vm1649, %v5948, 0.0
      %5951 = vadd.xlane.f32.xlu0 %v5950
      %v5952 = vpop.xlane.xlu0 %5951
      %v5953 = vlaneseq
      %v5954 = vshrl.u32 %v5953, 7
      %v5955 = vsub.s32 %v788, %v5954
      %v5956 = vrot.slane %v5520, %v5955
      %v5957 = vlaneseq
      %v5958 = vshrl.u32 %v5957, 7
      %v5959 = vsub.s32 %v1564, %v5958
      %v5960 = vrot.slane %v5525, %v5959
      %v5961 = vsel %vm1569, %v5960, %v5956
      %v5962 = vlaneseq
      %v5963 = vshrl.u32 %v5962, 7
      %v5964 = vsub.s32 %v788, %v5963
      %v5965 = vrot.slane %v5530, %v5964
      %v5966 = vlaneseq
      %v5967 = vshrl.u32 %v5966, 7
      %v5968 = vsub.s32 %v1564, %v5967
      %v5969 = vrot.slane %v5535, %v5968
      %v5970 = vsel %vm1569, %v5969, %v5965
      %v5971 = vlaneseq
      %v5972 = vshrl.u32 %v5971, 7
      %v5973 = vsub.s32 %v788, %v5972
      %v5974 = vrot.slane %v5540, %v5973
      %v5975 = vlaneseq
      %v5976 = vshrl.u32 %v5975, 7
      %v5977 = vsub.s32 %v1564, %v5976
      %v5978 = vrot.slane %v5545, %v5977
      %v5979 = vsel %vm1569, %v5978, %v5974
      %v5980 = vlaneseq
      %v5981 = vshrl.u32 %v5980, 7
      %v5982 = vsub.s32 %v788, %v5981
      %v5983 = vrot.slane %v5550, %v5982
      %v5984 = vlaneseq
      %v5985 = vshrl.u32 %v5984, 7
      %v5986 = vsub.s32 %v1564, %v5985
      %v5987 = vrot.slane %v5555, %v5986
      %v5988 = vsel %vm1569, %v5987, %v5983
      %v5989 = vlaneseq
      %v5990 = vshrl.u32 %v5989, 7
      %v5991 = vsub.s32 %v788, %v5990
      %v5992 = vrot.slane %v5560, %v5991
      %v5993 = vlaneseq
      %v5994 = vshrl.u32 %v5993, 7
      %v5995 = vsub.s32 %v1564, %v5994
      %v5996 = vrot.slane %v5565, %v5995
      %v5997 = vsel %vm1569, %v5996, %v5992
      %v5998 = vlaneseq
      %v5999 = vshrl.u32 %v5998, 7
      %v6000 = vsub.s32 %v788, %v5999
      %v6001 = vrot.slane %v5570, %v6000
      %v6002 = vlaneseq
      %v6003 = vshrl.u32 %v6002, 7
      %v6004 = vsub.s32 %v1564, %v6003
      %v6005 = vrot.slane %v5575, %v6004
      %v6006 = vsel %vm1569, %v6005, %v6001
      %v6007 = vlaneseq
      %v6008 = vshrl.u32 %v6007, 7
      %v6009 = vsub.s32 %v788, %v6008
      %v6010 = vrot.slane %v5580, %v6009
      %v6011 = vlaneseq
      %v6012 = vshrl.u32 %v6011, 7
      %v6013 = vsub.s32 %v1564, %v6012
      %v6014 = vrot.slane %v5585, %v6013
      %v6015 = vsel %vm1569, %v6014, %v6010
      %v6016 = vlaneseq
      %v6017 = vshrl.u32 %v6016, 7
      %v6018 = vsub.s32 %v788, %v6017
      %v6019 = vrot.slane %v5590, %v6018
      %v6020 = vlaneseq
      %v6021 = vshrl.u32 %v6020, 7
      %v6022 = vsub.s32 %v1564, %v6021
      %v6023 = vrot.slane %v5595, %v6022
      %v6024 = vsel %vm1569, %v6023, %v6019
      %v6025 = vsel %vm1634, %v5970, %v5961
      %v6026 = vsel %vm1636, %v5979, %v6025
      %v6027 = vsel %vm1638, %v5988, %v6026
      %v6028 = vsel %vm1640, %v5997, %v6027
      %v6029 = vsel %vm1642, %v6006, %v6028
      %v6030 = vsel %vm1644, %v6015, %v6029
      %v6031 = vsel %vm1646, %v6024, %v6030
      %v6033 = vadd.f32 %v4274, %v6031
      %v6034 = vpack.c.bf16 %v5621, %v5621
      %v6035 = vpack.c.bf16 %v5630, %v5630
      %v6036 = vpack.c.bf16 %v5639, %v5639
      %v6037 = vpack.c.bf16 %v5648, %v5648
      %v6038 = vpack.c.bf16 %v5657, %v5657
      %v6039 = vpack.c.bf16 %v5666, %v5666
      %v6040 = vpack.c.bf16 %v5675, %v5675
      %v6041 = vpack.c.bf16 %v5684, %v5684
      %v6042 = vpack.c.bf16 %v4677, %v4677
      %6044 = vrot.lane.b32.xlu0 %v6042, 80
      %v6045 = vpop.permute.xlu0 %6044
      %v6047 = vsel %vm798, %v6045, 0
      %6049 = vmatprep.subr.bf16.mxu0 0
      %6050 = vmatpush1.bf16.msra.mxu0 %v2483
      %6051 = vmatprep.subr.bf16.mxu0 0
      %6052 = vmatpush1.bf16.msra.mxu0 0
      %6053 = vmatprep.subr.bf16.mxu0 0
      %6054 = vmatpush1.bf16.msra.mxu0 0
      %6055 = vmatprep.subr.bf16.mxu0 0
      %6056 = vmatpush1.bf16.msra.mxu0 0
      %6057 = vmatprep.subr.bf16.mxu0 0
      %6058 = vmatpush1.bf16.msra.mxu0 0
      %6059 = vmatprep.subr.bf16.mxu0 0
      %6060 = vmatpush1.bf16.msra.mxu0 0
      %6061 = vmatprep.subr.bf16.mxu0 0
      %6062 = vmatpush1.bf16.msra.mxu0 0
      %6063 = vmatprep.subr.bf16.mxu0 0
      %6064 = vmatpush1.bf16.msra.mxu0 0
      %6065 = vmatprep.subr.bf16.mxu0 0
      %6066 = vmatpush1.bf16.msra.mxu0 0
      %6067 = vmatprep.subr.bf16.mxu0 0
      %6068 = vmatpush1.bf16.msra.mxu0 0
      %6069 = vmatprep.subr.bf16.mxu0 0
      %6070 = vmatpush1.bf16.msra.mxu0 0
      %6071 = vmatprep.subr.bf16.mxu0 0
      %6072 = vmatpush1.bf16.msra.mxu0 0
      %6073 = vmatprep.subr.bf16.mxu0 0
      %6074 = vmatpush1.bf16.msra.mxu0 0
      %6075 = vmatprep.subr.bf16.mxu0 0
      %6076 = vmatpush1.bf16.msra.mxu0 0
      %6077 = vmatprep.subr.bf16.mxu0 0
      %6078 = vmatpush1.bf16.msra.mxu0 0
      %6079 = vmatprep.subr.bf16.mxu0 0
      %6080 = vmatpush1.bf16.msra.mxu0 0
      %6081 = vmatprep.mubr.bf16.mxu0 0
      %6082 = vmatmul.mubr.bf16.gmra.mrb[0].mxu0 %v6047
      %v6083 = vpop.f32.mrb[0].mxu0
      %v6084 = vadd.f32 0.0, %v6083
      %v6085 = vpop.f32.mrb[0].mxu0
      %v6086 = vpop.f32.mrb[0].mxu0
      %v6087 = vpop.f32.mrb[0].mxu0
      %6088 = vdwg.mxu0
      %v6097 = vunpack.c.l.b16 %v6034
      %v6098 = vunpack.c.l.b16 %v6035
      %v6099 = vunpack.c.l.b16 %v6036
      %v6100 = vunpack.c.l.b16 %v6037
      %v6101 = vunpack.c.l.b16 %v6038
      %v6102 = vunpack.c.l.b16 %v6039
      %v6103 = vunpack.c.l.b16 %v6040
      %v6104 = vunpack.c.l.b16 %v6041
      %v6105 = vsel %vm1634, %v6098, %v6097
      %v6106 = vsel %vm1636, %v6099, %v6105
      %v6107 = vsel %vm1638, %v6100, %v6106
      %v6108 = vsel %vm1640, %v6101, %v6107
      %v6109 = vsel %vm1642, %v6102, %v6108
      %v6110 = vsel %vm1644, %v6103, %v6109
      %v6111 = vsel %vm1646, %v6104, %v6110
      %v6112 = vpack.c.b16 %v6111, %v6111
      %v6114 = vsel %vm2044, %v6112, 0
      %6116 = vmatprep.subr.bf16.mxu0 0
      %6117 = vmatpush1.bf16.msra.mxu0 %v2560
      %6118 = vmatprep.subr.bf16.mxu0 0
      %6119 = vmatpush1.bf16.msra.mxu0 %v2561
      %6120 = vmatprep.subr.bf16.mxu0 0
      %6121 = vmatpush1.bf16.msra.mxu0 0
      %6122 = vmatprep.subr.bf16.mxu0 0
      %6123 = vmatpush1.bf16.msra.mxu0 0
      %6124 = vmatprep.subr.bf16.mxu0 0
      %6125 = vmatpush1.bf16.msra.mxu0 0
      %6126 = vmatprep.subr.bf16.mxu0 0
      %6127 = vmatpush1.bf16.msra.mxu0 0
      %6128 = vmatprep.subr.bf16.mxu0 0
      %6129 = vmatpush1.bf16.msra.mxu0 0
      %6130 = vmatprep.subr.bf16.mxu0 0
      %6131 = vmatpush1.bf16.msra.mxu0 0
      %6132 = vmatprep.subr.bf16.mxu0 0
      %6133 = vmatpush1.bf16.msra.mxu0 0
      %6134 = vmatprep.subr.bf16.mxu0 0
      %6135 = vmatpush1.bf16.msra.mxu0 0
      %6136 = vmatprep.subr.bf16.mxu0 0
      %6137 = vmatpush1.bf16.msra.mxu0 0
      %6138 = vmatprep.subr.bf16.mxu0 0
      %6139 = vmatpush1.bf16.msra.mxu0 0
      %6140 = vmatprep.subr.bf16.mxu0 0
      %6141 = vmatpush1.bf16.msra.mxu0 0
      %6142 = vmatprep.subr.bf16.mxu0 0
      %6143 = vmatpush1.bf16.msra.mxu0 0
      %6144 = vmatprep.subr.bf16.mxu0 0
      %6145 = vmatpush1.bf16.msra.mxu0 0
      %6146 = vmatprep.subr.bf16.mxu0 0
      %6147 = vmatpush1.bf16.msra.mxu0 0
      %6148 = vmatprep.mubr.bf16.mxu0 0
      %6149 = vmatmul.mubr.bf16.gmra.mrb[0].mxu0 %v6114
      %v6150 = vpop.f32.mrb[0].mxu0
      %v6151 = vadd.f32 %v6084, %v6150
      %v6152 = vpop.f32.mrb[0].mxu0
      %v6153 = vpop.f32.mrb[0].mxu0
      %v6154 = vpop.f32.mrb[0].mxu0
      %6155 = vdwg.mxu0
      %v6156 = vadd.f32 %v6151, %v2611
      %v6157 = vmul.f32 %v4507, %v2618
      %v6158 = vsel %vm872, %v6157, 0.0
      %6159 = vadd.xlane.f32.xlu0 %v6158
      %v6160 = vpop.xlane.xlu0 %6159
      %v6161 = vadd.f32 %v6156, %v6160
      %v6162 = vxor.u32 %v6161, 2147483648
      %v6163 = vmul.f32 %v6162, 1.442695
      %v6164 = vpow.pop %v6163
      %v6165 = vadd.f32 %v6164, 1.0
      %v6166 = vrcp.pop %v6165
      %v6167 = vmul.f32 1.0, %v6166
      %v6168 = vpack.c.bf16 %v6156, %v6156
      %v6170 = vsel %vm2044, %v6168, 0
      %6172 = vmatprep.subr.bf16.mxu0 0
      %6173 = vmatpush1.bf16.msra.mxu0 %v2646
      %6174 = vmatprep.subr.bf16.mxu0 0
      %6175 = vmatpush1.bf16.msra.mxu0 %v2647
      %6176 = vmatprep.subr.bf16.mxu0 0
      %6177 = vmatpush1.bf16.msra.mxu0 0
      %6178 = vmatprep.subr.bf16.mxu0 0
      %6179 = vmatpush1.bf16.msra.mxu0 0
      %6180 = vmatprep.subr.bf16.mxu0 0
      %6181 = vmatpush1.bf16.msra.mxu0 0
      %6182 = vmatprep.subr.bf16.mxu0 0
      %6183 = vmatpush1.bf16.msra.mxu0 0
      %6184 = vmatprep.subr.bf16.mxu0 0
      %6185 = vmatpush1.bf16.msra.mxu0 0
      %6186 = vmatprep.subr.bf16.mxu0 0
      %6187 = vmatpush1.bf16.msra.mxu0 0
      %6188 = vmatprep.subr.bf16.mxu0 0
      %6189 = vmatpush1.bf16.msra.mxu0 0
      %6190 = vmatprep.subr.bf16.mxu0 0
      %6191 = vmatpush1.bf16.msra.mxu0 0
      %6192 = vmatprep.subr.bf16.mxu0 0
      %6193 = vmatpush1.bf16.msra.mxu0 0
      %6194 = vmatprep.subr.bf16.mxu0 0
      %6195 = vmatpush1.bf16.msra.mxu0 0
      %6196 = vmatprep.subr.bf16.mxu0 0
      %6197 = vmatpush1.bf16.msra.mxu0 0
      %6198 = vmatprep.subr.bf16.mxu0 0
      %6199 = vmatpush1.bf16.msra.mxu0 0
      %6200 = vmatprep.subr.bf16.mxu0 0
      %6201 = vmatpush1.bf16.msra.mxu0 0
      %6202 = vmatprep.subr.bf16.mxu0 0
      %6203 = vmatpush1.bf16.msra.mxu0 0
      %6204 = vmatprep.mubr.bf16.mxu0 0
      %6205 = vmatmul.mubr.bf16.gmra.mrb[0].mxu0 %v6170
      %v6206 = vpop.f32.mrb[0].mxu0
      %v6207 = vadd.f32 %v2636, %v6206
      %v6208 = vpop.f32.mrb[0].mxu0
      %v6209 = vpop.f32.mrb[0].mxu0
      %v6210 = vpop.f32.mrb[0].mxu0
      %6211 = vdwg.mxu0
      %v6212 = vsel %vm2044, %v6207, -inf
      %6213 = vmax.xlane.f32.xlu0 %v6212
      %v6214 = vpop.xlane.xlu0 %6213
      %v6215 = vsub.f32 %v6207, %v6214
      %v6216 = vmul.f32 %v6215, 1.442695
      %v6217 = vpow.pop %v6216
      %v6218 = vsel %vm2044, %v6217, 0.0
      %6219 = vadd.xlane.f32.xlu0 %v6218
      %v6220 = vpop.xlane.xlu0 %6219
      %6221 = vset.pattern.permute.xlu0 0
      %6222 = vperm.xlu0 %6221, %v4509
      %v6223 = vpop.permute.xlu0 %6222
      %vm6224 = vcmp.eq.s32.totalorder %v788, %v6223
      %v6225 = vsel %vm6224, %v6217, 0.0
      %v6226 = vsel %vm2044, %v6225, 0.0
      %6227 = vadd.xlane.f32.xlu0 %v6226
      %v6228 = vpop.xlane.xlu0 %6227
      %v6229 = vmul.f32 %v6167, %v6228
      %v6230 = vrcp.pop %v6220
      %v6231 = vmul.f32 %v6229, %v6230
      %vm6232 = vcmp.eq.s32.totalorder %v789, %v6223
      %v6233 = vsel %vm6232, %v765, 0.0
      %v6234 = vsel %vm2715, %v6233, 0.0
      %6235 = vadd.xlane.f32.xlu0 %v6234
      %v6236 = vpop.xlane.xlu0 %6235
      %vm6237 = vcmp.eq.s32.totalorder %v764, %v6223
      %v6238 = vsel %vm6237, %v6031, 0.0
      %v6239 = vsel %vm1649, %v6238, 0.0
      %6240 = vadd.xlane.f32.xlu0 %v6239
      %v6241 = vpop.xlane.xlu0 %6240
      %v6242 = vsub.f32 1.0, %v6167
      %v6243 = vmul.f32 %v6241, %v6242
      %v6244 = vadd.f32 %v6231, %v6236
      %v6245 = vadd.f32 %v6244, %v6243
      %vm6246 = vcmp.ne.s32.totalorder %v4509, 0
      %v6247 = vsel %vm6246, 1, 0
      %v6248 = vcvt.s32.f32 %v6247
      %v6249 = vadd.f32 %v6245, 1e-30
      %v6250 = vlog2.pop %v6249
      %v6251 = vmul.f32 %v6250, 0.6931472
      %6253 = vrot.lane.b32.xlu0 %v6248, 32
      %v6254 = vpop.permute.xlu0 %6253
      %v6256 = vmul.f32 %v6251, %v6254
      %6258 = vrot.lane.b32.xlu0 %v6256, 96
      %v6259 = vpop.permute.xlu0 %6258
      %v6261 = vadd.f32 %v4502, %v6259
      %v6262 = vmul.f32 %v5952, %v6248
      %v6263 = vadd.f32 %v4504, %v6262
      %v6264 = vadd.f32 %v4505, %v6248
      %s6265 = scalar_lea.vmem %s707, 24
      %v6266 = vld [vmem:[%s6265] sm:$0xff]
      %s6267 = scalar_lea.vmem %s713, 24
      %v6268 = vld [vmem:[%s6267] sm:$0xff]
      %6269 = vmatprep.subr.mxu0 0.0
      %6270 = vmatpush1.msra.mxu0 %v767
      %6271 = vmatprep.subr.mxu0 0.0
      %6272 = vmatpush1.msra.mxu0 %v768
      %6273 = vmatprep.subr.mxu0 0.0
      %6274 = vmatpush1.msra.mxu0 0.0
      %6275 = vmatprep.subr.mxu0 0.0
      %6276 = vmatpush1.msra.mxu0 0.0
      %6277 = vmatprep.subr.mxu0 0.0
      %6278 = vmatpush1.msra.mxu0 0.0
      %6279 = vmatprep.subr.mxu0 0.0
      %6280 = vmatpush1.msra.mxu0 0.0
      %6281 = vmatprep.subr.mxu0 0.0
      %6282 = vmatpush1.msra.mxu0 0.0
      %6283 = vmatprep.subr.mxu0 0.0
      %6284 = vmatpush1.msra.mxu0 0.0
      %6285 = vmatprep.subr.mxu0 0.0
      %6286 = vmatpush1.msra.mxu0 0.0
      %6287 = vmatprep.subr.mxu0 0.0
      %6288 = vmatpush1.msra.mxu0 0.0
      %6289 = vmatprep.subr.mxu0 0.0
      %6290 = vmatpush1.msra.mxu0 0.0
      %6291 = vmatprep.subr.mxu0 0.0
      %6292 = vmatpush1.msra.mxu0 0.0
      %6293 = vmatprep.subr.mxu0 0.0
      %6294 = vmatpush1.msra.mxu0 0.0
      %6295 = vmatprep.subr.mxu0 0.0
      %6296 = vmatpush1.msra.mxu0 0.0
      %6297 = vmatprep.subr.mxu0 0.0
      %6298 = vmatpush1.msra.mxu0 0.0
      %6299 = vmatprep.subr.mxu0 0.0
      %6300 = vmatpush1.msra.mxu0 0.0
      %6301 = vmatprep.subr.mxu0 0.0
      %6302 = vmatpush1.msra.mxu0 0.0
      %6303 = vmatprep.subr.mxu0 0.0
      %6304 = vmatpush1.msra.mxu0 0.0
      %6305 = vmatprep.subr.mxu0 0.0
      %6306 = vmatpush1.msra.mxu0 0.0
      %6307 = vmatprep.subr.mxu0 0.0
      %6308 = vmatpush1.msra.mxu0 0.0
      %6309 = vmatprep.subr.mxu0 0.0
      %6310 = vmatpush1.msra.mxu0 0.0
      %6311 = vmatprep.subr.mxu0 0.0
      %6312 = vmatpush1.msra.mxu0 0.0
      %6313 = vmatprep.subr.mxu0 0.0
      %6314 = vmatpush1.msra.mxu0 0.0
      %6315 = vmatprep.subr.mxu0 0.0
      %6316 = vmatpush1.msra.mxu0 0.0
      %6317 = vmatprep.subr.mxu0 0.0
      %6318 = vmatpush1.msra.mxu0 0.0
      %6319 = vmatprep.subr.mxu0 0.0
      %6320 = vmatpush1.msra.mxu0 0.0
      %6321 = vmatprep.subr.mxu0 0.0
      %6322 = vmatpush1.msra.mxu0 0.0
      %6323 = vmatprep.subr.mxu0 0.0
      %6324 = vmatpush1.msra.mxu0 0.0
      %6325 = vmatprep.subr.mxu0 0.0
      %6326 = vmatpush1.msra.mxu0 0.0
      %6327 = vmatprep.subr.mxu0 0.0
      %6328 = vmatpush1.msra.mxu0 0.0
      %6329 = vmatprep.subr.mxu0 0.0
      %6330 = vmatpush1.msra.mxu0 0.0
      %6331 = vmatprep.subr.mxu0 0.0
      %6332 = vmatpush1.msra.mxu0 0.0
      %6333 = vmatprep.mubr.f32.mxu0 0.0
      %6334 = vmatmul.mubr.f32.gmra.mrb[0].mxu0 %v4681
      %v6335 = vpop.f32.mrb[0].mxu0
      %v6336 = vadd.f32 0.0, %v6335
      %v6337 = vpop.f32.mrb[0].mxu0
      %6338 = vdwg.mxu0
      %v6340 = vsel %vm872, %v6266, 0
      %6342 = vmatprep.subr.mxu0 0.0
      %6343 = vmatpush1.msra.mxu0 %v766
      %6344 = vmatprep.subr.mxu0 0.0
      %6345 = vmatpush1.msra.mxu0 0.0
      %6346 = vmatprep.subr.mxu0 0.0
      %6347 = vmatpush1.msra.mxu0 0.0
      %6348 = vmatprep.subr.mxu0 0.0
      %6349 = vmatpush1.msra.mxu0 0.0
      %6350 = vmatprep.subr.mxu0 0.0
      %6351 = vmatpush1.msra.mxu0 0.0
      %6352 = vmatprep.subr.mxu0 0.0
      %6353 = vmatpush1.msra.mxu0 0.0
      %6354 = vmatprep.subr.mxu0 0.0
      %6355 = vmatpush1.msra.mxu0 0.0
      %6356 = vmatprep.subr.mxu0 0.0
      %6357 = vmatpush1.msra.mxu0 0.0
      %6358 = vmatprep.subr.mxu0 0.0
      %6359 = vmatpush1.msra.mxu0 0.0
      %6360 = vmatprep.subr.mxu0 0.0
      %6361 = vmatpush1.msra.mxu0 0.0
      %6362 = vmatprep.subr.mxu0 0.0
      %6363 = vmatpush1.msra.mxu0 0.0
      %6364 = vmatprep.subr.mxu0 0.0
      %6365 = vmatpush1.msra.mxu0 0.0
      %6366 = vmatprep.subr.mxu0 0.0
      %6367 = vmatpush1.msra.mxu0 0.0
      %6368 = vmatprep.subr.mxu0 0.0
      %6369 = vmatpush1.msra.mxu0 0.0
      %6370 = vmatprep.subr.mxu0 0.0
      %6371 = vmatpush1.msra.mxu0 0.0
      %6372 = vmatprep.subr.mxu0 0.0
      %6373 = vmatpush1.msra.mxu0 0.0
      %6374 = vmatprep.subr.mxu0 0.0
      %6375 = vmatpush1.msra.mxu0 0.0
      %6376 = vmatprep.subr.mxu0 0.0
      %6377 = vmatpush1.msra.mxu0 0.0
      %6378 = vmatprep.subr.mxu0 0.0
      %6379 = vmatpush1.msra.mxu0 0.0
      %6380 = vmatprep.subr.mxu0 0.0
      %6381 = vmatpush1.msra.mxu0 0.0
      %6382 = vmatprep.subr.mxu0 0.0
      %6383 = vmatpush1.msra.mxu0 0.0
      %6384 = vmatprep.subr.mxu0 0.0
      %6385 = vmatpush1.msra.mxu0 0.0
      %6386 = vmatprep.subr.mxu0 0.0
      %6387 = vmatpush1.msra.mxu0 0.0
      %6388 = vmatprep.subr.mxu0 0.0
      %6389 = vmatpush1.msra.mxu0 0.0
      %6390 = vmatprep.subr.mxu0 0.0
      %6391 = vmatpush1.msra.mxu0 0.0
      %6392 = vmatprep.subr.mxu0 0.0
      %6393 = vmatpush1.msra.mxu0 0.0
      %6394 = vmatprep.subr.mxu0 0.0
      %6395 = vmatpush1.msra.mxu0 0.0
      %6396 = vmatprep.subr.mxu0 0.0
      %6397 = vmatpush1.msra.mxu0 0.0
      %6398 = vmatprep.subr.mxu0 0.0
      %6399 = vmatpush1.msra.mxu0 0.0
      %6400 = vmatprep.subr.mxu0 0.0
      %6401 = vmatpush1.msra.mxu0 0.0
      %6402 = vmatprep.subr.mxu0 0.0
      %6403 = vmatpush1.msra.mxu0 0.0
      %6404 = vmatprep.subr.mxu0 0.0
      %6405 = vmatpush1.msra.mxu0 0.0
      %6406 = vmatprep.mubr.f32.mxu0 0.0
      %6407 = vmatmul.mubr.f32.gmra.mrb[0].mxu0 %v6340
      %v6408 = vpop.f32.mrb[0].mxu0
      %v6409 = vadd.f32 %v6336, %v6408
      %v6410 = vpop.f32.mrb[0].mxu0
      %6411 = vdwg.mxu0
      %v6412 = vadd.f32 %v6409, %v950
      %v6413 = vxor.u32 %v6412, 2147483648
      %v6414 = vmul.f32 %v6413, 1.442695
      %v6415 = vpow.pop %v6414
      %v6416 = vadd.f32 %v6415, 1.0
      %v6417 = vrcp.pop %v6416
      %v6418 = vmul.f32 1.0, %v6417
      %v6419 = vtanh.pop %v6412
      %v6420 = vmul.f32 %v6418, %v4671
      %6422 = vrot.lane.b32.xlu0 %v6419, 96
      %v6423 = vpop.permute.xlu0 %6422
      %v6425 = vmul.f32 %v6418, %v6423
      %6427 = vrot.lane.b32.xlu0 %v6425, 16
      %v6428 = vpop.permute.xlu0 %6427
      %v6430 = vadd.f32 %v6420, %v6428
      %v6431 = vtanh.pop %v6430
      %6433 = vrot.lane.b32.xlu0 %v6431, 32
      %v6434 = vpop.permute.xlu0 %6433
      %v6436 = vmul.f32 %v6418, %v6434
      %6438 = vrot.lane.b32.xlu0 %v6436, 80
      %v6439 = vpop.permute.xlu0 %6438
      %v6440 = vsel %vm798, %v6439, 0
      %6442 = vmatprep.subr.mxu0 0.0
      %6443 = vmatpush1.msra.mxu0 %v770
      %6444 = vmatprep.subr.mxu0 0.0
      %6445 = vmatpush1.msra.mxu0 %v771
      %6446 = vmatprep.subr.mxu0 0.0
      %6447 = vmatpush1.msra.mxu0 0.0
      %6448 = vmatprep.subr.mxu0 0.0
      %6449 = vmatpush1.msra.mxu0 0.0
      %6450 = vmatprep.subr.mxu0 0.0
      %6451 = vmatpush1.msra.mxu0 0.0
      %6452 = vmatprep.subr.mxu0 0.0
      %6453 = vmatpush1.msra.mxu0 0.0
      %6454 = vmatprep.subr.mxu0 0.0
      %6455 = vmatpush1.msra.mxu0 0.0
      %6456 = vmatprep.subr.mxu0 0.0
      %6457 = vmatpush1.msra.mxu0 0.0
      %6458 = vmatprep.subr.mxu0 0.0
      %6459 = vmatpush1.msra.mxu0 0.0
      %6460 = vmatprep.subr.mxu0 0.0
      %6461 = vmatpush1.msra.mxu0 0.0
      %6462 = vmatprep.subr.mxu0 0.0
      %6463 = vmatpush1.msra.mxu0 0.0
      %6464 = vmatprep.subr.mxu0 0.0
      %6465 = vmatpush1.msra.mxu0 0.0
      %6466 = vmatprep.subr.mxu0 0.0
      %6467 = vmatpush1.msra.mxu0 0.0
      %6468 = vmatprep.subr.mxu0 0.0
      %6469 = vmatpush1.msra.mxu0 0.0
      %6470 = vmatprep.subr.mxu0 0.0
      %6471 = vmatpush1.msra.mxu0 0.0
      %6472 = vmatprep.subr.mxu0 0.0
      %6473 = vmatpush1.msra.mxu0 0.0
      %6474 = vmatprep.subr.mxu0 0.0
      %6475 = vmatpush1.msra.mxu0 0.0
      %6476 = vmatprep.subr.mxu0 0.0
      %6477 = vmatpush1.msra.mxu0 0.0
      %6478 = vmatprep.subr.mxu0 0.0
      %6479 = vmatpush1.msra.mxu0 0.0
      %6480 = vmatprep.subr.mxu0 0.0
      %6481 = vmatpush1.msra.mxu0 0.0
      %6482 = vmatprep.subr.mxu0 0.0
      %6483 = vmatpush1.msra.mxu0 0.0
      %6484 = vmatprep.subr.mxu0 0.0
      %6485 = vmatpush1.msra.mxu0 0.0
      %6486 = vmatprep.subr.mxu0 0.0
      %6487 = vmatpush1.msra.mxu0 0.0
      %6488 = vmatprep.subr.mxu0 0.0
      %6489 = vmatpush1.msra.mxu0 0.0
      %6490 = vmatprep.subr.mxu0 0.0
      %6491 = vmatpush1.msra.mxu0 0.0
      %6492 = vmatprep.subr.mxu0 0.0
      %6493 = vmatpush1.msra.mxu0 0.0
      %6494 = vmatprep.subr.mxu0 0.0
      %6495 = vmatpush1.msra.mxu0 0.0
      %6496 = vmatprep.subr.mxu0 0.0
      %6497 = vmatpush1.msra.mxu0 0.0
      %6498 = vmatprep.subr.mxu0 0.0
      %6499 = vmatpush1.msra.mxu0 0.0
      %6500 = vmatprep.subr.mxu0 0.0
      %6501 = vmatpush1.msra.mxu0 0.0
      %6502 = vmatprep.subr.mxu0 0.0
      %6503 = vmatpush1.msra.mxu0 0.0
      %6504 = vmatprep.subr.mxu0 0.0
      %6505 = vmatpush1.msra.mxu0 0.0
      %6506 = vmatprep.mubr.f32.mxu0 0.0
      %6507 = vmatmul.mubr.f32.gmra.mrb[0].mxu0 %v6440
      %v6508 = vpop.f32.mrb[0].mxu0
      %v6509 = vadd.f32 0.0, %v6508
      %v6510 = vpop.f32.mrb[0].mxu0
      %6511 = vdwg.mxu0
      %v6513 = vcombine.high %v6509, %v6509
      %v6515 = vunpack.c.l.s4 1966171168
      %v6516 = vunpack.c.0.s8 %v6515
      %v6517 = vlaneseq
      %v6518 = vshrl.u32 %v6517, 7
      %v6519 = vsub.s32 %v6516, %v6518
      %v6520 = vrot.slane %v6509, %v6519
      %v6522 = vunpack.c.l.s4 1966171168
      %v6523 = vunpack.c.0.s8 %v6522
      %v6524 = vlaneseq
      %v6525 = vshrl.u32 %v6524, 7
      %v6526 = vsub.s32 %v6523, %v6525
      %v6527 = vrot.slane %v6513, %v6526
      %v6528 = vcombine.high %v6520, %v6520
      %v6529 = vcombine.high %v6527, %v6527
      %v6531 = vunpack.c.l.s4 1966171168
      %v6532 = vunpack.c.0.s8 %v6531
      %v6533 = vlaneseq
      %v6534 = vshrl.u32 %v6533, 7
      %v6535 = vsub.s32 %v6532, %v6534
      %v6536 = vrot.slane %v6520, %v6535
      %v6538 = vunpack.c.l.s4 1966171168
      %v6539 = vunpack.c.0.s8 %v6538
      %v6540 = vlaneseq
      %v6541 = vshrl.u32 %v6540, 7
      %v6542 = vsub.s32 %v6539, %v6541
      %v6543 = vrot.slane %v6527, %v6542
      %v6545 = vunpack.c.l.s4 1966171168
      %v6546 = vunpack.c.0.s8 %v6545
      %v6547 = vlaneseq
      %v6548 = vshrl.u32 %v6547, 7
      %v6549 = vsub.s32 %v6546, %v6548
      %v6550 = vrot.slane %v6528, %v6549
      %v6552 = vunpack.c.l.s4 1966171168
      %v6553 = vunpack.c.0.s8 %v6552
      %v6554 = vlaneseq
      %v6555 = vshrl.u32 %v6554, 7
      %v6556 = vsub.s32 %v6553, %v6555
      %v6557 = vrot.slane %v6529, %v6556
      %v6558 = vcombine.high %v6536, %v6536
      %v6559 = vcombine.high %v6543, %v6543
      %v6560 = vcombine.high %v6550, %v6550
      %v6561 = vcombine.high %v6557, %v6557
      %v6562 = vlaneseq
      %v6563 = vshrl.u32 %v6562, 7
      %v6564 = vsub.s32 0, %v6563
      %v6565 = vrot.slane %v6536, %v6564
      %v6566 = vlaneseq
      %v6567 = vshrl.u32 %v6566, 7
      %v6568 = vsub.s32 0, %v6567
      %v6569 = vrot.slane %v6550, %v6568
      %v6570 = vlaneseq
      %v6571 = vshrl.u32 %v6570, 7
      %v6572 = vsub.s32 0, %v6571
      %v6573 = vrot.slane %v6558, %v6572
      %v6574 = vlaneseq
      %v6575 = vshrl.u32 %v6574, 7
      %v6576 = vsub.s32 0, %v6575
      %v6577 = vrot.slane %v6560, %v6576
      %v6578 = vlaneseq
      %v6579 = vshrl.u32 %v6578, 7
      %v6580 = vsub.s32 0, %v6579
      %v6581 = vrot.slane %v6543, %v6580
      %v6582 = vlaneseq
      %v6583 = vshrl.u32 %v6582, 7
      %v6584 = vsub.s32 0, %v6583
      %v6585 = vrot.slane %v6557, %v6584
      %v6586 = vlaneseq
      %v6587 = vshrl.u32 %v6586, 7
      %v6588 = vsub.s32 0, %v6587
      %v6589 = vrot.slane %v6559, %v6588
      %v6590 = vlaneseq
      %v6591 = vshrl.u32 %v6590, 7
      %v6592 = vsub.s32 0, %v6591
      %v6593 = vrot.slane %v6561, %v6592
      %v6602 = vadd.f32 %v747, %v6565
      %v6603 = vadd.f32 %v748, %v6565
      %v6604 = vadd.f32 %v749, %v6569
      %v6605 = vadd.f32 %v750, %v6569
      %v6606 = vadd.f32 %v751, %v6573
      %v6607 = vadd.f32 %v752, %v6573
      %v6608 = vadd.f32 %v753, %v6577
      %v6609 = vadd.f32 %v754, %v6577
      %v6610 = vadd.f32 %v755, %v6581
      %v6611 = vadd.f32 %v756, %v6581
      %v6612 = vadd.f32 %v757, %v6585
      %v6613 = vadd.f32 %v758, %v6585
      %v6614 = vadd.f32 %v759, %v6589
      %v6615 = vadd.f32 %v760, %v6589
      %v6616 = vadd.f32 %v761, %v6593
      %v6617 = vadd.f32 %v762, %v6593
      %v6618 = vlaneseq
      %v6619 = vshrl.u32 %v6618, 7
      %v6620 = vsub.s32 0, %v6619
      %v6621 = vrot.slane %v6033, %v6620
      %6623 = vbcast.lane.b32.xlu0 %v6621, 256
      %v6624 = vpop.permute.xlu0 %6623
      %s6626 = sor.u32 256, 8
      %6627 = vbcast.lane.b32.xlu0 %v6621, %s6626
      %v6628 = vpop.permute.xlu0 %6627
      %v6629 = vlaneseq
      %v6630 = vshrl.u32 %v6629, 7
      %v6631 = vsub.s32 1, %v6630
      %v6632 = vrot.slane %v6033, %v6631
      %6634 = vbcast.lane.b32.xlu0 %v6632, 256
      %v6635 = vpop.permute.xlu0 %6634
      %s6637 = sor.u32 256, 8
      %6638 = vbcast.lane.b32.xlu0 %v6632, %s6637
      %v6639 = vpop.permute.xlu0 %6638
      %v6640 = vlaneseq
      %v6641 = vshrl.u32 %v6640, 7
      %v6642 = vsub.s32 2, %v6641
      %v6643 = vrot.slane %v6033, %v6642
      %6645 = vbcast.lane.b32.xlu0 %v6643, 256
      %v6646 = vpop.permute.xlu0 %6645
      %s6648 = sor.u32 256, 8
      %6649 = vbcast.lane.b32.xlu0 %v6643, %s6648
      %v6650 = vpop.permute.xlu0 %6649
      %v6651 = vlaneseq
      %v6652 = vshrl.u32 %v6651, 7
      %v6653 = vsub.s32 3, %v6652
      %v6654 = vrot.slane %v6033, %v6653
      %6656 = vbcast.lane.b32.xlu0 %v6654, 256
      %v6657 = vpop.permute.xlu0 %6656
      %s6659 = sor.u32 256, 8
      %6660 = vbcast.lane.b32.xlu0 %v6654, %s6659
      %v6661 = vpop.permute.xlu0 %6660
      %v6662 = vlaneseq
      %v6663 = vshrl.u32 %v6662, 7
      %v6664 = vsub.s32 4, %v6663
      %v6665 = vrot.slane %v6033, %v6664
      %6667 = vbcast.lane.b32.xlu0 %v6665, 256
      %v6668 = vpop.permute.xlu0 %6667
      %s6670 = sor.u32 256, 8
      %6671 = vbcast.lane.b32.xlu0 %v6665, %s6670
      %v6672 = vpop.permute.xlu0 %6671
      %v6673 = vlaneseq
      %v6674 = vshrl.u32 %v6673, 7
      %v6675 = vsub.s32 5, %v6674
      %v6676 = vrot.slane %v6033, %v6675
      %6678 = vbcast.lane.b32.xlu0 %v6676, 256
      %v6679 = vpop.permute.xlu0 %6678
      %s6681 = sor.u32 256, 8
      %6682 = vbcast.lane.b32.xlu0 %v6676, %s6681
      %v6683 = vpop.permute.xlu0 %6682
      %v6684 = vlaneseq
      %v6685 = vshrl.u32 %v6684, 7
      %v6686 = vsub.s32 6, %v6685
      %v6687 = vrot.slane %v6033, %v6686
      %6689 = vbcast.lane.b32.xlu0 %v6687, 256
      %v6690 = vpop.permute.xlu0 %6689
      %s6692 = sor.u32 256, 8
      %6693 = vbcast.lane.b32.xlu0 %v6687, %s6692
      %v6694 = vpop.permute.xlu0 %6693
      %v6695 = vlaneseq
      %v6696 = vshrl.u32 %v6695, 7
      %v6697 = vsub.s32 7, %v6696
      %v6698 = vrot.slane %v6033, %v6697
      %6700 = vbcast.lane.b32.xlu0 %v6698, 256
      %v6701 = vpop.permute.xlu0 %6700
      %s6703 = sor.u32 256, 8
      %6704 = vbcast.lane.b32.xlu0 %v6698, %s6703
      %v6705 = vpop.permute.xlu0 %6704
      %v6706 = vmul.f32 %v6624, %v1254
      %v6707 = vmul.f32 %v6628, %v1254
      %v6708 = vmul.f32 %v6635, %v1254
      %v6709 = vmul.f32 %v6639, %v1254
      %v6710 = vmul.f32 %v6646, %v1254
      %v6711 = vmul.f32 %v6650, %v1254
      %v6712 = vmul.f32 %v6657, %v1254
      %v6713 = vmul.f32 %v6661, %v1254
      %v6714 = vmul.f32 %v6668, %v1254
      %v6715 = vmul.f32 %v6672, %v1254
      %v6716 = vmul.f32 %v6679, %v1254
      %v6717 = vmul.f32 %v6683, %v1254
      %v6718 = vmul.f32 %v6690, %v1254
      %v6719 = vmul.f32 %v6694, %v1254
      %v6720 = vmul.f32 %v6701, %v1254
      %v6721 = vmul.f32 %v6705, %v1254
      %v6722 = vadd.f32 %v6602, %v6706
      %v6723 = vadd.f32 %v6603, %v6707
      %v6724 = vadd.f32 %v6604, %v6708
      %v6725 = vadd.f32 %v6605, %v6709
      %v6726 = vadd.f32 %v6606, %v6710
      %v6727 = vadd.f32 %v6607, %v6711
      %v6728 = vadd.f32 %v6608, %v6712
      %v6729 = vadd.f32 %v6609, %v6713
      %v6730 = vadd.f32 %v6610, %v6714
      %v6731 = vadd.f32 %v6611, %v6715
      %v6732 = vadd.f32 %v6612, %v6716
      %v6733 = vadd.f32 %v6613, %v6717
      %v6734 = vadd.f32 %v6614, %v6718
      %v6735 = vadd.f32 %v6615, %v6719
      %v6736 = vadd.f32 %v6616, %v6720
      %v6737 = vadd.f32 %v6617, %v6721
      %v6738 = vtanh.pop %v6722
      %v6739 = vtanh.pop %v6723
      %v6740 = vtanh.pop %v6724
      %v6741 = vtanh.pop %v6725
      %v6742 = vtanh.pop %v6726
      %v6743 = vtanh.pop %v6727
      %v6744 = vtanh.pop %v6728
      %v6745 = vtanh.pop %v6729
      %v6746 = vtanh.pop %v6730
      %v6747 = vtanh.pop %v6731
      %v6748 = vtanh.pop %v6732
      %v6749 = vtanh.pop %v6733
      %v6750 = vtanh.pop %v6734
      %v6751 = vtanh.pop %v6735
      %v6752 = vtanh.pop %v6736
      %v6753 = vtanh.pop %v6737
      %v6754 = vmul.f32 %v6738, %v1308
      %v6755 = vmul.f32 %v6739, %v1308
      %v6756 = vmul.f32 %v6740, %v1308
      %v6757 = vmul.f32 %v6741, %v1308
      %v6758 = vmul.f32 %v6742, %v1308
      %v6759 = vmul.f32 %v6743, %v1308
      %v6760 = vmul.f32 %v6744, %v1308
      %v6761 = vmul.f32 %v6745, %v1308
      %v6762 = vmul.f32 %v6746, %v1308
      %v6763 = vmul.f32 %v6747, %v1308
      %v6764 = vmul.f32 %v6748, %v1308
      %v6765 = vmul.f32 %v6749, %v1308
      %v6766 = vmul.f32 %v6750, %v1308
      %v6767 = vmul.f32 %v6751, %v1308
      %v6768 = vmul.f32 %v6752, %v1308
      %v6769 = vmul.f32 %v6753, %v1308
      %v6770 = vsel %vm798, %v6754, 0.0
      %6771 = vadd.xlane.f32.xlu0 %v6770
      %v6772 = vpop.xlane.xlu0 %6771
      %v6773 = vsel %vm1329, %v6755, 0.0
      %6774 = vadd.xlane.f32.xlu0 %v6773
      %v6775 = vpop.xlane.xlu0 %6774
      %v6776 = vsel %vm798, %v6756, 0.0
      %6777 = vadd.xlane.f32.xlu0 %v6776
      %v6778 = vpop.xlane.xlu0 %6777
      %v6779 = vsel %vm1329, %v6757, 0.0
      %6780 = vadd.xlane.f32.xlu0 %v6779
      %v6781 = vpop.xlane.xlu0 %6780
      %v6782 = vsel %vm798, %v6758, 0.0
      %6783 = vadd.xlane.f32.xlu0 %v6782
      %v6784 = vpop.xlane.xlu0 %6783
      %v6785 = vsel %vm1329, %v6759, 0.0
      %6786 = vadd.xlane.f32.xlu0 %v6785
      %v6787 = vpop.xlane.xlu0 %6786
      %v6788 = vsel %vm798, %v6760, 0.0
      %6789 = vadd.xlane.f32.xlu0 %v6788
      %v6790 = vpop.xlane.xlu0 %6789
      %v6791 = vsel %vm1329, %v6761, 0.0
      %6792 = vadd.xlane.f32.xlu0 %v6791
      %v6793 = vpop.xlane.xlu0 %6792
      %v6794 = vsel %vm798, %v6762, 0.0
      %6795 = vadd.xlane.f32.xlu0 %v6794
      %v6796 = vpop.xlane.xlu0 %6795
      %v6797 = vsel %vm1329, %v6763, 0.0
      %6798 = vadd.xlane.f32.xlu0 %v6797
      %v6799 = vpop.xlane.xlu0 %6798
      %v6800 = vsel %vm798, %v6764, 0.0
      %6801 = vadd.xlane.f32.xlu0 %v6800
      %v6802 = vpop.xlane.xlu0 %6801
      %v6803 = vsel %vm1329, %v6765, 0.0
      %6804 = vadd.xlane.f32.xlu0 %v6803
      %v6805 = vpop.xlane.xlu0 %6804
      %v6806 = vsel %vm798, %v6766, 0.0
      %6807 = vadd.xlane.f32.xlu0 %v6806
      %v6808 = vpop.xlane.xlu0 %6807
      %v6809 = vsel %vm1329, %v6767, 0.0
      %6810 = vadd.xlane.f32.xlu0 %v6809
      %v6811 = vpop.xlane.xlu0 %6810
      %v6812 = vsel %vm798, %v6768, 0.0
      %6813 = vadd.xlane.f32.xlu0 %v6812
      %v6814 = vpop.xlane.xlu0 %6813
      %v6815 = vsel %vm1329, %v6769, 0.0
      %6816 = vadd.xlane.f32.xlu0 %v6815
      %v6817 = vpop.xlane.xlu0 %6816
      %v6818 = vadd.f32 %v6772, %v1382
      %v6819 = vadd.f32 %v6775, %v1386
      %v6820 = vadd.f32 %v6778, %v1393
      %v6821 = vadd.f32 %v6781, %v1397
      %v6822 = vadd.f32 %v6784, %v1404
      %v6823 = vadd.f32 %v6787, %v1408
      %v6824 = vadd.f32 %v6790, %v1415
      %v6825 = vadd.f32 %v6793, %v1419
      %v6826 = vadd.f32 %v6796, %v1426
      %v6827 = vadd.f32 %v6799, %v1430
      %v6828 = vadd.f32 %v6802, %v1437
      %v6829 = vadd.f32 %v6805, %v1441
      %v6830 = vadd.f32 %v6808, %v1448
      %v6831 = vadd.f32 %v6811, %v1452
      %v6832 = vadd.f32 %v6814, %v1459
      %v6833 = vadd.f32 %v6817, %v1463
      %6850 = vset.pattern.permute.xlu0 0
      %6851 = vperm.xlu0 %6850, %v6818
      %v6852 = vpop.permute.xlu0 %6851
      %6853 = vset.pattern.permute.xlu0 0
      %6854 = vperm.xlu0 %6853, %v6819
      %v6855 = vpop.permute.xlu0 %6854
      %6856 = vset.pattern.permute.xlu0 0
      %6857 = vperm.xlu0 %6856, %v6820
      %v6858 = vpop.permute.xlu0 %6857
      %6859 = vset.pattern.permute.xlu0 0
      %6860 = vperm.xlu0 %6859, %v6821
      %v6861 = vpop.permute.xlu0 %6860
      %6862 = vset.pattern.permute.xlu0 0
      %6863 = vperm.xlu0 %6862, %v6822
      %v6864 = vpop.permute.xlu0 %6863
      %6865 = vset.pattern.permute.xlu0 0
      %6866 = vperm.xlu0 %6865, %v6823
      %v6867 = vpop.permute.xlu0 %6866
      %6868 = vset.pattern.permute.xlu0 0
      %6869 = vperm.xlu0 %6868, %v6824
      %v6870 = vpop.permute.xlu0 %6869
      %6871 = vset.pattern.permute.xlu0 0
      %6872 = vperm.xlu0 %6871, %v6825
      %v6873 = vpop.permute.xlu0 %6872
      %6874 = vset.pattern.permute.xlu0 0
      %6875 = vperm.xlu0 %6874, %v6826
      %v6876 = vpop.permute.xlu0 %6875
      %6877 = vset.pattern.permute.xlu0 0
      %6878 = vperm.xlu0 %6877, %v6827
      %v6879 = vpop.permute.xlu0 %6878
      %6880 = vset.pattern.permute.xlu0 0
      %6881 = vperm.xlu0 %6880, %v6828
      %v6882 = vpop.permute.xlu0 %6881
      %6883 = vset.pattern.permute.xlu0 0
      %6884 = vperm.xlu0 %6883, %v6829
      %v6885 = vpop.permute.xlu0 %6884
      %6886 = vset.pattern.permute.xlu0 0
      %6887 = vperm.xlu0 %6886, %v6830
      %v6888 = vpop.permute.xlu0 %6887
      %6889 = vset.pattern.permute.xlu0 0
      %6890 = vperm.xlu0 %6889, %v6831
      %v6891 = vpop.permute.xlu0 %6890
      %6892 = vset.pattern.permute.xlu0 0
      %6893 = vperm.xlu0 %6892, %v6832
      %v6894 = vpop.permute.xlu0 %6893
      %6895 = vset.pattern.permute.xlu0 0
      %6896 = vperm.xlu0 %6895, %v6833
      %v6897 = vpop.permute.xlu0 %6896
      %v6898 = vlaneseq
      %v6899 = vshrl.u32 %v6898, 7
      %v6900 = vsub.s32 %v788, %v6899
      %v6901 = vrot.slane %v6852, %v6900
      %v6902 = vlaneseq
      %v6903 = vshrl.u32 %v6902, 7
      %v6904 = vsub.s32 %v1564, %v6903
      %v6905 = vrot.slane %v6855, %v6904
      %v6906 = vsel %vm1569, %v6905, %v6901
      %v6907 = vlaneseq
      %v6908 = vshrl.u32 %v6907, 7
      %v6909 = vsub.s32 %v788, %v6908
      %v6910 = vrot.slane %v6858, %v6909
      %v6911 = vlaneseq
      %v6912 = vshrl.u32 %v6911, 7
      %v6913 = vsub.s32 %v1564, %v6912
      %v6914 = vrot.slane %v6861, %v6913
      %v6915 = vsel %vm1569, %v6914, %v6910
      %v6916 = vlaneseq
      %v6917 = vshrl.u32 %v6916, 7
      %v6918 = vsub.s32 %v788, %v6917
      %v6919 = vrot.slane %v6864, %v6918
      %v6920 = vlaneseq
      %v6921 = vshrl.u32 %v6920, 7
      %v6922 = vsub.s32 %v1564, %v6921
      %v6923 = vrot.slane %v6867, %v6922
      %v6924 = vsel %vm1569, %v6923, %v6919
      %v6925 = vlaneseq
      %v6926 = vshrl.u32 %v6925, 7
      %v6927 = vsub.s32 %v788, %v6926
      %v6928 = vrot.slane %v6870, %v6927
      %v6929 = vlaneseq
      %v6930 = vshrl.u32 %v6929, 7
      %v6931 = vsub.s32 %v1564, %v6930
      %v6932 = vrot.slane %v6873, %v6931
      %v6933 = vsel %vm1569, %v6932, %v6928
      %v6934 = vlaneseq
      %v6935 = vshrl.u32 %v6934, 7
      %v6936 = vsub.s32 %v788, %v6935
      %v6937 = vrot.slane %v6876, %v6936
      %v6938 = vlaneseq
      %v6939 = vshrl.u32 %v6938, 7
      %v6940 = vsub.s32 %v1564, %v6939
      %v6941 = vrot.slane %v6879, %v6940
      %v6942 = vsel %vm1569, %v6941, %v6937
      %v6943 = vlaneseq
      %v6944 = vshrl.u32 %v6943, 7
      %v6945 = vsub.s32 %v788, %v6944
      %v6946 = vrot.slane %v6882, %v6945
      %v6947 = vlaneseq
      %v6948 = vshrl.u32 %v6947, 7
      %v6949 = vsub.s32 %v1564, %v6948
      %v6950 = vrot.slane %v6885, %v6949
      %v6951 = vsel %vm1569, %v6950, %v6946
      %v6952 = vlaneseq
      %v6953 = vshrl.u32 %v6952, 7
      %v6954 = vsub.s32 %v788, %v6953
      %v6955 = vrot.slane %v6888, %v6954
      %v6956 = vlaneseq
      %v6957 = vshrl.u32 %v6956, 7
      %v6958 = vsub.s32 %v1564, %v6957
      %v6959 = vrot.slane %v6891, %v6958
      %v6960 = vsel %vm1569, %v6959, %v6955
      %v6961 = vlaneseq
      %v6962 = vshrl.u32 %v6961, 7
      %v6963 = vsub.s32 %v788, %v6962
      %v6964 = vrot.slane %v6894, %v6963
      %v6965 = vlaneseq
      %v6966 = vshrl.u32 %v6965, 7
      %v6967 = vsub.s32 %v1564, %v6966
      %v6968 = vrot.slane %v6897, %v6967
      %v6969 = vsel %vm1569, %v6968, %v6964
      %v6970 = vsel %vm1634, %v6915, %v6906
      %v6971 = vsel %vm1636, %v6924, %v6970
      %v6972 = vsel %vm1638, %v6933, %v6971
      %v6973 = vsel %vm1640, %v6942, %v6972
      %v6974 = vsel %vm1642, %v6951, %v6973
      %v6975 = vsel %vm1644, %v6960, %v6974
      %v6976 = vsel %vm1646, %v6969, %v6975
      %v6978 = vsel %vm1649, %v6976, -inf
      %6979 = vmax.xlane.f32.xlu0 %v6978
      %v6980 = vpop.xlane.xlu0 %6979
      %v6982 = vlaneseq
      %v6983 = vshrl.u32 %v6982, 7
      %v6984 = vsub.s32 0, %v6983
      %v6985 = vrot.slane %v6980, %v6984
      %v6986 = vlaneseq
      %v6987 = vshrl.u32 %v6986, 7
      %v6988 = vsub.s32 1, %v6987
      %v6989 = vrot.slane %v6980, %v6988
      %v6990 = vlaneseq
      %v6991 = vshrl.u32 %v6990, 7
      %v6992 = vsub.s32 2, %v6991
      %v6993 = vrot.slane %v6980, %v6992
      %v6994 = vlaneseq
      %v6995 = vshrl.u32 %v6994, 7
      %v6996 = vsub.s32 3, %v6995
      %v6997 = vrot.slane %v6980, %v6996
      %v6998 = vlaneseq
      %v6999 = vshrl.u32 %v6998, 7
      %v7000 = vsub.s32 4, %v6999
      %v7001 = vrot.slane %v6980, %v7000
      %v7002 = vlaneseq
      %v7003 = vshrl.u32 %v7002, 7
      %v7004 = vsub.s32 5, %v7003
      %v7005 = vrot.slane %v6980, %v7004
      %v7006 = vlaneseq
      %v7007 = vshrl.u32 %v7006, 7
      %v7008 = vsub.s32 6, %v7007
      %v7009 = vrot.slane %v6980, %v7008
      %v7010 = vlaneseq
      %v7011 = vshrl.u32 %v7010, 7
      %v7012 = vsub.s32 7, %v7011
      %v7013 = vrot.slane %v6980, %v7012
      %v7022 = vsub.f32 %v6818, %v6985
      %v7023 = vsub.f32 %v6819, %v6985
      %v7024 = vsub.f32 %v6820, %v6989
      %v7025 = vsub.f32 %v6821, %v6989
      %v7026 = vsub.f32 %v6822, %v6993
      %v7027 = vsub.f32 %v6823, %v6993
      %v7028 = vsub.f32 %v6824, %v6997
      %v7029 = vsub.f32 %v6825, %v6997
      %v7030 = vsub.f32 %v6826, %v7001
      %v7031 = vsub.f32 %v6827, %v7001
      %v7032 = vsub.f32 %v6828, %v7005
      %v7033 = vsub.f32 %v6829, %v7005
      %v7034 = vsub.f32 %v6830, %v7009
      %v7035 = vsub.f32 %v6831, %v7009
      %v7036 = vsub.f32 %v6832, %v7013
      %v7037 = vsub.f32 %v6833, %v7013
      %v7038 = vmul.f32 %v7022, 1.442695
      %v7039 = vpow.pop %v7038
      %v7040 = vmul.f32 %v7023, 1.442695
      %v7041 = vpow.pop %v7040
      %v7042 = vmul.f32 %v7024, 1.442695
      %v7043 = vpow.pop %v7042
      %v7044 = vmul.f32 %v7025, 1.442695
      %v7045 = vpow.pop %v7044
      %v7046 = vmul.f32 %v7026, 1.442695
      %v7047 = vpow.pop %v7046
      %v7048 = vmul.f32 %v7027, 1.442695
      %v7049 = vpow.pop %v7048
      %v7050 = vmul.f32 %v7028, 1.442695
      %v7051 = vpow.pop %v7050
      %v7052 = vmul.f32 %v7029, 1.442695
      %v7053 = vpow.pop %v7052
      %v7054 = vmul.f32 %v7030, 1.442695
      %v7055 = vpow.pop %v7054
      %v7056 = vmul.f32 %v7031, 1.442695
      %v7057 = vpow.pop %v7056
      %v7058 = vmul.f32 %v7032, 1.442695
      %v7059 = vpow.pop %v7058
      %v7060 = vmul.f32 %v7033, 1.442695
      %v7061 = vpow.pop %v7060
      %v7062 = vmul.f32 %v7034, 1.442695
      %v7063 = vpow.pop %v7062
      %v7064 = vmul.f32 %v7035, 1.442695
      %v7065 = vpow.pop %v7064
      %v7066 = vmul.f32 %v7036, 1.442695
      %v7067 = vpow.pop %v7066
      %v7068 = vmul.f32 %v7037, 1.442695
      %v7069 = vpow.pop %v7068
      %7086 = vset.pattern.permute.xlu0 0
      %7087 = vperm.xlu0 %7086, %v7039
      %v7088 = vpop.permute.xlu0 %7087
      %7089 = vset.pattern.permute.xlu0 0
      %7090 = vperm.xlu0 %7089, %v7041
      %v7091 = vpop.permute.xlu0 %7090
      %7092 = vset.pattern.permute.xlu0 0
      %7093 = vperm.xlu0 %7092, %v7043
      %v7094 = vpop.permute.xlu0 %7093
      %7095 = vset.pattern.permute.xlu0 0
      %7096 = vperm.xlu0 %7095, %v7045
      %v7097 = vpop.permute.xlu0 %7096
      %7098 = vset.pattern.permute.xlu0 0
      %7099 = vperm.xlu0 %7098, %v7047
      %v7100 = vpop.permute.xlu0 %7099
      %7101 = vset.pattern.permute.xlu0 0
      %7102 = vperm.xlu0 %7101, %v7049
      %v7103 = vpop.permute.xlu0 %7102
      %7104 = vset.pattern.permute.xlu0 0
      %7105 = vperm.xlu0 %7104, %v7051
      %v7106 = vpop.permute.xlu0 %7105
      %7107 = vset.pattern.permute.xlu0 0
      %7108 = vperm.xlu0 %7107, %v7053
      %v7109 = vpop.permute.xlu0 %7108
      %7110 = vset.pattern.permute.xlu0 0
      %7111 = vperm.xlu0 %7110, %v7055
      %v7112 = vpop.permute.xlu0 %7111
      %7113 = vset.pattern.permute.xlu0 0
      %7114 = vperm.xlu0 %7113, %v7057
      %v7115 = vpop.permute.xlu0 %7114
      %7116 = vset.pattern.permute.xlu0 0
      %7117 = vperm.xlu0 %7116, %v7059
      %v7118 = vpop.permute.xlu0 %7117
      %7119 = vset.pattern.permute.xlu0 0
      %7120 = vperm.xlu0 %7119, %v7061
      %v7121 = vpop.permute.xlu0 %7120
      %7122 = vset.pattern.permute.xlu0 0
      %7123 = vperm.xlu0 %7122, %v7063
      %v7124 = vpop.permute.xlu0 %7123
      %7125 = vset.pattern.permute.xlu0 0
      %7126 = vperm.xlu0 %7125, %v7065
      %v7127 = vpop.permute.xlu0 %7126
      %7128 = vset.pattern.permute.xlu0 0
      %7129 = vperm.xlu0 %7128, %v7067
      %v7130 = vpop.permute.xlu0 %7129
      %7131 = vset.pattern.permute.xlu0 0
      %7132 = vperm.xlu0 %7131, %v7069
      %v7133 = vpop.permute.xlu0 %7132
      %v7134 = vlaneseq
      %v7135 = vshrl.u32 %v7134, 7
      %v7136 = vsub.s32 %v788, %v7135
      %v7137 = vrot.slane %v7088, %v7136
      %v7138 = vlaneseq
      %v7139 = vshrl.u32 %v7138, 7
      %v7140 = vsub.s32 %v1564, %v7139
      %v7141 = vrot.slane %v7091, %v7140
      %v7142 = vsel %vm1569, %v7141, %v7137
      %v7143 = vlaneseq
      %v7144 = vshrl.u32 %v7143, 7
      %v7145 = vsub.s32 %v788, %v7144
      %v7146 = vrot.slane %v7094, %v7145
      %v7147 = vlaneseq
      %v7148 = vshrl.u32 %v7147, 7
      %v7149 = vsub.s32 %v1564, %v7148
      %v7150 = vrot.slane %v7097, %v7149
      %v7151 = vsel %vm1569, %v7150, %v7146
      %v7152 = vlaneseq
      %v7153 = vshrl.u32 %v7152, 7
      %v7154 = vsub.s32 %v788, %v7153
      %v7155 = vrot.slane %v7100, %v7154
      %v7156 = vlaneseq
      %v7157 = vshrl.u32 %v7156, 7
      %v7158 = vsub.s32 %v1564, %v7157
      %v7159 = vrot.slane %v7103, %v7158
      %v7160 = vsel %vm1569, %v7159, %v7155
      %v7161 = vlaneseq
      %v7162 = vshrl.u32 %v7161, 7
      %v7163 = vsub.s32 %v788, %v7162
      %v7164 = vrot.slane %v7106, %v7163
      %v7165 = vlaneseq
      %v7166 = vshrl.u32 %v7165, 7
      %v7167 = vsub.s32 %v1564, %v7166
      %v7168 = vrot.slane %v7109, %v7167
      %v7169 = vsel %vm1569, %v7168, %v7164
      %v7170 = vlaneseq
      %v7171 = vshrl.u32 %v7170, 7
      %v7172 = vsub.s32 %v788, %v7171
      %v7173 = vrot.slane %v7112, %v7172
      %v7174 = vlaneseq
      %v7175 = vshrl.u32 %v7174, 7
      %v7176 = vsub.s32 %v1564, %v7175
      %v7177 = vrot.slane %v7115, %v7176
      %v7178 = vsel %vm1569, %v7177, %v7173
      %v7179 = vlaneseq
      %v7180 = vshrl.u32 %v7179, 7
      %v7181 = vsub.s32 %v788, %v7180
      %v7182 = vrot.slane %v7118, %v7181
      %v7183 = vlaneseq
      %v7184 = vshrl.u32 %v7183, 7
      %v7185 = vsub.s32 %v1564, %v7184
      %v7186 = vrot.slane %v7121, %v7185
      %v7187 = vsel %vm1569, %v7186, %v7182
      %v7188 = vlaneseq
      %v7189 = vshrl.u32 %v7188, 7
      %v7190 = vsub.s32 %v788, %v7189
      %v7191 = vrot.slane %v7124, %v7190
      %v7192 = vlaneseq
      %v7193 = vshrl.u32 %v7192, 7
      %v7194 = vsub.s32 %v1564, %v7193
      %v7195 = vrot.slane %v7127, %v7194
      %v7196 = vsel %vm1569, %v7195, %v7191
      %v7197 = vlaneseq
      %v7198 = vshrl.u32 %v7197, 7
      %v7199 = vsub.s32 %v788, %v7198
      %v7200 = vrot.slane %v7130, %v7199
      %v7201 = vlaneseq
      %v7202 = vshrl.u32 %v7201, 7
      %v7203 = vsub.s32 %v1564, %v7202
      %v7204 = vrot.slane %v7133, %v7203
      %v7205 = vsel %vm1569, %v7204, %v7200
      %v7206 = vsel %vm1634, %v7151, %v7142
      %v7207 = vsel %vm1636, %v7160, %v7206
      %v7208 = vsel %vm1638, %v7169, %v7207
      %v7209 = vsel %vm1640, %v7178, %v7208
      %v7210 = vsel %vm1642, %v7187, %v7209
      %v7211 = vsel %vm1644, %v7196, %v7210
      %v7212 = vsel %vm1646, %v7205, %v7211
      %v7214 = vsel %vm1649, %v7212, 0.0
      %7215 = vadd.xlane.f32.xlu0 %v7214
      %v7216 = vpop.xlane.xlu0 %7215
      %v7217 = vrcp.pop %v7216
      %v7218 = vmul.f32 1.0, %v7217
      %v7220 = vlaneseq
      %v7221 = vshrl.u32 %v7220, 7
      %v7222 = vsub.s32 0, %v7221
      %v7223 = vrot.slane %v7218, %v7222
      %v7224 = vlaneseq
      %v7225 = vshrl.u32 %v7224, 7
      %v7226 = vsub.s32 1, %v7225
      %v7227 = vrot.slane %v7218, %v7226
      %v7228 = vlaneseq
      %v7229 = vshrl.u32 %v7228, 7
      %v7230 = vsub.s32 2, %v7229
      %v7231 = vrot.slane %v7218, %v7230
      %v7232 = vlaneseq
      %v7233 = vshrl.u32 %v7232, 7
      %v7234 = vsub.s32 3, %v7233
      %v7235 = vrot.slane %v7218, %v7234
      %v7236 = vlaneseq
      %v7237 = vshrl.u32 %v7236, 7
      %v7238 = vsub.s32 4, %v7237
      %v7239 = vrot.slane %v7218, %v7238
      %v7240 = vlaneseq
      %v7241 = vshrl.u32 %v7240, 7
      %v7242 = vsub.s32 5, %v7241
      %v7243 = vrot.slane %v7218, %v7242
      %v7244 = vlaneseq
      %v7245 = vshrl.u32 %v7244, 7
      %v7246 = vsub.s32 6, %v7245
      %v7247 = vrot.slane %v7218, %v7246
      %v7248 = vlaneseq
      %v7249 = vshrl.u32 %v7248, 7
      %v7250 = vsub.s32 7, %v7249
      %v7251 = vrot.slane %v7218, %v7250
      %v7260 = vmul.f32 %v7039, %v7223
      %v7261 = vmul.f32 %v7041, %v7223
      %v7262 = vmul.f32 %v7043, %v7227
      %v7263 = vmul.f32 %v7045, %v7227
      %v7264 = vmul.f32 %v7047, %v7231
      %v7265 = vmul.f32 %v7049, %v7231
      %v7266 = vmul.f32 %v7051, %v7235
      %v7267 = vmul.f32 %v7053, %v7235
      %v7268 = vmul.f32 %v7055, %v7239
      %v7269 = vmul.f32 %v7057, %v7239
      %v7270 = vmul.f32 %v7059, %v7243
      %v7271 = vmul.f32 %v7061, %v7243
      %v7272 = vmul.f32 %v7063, %v7247
      %v7273 = vmul.f32 %v7065, %v7247
      %v7274 = vmul.f32 %v7067, %v7251
      %v7275 = vmul.f32 %v7069, %v7251
      %7277 = vset.pattern.permute.xlu0 0
      %7278 = vperm.xlu0 %7277, %v7260
      %v7279 = vpop.permute.xlu0 %7278
      %7282 = vset.pattern.permute.xlu0 0
      %7283 = vperm.xlu0 %7282, %v7261
      %v7284 = vpop.permute.xlu0 %7283
      %7287 = vset.pattern.permute.xlu0 0
      %7288 = vperm.xlu0 %7287, %v7262
      %v7289 = vpop.permute.xlu0 %7288
      %7292 = vset.pattern.permute.xlu0 0
      %7293 = vperm.xlu0 %7292, %v7263
      %v7294 = vpop.permute.xlu0 %7293
      %7297 = vset.pattern.permute.xlu0 0
      %7298 = vperm.xlu0 %7297, %v7264
      %v7299 = vpop.permute.xlu0 %7298
      %7302 = vset.pattern.permute.xlu0 0
      %7303 = vperm.xlu0 %7302, %v7265
      %v7304 = vpop.permute.xlu0 %7303
      %7307 = vset.pattern.permute.xlu0 0
      %7308 = vperm.xlu0 %7307, %v7266
      %v7309 = vpop.permute.xlu0 %7308
      %7312 = vset.pattern.permute.xlu0 0
      %7313 = vperm.xlu0 %7312, %v7267
      %v7314 = vpop.permute.xlu0 %7313
      %7317 = vset.pattern.permute.xlu0 0
      %7318 = vperm.xlu0 %7317, %v7268
      %v7319 = vpop.permute.xlu0 %7318
      %7322 = vset.pattern.permute.xlu0 0
      %7323 = vperm.xlu0 %7322, %v7269
      %v7324 = vpop.permute.xlu0 %7323
      %7327 = vset.pattern.permute.xlu0 0
      %7328 = vperm.xlu0 %7327, %v7270
      %v7329 = vpop.permute.xlu0 %7328
      %7332 = vset.pattern.permute.xlu0 0
      %7333 = vperm.xlu0 %7332, %v7271
      %v7334 = vpop.permute.xlu0 %7333
      %7337 = vset.pattern.permute.xlu0 0
      %7338 = vperm.xlu0 %7337, %v7272
      %v7339 = vpop.permute.xlu0 %7338
      %7342 = vset.pattern.permute.xlu0 0
      %7343 = vperm.xlu0 %7342, %v7273
      %v7344 = vpop.permute.xlu0 %7343
      %7347 = vset.pattern.permute.xlu0 0
      %7348 = vperm.xlu0 %7347, %v7274
      %v7349 = vpop.permute.xlu0 %7348
      %7352 = vset.pattern.permute.xlu0 0
      %7353 = vperm.xlu0 %7352, %v7275
      %v7354 = vpop.permute.xlu0 %7353
      %v7356 = vmul.f32 %v7279, %v731
      %v7357 = vmul.f32 %v7284, %v732
      %v7358 = vmul.f32 %v7289, %v733
      %v7359 = vmul.f32 %v7294, %v734
      %v7360 = vmul.f32 %v7299, %v735
      %v7361 = vmul.f32 %v7304, %v736
      %v7362 = vmul.f32 %v7309, %v737
      %v7363 = vmul.f32 %v7314, %v738
      %v7364 = vmul.f32 %v7319, %v739
      %v7365 = vmul.f32 %v7324, %v740
      %v7366 = vmul.f32 %v7329, %v741
      %v7367 = vmul.f32 %v7334, %v742
      %v7368 = vmul.f32 %v7339, %v743
      %v7369 = vmul.f32 %v7344, %v744
      %v7370 = vmul.f32 %v7349, %v745
      %v7371 = vmul.f32 %v7354, %v746
      %v7372 = vsel %vm2044, %v7356, 0.0
      %v7373 = vsel %vm2046, %v7357, 0.0
      %v7374 = vadd.f32 %v7372, %v7373
      %v7375 = vrot.slane %v7374, 4
      %v7376 = vadd.f32 %v7374, %v7375
      %v7377 = vrot.slane %v7376, 2
      %v7378 = vadd.f32 %v7376, %v7377
      %v7379 = vrot.slane %v7378, 1
      %v7380 = vadd.f32 %v7378, %v7379
      %v7381 = vsel %vm2044, %v7358, 0.0
      %v7382 = vsel %vm2046, %v7359, 0.0
      %v7383 = vadd.f32 %v7381, %v7382
      %v7384 = vrot.slane %v7383, 4
      %v7385 = vadd.f32 %v7383, %v7384
      %v7386 = vrot.slane %v7385, 2
      %v7387 = vadd.f32 %v7385, %v7386
      %v7388 = vrot.slane %v7387, 1
      %v7389 = vadd.f32 %v7387, %v7388
      %v7390 = vsel %vm2044, %v7360, 0.0
      %v7391 = vsel %vm2046, %v7361, 0.0
      %v7392 = vadd.f32 %v7390, %v7391
      %v7393 = vrot.slane %v7392, 4
      %v7394 = vadd.f32 %v7392, %v7393
      %v7395 = vrot.slane %v7394, 2
      %v7396 = vadd.f32 %v7394, %v7395
      %v7397 = vrot.slane %v7396, 1
      %v7398 = vadd.f32 %v7396, %v7397
      %v7399 = vsel %vm2044, %v7362, 0.0
      %v7400 = vsel %vm2046, %v7363, 0.0
      %v7401 = vadd.f32 %v7399, %v7400
      %v7402 = vrot.slane %v7401, 4
      %v7403 = vadd.f32 %v7401, %v7402
      %v7404 = vrot.slane %v7403, 2
      %v7405 = vadd.f32 %v7403, %v7404
      %v7406 = vrot.slane %v7405, 1
      %v7407 = vadd.f32 %v7405, %v7406
      %v7408 = vsel %vm2044, %v7364, 0.0
      %v7409 = vsel %vm2046, %v7365, 0.0
      %v7410 = vadd.f32 %v7408, %v7409
      %v7411 = vrot.slane %v7410, 4
      %v7412 = vadd.f32 %v7410, %v7411
      %v7413 = vrot.slane %v7412, 2
      %v7414 = vadd.f32 %v7412, %v7413
      %v7415 = vrot.slane %v7414, 1
      %v7416 = vadd.f32 %v7414, %v7415
      %v7417 = vsel %vm2044, %v7366, 0.0
      %v7418 = vsel %vm2046, %v7367, 0.0
      %v7419 = vadd.f32 %v7417, %v7418
      %v7420 = vrot.slane %v7419, 4
      %v7421 = vadd.f32 %v7419, %v7420
      %v7422 = vrot.slane %v7421, 2
      %v7423 = vadd.f32 %v7421, %v7422
      %v7424 = vrot.slane %v7423, 1
      %v7425 = vadd.f32 %v7423, %v7424
      %v7426 = vsel %vm2044, %v7368, 0.0
      %v7427 = vsel %vm2046, %v7369, 0.0
      %v7428 = vadd.f32 %v7426, %v7427
      %v7429 = vrot.slane %v7428, 4
      %v7430 = vadd.f32 %v7428, %v7429
      %v7431 = vrot.slane %v7430, 2
      %v7432 = vadd.f32 %v7430, %v7431
      %v7433 = vrot.slane %v7432, 1
      %v7434 = vadd.f32 %v7432, %v7433
      %v7435 = vsel %vm2044, %v7370, 0.0
      %v7436 = vsel %vm2046, %v7371, 0.0
      %v7437 = vadd.f32 %v7435, %v7436
      %v7438 = vrot.slane %v7437, 4
      %v7439 = vadd.f32 %v7437, %v7438
      %v7440 = vrot.slane %v7439, 2
      %v7441 = vadd.f32 %v7439, %v7440
      %v7442 = vrot.slane %v7441, 1
      %v7443 = vadd.f32 %v7441, %v7442
      %v7445 = vlaneseq
      %v7446 = vshrl.u32 %v7445, 7
      %v7447 = vsub.s32 0, %v7446
      %v7448 = vrot.slane %v6033, %v7447
      %7450 = vbcast.lane.b32.xlu0 %v7448, 256
      %v7451 = vpop.permute.xlu0 %7450
      %s7453 = sor.u32 256, 8
      %7454 = vbcast.lane.b32.xlu0 %v7448, %s7453
      %v7455 = vpop.permute.xlu0 %7454
      %v7456 = vlaneseq
      %v7457 = vshrl.u32 %v7456, 7
      %v7458 = vsub.s32 1, %v7457
      %v7459 = vrot.slane %v6033, %v7458
      %7461 = vbcast.lane.b32.xlu0 %v7459, 256
      %v7462 = vpop.permute.xlu0 %7461
      %s7464 = sor.u32 256, 8
      %7465 = vbcast.lane.b32.xlu0 %v7459, %s7464
      %v7466 = vpop.permute.xlu0 %7465
      %v7467 = vlaneseq
      %v7468 = vshrl.u32 %v7467, 7
      %v7469 = vsub.s32 2, %v7468
      %v7470 = vrot.slane %v6033, %v7469
      %7472 = vbcast.lane.b32.xlu0 %v7470, 256
      %v7473 = vpop.permute.xlu0 %7472
      %s7475 = sor.u32 256, 8
      %7476 = vbcast.lane.b32.xlu0 %v7470, %s7475
      %v7477 = vpop.permute.xlu0 %7476
      %v7478 = vlaneseq
      %v7479 = vshrl.u32 %v7478, 7
      %v7480 = vsub.s32 3, %v7479
      %v7481 = vrot.slane %v6033, %v7480
      %7483 = vbcast.lane.b32.xlu0 %v7481, 256
      %v7484 = vpop.permute.xlu0 %7483
      %s7486 = sor.u32 256, 8
      %7487 = vbcast.lane.b32.xlu0 %v7481, %s7486
      %v7488 = vpop.permute.xlu0 %7487
      %v7489 = vlaneseq
      %v7490 = vshrl.u32 %v7489, 7
      %v7491 = vsub.s32 4, %v7490
      %v7492 = vrot.slane %v6033, %v7491
      %7494 = vbcast.lane.b32.xlu0 %v7492, 256
      %v7495 = vpop.permute.xlu0 %7494
      %s7497 = sor.u32 256, 8
      %7498 = vbcast.lane.b32.xlu0 %v7492, %s7497
      %v7499 = vpop.permute.xlu0 %7498
      %v7500 = vlaneseq
      %v7501 = vshrl.u32 %v7500, 7
      %v7502 = vsub.s32 5, %v7501
      %v7503 = vrot.slane %v6033, %v7502
      %7505 = vbcast.lane.b32.xlu0 %v7503, 256
      %v7506 = vpop.permute.xlu0 %7505
      %s7508 = sor.u32 256, 8
      %7509 = vbcast.lane.b32.xlu0 %v7503, %s7508
      %v7510 = vpop.permute.xlu0 %7509
      %v7511 = vlaneseq
      %v7512 = vshrl.u32 %v7511, 7
      %v7513 = vsub.s32 6, %v7512
      %v7514 = vrot.slane %v6033, %v7513
      %7516 = vbcast.lane.b32.xlu0 %v7514, 256
      %v7517 = vpop.permute.xlu0 %7516
      %s7519 = sor.u32 256, 8
      %7520 = vbcast.lane.b32.xlu0 %v7514, %s7519
      %v7521 = vpop.permute.xlu0 %7520
      %v7522 = vlaneseq
      %v7523 = vshrl.u32 %v7522, 7
      %v7524 = vsub.s32 7, %v7523
      %v7525 = vrot.slane %v6033, %v7524
      %7527 = vbcast.lane.b32.xlu0 %v7525, 256
      %v7528 = vpop.permute.xlu0 %7527
      %s7530 = sor.u32 256, 8
      %7531 = vbcast.lane.b32.xlu0 %v7525, %s7530
      %v7532 = vpop.permute.xlu0 %7531
      %v7549 = vmin.f32 %v7260, %v7451
      %v7550 = vmin.f32 %v7261, %v7455
      %v7551 = vmin.f32 %v7262, %v7462
      %v7552 = vmin.f32 %v7263, %v7466
      %v7553 = vmin.f32 %v7264, %v7473
      %v7554 = vmin.f32 %v7265, %v7477
      %v7555 = vmin.f32 %v7266, %v7484
      %v7556 = vmin.f32 %v7267, %v7488
      %v7557 = vmin.f32 %v7268, %v7495
      %v7558 = vmin.f32 %v7269, %v7499
      %v7559 = vmin.f32 %v7270, %v7506
      %v7560 = vmin.f32 %v7271, %v7510
      %v7561 = vmin.f32 %v7272, %v7517
      %v7562 = vmin.f32 %v7273, %v7521
      %v7563 = vmin.f32 %v7274, %v7528
      %v7564 = vmin.f32 %v7275, %v7532
      %7581 = vset.pattern.permute.xlu0 0
      %7582 = vperm.xlu0 %7581, %v7549
      %v7583 = vpop.permute.xlu0 %7582
      %7584 = vset.pattern.permute.xlu0 0
      %7585 = vperm.xlu0 %7584, %v7550
      %v7586 = vpop.permute.xlu0 %7585
      %7587 = vset.pattern.permute.xlu0 0
      %7588 = vperm.xlu0 %7587, %v7551
      %v7589 = vpop.permute.xlu0 %7588
      %7590 = vset.pattern.permute.xlu0 0
      %7591 = vperm.xlu0 %7590, %v7552
      %v7592 = vpop.permute.xlu0 %7591
      %7593 = vset.pattern.permute.xlu0 0
      %7594 = vperm.xlu0 %7593, %v7553
      %v7595 = vpop.permute.xlu0 %7594
      %7596 = vset.pattern.permute.xlu0 0
      %7597 = vperm.xlu0 %7596, %v7554
      %v7598 = vpop.permute.xlu0 %7597
      %7599 = vset.pattern.permute.xlu0 0
      %7600 = vperm.xlu0 %7599, %v7555
      %v7601 = vpop.permute.xlu0 %7600
      %7602 = vset.pattern.permute.xlu0 0
      %7603 = vperm.xlu0 %7602, %v7556
      %v7604 = vpop.permute.xlu0 %7603
      %7605 = vset.pattern.permute.xlu0 0
      %7606 = vperm.xlu0 %7605, %v7557
      %v7607 = vpop.permute.xlu0 %7606
      %7608 = vset.pattern.permute.xlu0 0
      %7609 = vperm.xlu0 %7608, %v7558
      %v7610 = vpop.permute.xlu0 %7609
      %7611 = vset.pattern.permute.xlu0 0
      %7612 = vperm.xlu0 %7611, %v7559
      %v7613 = vpop.permute.xlu0 %7612
      %7614 = vset.pattern.permute.xlu0 0
      %7615 = vperm.xlu0 %7614, %v7560
      %v7616 = vpop.permute.xlu0 %7615
      %7617 = vset.pattern.permute.xlu0 0
      %7618 = vperm.xlu0 %7617, %v7561
      %v7619 = vpop.permute.xlu0 %7618
      %7620 = vset.pattern.permute.xlu0 0
      %7621 = vperm.xlu0 %7620, %v7562
      %v7622 = vpop.permute.xlu0 %7621
      %7623 = vset.pattern.permute.xlu0 0
      %7624 = vperm.xlu0 %7623, %v7563
      %v7625 = vpop.permute.xlu0 %7624
      %7626 = vset.pattern.permute.xlu0 0
      %7627 = vperm.xlu0 %7626, %v7564
      %v7628 = vpop.permute.xlu0 %7627
      %v7629 = vlaneseq
      %v7630 = vshrl.u32 %v7629, 7
      %v7631 = vsub.s32 %v788, %v7630
      %v7632 = vrot.slane %v7583, %v7631
      %v7633 = vlaneseq
      %v7634 = vshrl.u32 %v7633, 7
      %v7635 = vsub.s32 %v1564, %v7634
      %v7636 = vrot.slane %v7586, %v7635
      %v7637 = vsel %vm1569, %v7636, %v7632
      %v7638 = vlaneseq
      %v7639 = vshrl.u32 %v7638, 7
      %v7640 = vsub.s32 %v788, %v7639
      %v7641 = vrot.slane %v7589, %v7640
      %v7642 = vlaneseq
      %v7643 = vshrl.u32 %v7642, 7
      %v7644 = vsub.s32 %v1564, %v7643
      %v7645 = vrot.slane %v7592, %v7644
      %v7646 = vsel %vm1569, %v7645, %v7641
      %v7647 = vlaneseq
      %v7648 = vshrl.u32 %v7647, 7
      %v7649 = vsub.s32 %v788, %v7648
      %v7650 = vrot.slane %v7595, %v7649
      %v7651 = vlaneseq
      %v7652 = vshrl.u32 %v7651, 7
      %v7653 = vsub.s32 %v1564, %v7652
      %v7654 = vrot.slane %v7598, %v7653
      %v7655 = vsel %vm1569, %v7654, %v7650
      %v7656 = vlaneseq
      %v7657 = vshrl.u32 %v7656, 7
      %v7658 = vsub.s32 %v788, %v7657
      %v7659 = vrot.slane %v7601, %v7658
      %v7660 = vlaneseq
      %v7661 = vshrl.u32 %v7660, 7
      %v7662 = vsub.s32 %v1564, %v7661
      %v7663 = vrot.slane %v7604, %v7662
      %v7664 = vsel %vm1569, %v7663, %v7659
      %v7665 = vlaneseq
      %v7666 = vshrl.u32 %v7665, 7
      %v7667 = vsub.s32 %v788, %v7666
      %v7668 = vrot.slane %v7607, %v7667
      %v7669 = vlaneseq
      %v7670 = vshrl.u32 %v7669, 7
      %v7671 = vsub.s32 %v1564, %v7670
      %v7672 = vrot.slane %v7610, %v7671
      %v7673 = vsel %vm1569, %v7672, %v7668
      %v7674 = vlaneseq
      %v7675 = vshrl.u32 %v7674, 7
      %v7676 = vsub.s32 %v788, %v7675
      %v7677 = vrot.slane %v7613, %v7676
      %v7678 = vlaneseq
      %v7679 = vshrl.u32 %v7678, 7
      %v7680 = vsub.s32 %v1564, %v7679
      %v7681 = vrot.slane %v7616, %v7680
      %v7682 = vsel %vm1569, %v7681, %v7677
      %v7683 = vlaneseq
      %v7684 = vshrl.u32 %v7683, 7
      %v7685 = vsub.s32 %v788, %v7684
      %v7686 = vrot.slane %v7619, %v7685
      %v7687 = vlaneseq
      %v7688 = vshrl.u32 %v7687, 7
      %v7689 = vsub.s32 %v1564, %v7688
      %v7690 = vrot.slane %v7622, %v7689
      %v7691 = vsel %vm1569, %v7690, %v7686
      %v7692 = vlaneseq
      %v7693 = vshrl.u32 %v7692, 7
      %v7694 = vsub.s32 %v788, %v7693
      %v7695 = vrot.slane %v7625, %v7694
      %v7696 = vlaneseq
      %v7697 = vshrl.u32 %v7696, 7
      %v7698 = vsub.s32 %v1564, %v7697
      %v7699 = vrot.slane %v7628, %v7698
      %v7700 = vsel %vm1569, %v7699, %v7695
      %v7701 = vsel %vm1634, %v7646, %v7637
      %v7702 = vsel %vm1636, %v7655, %v7701
      %v7703 = vsel %vm1638, %v7664, %v7702
      %v7704 = vsel %vm1640, %v7673, %v7703
      %v7705 = vsel %vm1642, %v7682, %v7704
      %v7706 = vsel %vm1644, %v7691, %v7705
      %v7707 = vsel %vm1646, %v7700, %v7706
      %v7709 = vsel %vm1649, %v7707, 0.0
      %7710 = vadd.xlane.f32.xlu0 %v7709
      %v7711 = vpop.xlane.xlu0 %7710
      %v7712 = vlaneseq
      %v7713 = vshrl.u32 %v7712, 7
      %v7714 = vsub.s32 %v788, %v7713
      %v7715 = vrot.slane %v7279, %v7714
      %v7716 = vlaneseq
      %v7717 = vshrl.u32 %v7716, 7
      %v7718 = vsub.s32 %v1564, %v7717
      %v7719 = vrot.slane %v7284, %v7718
      %v7720 = vsel %vm1569, %v7719, %v7715
      %v7721 = vlaneseq
      %v7722 = vshrl.u32 %v7721, 7
      %v7723 = vsub.s32 %v788, %v7722
      %v7724 = vrot.slane %v7289, %v7723
      %v7725 = vlaneseq
      %v7726 = vshrl.u32 %v7725, 7
      %v7727 = vsub.s32 %v1564, %v7726
      %v7728 = vrot.slane %v7294, %v7727
      %v7729 = vsel %vm1569, %v7728, %v7724
      %v7730 = vlaneseq
      %v7731 = vshrl.u32 %v7730, 7
      %v7732 = vsub.s32 %v788, %v7731
      %v7733 = vrot.slane %v7299, %v7732
      %v7734 = vlaneseq
      %v7735 = vshrl.u32 %v7734, 7
      %v7736 = vsub.s32 %v1564, %v7735
      %v7737 = vrot.slane %v7304, %v7736
      %v7738 = vsel %vm1569, %v7737, %v7733
      %v7739 = vlaneseq
      %v7740 = vshrl.u32 %v7739, 7
      %v7741 = vsub.s32 %v788, %v7740
      %v7742 = vrot.slane %v7309, %v7741
      %v7743 = vlaneseq
      %v7744 = vshrl.u32 %v7743, 7
      %v7745 = vsub.s32 %v1564, %v7744
      %v7746 = vrot.slane %v7314, %v7745
      %v7747 = vsel %vm1569, %v7746, %v7742
      %v7748 = vlaneseq
      %v7749 = vshrl.u32 %v7748, 7
      %v7750 = vsub.s32 %v788, %v7749
      %v7751 = vrot.slane %v7319, %v7750
      %v7752 = vlaneseq
      %v7753 = vshrl.u32 %v7752, 7
      %v7754 = vsub.s32 %v1564, %v7753
      %v7755 = vrot.slane %v7324, %v7754
      %v7756 = vsel %vm1569, %v7755, %v7751
      %v7757 = vlaneseq
      %v7758 = vshrl.u32 %v7757, 7
      %v7759 = vsub.s32 %v788, %v7758
      %v7760 = vrot.slane %v7329, %v7759
      %v7761 = vlaneseq
      %v7762 = vshrl.u32 %v7761, 7
      %v7763 = vsub.s32 %v1564, %v7762
      %v7764 = vrot.slane %v7334, %v7763
      %v7765 = vsel %vm1569, %v7764, %v7760
      %v7766 = vlaneseq
      %v7767 = vshrl.u32 %v7766, 7
      %v7768 = vsub.s32 %v788, %v7767
      %v7769 = vrot.slane %v7339, %v7768
      %v7770 = vlaneseq
      %v7771 = vshrl.u32 %v7770, 7
      %v7772 = vsub.s32 %v1564, %v7771
      %v7773 = vrot.slane %v7344, %v7772
      %v7774 = vsel %vm1569, %v7773, %v7769
      %v7775 = vlaneseq
      %v7776 = vshrl.u32 %v7775, 7
      %v7777 = vsub.s32 %v788, %v7776
      %v7778 = vrot.slane %v7349, %v7777
      %v7779 = vlaneseq
      %v7780 = vshrl.u32 %v7779, 7
      %v7781 = vsub.s32 %v1564, %v7780
      %v7782 = vrot.slane %v7354, %v7781
      %v7783 = vsel %vm1569, %v7782, %v7778
      %v7784 = vsel %vm1634, %v7729, %v7720
      %v7785 = vsel %vm1636, %v7738, %v7784
      %v7786 = vsel %vm1638, %v7747, %v7785
      %v7787 = vsel %vm1640, %v7756, %v7786
      %v7788 = vsel %vm1642, %v7765, %v7787
      %v7789 = vsel %vm1644, %v7774, %v7788
      %v7790 = vsel %vm1646, %v7783, %v7789
      %v7792 = vadd.f32 %v6033, %v7790
      %v7793 = vpack.c.bf16 %v7380, %v7380
      %v7794 = vpack.c.bf16 %v7389, %v7389
      %v7795 = vpack.c.bf16 %v7398, %v7398
      %v7796 = vpack.c.bf16 %v7407, %v7407
      %v7797 = vpack.c.bf16 %v7416, %v7416
      %v7798 = vpack.c.bf16 %v7425, %v7425
      %v7799 = vpack.c.bf16 %v7434, %v7434
      %v7800 = vpack.c.bf16 %v7443, %v7443
      %v7801 = vpack.c.bf16 %v6436, %v6436
      %7803 = vrot.lane.b32.xlu0 %v7801, 80
      %v7804 = vpop.permute.xlu0 %7803
      %v7806 = vsel %vm798, %v7804, 0
      %7808 = vmatprep.subr.bf16.mxu0 0
      %7809 = vmatpush1.bf16.msra.mxu0 %v2483
      %7810 = vmatprep.subr.bf16.mxu0 0
      %7811 = vmatpush1.bf16.msra.mxu0 0
      %7812 = vmatprep.subr.bf16.mxu0 0
      %7813 = vmatpush1.bf16.msra.mxu0 0
      %7814 = vmatprep.subr.bf16.mxu0 0
      %7815 = vmatpush1.bf16.msra.mxu0 0
      %7816 = vmatprep.subr.bf16.mxu0 0
      %7817 = vmatpush1.bf16.msra.mxu0 0
      %7818 = vmatprep.subr.bf16.mxu0 0
      %7819 = vmatpush1.bf16.msra.mxu0 0
      %7820 = vmatprep.subr.bf16.mxu0 0
      %7821 = vmatpush1.bf16.msra.mxu0 0
      %7822 = vmatprep.subr.bf16.mxu0 0
      %7823 = vmatpush1.bf16.msra.mxu0 0
      %7824 = vmatprep.subr.bf16.mxu0 0
      %7825 = vmatpush1.bf16.msra.mxu0 0
      %7826 = vmatprep.subr.bf16.mxu0 0
      %7827 = vmatpush1.bf16.msra.mxu0 0
      %7828 = vmatprep.subr.bf16.mxu0 0
      %7829 = vmatpush1.bf16.msra.mxu0 0
      %7830 = vmatprep.subr.bf16.mxu0 0
      %7831 = vmatpush1.bf16.msra.mxu0 0
      %7832 = vmatprep.subr.bf16.mxu0 0
      %7833 = vmatpush1.bf16.msra.mxu0 0
      %7834 = vmatprep.subr.bf16.mxu0 0
      %7835 = vmatpush1.bf16.msra.mxu0 0
      %7836 = vmatprep.subr.bf16.mxu0 0
      %7837 = vmatpush1.bf16.msra.mxu0 0
      %7838 = vmatprep.subr.bf16.mxu0 0
      %7839 = vmatpush1.bf16.msra.mxu0 0
      %7840 = vmatprep.mubr.bf16.mxu0 0
      %7841 = vmatmul.mubr.bf16.gmra.mrb[0].mxu0 %v7806
      %v7842 = vpop.f32.mrb[0].mxu0
      %v7843 = vadd.f32 0.0, %v7842
      %v7844 = vpop.f32.mrb[0].mxu0
      %v7845 = vpop.f32.mrb[0].mxu0
      %v7846 = vpop.f32.mrb[0].mxu0
      %7847 = vdwg.mxu0
      %v7856 = vunpack.c.l.b16 %v7793
      %v7857 = vunpack.c.l.b16 %v7794
      %v7858 = vunpack.c.l.b16 %v7795
      %v7859 = vunpack.c.l.b16 %v7796
      %v7860 = vunpack.c.l.b16 %v7797
      %v7861 = vunpack.c.l.b16 %v7798
      %v7862 = vunpack.c.l.b16 %v7799
      %v7863 = vunpack.c.l.b16 %v7800
      %v7864 = vsel %vm1634, %v7857, %v7856
      %v7865 = vsel %vm1636, %v7858, %v7864
      %v7866 = vsel %vm1638, %v7859, %v7865
      %v7867 = vsel %vm1640, %v7860, %v7866
      %v7868 = vsel %vm1642, %v7861, %v7867
      %v7869 = vsel %vm1644, %v7862, %v7868
      %v7870 = vsel %vm1646, %v7863, %v7869
      %v7871 = vpack.c.b16 %v7870, %v7870
      %v7873 = vsel %vm2044, %v7871, 0
      %7875 = vmatprep.subr.bf16.mxu0 0
      %7876 = vmatpush1.bf16.msra.mxu0 %v2560
      %7877 = vmatprep.subr.bf16.mxu0 0
      %7878 = vmatpush1.bf16.msra.mxu0 %v2561
      %7879 = vmatprep.subr.bf16.mxu0 0
      %7880 = vmatpush1.bf16.msra.mxu0 0
      %7881 = vmatprep.subr.bf16.mxu0 0
      %7882 = vmatpush1.bf16.msra.mxu0 0
      %7883 = vmatprep.subr.bf16.mxu0 0
      %7884 = vmatpush1.bf16.msra.mxu0 0
      %7885 = vmatprep.subr.bf16.mxu0 0
      %7886 = vmatpush1.bf16.msra.mxu0 0
      %7887 = vmatprep.subr.bf16.mxu0 0
      %7888 = vmatpush1.bf16.msra.mxu0 0
      %7889 = vmatprep.subr.bf16.mxu0 0
      %7890 = vmatpush1.bf16.msra.mxu0 0
      %7891 = vmatprep.subr.bf16.mxu0 0
      %7892 = vmatpush1.bf16.msra.mxu0 0
      %7893 = vmatprep.subr.bf16.mxu0 0
      %7894 = vmatpush1.bf16.msra.mxu0 0
      %7895 = vmatprep.subr.bf16.mxu0 0
      %7896 = vmatpush1.bf16.msra.mxu0 0
      %7897 = vmatprep.subr.bf16.mxu0 0
      %7898 = vmatpush1.bf16.msra.mxu0 0
      %7899 = vmatprep.subr.bf16.mxu0 0
      %7900 = vmatpush1.bf16.msra.mxu0 0
      %7901 = vmatprep.subr.bf16.mxu0 0
      %7902 = vmatpush1.bf16.msra.mxu0 0
      %7903 = vmatprep.subr.bf16.mxu0 0
      %7904 = vmatpush1.bf16.msra.mxu0 0
      %7905 = vmatprep.subr.bf16.mxu0 0
      %7906 = vmatpush1.bf16.msra.mxu0 0
      %7907 = vmatprep.mubr.bf16.mxu0 0
      %7908 = vmatmul.mubr.bf16.gmra.mrb[0].mxu0 %v7873
      %v7909 = vpop.f32.mrb[0].mxu0
      %v7910 = vadd.f32 %v7843, %v7909
      %v7911 = vpop.f32.mrb[0].mxu0
      %v7912 = vpop.f32.mrb[0].mxu0
      %v7913 = vpop.f32.mrb[0].mxu0
      %7914 = vdwg.mxu0
      %v7915 = vadd.f32 %v7910, %v2611
      %v7916 = vmul.f32 %v6266, %v2618
      %v7917 = vsel %vm872, %v7916, 0.0
      %7918 = vadd.xlane.f32.xlu0 %v7917
      %v7919 = vpop.xlane.xlu0 %7918
      %v7920 = vadd.f32 %v7915, %v7919
      %v7921 = vxor.u32 %v7920, 2147483648
      %v7922 = vmul.f32 %v7921, 1.442695
      %v7923 = vpow.pop %v7922
      %v7924 = vadd.f32 %v7923, 1.0
      %v7925 = vrcp.pop %v7924
      %v7926 = vmul.f32 1.0, %v7925
      %v7927 = vpack.c.bf16 %v7915, %v7915
      %v7929 = vsel %vm2044, %v7927, 0
      %7931 = vmatprep.subr.bf16.mxu0 0
      %7932 = vmatpush1.bf16.msra.mxu0 %v2646
      %7933 = vmatprep.subr.bf16.mxu0 0
      %7934 = vmatpush1.bf16.msra.mxu0 %v2647
      %7935 = vmatprep.subr.bf16.mxu0 0
      %7936 = vmatpush1.bf16.msra.mxu0 0
      %7937 = vmatprep.subr.bf16.mxu0 0
      %7938 = vmatpush1.bf16.msra.mxu0 0
      %7939 = vmatprep.subr.bf16.mxu0 0
      %7940 = vmatpush1.bf16.msra.mxu0 0
      %7941 = vmatprep.subr.bf16.mxu0 0
      %7942 = vmatpush1.bf16.msra.mxu0 0
      %7943 = vmatprep.subr.bf16.mxu0 0
      %7944 = vmatpush1.bf16.msra.mxu0 0
      %7945 = vmatprep.subr.bf16.mxu0 0
      %7946 = vmatpush1.bf16.msra.mxu0 0
      %7947 = vmatprep.subr.bf16.mxu0 0
      %7948 = vmatpush1.bf16.msra.mxu0 0
      %7949 = vmatprep.subr.bf16.mxu0 0
      %7950 = vmatpush1.bf16.msra.mxu0 0
      %7951 = vmatprep.subr.bf16.mxu0 0
      %7952 = vmatpush1.bf16.msra.mxu0 0
      %7953 = vmatprep.subr.bf16.mxu0 0
      %7954 = vmatpush1.bf16.msra.mxu0 0
      %7955 = vmatprep.subr.bf16.mxu0 0
      %7956 = vmatpush1.bf16.msra.mxu0 0
      %7957 = vmatprep.subr.bf16.mxu0 0
      %7958 = vmatpush1.bf16.msra.mxu0 0
      %7959 = vmatprep.subr.bf16.mxu0 0
      %7960 = vmatpush1.bf16.msra.mxu0 0
      %7961 = vmatprep.subr.bf16.mxu0 0
      %7962 = vmatpush1.bf16.msra.mxu0 0
      %7963 = vmatprep.mubr.bf16.mxu0 0
      %7964 = vmatmul.mubr.bf16.gmra.mrb[0].mxu0 %v7929
      %v7965 = vpop.f32.mrb[0].mxu0
      %v7966 = vadd.f32 %v2636, %v7965
      %v7967 = vpop.f32.mrb[0].mxu0
      %v7968 = vpop.f32.mrb[0].mxu0
      %v7969 = vpop.f32.mrb[0].mxu0
      %7970 = vdwg.mxu0
      %v7971 = vsel %vm2044, %v7966, -inf
      %7972 = vmax.xlane.f32.xlu0 %v7971
      %v7973 = vpop.xlane.xlu0 %7972
      %v7974 = vsub.f32 %v7966, %v7973
      %v7975 = vmul.f32 %v7974, 1.442695
      %v7976 = vpow.pop %v7975
      %v7977 = vsel %vm2044, %v7976, 0.0
      %7978 = vadd.xlane.f32.xlu0 %v7977
      %v7979 = vpop.xlane.xlu0 %7978
      %7980 = vset.pattern.permute.xlu0 0
      %7981 = vperm.xlu0 %7980, %v6268
      %v7982 = vpop.permute.xlu0 %7981
      %vm7983 = vcmp.eq.s32.totalorder %v788, %v7982
      %v7984 = vsel %vm7983, %v7976, 0.0
      %v7985 = vsel %vm2044, %v7984, 0.0
      %7986 = vadd.xlane.f32.xlu0 %v7985
      %v7987 = vpop.xlane.xlu0 %7986
      %v7988 = vmul.f32 %v7926, %v7987
      %v7989 = vrcp.pop %v7979
      %v7990 = vmul.f32 %v7988, %v7989
      %vm7991 = vcmp.eq.s32.totalorder %v789, %v7982
      %v7992 = vsel %vm7991, %v765, 0.0
      %v7993 = vsel %vm2715, %v7992, 0.0
      %7994 = vadd.xlane.f32.xlu0 %v7993
      %v7995 = vpop.xlane.xlu0 %7994
      %vm7996 = vcmp.eq.s32.totalorder %v764, %v7982
      %v7997 = vsel %vm7996, %v7790, 0.0
      %v7998 = vsel %vm1649, %v7997, 0.0
      %7999 = vadd.xlane.f32.xlu0 %v7998
      %v8000 = vpop.xlane.xlu0 %7999
      %v8001 = vsub.f32 1.0, %v7926
      %v8002 = vmul.f32 %v8000, %v8001
      %v8003 = vadd.f32 %v7990, %v7995
      %v8004 = vadd.f32 %v8003, %v8002
      %vm8005 = vcmp.ne.s32.totalorder %v6268, 0
      %v8006 = vsel %vm8005, 1, 0
      %v8007 = vcvt.s32.f32 %v8006
      %v8008 = vadd.f32 %v8004, 1e-30
      %v8009 = vlog2.pop %v8008
      %v8010 = vmul.f32 %v8009, 0.6931472
      %8012 = vrot.lane.b32.xlu0 %v8007, 32
      %v8013 = vpop.permute.xlu0 %8012
      %v8015 = vmul.f32 %v8010, %v8013
      %8017 = vrot.lane.b32.xlu0 %v8015, 96
      %v8018 = vpop.permute.xlu0 %8017
      %v8020 = vadd.f32 %v6261, %v8018
      %v8021 = vmul.f32 %v7711, %v8007
      %v8022 = vadd.f32 %v6263, %v8021
      %v8023 = vadd.f32 %v6264, %v8007
      %8025 = vst.msk [vmem:[#allocation2] sm:$0xff] %vm798, %v6439
      %8027 = vrot.lane.b32.xlu0 %v6430, 112
      %v8028 = vpop.permute.xlu0 %8027
      %8030 = vst.msk [vmem:[#allocation3] sm:$0xff] %vm798, %v8028
      %8031 = vst.msk [vmem:[#allocation4] sm:$0xff] %vm1649, %v7792
      %vm8032 = vcmask 7168
      %8033 = vst.msk [vmem:[#allocation5] sm:$0xff] %vm8032, %v8020
      %8034 = vst.msk [vmem:[#allocation6] sm:$0xff] %vm8032, %v8022
      %8035 = vst.msk [vmem:[#allocation7] sm:$0xff] %vm8032, %v8023
      %p8036 = scmp.eq.s32.totalorder %s35, 1
      // Predicated region
      $region109: #{tpu_custom_call.1} parent=103 // pred_check
        %p8037 = pneg %p8036
      $region110: #{tpu_custom_call.1} parent=103 // pred_check_branch
        %8039 = sbr.rel (%p8037) target = $region112
      $region111: #{tpu_custom_call.1} parent=103 // pred_region
        %v8040 = vld [vmem:[#allocation7] sm:$0xff]
        %v8041 = vmax.f32 %v8040, 1.0
        %v8042 = vld [vmem:[#allocation5] sm:$0xff]
        %v8043 = vsub.f32 0.0, %v8042
        %v8044 = vrcp.pop %v8041
        %v8045 = vmul.f32 %v8043, %v8044
        %8046 = vst.msk [vmem:[%s22] sm:$0xff] %vm8032, %v8045
        %v8047 = vld [vmem:[#allocation6] sm:$0xff]
        %v8048 = vmul.f32 %v8047, %v8044
        %8049 = vst.msk [vmem:[%s23] sm:$0xff] %vm8032, %v8048
        %v8050 = vadd.f32 %v8045, %v8048
        %8051 = vst.msk [vmem:[%s21] sm:$0xff] %vm8032, %v8050
      $region112: #{tpu_custom_call.1} parent=103 // pred_fallthru
        _
      // Predicated region
      $region113: #{tpu_custom_call.1} parent=103 // pred_check
        %p8052 = pneg %p499
      $region114: #{tpu_custom_call.1} parent=103 // pred_check_branch
        %8054 = sbr.rel (%p8052) target = $region116
      $region115: #{tpu_custom_call.1} parent=103 // pred_region
        _
      $region116: #{tpu_custom_call.1} parent=103 // pred_fallthru
        _
      // Predicated region
      $region117: #{tpu_custom_call.1} parent=103 // pred_check
        %p8055 = pneg %p520
      $region118: #{tpu_custom_call.1} parent=103 // pred_check_branch
        %8057 = sbr.rel (%p8055) target = $region120
      $region119: #{tpu_custom_call.1} parent=103 // pred_region
        _
      $region120: #{tpu_custom_call.1} parent=103 // pred_fallthru
        _
      // Predicated region
      $region121: #{tpu_custom_call.1} parent=103 // pred_check
        %p8058 = pneg %p541
      $region122: #{tpu_custom_call.1} parent=103 // pred_check_branch
        %8060 = sbr.rel (%p8058) target = $region124
      $region123: #{tpu_custom_call.1} parent=103 // pred_region
        _
      $region124: #{tpu_custom_call.1} parent=103 // pred_fallthru
        _
      // Predicated region
      $region125: #{tpu_custom_call.1} parent=103 // pred_check
        %p8061 = pneg %p499
      $region126: #{tpu_custom_call.1} parent=103 // pred_check_branch
        %8063 = sbr.rel (%p8061) target = $region128
      $region127: #{tpu_custom_call.1} parent=103 // pred_region
        _
      $region128: #{tpu_custom_call.1} parent=103 // pred_fallthru
        _
      // Predicated region
      $region129: #{tpu_custom_call.1} parent=103 // pred_check
        %p8064 = pneg %p520
      $region130: #{tpu_custom_call.1} parent=103 // pred_check_branch
        %8066 = sbr.rel (%p8064) target = $region132
      $region131: #{tpu_custom_call.1} parent=103 // pred_region
        _
      $region132: #{tpu_custom_call.1} parent=103 // pred_fallthru
        _
      // Predicated region
      $region133: #{tpu_custom_call.1} parent=103 // pred_check
        %p8067 = pneg %p541
      $region134: #{tpu_custom_call.1} parent=103 // pred_check_branch
        %8069 = sbr.rel (%p8067) target = $region136
      $region135: #{tpu_custom_call.1} parent=103 // pred_region
        _
      $region136: #{tpu_custom_call.1} parent=103 // pred_fallthru
        _
    $region104: #{tpu_custom_call.1} parent=5 // pred_fallthru
      _
    %p8070 = scmp.le.s32.totalorder 2, %s30
    // Predicated region
    $region137: #{tpu_custom_call.1} parent=5 // pred_check
      %p8071 = pneg %p8070
    $region138: #{tpu_custom_call.1} parent=5 // pred_check_branch
      %8073 = sbr.rel (%p8071) target = $region140
    $region139: #{tpu_custom_call.1} parent=5 // pred_region
      %s8074 = ssub.s32 %s30, 2
    $region140: #{tpu_custom_call.1} parent=5 // pred_fallthru
      _
  $region6: #{tpu_custom_call.1} parent=0 // loop_footer
    %s34 = sadd.s32 1, %s30
  $region7: #{tpu_custom_call.1} parent=0 // loop_footer_branch
    %29 = sbr.rel target = $region3
  $region8: #{tpu_custom_call.1} parent=0 // loop_exit
    _

</llo_original>
